<compile_context>
chip_gen: v5e
topology: v5e:2x2
jax: 0.10.0
libtpu: 0.0.40
codegen_flags: <defaults>
</compile_context>

<pallas_src>
import numpy as np
import jax
import jax.numpy as jnp
from jax import lax
from jax.experimental import pallas as pl
from jax.experimental.pallas import tpu as pltpu

N, C, D, H, W = 2, 32, 4, 8, 8          # small shapes consistent with the module
G = 16                                   # GroupNorm num_groups
GS = C // G                              # channels per group
EPS = 1e-5                               # PyTorch GroupNorm default eps
WC = W * C                               # fused lane dimension = 256
DH = D * H
ROWS = N * DH                            # MXU M dimension = 64
INV_CNT = 1.0 / (DH * W * GS)            # 1 / (D*H*W*GS) = 1/512

assert GS == 2, "roll-based group reduction below assumes 2 channels per group"
assert W & (W - 1) == 0, "log-step w reduction assumes W is a power of two"


def basic_block_kernel(xpad_ref, xres_ref, w1_ref, g1_ref, b1_ref,
                       w2_ref, g2_ref, b2_ref, out_ref, hpad_ref):

    def conv3x3x3(xp, w_ref):
        # xp: (N, D+2, H+2, WC) bf16, D/H zero-padded.  w_ref: (9, WC, WC) bf16
        # block-Toeplitz weights (kw tap + W boundary folded in).
        acc = jnp.zeros((ROWS, WC), jnp.float32)
        for kh in range(3):
            # Hoisted kh shift: the sublane-unaligned slice happens once per kh
            # (3 per conv), not once per (kd, kh) tap.
            plane = xp[:, :, kh:kh + H, :]                    # (N, D+2, H, WC)
            for kd in range(3):
                win = plane[:, kd:kd + D, :, :].reshape(ROWS, WC)
                acc = acc + jnp.dot(win, w_ref[kd * 3 + kh],
                                    preferred_element_type=jnp.float32)
        return acc                                            # (ROWS, WC) f32

    def group_reduce_bcast(m):
        # m: (N, WC) f32, lanes fused as (w, c).  Returns per-group lane sums
        # broadcast back to every member lane, using only XLU rolls + a parity
        # select (no MXU, no gmat).
        s = m
        for sh in (C, 2 * C, 4 * C):                          # sum over the W copies
            s = s + pltpu.roll(s, shift=sh, axis=1)
        t = s + pltpu.roll(s, shift=WC - 1, axis=1)           # even lane: group sum
        lane = lax.broadcasted_iota(jnp.int32, m.shape, 1)
        return jnp.where(lane % 2 == 0, t, pltpu.roll(t, shift=1, axis=1))

    def group_norm(h, g_ref, b_ref):
        # h: (ROWS, WC) f32.  Centered two-pass variance (matches torch GroupNorm,
        # avoids E[x^2]-mean^2 cancellation).
        h3 = h.reshape(N, DH, WC)
        mean = group_reduce_bcast(jnp.sum(h3, axis=1)) * INV_CNT          # (N, WC)
        diff = h3 - mean[:, None, :]
        var = group_reduce_bcast(jnp.sum(diff * diff, axis=1)) * INV_CNT  # biased var
        inv = lax.rsqrt(var + EPS)
        out = (diff * inv[:, None, :]
               * g_ref[...].reshape(1, 1, WC) + b_ref[...].reshape(1, 1, WC))
        return out.reshape(ROWS, WC)

    # ---- conv1 -> bn1 (GroupNorm) -> relu ----
    h1 = conv3x3x3(xpad_ref[...], w1_ref)
    h1 = jnp.maximum(group_norm(h1, g1_ref, b1_ref), 0.0)

    # ---- pad the intermediate into VMEM scratch: one full zero, then interior ----
    hpad_ref[...] = jnp.zeros((N, D + 2, H + 2, WC), jnp.bfloat16)
    hpad_ref[:, 1:D + 1, 1:H + 1, :] = h1.astype(jnp.bfloat16).reshape(N, D, H, WC)

    # ---- conv2 -> bn2 (GroupNorm) -> +residual -> relu ----
    h2 = conv3x3x3(hpad_ref[...], w2_ref)
    h2 = group_norm(h2, g2_ref, b2_ref)
    out = jnp.maximum(h2.reshape(N, DH, WC) + xres_ref[...], 0.0)
    out_ref[...] = out.astype(out_ref.dtype)


def _toeplitz_taps(w):
    # torch conv weight (Cout, Cin, 3, 3, 3) -> (9, WC, WC) block-Toeplitz bf16.
    # T[kd*3+kh, wi*C + cin, wo*C + cout] = w[cout, cin, kd, kh, wi - wo + 1]
    # (taps falling outside [0, W-1] are omitted -> implicit zero padding in W).
    # Pure NumPy: runs once at parameter-load time, not in the per-call hot path.
    w = np.asarray(w, np.float32)
    wt = np.transpose(w, (2, 3, 4, 1, 0))                     # (kd, kh, kw, Cin, Cout)
    T = np.zeros((3, 3, W, C, W, C), np.float32)
    for wo in range(W):
        for kw in range(3):
            wi = wo + kw - 1
            if 0 <= wi < W:
                T[:, :, wi, :, wo, :] = wt[:, :, kw]
    return jnp.asarray(T.reshape(9, WC, WC), jnp.bfloat16)


def prepare_params(w1, g1, b1, w2, g2, b2):
    """One-time weight preparation (parameter-load time, not per forward call)."""
    def lane_param(p):
        return jnp.asarray(np.tile(np.asarray(p, np.float32), (W,)).reshape(1, WC))
    return (_toeplitz_taps(w1), lane_param(g1), lane_param(b1),
            _toeplitz_taps(w2), lane_param(g2), lane_param(b2))


@jax.jit
def basic_block_pallas(x_ncdhw, w1t, g1r, b1r, w2t, g2r, b2r):
    # NCDHW -> lane-dense (N, D, H, W*C); pad only D/H (W handled by Toeplitz weight)
    x = jnp.transpose(x_ncdhw, (0, 2, 3, 4, 1)).astype(jnp.float32)     # NDHWC
    x = x.reshape(N, D, H, WC)
    x_res = x.reshape(N, DH, WC)                                        # residual, f32
    xpad = jnp.pad(x, ((0, 0), (1, 1), (1, 1), (0, 0))).astype(jnp.bfloat16)

    grid_spec = pltpu.PrefetchScalarGridSpec(
        num_scalar_prefetch=0,
        grid=(1,),                             # batch folded into the MXU M dimension
        in_specs=[
            pl.BlockSpec((N, D + 2, H + 2, WC), lambda i: (0, 0, 0, 0)),  # xpad
            pl.BlockSpec((N, DH, WC), lambda i: (0, 0, 0)),               # residual
            pl.BlockSpec((9, WC, WC), lambda i: (0, 0, 0)),               # w1 Toeplitz
            pl.BlockSpec((1, WC), lambda i: (0, 0)),                      # g1
            pl.BlockSpec((1, WC), lambda i: (0, 0)),                      # b1
            pl.BlockSpec((9, WC, WC), lambda i: (0, 0, 0)),               # w2 Toeplitz
            pl.BlockSpec((1, WC), lambda i: (0, 0)),                      # g2
            pl.BlockSpec((1, WC), lambda i: (0, 0)),                      # b2
        ],
        out_specs=pl.BlockSpec((N, DH, WC), lambda i: (0, 0, 0)),
        scratch_shapes=[pltpu.VMEM((N, D + 2, H + 2, WC), jnp.bfloat16)],
    )
    out = pl.pallas_call(
        basic_block_kernel,
        out_shape=jax.ShapeDtypeStruct((N, DH, WC), jnp.float32),
        grid_spec=grid_spec,
        compiler_params=pltpu.CompilerParams(
            dimension_semantics=("arbitrary",),
            vmem_limit_bytes=32 * 1024 * 1024,
        ),
    )(xpad, x_res, w1t, g1r, b1r, w2t, g2r, b2r)
    return jnp.transpose(out.reshape(N, D, H, W, C), (0, 4, 1, 2, 3))   # back to NCDHW


def basic_block_ref(x, w1, g1, b1, w2, g2, b2):
    # pure-JAX reference (NCDHW), mirrors the PyTorch forward
    dn = ('NCDHW', 'OIDHW', 'NCDHW')

    def conv(v, w):
        return lax.conv_general_dilated(v, w, (1, 1, 1), [(1, 1)] * 3,
                                        dimension_numbers=dn)

    def gn(v, g, b):
        n, c, d, h, wd = v.shape
        vg = v.reshape(n, G, c // G, d, h, wd)
        mean = vg.mean(axis=(2, 3, 4, 5), keepdims=True)
        var = vg.var(axis=(2, 3, 4, 5), keepdims=True)
        vn = ((vg - mean) / jnp.sqrt(var + EPS)).reshape(n, c, d, h, wd)
        return vn * g.reshape(1, c, 1, 1, 1) + b.reshape(1, c, 1, 1, 1)

    out = jnp.maximum(gn(conv(x, w1), g1, b1), 0.0)
    out = gn(conv(out, w2), g2, b2)
    return jnp.maximum(out + x, 0.0)


if __name__ == "__main__":
    key = jax.random.PRNGKey(0)
    kx, k1, k2, kg1, kb1, kg2, kb2 = jax.random.split(key, 7)
    # deterministic synthetic parameters (shapes from the module's __init__)
    x = jax.random.normal(kx, (N, C, D, H, W), jnp.float32)
    w1 = jax.random.normal(k1, (C, C, 3, 3, 3), jnp.float32) * 0.05
    w2 = jax.random.normal(k2, (C, C, 3, 3, 3), jnp.float32) * 0.05
    g1 = 1.0 + 0.1 * jax.random.normal(kg1, (C,), jnp.float32)
    b1 = 0.1 * jax.random.normal(kb1, (C,), jnp.float32)
    g2 = 1.0 + 0.1 * jax.random.normal(kg2, (C,), jnp.float32)
    b2 = 0.1 * jax.random.normal(kb2, (C,), jnp.float32)

    params = prepare_params(w1, g1, b1, w2, g2, b2)   # one-time weight prep
    out = jax.block_until_ready(basic_block_pallas(x, *params))
    ref = jax.block_until_ready(basic_block_ref(x, w1, g1, b1, w2, g2, b2))
    np.testing.assert_allclose(np.asarray(out), np.asarray(ref), rtol=5e-2, atol=5e-2)
    print("KERNEL_OK")
</pallas_src>

<mosaic_0001>
module attributes {stable_mosaic.version = 11 : i64} {
  func.func @basic_block_kernel(%arg0: i32, %arg1: memref<2x6x10x256xbf16, #tpu.memory_space<vmem>>, %arg2: memref<2x32x256xf32, #tpu.memory_space<vmem>>, %arg3: memref<9x256x256xbf16, #tpu.memory_space<vmem>>, %arg4: memref<1x256xf32, #tpu.memory_space<vmem>>, %arg5: memref<1x256xf32, #tpu.memory_space<vmem>>, %arg6: memref<9x256x256xbf16, #tpu.memory_space<vmem>>, %arg7: memref<1x256xf32, #tpu.memory_space<vmem>>, %arg8: memref<1x256xf32, #tpu.memory_space<vmem>>, %arg9: memref<2x32x256xf32, #tpu.memory_space<vmem>>, %arg10: memref<2x6x10x256xbf16, #tpu.memory_space<vmem>>) attributes {dimension_semantics = [#tpu.dimension_semantics<arbitrary>], iteration_bounds = array<i64: 1>, scalar_prefetch = 0 : i64, scratch_operands = 1 : i64, tpu.core_type = #tpu.core_type<tc>, window_params = [{pipeline_mode = #tpu.pipeline_mode<synchronous>, transform_indices = @transform_0, window_bounds = array<i64: 2, 6, 10, 256>}, {pipeline_mode = #tpu.pipeline_mode<synchronous>, transform_indices = @transform_1, window_bounds = array<i64: 2, 32, 256>}, {pipeline_mode = #tpu.pipeline_mode<synchronous>, transform_indices = @transform_2, window_bounds = array<i64: 9, 256, 256>}, {pipeline_mode = #tpu.pipeline_mode<synchronous>, transform_indices = @transform_3, window_bounds = array<i64: 1, 256>}, {pipeline_mode = #tpu.pipeline_mode<synchronous>, transform_indices = @transform_4, window_bounds = array<i64: 1, 256>}, {pipeline_mode = #tpu.pipeline_mode<synchronous>, transform_indices = @transform_5, window_bounds = array<i64: 9, 256, 256>}, {pipeline_mode = #tpu.pipeline_mode<synchronous>, transform_indices = @transform_6, window_bounds = array<i64: 1, 256>}, {pipeline_mode = #tpu.pipeline_mode<synchronous>, transform_indices = @transform_7, window_bounds = array<i64: 1, 256>}, {pipeline_mode = #tpu.pipeline_mode<synchronous>, transform_indices = @transform_8, window_bounds = array<i64: 2, 32, 256>}]} {
    %c0 = arith.constant 0 : index
    %c0_0 = arith.constant 0 : index
    %c0_1 = arith.constant 0 : index
    %c0_2 = arith.constant 0 : index
    %0 = vector.load %arg1[%c0, %c0_0, %c0_1, %c0_2] : memref<2x6x10x256xbf16, #tpu.memory_space<vmem>>, vector<2x6x10x256xbf16>
    %cst = arith.constant 0.000000e+00 : f32
    %1 = vector.broadcast %cst : f32 to vector<64x256xf32>
    %2 = vector.extract_strided_slice %0 {offsets = [0, 0, 0, 0], sizes = [2, 6, 8, 256], strides = [1, 1, 1, 1]} : vector<2x6x10x256xbf16> to vector<2x6x8x256xbf16>
    %3 = vector.extract_strided_slice %2 {offsets = [0, 0, 0, 0], sizes = [2, 4, 8, 256], strides = [1, 1, 1, 1]} : vector<2x6x8x256xbf16> to vector<2x4x8x256xbf16>
    %4 = vector.shape_cast %3 : vector<2x4x8x256xbf16> to vector<64x256xbf16>
    %c0_3 = arith.constant 0 : index
    %c0_4 = arith.constant 0 : index
    %c0_5 = arith.constant 0 : index
    %5 = vector.load %arg3[%c0_3, %c0_4, %c0_5] : memref<9x256x256xbf16, #tpu.memory_space<vmem>>, vector<1x256x256xbf16>
    %6 = vector.shape_cast %5 : vector<1x256x256xbf16> to vector<256x256xbf16>
    %cst_6 = arith.constant dense<0.000000e+00> : vector<64x256xf32>
    %7 = tpu.matmul %4, %6, %cst_6 {dimension_numbers = #tpu.dot_dimension_numbers<[1], [0], [0], [1], [0, 0, 1, 1], [], []>} : vector<64x256xbf16>, vector<256x256xbf16>, vector<64x256xf32> -> vector<64x256xf32>
    %8 = arith.addf %1, %7 : vector<64x256xf32>
    %9 = vector.extract_strided_slice %2 {offsets = [0, 1, 0, 0], sizes = [2, 4, 8, 256], strides = [1, 1, 1, 1]} : vector<2x6x8x256xbf16> to vector<2x4x8x256xbf16>
    %10 = vector.shape_cast %9 : vector<2x4x8x256xbf16> to vector<64x256xbf16>
    %c3 = arith.constant 3 : index
    %c0_7 = arith.constant 0 : index
    %c0_8 = arith.constant 0 : index
    %11 = vector.load %arg3[%c3, %c0_7, %c0_8] : memref<9x256x256xbf16, #tpu.memory_space<vmem>>, vector<1x256x256xbf16>
    %12 = vector.shape_cast %11 : vector<1x256x256xbf16> to vector<256x256xbf16>
    %cst_9 = arith.constant dense<0.000000e+00> : vector<64x256xf32>
    %13 = tpu.matmul %10, %12, %cst_9 {dimension_numbers = #tpu.dot_dimension_numbers<[1], [0], [0], [1], [0, 0, 1, 1], [], []>} : vector<64x256xbf16>, vector<256x256xbf16>, vector<64x256xf32> -> vector<64x256xf32>
    %14 = arith.addf %8, %13 : vector<64x256xf32>
    %15 = vector.extract_strided_slice %2 {offsets = [0, 2, 0, 0], sizes = [2, 4, 8, 256], strides = [1, 1, 1, 1]} : vector<2x6x8x256xbf16> to vector<2x4x8x256xbf16>
    %16 = vector.shape_cast %15 : vector<2x4x8x256xbf16> to vector<64x256xbf16>
    %c6 = arith.constant 6 : index
    %c0_10 = arith.constant 0 : index
    %c0_11 = arith.constant 0 : index
    %17 = vector.load %arg3[%c6, %c0_10, %c0_11] : memref<9x256x256xbf16, #tpu.memory_space<vmem>>, vector<1x256x256xbf16>
    %18 = vector.shape_cast %17 : vector<1x256x256xbf16> to vector<256x256xbf16>
    %cst_12 = arith.constant dense<0.000000e+00> : vector<64x256xf32>
    %19 = tpu.matmul %16, %18, %cst_12 {dimension_numbers = #tpu.dot_dimension_numbers<[1], [0], [0], [1], [0, 0, 1, 1], [], []>} : vector<64x256xbf16>, vector<256x256xbf16>, vector<64x256xf32> -> vector<64x256xf32>
    %20 = arith.addf %14, %19 : vector<64x256xf32>
    %21 = vector.extract_strided_slice %0 {offsets = [0, 0, 1, 0], sizes = [2, 6, 8, 256], strides = [1, 1, 1, 1]} : vector<2x6x10x256xbf16> to vector<2x6x8x256xbf16>
    %22 = vector.extract_strided_slice %21 {offsets = [0, 0, 0, 0], sizes = [2, 4, 8, 256], strides = [1, 1, 1, 1]} : vector<2x6x8x256xbf16> to vector<2x4x8x256xbf16>
    %23 = vector.shape_cast %22 : vector<2x4x8x256xbf16> to vector<64x256xbf16>
    %c1 = arith.constant 1 : index
    %c0_13 = arith.constant 0 : index
    %c0_14 = arith.constant 0 : index
    %24 = vector.load %arg3[%c1, %c0_13, %c0_14] : memref<9x256x256xbf16, #tpu.memory_space<vmem>>, vector<1x256x256xbf16>
    %25 = vector.shape_cast %24 : vector<1x256x256xbf16> to vector<256x256xbf16>
    %cst_15 = arith.constant dense<0.000000e+00> : vector<64x256xf32>
    %26 = tpu.matmul %23, %25, %cst_15 {dimension_numbers = #tpu.dot_dimension_numbers<[1], [0], [0], [1], [0, 0, 1, 1], [], []>} : vector<64x256xbf16>, vector<256x256xbf16>, vector<64x256xf32> -> vector<64x256xf32>
    %27 = arith.addf %20, %26 : vector<64x256xf32>
    %28 = vector.extract_strided_slice %21 {offsets = [0, 1, 0, 0], sizes = [2, 4, 8, 256], strides = [1, 1, 1, 1]} : vector<2x6x8x256xbf16> to vector<2x4x8x256xbf16>
    %29 = vector.shape_cast %28 : vector<2x4x8x256xbf16> to vector<64x256xbf16>
    %c4 = arith.constant 4 : index
    %c0_16 = arith.constant 0 : index
    %c0_17 = arith.constant 0 : index
    %30 = vector.load %arg3[%c4, %c0_16, %c0_17] : memref<9x256x256xbf16, #tpu.memory_space<vmem>>, vector<1x256x256xbf16>
    %31 = vector.shape_cast %30 : vector<1x256x256xbf16> to vector<256x256xbf16>
    %cst_18 = arith.constant dense<0.000000e+00> : vector<64x256xf32>
    %32 = tpu.matmul %29, %31, %cst_18 {dimension_numbers = #tpu.dot_dimension_numbers<[1], [0], [0], [1], [0, 0, 1, 1], [], []>} : vector<64x256xbf16>, vector<256x256xbf16>, vector<64x256xf32> -> vector<64x256xf32>
    %33 = arith.addf %27, %32 : vector<64x256xf32>
    %34 = vector.extract_strided_slice %21 {offsets = [0, 2, 0, 0], sizes = [2, 4, 8, 256], strides = [1, 1, 1, 1]} : vector<2x6x8x256xbf16> to vector<2x4x8x256xbf16>
    %35 = vector.shape_cast %34 : vector<2x4x8x256xbf16> to vector<64x256xbf16>
    %c7 = arith.constant 7 : index
    %c0_19 = arith.constant 0 : index
    %c0_20 = arith.constant 0 : index
    %36 = vector.load %arg3[%c7, %c0_19, %c0_20] : memref<9x256x256xbf16, #tpu.memory_space<vmem>>, vector<1x256x256xbf16>
    %37 = vector.shape_cast %36 : vector<1x256x256xbf16> to vector<256x256xbf16>
    %cst_21 = arith.constant dense<0.000000e+00> : vector<64x256xf32>
    %38 = tpu.matmul %35, %37, %cst_21 {dimension_numbers = #tpu.dot_dimension_numbers<[1], [0], [0], [1], [0, 0, 1, 1], [], []>} : vector<64x256xbf16>, vector<256x256xbf16>, vector<64x256xf32> -> vector<64x256xf32>
    %39 = arith.addf %33, %38 : vector<64x256xf32>
    %40 = vector.extract_strided_slice %0 {offsets = [0, 0, 2, 0], sizes = [2, 6, 8, 256], strides = [1, 1, 1, 1]} : vector<2x6x10x256xbf16> to vector<2x6x8x256xbf16>
    %41 = vector.extract_strided_slice %40 {offsets = [0, 0, 0, 0], sizes = [2, 4, 8, 256], strides = [1, 1, 1, 1]} : vector<2x6x8x256xbf16> to vector<2x4x8x256xbf16>
    %42 = vector.shape_cast %41 : vector<2x4x8x256xbf16> to vector<64x256xbf16>
    %c2 = arith.constant 2 : index
    %c0_22 = arith.constant 0 : index
    %c0_23 = arith.constant 0 : index
    %43 = vector.load %arg3[%c2, %c0_22, %c0_23] : memref<9x256x256xbf16, #tpu.memory_space<vmem>>, vector<1x256x256xbf16>
    %44 = vector.shape_cast %43 : vector<1x256x256xbf16> to vector<256x256xbf16>
    %cst_24 = arith.constant dense<0.000000e+00> : vector<64x256xf32>
    %45 = tpu.matmul %42, %44, %cst_24 {dimension_numbers = #tpu.dot_dimension_numbers<[1], [0], [0], [1], [0, 0, 1, 1], [], []>} : vector<64x256xbf16>, vector<256x256xbf16>, vector<64x256xf32> -> vector<64x256xf32>
    %46 = arith.addf %39, %45 : vector<64x256xf32>
    %47 = vector.extract_strided_slice %40 {offsets = [0, 1, 0, 0], sizes = [2, 4, 8, 256], strides = [1, 1, 1, 1]} : vector<2x6x8x256xbf16> to vector<2x4x8x256xbf16>
    %48 = vector.shape_cast %47 : vector<2x4x8x256xbf16> to vector<64x256xbf16>
    %c5 = arith.constant 5 : index
    %c0_25 = arith.constant 0 : index
    %c0_26 = arith.constant 0 : index
    %49 = vector.load %arg3[%c5, %c0_25, %c0_26] : memref<9x256x256xbf16, #tpu.memory_space<vmem>>, vector<1x256x256xbf16>
    %50 = vector.shape_cast %49 : vector<1x256x256xbf16> to vector<256x256xbf16>
    %cst_27 = arith.constant dense<0.000000e+00> : vector<64x256xf32>
    %51 = tpu.matmul %48, %50, %cst_27 {dimension_numbers = #tpu.dot_dimension_numbers<[1], [0], [0], [1], [0, 0, 1, 1], [], []>} : vector<64x256xbf16>, vector<256x256xbf16>, vector<64x256xf32> -> vector<64x256xf32>
    %52 = arith.addf %46, %51 : vector<64x256xf32>
    %53 = vector.extract_strided_slice %40 {offsets = [0, 2, 0, 0], sizes = [2, 4, 8, 256], strides = [1, 1, 1, 1]} : vector<2x6x8x256xbf16> to vector<2x4x8x256xbf16>
    %54 = vector.shape_cast %53 : vector<2x4x8x256xbf16> to vector<64x256xbf16>
    %c8 = arith.constant 8 : index
    %c0_28 = arith.constant 0 : index
    %c0_29 = arith.constant 0 : index
    %55 = vector.load %arg3[%c8, %c0_28, %c0_29] : memref<9x256x256xbf16, #tpu.memory_space<vmem>>, vector<1x256x256xbf16>
    %56 = vector.shape_cast %55 : vector<1x256x256xbf16> to vector<256x256xbf16>
    %cst_30 = arith.constant dense<0.000000e+00> : vector<64x256xf32>
    %57 = tpu.matmul %54, %56, %cst_30 {dimension_numbers = #tpu.dot_dimension_numbers<[1], [0], [0], [1], [0, 0, 1, 1], [], []>} : vector<64x256xbf16>, vector<256x256xbf16>, vector<64x256xf32> -> vector<64x256xf32>
    %58 = arith.addf %52, %57 : vector<64x256xf32>
    %59 = vector.shape_cast %58 : vector<64x256xf32> to vector<2x32x256xf32>
    %cst_31 = arith.constant dense<0.000000e+00> : vector<2x256xf32>
    %60 = vector.multi_reduction <add>, %59, %cst_31 [1] : vector<2x32x256xf32> to vector<2x256xf32>
    %c32_i32 = arith.constant 32 : i32
    %61 = tpu.dynamic_rotate %60 by %c32_i32 dim 1 : vector<2x256xf32>, i32 -> vector<2x256xf32>
    %62 = arith.addf %60, %61 : vector<2x256xf32>
    %c64_i32 = arith.constant 64 : i32
    %63 = tpu.dynamic_rotate %62 by %c64_i32 dim 1 : vector<2x256xf32>, i32 -> vector<2x256xf32>
    %64 = arith.addf %62, %63 : vector<2x256xf32>
    %c128_i32 = arith.constant 128 : i32
    %65 = tpu.dynamic_rotate %64 by %c128_i32 dim 1 : vector<2x256xf32>, i32 -> vector<2x256xf32>
    %66 = arith.addf %64, %65 : vector<2x256xf32>
    %c255_i32 = arith.constant 255 : i32
    %67 = tpu.dynamic_rotate %66 by %c255_i32 dim 1 : vector<2x256xf32>, i32 -> vector<2x256xf32>
    %68 = arith.addf %66, %67 : vector<2x256xf32>
    %69 = tpu.iota {dimensions = array<i32: 1>} : vector<2x256xi32>
    %c2_i32 = arith.constant 2 : i32
    %c0_i32 = arith.constant 0 : i32
    %70 = arith.cmpi eq, %c2_i32, %c0_i32 : i32
    %c1_i32 = arith.constant 1 : i32
    %71 = arith.select %70, %c1_i32, %c2_i32 : i32
    %72 = vector.broadcast %71 : i32 to vector<2x256xi32>
    %73 = arith.remsi %69, %72 : vector<2x256xi32>
    %c0_i32_32 = arith.constant 0 : i32
    %74 = vector.broadcast %c0_i32_32 : i32 to vector<2x256xi32>
    %75 = arith.cmpi ne, %73, %74 : vector<2x256xi32>
    %c0_i32_33 = arith.constant 0 : i32
    %76 = vector.broadcast %c0_i32_33 : i32 to vector<2x256xi32>
    %77 = arith.cmpi slt, %73, %76 : vector<2x256xi32>
    %c0_i32_34 = arith.constant 0 : i32
    %78 = arith.cmpi slt, %71, %c0_i32_34 : i32
    %79 = vector.broadcast %78 : i1 to vector<2x256xi1>
    %80 = vector.broadcast %79 : vector<2x256xi1> to vector<2x256xi1>
    %81 = arith.xori %77, %80 : vector<2x256xi1>
    %82 = arith.andi %81, %75 : vector<2x256xi1>
    %83 = vector.broadcast %71 : i32 to vector<2x256xi32>
    %84 = arith.addi %73, %83 : vector<2x256xi32>
    %85 = arith.select %82, %84, %73 : vector<2x256xi1>, vector<2x256xi32>
    %c0_i32_35 = arith.constant 0 : i32
    %86 = vector.broadcast %c0_i32_35 : i32 to vector<2x256xi32>
    %87 = arith.cmpi eq, %85, %86 : vector<2x256xi32>
    %c1_i32_36 = arith.constant 1 : i32
    %88 = tpu.dynamic_rotate %68 by %c1_i32_36 dim 1 : vector<2x256xf32>, i32 -> vector<2x256xf32>
    %89 = arith.select %87, %68, %88 : vector<2x256xi1>, vector<2x256xf32>
    %cst_37 = arith.constant 0.001953125 : f32
    %90 = vector.broadcast %cst_37 : f32 to vector<2x256xf32>
    %91 = arith.mulf %89, %90 : vector<2x256xf32>
    %92 = vector.shape_cast %91 : vector<2x256xf32> to vector<2x1x256xf32>
    %93 = vector.broadcast %92 : vector<2x1x256xf32> to vector<2x32x256xf32>
    %94 = arith.subf %59, %93 : vector<2x32x256xf32>
    %95 = arith.mulf %94, %94 : vector<2x32x256xf32>
    %cst_38 = arith.constant dense<0.000000e+00> : vector<2x256xf32>
    %96 = vector.multi_reduction <add>, %95, %cst_38 [1] : vector<2x32x256xf32> to vector<2x256xf32>
    %c32_i32_39 = arith.constant 32 : i32
    %97 = tpu.dynamic_rotate %96 by %c32_i32_39 dim 1 : vector<2x256xf32>, i32 -> vector<2x256xf32>
    %98 = arith.addf %96, %97 : vector<2x256xf32>
    %c64_i32_40 = arith.constant 64 : i32
    %99 = tpu.dynamic_rotate %98 by %c64_i32_40 dim 1 : vector<2x256xf32>, i32 -> vector<2x256xf32>
    %100 = arith.addf %98, %99 : vector<2x256xf32>
    %c128_i32_41 = arith.constant 128 : i32
    %101 = tpu.dynamic_rotate %100 by %c128_i32_41 dim 1 : vector<2x256xf32>, i32 -> vector<2x256xf32>
    %102 = arith.addf %100, %101 : vector<2x256xf32>
    %c255_i32_42 = arith.constant 255 : i32
    %103 = tpu.dynamic_rotate %102 by %c255_i32_42 dim 1 : vector<2x256xf32>, i32 -> vector<2x256xf32>
    %104 = arith.addf %102, %103 : vector<2x256xf32>
    %105 = tpu.iota {dimensions = array<i32: 1>} : vector<2x256xi32>
    %c2_i32_43 = arith.constant 2 : i32
    %c0_i32_44 = arith.constant 0 : i32
    %106 = arith.cmpi eq, %c2_i32_43, %c0_i32_44 : i32
    %c1_i32_45 = arith.constant 1 : i32
    %107 = arith.select %106, %c1_i32_45, %c2_i32_43 : i32
    %108 = vector.broadcast %107 : i32 to vector<2x256xi32>
    %109 = arith.remsi %105, %108 : vector<2x256xi32>
    %c0_i32_46 = arith.constant 0 : i32
    %110 = vector.broadcast %c0_i32_46 : i32 to vector<2x256xi32>
    %111 = arith.cmpi ne, %109, %110 : vector<2x256xi32>
    %c0_i32_47 = arith.constant 0 : i32
    %112 = vector.broadcast %c0_i32_47 : i32 to vector<2x256xi32>
    %113 = arith.cmpi slt, %109, %112 : vector<2x256xi32>
    %c0_i32_48 = arith.constant 0 : i32
    %114 = arith.cmpi slt, %107, %c0_i32_48 : i32
    %115 = vector.broadcast %114 : i1 to vector<2x256xi1>
    %116 = vector.broadcast %115 : vector<2x256xi1> to vector<2x256xi1>
    %117 = arith.xori %113, %116 : vector<2x256xi1>
    %118 = arith.andi %117, %111 : vector<2x256xi1>
    %119 = vector.broadcast %107 : i32 to vector<2x256xi32>
    %120 = arith.addi %109, %119 : vector<2x256xi32>
    %121 = arith.select %118, %120, %109 : vector<2x256xi1>, vector<2x256xi32>
    %c0_i32_49 = arith.constant 0 : i32
    %122 = vector.broadcast %c0_i32_49 : i32 to vector<2x256xi32>
    %123 = arith.cmpi eq, %121, %122 : vector<2x256xi32>
    %c1_i32_50 = arith.constant 1 : i32
    %124 = tpu.dynamic_rotate %104 by %c1_i32_50 dim 1 : vector<2x256xf32>, i32 -> vector<2x256xf32>
    %125 = arith.select %123, %104, %124 : vector<2x256xi1>, vector<2x256xf32>
    %cst_51 = arith.constant 0.001953125 : f32
    %126 = vector.broadcast %cst_51 : f32 to vector<2x256xf32>
    %127 = arith.mulf %125, %126 : vector<2x256xf32>
    %cst_52 = arith.constant 9.99999974E-6 : f32
    %128 = vector.broadcast %cst_52 : f32 to vector<2x256xf32>
    %129 = arith.addf %127, %128 : vector<2x256xf32>
    %130 = math.rsqrt %129 : vector<2x256xf32>
    %131 = vector.shape_cast %130 : vector<2x256xf32> to vector<2x1x256xf32>
    %132 = vector.broadcast %131 : vector<2x1x256xf32> to vector<2x32x256xf32>
    %133 = arith.mulf %94, %132 : vector<2x32x256xf32>
    %c0_53 = arith.constant 0 : index
    %c0_54 = arith.constant 0 : index
    %134 = vector.load %arg4[%c0_53, %c0_54] : memref<1x256xf32, #tpu.memory_space<vmem>>, vector<1x256xf32>
    %135 = vector.shape_cast %134 : vector<1x256xf32> to vector<1x1x256xf32>
    %136 = vector.broadcast %135 : vector<1x1x256xf32> to vector<2x32x256xf32>
    %137 = arith.mulf %133, %136 : vector<2x32x256xf32>
    %c0_55 = arith.constant 0 : index
    %c0_56 = arith.constant 0 : index
    %138 = vector.load %arg5[%c0_55, %c0_56] : memref<1x256xf32, #tpu.memory_space<vmem>>, vector<1x256xf32>
    %139 = vector.shape_cast %138 : vector<1x256xf32> to vector<1x1x256xf32>
    %140 = vector.broadcast %139 : vector<1x1x256xf32> to vector<2x32x256xf32>
    %141 = arith.addf %137, %140 : vector<2x32x256xf32>
    %142 = vector.shape_cast %141 : vector<2x32x256xf32> to vector<64x256xf32>
    %cst_57 = arith.constant 0.000000e+00 : f32
    %143 = vector.broadcast %cst_57 : f32 to vector<64x256xf32>
    %144 = arith.maximumf %142, %143 : vector<64x256xf32>
    %cst_58 = arith.constant 0.000000e+00 : bf16
    %145 = vector.broadcast %cst_58 : bf16 to vector<2x6x10x256xbf16>
    %c0_59 = arith.constant 0 : index
    %c0_60 = arith.constant 0 : index
    %c0_61 = arith.constant 0 : index
    %c0_62 = arith.constant 0 : index
    %146 = vector.load %arg10[%c0_59, %c0_60, %c0_61, %c0_62] : memref<2x6x10x256xbf16, #tpu.memory_space<vmem>>, vector<2x6x10x256xbf16>
    tpu.vector_store %arg10[%c0_59, %c0_60, %c0_61, %c0_62], %145 {strides = array<i32>} : memref<2x6x10x256xbf16, #tpu.memory_space<vmem>>, vector<2x6x10x256xbf16>,
    %147 = arith.truncf %144 : vector<64x256xf32> to vector<64x256xbf16>
    %148 = vector.shape_cast %147 : vector<64x256xbf16> to vector<2x4x8x256xbf16>
    %c0_63 = arith.constant 0 : index
    %c1_64 = arith.constant 1 : index
    %c1_65 = arith.constant 1 : index
    %c0_66 = arith.constant 0 : index
    %149 = vector.load %arg10[%c0_63, %c1_64, %c1_65, %c0_66] : memref<2x6x10x256xbf16, #tpu.memory_space<vmem>>, vector<2x4x8x256xbf16>
    tpu.vector_store %arg10[%c0_63, %c1_64, %c1_65, %c0_66], %148 {strides = array<i32>} : memref<2x6x10x256xbf16, #tpu.memory_space<vmem>>, vector<2x4x8x256xbf16>,
    %c0_67 = arith.constant 0 : index
    %c0_68 = arith.constant 0 : index
    %c0_69 = arith.constant 0 : index
    %c0_70 = arith.constant 0 : index
    %150 = vector.load %arg10[%c0_67, %c0_68, %c0_69, %c0_70] : memref<2x6x10x256xbf16, #tpu.memory_space<vmem>>, vector<2x6x10x256xbf16>
    %cst_71 = arith.constant 0.000000e+00 : f32
    %151 = vector.broadcast %cst_71 : f32 to vector<64x256xf32>
    %152 = vector.extract_strided_slice %150 {offsets = [0, 0, 0, 0], sizes = [2, 6, 8, 256], strides = [1, 1, 1, 1]} : vector<2x6x10x256xbf16> to vector<2x6x8x256xbf16>
    %153 = vector.extract_strided_slice %152 {offsets = [0, 0, 0, 0], sizes = [2, 4, 8, 256], strides = [1, 1, 1, 1]} : vector<2x6x8x256xbf16> to vector<2x4x8x256xbf16>
    %154 = vector.shape_cast %153 : vector<2x4x8x256xbf16> to vector<64x256xbf16>
    %c0_72 = arith.constant 0 : index
    %c0_73 = arith.constant 0 : index
    %c0_74 = arith.constant 0 : index
    %155 = vector.load %arg6[%c0_72, %c0_73, %c0_74] : memref<9x256x256xbf16, #tpu.memory_space<vmem>>, vector<1x256x256xbf16>
    %156 = vector.shape_cast %155 : vector<1x256x256xbf16> to vector<256x256xbf16>
    %cst_75 = arith.constant dense<0.000000e+00> : vector<64x256xf32>
    %157 = tpu.matmul %154, %156, %cst_75 {dimension_numbers = #tpu.dot_dimension_numbers<[1], [0], [0], [1], [0, 0, 1, 1], [], []>} : vector<64x256xbf16>, vector<256x256xbf16>, vector<64x256xf32> -> vector<64x256xf32>
    %158 = arith.addf %151, %157 : vector<64x256xf32>
    %159 = vector.extract_strided_slice %152 {offsets = [0, 1, 0, 0], sizes = [2, 4, 8, 256], strides = [1, 1, 1, 1]} : vector<2x6x8x256xbf16> to vector<2x4x8x256xbf16>
    %160 = vector.shape_cast %159 : vector<2x4x8x256xbf16> to vector<64x256xbf16>
    %c3_76 = arith.constant 3 : index
    %c0_77 = arith.constant 0 : index
    %c0_78 = arith.constant 0 : index
    %161 = vector.load %arg6[%c3_76, %c0_77, %c0_78] : memref<9x256x256xbf16, #tpu.memory_space<vmem>>, vector<1x256x256xbf16>
    %162 = vector.shape_cast %161 : vector<1x256x256xbf16> to vector<256x256xbf16>
    %cst_79 = arith.constant dense<0.000000e+00> : vector<64x256xf32>
    %163 = tpu.matmul %160, %162, %cst_79 {dimension_numbers = #tpu.dot_dimension_numbers<[1], [0], [0], [1], [0, 0, 1, 1], [], []>} : vector<64x256xbf16>, vector<256x256xbf16>, vector<64x256xf32> -> vector<64x256xf32>
    %164 = arith.addf %158, %163 : vector<64x256xf32>
    %165 = vector.extract_strided_slice %152 {offsets = [0, 2, 0, 0], sizes = [2, 4, 8, 256], strides = [1, 1, 1, 1]} : vector<2x6x8x256xbf16> to vector<2x4x8x256xbf16>
    %166 = vector.shape_cast %165 : vector<2x4x8x256xbf16> to vector<64x256xbf16>
    %c6_80 = arith.constant 6 : index
    %c0_81 = arith.constant 0 : index
    %c0_82 = arith.constant 0 : index
    %167 = vector.load %arg6[%c6_80, %c0_81, %c0_82] : memref<9x256x256xbf16, #tpu.memory_space<vmem>>, vector<1x256x256xbf16>
    %168 = vector.shape_cast %167 : vector<1x256x256xbf16> to vector<256x256xbf16>
    %cst_83 = arith.constant dense<0.000000e+00> : vector<64x256xf32>
    %169 = tpu.matmul %166, %168, %cst_83 {dimension_numbers = #tpu.dot_dimension_numbers<[1], [0], [0], [1], [0, 0, 1, 1], [], []>} : vector<64x256xbf16>, vector<256x256xbf16>, vector<64x256xf32> -> vector<64x256xf32>
    %170 = arith.addf %164, %169 : vector<64x256xf32>
    %171 = vector.extract_strided_slice %150 {offsets = [0, 0, 1, 0], sizes = [2, 6, 8, 256], strides = [1, 1, 1, 1]} : vector<2x6x10x256xbf16> to vector<2x6x8x256xbf16>
    %172 = vector.extract_strided_slice %171 {offsets = [0, 0, 0, 0], sizes = [2, 4, 8, 256], strides = [1, 1, 1, 1]} : vector<2x6x8x256xbf16> to vector<2x4x8x256xbf16>
    %173 = vector.shape_cast %172 : vector<2x4x8x256xbf16> to vector<64x256xbf16>
    %c1_84 = arith.constant 1 : index
    %c0_85 = arith.constant 0 : index
    %c0_86 = arith.constant 0 : index
    %174 = vector.load %arg6[%c1_84, %c0_85, %c0_86] : memref<9x256x256xbf16, #tpu.memory_space<vmem>>, vector<1x256x256xbf16>
    %175 = vector.shape_cast %174 : vector<1x256x256xbf16> to vector<256x256xbf16>
    %cst_87 = arith.constant dense<0.000000e+00> : vector<64x256xf32>
    %176 = tpu.matmul %173, %175, %cst_87 {dimension_numbers = #tpu.dot_dimension_numbers<[1], [0], [0], [1], [0, 0, 1, 1], [], []>} : vector<64x256xbf16>, vector<256x256xbf16>, vector<64x256xf32> -> vector<64x256xf32>
    %177 = arith.addf %170, %176 : vector<64x256xf32>
    %178 = vector.extract_strided_slice %171 {offsets = [0, 1, 0, 0], sizes = [2, 4, 8, 256], strides = [1, 1, 1, 1]} : vector<2x6x8x256xbf16> to vector<2x4x8x256xbf16>
    %179 = vector.shape_cast %178 : vector<2x4x8x256xbf16> to vector<64x256xbf16>
    %c4_88 = arith.constant 4 : index
    %c0_89 = arith.constant 0 : index
    %c0_90 = arith.constant 0 : index
    %180 = vector.load %arg6[%c4_88, %c0_89, %c0_90] : memref<9x256x256xbf16, #tpu.memory_space<vmem>>, vector<1x256x256xbf16>
    %181 = vector.shape_cast %180 : vector<1x256x256xbf16> to vector<256x256xbf16>
    %cst_91 = arith.constant dense<0.000000e+00> : vector<64x256xf32>
    %182 = tpu.matmul %179, %181, %cst_91 {dimension_numbers = #tpu.dot_dimension_numbers<[1], [0], [0], [1], [0, 0, 1, 1], [], []>} : vector<64x256xbf16>, vector<256x256xbf16>, vector<64x256xf32> -> vector<64x256xf32>
    %183 = arith.addf %177, %182 : vector<64x256xf32>
    %184 = vector.extract_strided_slice %171 {offsets = [0, 2, 0, 0], sizes = [2, 4, 8, 256], strides = [1, 1, 1, 1]} : vector<2x6x8x256xbf16> to vector<2x4x8x256xbf16>
    %185 = vector.shape_cast %184 : vector<2x4x8x256xbf16> to vector<64x256xbf16>
    %c7_92 = arith.constant 7 : index
    %c0_93 = arith.constant 0 : index
    %c0_94 = arith.constant 0 : index
    %186 = vector.load %arg6[%c7_92, %c0_93, %c0_94] : memref<9x256x256xbf16, #tpu.memory_space<vmem>>, vector<1x256x256xbf16>
    %187 = vector.shape_cast %186 : vector<1x256x256xbf16> to vector<256x256xbf16>
    %cst_95 = arith.constant dense<0.000000e+00> : vector<64x256xf32>
    %188 = tpu.matmul %185, %187, %cst_95 {dimension_numbers = #tpu.dot_dimension_numbers<[1], [0], [0], [1], [0, 0, 1, 1], [], []>} : vector<64x256xbf16>, vector<256x256xbf16>, vector<64x256xf32> -> vector<64x256xf32>
    %189 = arith.addf %183, %188 : vector<64x256xf32>
    %190 = vector.extract_strided_slice %150 {offsets = [0, 0, 2, 0], sizes = [2, 6, 8, 256], strides = [1, 1, 1, 1]} : vector<2x6x10x256xbf16> to vector<2x6x8x256xbf16>
    %191 = vector.extract_strided_slice %190 {offsets = [0, 0, 0, 0], sizes = [2, 4, 8, 256], strides = [1, 1, 1, 1]} : vector<2x6x8x256xbf16> to vector<2x4x8x256xbf16>
    %192 = vector.shape_cast %191 : vector<2x4x8x256xbf16> to vector<64x256xbf16>
    %c2_96 = arith.constant 2 : index
    %c0_97 = arith.constant 0 : index
    %c0_98 = arith.constant 0 : index
    %193 = vector.load %arg6[%c2_96, %c0_97, %c0_98] : memref<9x256x256xbf16, #tpu.memory_space<vmem>>, vector<1x256x256xbf16>
    %194 = vector.shape_cast %193 : vector<1x256x256xbf16> to vector<256x256xbf16>
    %cst_99 = arith.constant dense<0.000000e+00> : vector<64x256xf32>
    %195 = tpu.matmul %192, %194, %cst_99 {dimension_numbers = #tpu.dot_dimension_numbers<[1], [0], [0], [1], [0, 0, 1, 1], [], []>} : vector<64x256xbf16>, vector<256x256xbf16>, vector<64x256xf32> -> vector<64x256xf32>
    %196 = arith.addf %189, %195 : vector<64x256xf32>
    %197 = vector.extract_strided_slice %190 {offsets = [0, 1, 0, 0], sizes = [2, 4, 8, 256], strides = [1, 1, 1, 1]} : vector<2x6x8x256xbf16> to vector<2x4x8x256xbf16>
    %198 = vector.shape_cast %197 : vector<2x4x8x256xbf16> to vector<64x256xbf16>
    %c5_100 = arith.constant 5 : index
    %c0_101 = arith.constant 0 : index
    %c0_102 = arith.constant 0 : index
    %199 = vector.load %arg6[%c5_100, %c0_101, %c0_102] : memref<9x256x256xbf16, #tpu.memory_space<vmem>>, vector<1x256x256xbf16>
    %200 = vector.shape_cast %199 : vector<1x256x256xbf16> to vector<256x256xbf16>
    %cst_103 = arith.constant dense<0.000000e+00> : vector<64x256xf32>
    %201 = tpu.matmul %198, %200, %cst_103 {dimension_numbers = #tpu.dot_dimension_numbers<[1], [0], [0], [1], [0, 0, 1, 1], [], []>} : vector<64x256xbf16>, vector<256x256xbf16>, vector<64x256xf32> -> vector<64x256xf32>
    %202 = arith.addf %196, %201 : vector<64x256xf32>
    %203 = vector.extract_strided_slice %190 {offsets = [0, 2, 0, 0], sizes = [2, 4, 8, 256], strides = [1, 1, 1, 1]} : vector<2x6x8x256xbf16> to vector<2x4x8x256xbf16>
    %204 = vector.shape_cast %203 : vector<2x4x8x256xbf16> to vector<64x256xbf16>
    %c8_104 = arith.constant 8 : index
    %c0_105 = arith.constant 0 : index
    %c0_106 = arith.constant 0 : index
    %205 = vector.load %arg6[%c8_104, %c0_105, %c0_106] : memref<9x256x256xbf16, #tpu.memory_space<vmem>>, vector<1x256x256xbf16>
    %206 = vector.shape_cast %205 : vector<1x256x256xbf16> to vector<256x256xbf16>
    %cst_107 = arith.constant dense<0.000000e+00> : vector<64x256xf32>
    %207 = tpu.matmul %204, %206, %cst_107 {dimension_numbers = #tpu.dot_dimension_numbers<[1], [0], [0], [1], [0, 0, 1, 1], [], []>} : vector<64x256xbf16>, vector<256x256xbf16>, vector<64x256xf32> -> vector<64x256xf32>
    %208 = arith.addf %202, %207 : vector<64x256xf32>
    %209 = vector.shape_cast %208 : vector<64x256xf32> to vector<2x32x256xf32>
    %cst_108 = arith.constant dense<0.000000e+00> : vector<2x256xf32>
    %210 = vector.multi_reduction <add>, %209, %cst_108 [1] : vector<2x32x256xf32> to vector<2x256xf32>
    %c32_i32_109 = arith.constant 32 : i32
    %211 = tpu.dynamic_rotate %210 by %c32_i32_109 dim 1 : vector<2x256xf32>, i32 -> vector<2x256xf32>
    %212 = arith.addf %210, %211 : vector<2x256xf32>
    %c64_i32_110 = arith.constant 64 : i32
    %213 = tpu.dynamic_rotate %212 by %c64_i32_110 dim 1 : vector<2x256xf32>, i32 -> vector<2x256xf32>
    %214 = arith.addf %212, %213 : vector<2x256xf32>
    %c128_i32_111 = arith.constant 128 : i32
    %215 = tpu.dynamic_rotate %214 by %c128_i32_111 dim 1 : vector<2x256xf32>, i32 -> vector<2x256xf32>
    %216 = arith.addf %214, %215 : vector<2x256xf32>
    %c255_i32_112 = arith.constant 255 : i32
    %217 = tpu.dynamic_rotate %216 by %c255_i32_112 dim 1 : vector<2x256xf32>, i32 -> vector<2x256xf32>
    %218 = arith.addf %216, %217 : vector<2x256xf32>
    %219 = tpu.iota {dimensions = array<i32: 1>} : vector<2x256xi32>
    %c2_i32_113 = arith.constant 2 : i32
    %c0_i32_114 = arith.constant 0 : i32
    %220 = arith.cmpi eq, %c2_i32_113, %c0_i32_114 : i32
    %c1_i32_115 = arith.constant 1 : i32
    %221 = arith.select %220, %c1_i32_115, %c2_i32_113 : i32
    %222 = vector.broadcast %221 : i32 to vector<2x256xi32>
    %223 = arith.remsi %219, %222 : vector<2x256xi32>
    %c0_i32_116 = arith.constant 0 : i32
    %224 = vector.broadcast %c0_i32_116 : i32 to vector<2x256xi32>
    %225 = arith.cmpi ne, %223, %224 : vector<2x256xi32>
    %c0_i32_117 = arith.constant 0 : i32
    %226 = vector.broadcast %c0_i32_117 : i32 to vector<2x256xi32>
    %227 = arith.cmpi slt, %223, %226 : vector<2x256xi32>
    %c0_i32_118 = arith.constant 0 : i32
    %228 = arith.cmpi slt, %221, %c0_i32_118 : i32
    %229 = vector.broadcast %228 : i1 to vector<2x256xi1>
    %230 = vector.broadcast %229 : vector<2x256xi1> to vector<2x256xi1>
    %231 = arith.xori %227, %230 : vector<2x256xi1>
    %232 = arith.andi %231, %225 : vector<2x256xi1>
    %233 = vector.broadcast %221 : i32 to vector<2x256xi32>
    %234 = arith.addi %223, %233 : vector<2x256xi32>
    %235 = arith.select %232, %234, %223 : vector<2x256xi1>, vector<2x256xi32>
    %c0_i32_119 = arith.constant 0 : i32
    %236 = vector.broadcast %c0_i32_119 : i32 to vector<2x256xi32>
    %237 = arith.cmpi eq, %235, %236 : vector<2x256xi32>
    %c1_i32_120 = arith.constant 1 : i32
    %238 = tpu.dynamic_rotate %218 by %c1_i32_120 dim 1 : vector<2x256xf32>, i32 -> vector<2x256xf32>
    %239 = arith.select %237, %218, %238 : vector<2x256xi1>, vector<2x256xf32>
    %cst_121 = arith.constant 0.001953125 : f32
    %240 = vector.broadcast %cst_121 : f32 to vector<2x256xf32>
    %241 = arith.mulf %239, %240 : vector<2x256xf32>
    %242 = vector.shape_cast %241 : vector<2x256xf32> to vector<2x1x256xf32>
    %243 = vector.broadcast %242 : vector<2x1x256xf32> to vector<2x32x256xf32>
    %244 = arith.subf %209, %243 : vector<2x32x256xf32>
    %245 = arith.mulf %244, %244 : vector<2x32x256xf32>
    %cst_122 = arith.constant dense<0.000000e+00> : vector<2x256xf32>
    %246 = vector.multi_reduction <add>, %245, %cst_122 [1] : vector<2x32x256xf32> to vector<2x256xf32>
    %c32_i32_123 = arith.constant 32 : i32
    %247 = tpu.dynamic_rotate %246 by %c32_i32_123 dim 1 : vector<2x256xf32>, i32 -> vector<2x256xf32>
    %248 = arith.addf %246, %247 : vector<2x256xf32>
    %c64_i32_124 = arith.constant 64 : i32
    %249 = tpu.dynamic_rotate %248 by %c64_i32_124 dim 1 : vector<2x256xf32>, i32 -> vector<2x256xf32>
    %250 = arith.addf %248, %249 : vector<2x256xf32>
    %c128_i32_125 = arith.constant 128 : i32
    %251 = tpu.dynamic_rotate %250 by %c128_i32_125 dim 1 : vector<2x256xf32>, i32 -> vector<2x256xf32>
    %252 = arith.addf %250, %251 : vector<2x256xf32>
    %c255_i32_126 = arith.constant 255 : i32
    %253 = tpu.dynamic_rotate %252 by %c255_i32_126 dim 1 : vector<2x256xf32>, i32 -> vector<2x256xf32>
    %254 = arith.addf %252, %253 : vector<2x256xf32>
    %255 = tpu.iota {dimensions = array<i32: 1>} : vector<2x256xi32>
    %c2_i32_127 = arith.constant 2 : i32
    %c0_i32_128 = arith.constant 0 : i32
    %256 = arith.cmpi eq, %c2_i32_127, %c0_i32_128 : i32
    %c1_i32_129 = arith.constant 1 : i32
    %257 = arith.select %256, %c1_i32_129, %c2_i32_127 : i32
    %258 = vector.broadcast %257 : i32 to vector<2x256xi32>
    %259 = arith.remsi %255, %258 : vector<2x256xi32>
    %c0_i32_130 = arith.constant 0 : i32
    %260 = vector.broadcast %c0_i32_130 : i32 to vector<2x256xi32>
    %261 = arith.cmpi ne, %259, %260 : vector<2x256xi32>
    %c0_i32_131 = arith.constant 0 : i32
    %262 = vector.broadcast %c0_i32_131 : i32 to vector<2x256xi32>
    %263 = arith.cmpi slt, %259, %262 : vector<2x256xi32>
    %c0_i32_132 = arith.constant 0 : i32
    %264 = arith.cmpi slt, %257, %c0_i32_132 : i32
    %265 = vector.broadcast %264 : i1 to vector<2x256xi1>
    %266 = vector.broadcast %265 : vector<2x256xi1> to vector<2x256xi1>
    %267 = arith.xori %263, %266 : vector<2x256xi1>
    %268 = arith.andi %267, %261 : vector<2x256xi1>
    %269 = vector.broadcast %257 : i32 to vector<2x256xi32>
    %270 = arith.addi %259, %269 : vector<2x256xi32>
    %271 = arith.select %268, %270, %259 : vector<2x256xi1>, vector<2x256xi32>
    %c0_i32_133 = arith.constant 0 : i32
    %272 = vector.broadcast %c0_i32_133 : i32 to vector<2x256xi32>
    %273 = arith.cmpi eq, %271, %272 : vector<2x256xi32>
    %c1_i32_134 = arith.constant 1 : i32
    %274 = tpu.dynamic_rotate %254 by %c1_i32_134 dim 1 : vector<2x256xf32>, i32 -> vector<2x256xf32>
    %275 = arith.select %273, %254, %274 : vector<2x256xi1>, vector<2x256xf32>
    %cst_135 = arith.constant 0.001953125 : f32
    %276 = vector.broadcast %cst_135 : f32 to vector<2x256xf32>
    %277 = arith.mulf %275, %276 : vector<2x256xf32>
    %cst_136 = arith.constant 9.99999974E-6 : f32
    %278 = vector.broadcast %cst_136 : f32 to vector<2x256xf32>
    %279 = arith.addf %277, %278 : vector<2x256xf32>
    %280 = math.rsqrt %279 : vector<2x256xf32>
    %281 = vector.shape_cast %280 : vector<2x256xf32> to vector<2x1x256xf32>
    %282 = vector.broadcast %281 : vector<2x1x256xf32> to vector<2x32x256xf32>
    %283 = arith.mulf %244, %282 : vector<2x32x256xf32>
    %c0_137 = arith.constant 0 : index
    %c0_138 = arith.constant 0 : index
    %284 = vector.load %arg7[%c0_137, %c0_138] : memref<1x256xf32, #tpu.memory_space<vmem>>, vector<1x256xf32>
    %285 = vector.shape_cast %284 : vector<1x256xf32> to vector<1x1x256xf32>
    %286 = vector.broadcast %285 : vector<1x1x256xf32> to vector<2x32x256xf32>
    %287 = arith.mulf %283, %286 : vector<2x32x256xf32>
    %c0_139 = arith.constant 0 : index
    %c0_140 = arith.constant 0 : index
    %288 = vector.load %arg8[%c0_139, %c0_140] : memref<1x256xf32, #tpu.memory_space<vmem>>, vector<1x256xf32>
    %289 = vector.shape_cast %288 : vector<1x256xf32> to vector<1x1x256xf32>
    %290 = vector.broadcast %289 : vector<1x1x256xf32> to vector<2x32x256xf32>
    %291 = arith.addf %287, %290 : vector<2x32x256xf32>
    %292 = vector.shape_cast %291 : vector<2x32x256xf32> to vector<64x256xf32>
    %293 = vector.shape_cast %292 : vector<64x256xf32> to vector<2x32x256xf32>
    %c0_141 = arith.constant 0 : index
    %c0_142 = arith.constant 0 : index
    %c0_143 = arith.constant 0 : index
    %294 = vector.load %arg2[%c0_141, %c0_142, %c0_143] : memref<2x32x256xf32, #tpu.memory_space<vmem>>, vector<2x32x256xf32>
    %295 = arith.addf %293, %294 : vector<2x32x256xf32>
    %cst_144 = arith.constant 0.000000e+00 : f32
    %296 = vector.broadcast %cst_144 : f32 to vector<2x32x256xf32>
    %297 = arith.maximumf %295, %296 : vector<2x32x256xf32>
    %c0_145 = arith.constant 0 : index
    %c0_146 = arith.constant 0 : index
    %c0_147 = arith.constant 0 : index
    %298 = vector.load %arg9[%c0_145, %c0_146, %c0_147] : memref<2x32x256xf32, #tpu.memory_space<vmem>>, vector<2x32x256xf32>
    tpu.vector_store %arg9[%c0_145, %c0_146, %c0_147], %297 {strides = array<i32>} : memref<2x32x256xf32, #tpu.memory_space<vmem>>, vector<2x32x256xf32>,
    return
  }
  func.func @transform_0(%arg0: i32) -> (i32, i32, i32, i32) {
    %c0_i32 = arith.constant 0 : i32
    %c0_i32_0 = arith.constant 0 : i32
    %c0_i32_1 = arith.constant 0 : i32
    %c0_i32_2 = arith.constant 0 : i32
    %c0_i32_3 = arith.constant 0 : i32
    return %c0_i32, %c0_i32_0, %c0_i32_1, %c0_i32_2 : i32, i32, i32, i32
  }
  func.func @transform_1(%arg0: i32) -> (i32, i32, i32) {
    %c0_i32 = arith.constant 0 : i32
    %c0_i32_0 = arith.constant 0 : i32
    %c0_i32_1 = arith.constant 0 : i32
    %c0_i32_2 = arith.constant 0 : i32
    return %c0_i32, %c0_i32_0, %c0_i32_1 : i32, i32, i32
  }
  func.func @transform_2(%arg0: i32) -> (i32, i32, i32) {
    %c0_i32 = arith.constant 0 : i32
    %c0_i32_0 = arith.constant 0 : i32
    %c0_i32_1 = arith.constant 0 : i32
    %c0_i32_2 = arith.constant 0 : i32
    return %c0_i32, %c0_i32_0, %c0_i32_1 : i32, i32, i32
  }
  func.func @transform_3(%arg0: i32) -> (i32, i32) {
    %c0_i32 = arith.constant 0 : i32
    %c0_i32_0 = arith.constant 0 : i32
    %c0_i32_1 = arith.constant 0 : i32
    return %c0_i32, %c0_i32_0 : i32, i32
  }
  func.func @transform_4(%arg0: i32) -> (i32, i32) {
    %c0_i32 = arith.constant 0 : i32
    %c0_i32_0 = arith.constant 0 : i32
    %c0_i32_1 = arith.constant 0 : i32
    return %c0_i32, %c0_i32_0 : i32, i32
  }
  func.func @transform_5(%arg0: i32) -> (i32, i32, i32) {
    %c0_i32 = arith.constant 0 : i32
    %c0_i32_0 = arith.constant 0 : i32
    %c0_i32_1 = arith.constant 0 : i32
    %c0_i32_2 = arith.constant 0 : i32
    return %c0_i32, %c0_i32_0, %c0_i32_1 : i32, i32, i32
  }
  func.func @transform_6(%arg0: i32) -> (i32, i32) {
    %c0_i32 = arith.constant 0 : i32
    %c0_i32_0 = arith.constant 0 : i32
    %c0_i32_1 = arith.constant 0 : i32
    return %c0_i32, %c0_i32_0 : i32, i32
  }
  func.func @transform_7(%arg0: i32) -> (i32, i32) {
    %c0_i32 = arith.constant 0 : i32
    %c0_i32_0 = arith.constant 0 : i32
    %c0_i32_1 = arith.constant 0 : i32
    return %c0_i32, %c0_i32_0 : i32, i32
  }
  func.func @transform_8(%arg0: i32) -> (i32, i32, i32) {
    %c0_i32 = arith.constant 0 : i32
    %c0_i32_0 = arith.constant 0 : i32
    %c0_i32_1 = arith.constant 0 : i32
    %c0_i32_2 = arith.constant 0 : i32
    return %c0_i32, %c0_i32_0, %c0_i32_1 : i32, i32, i32
  }
}

</mosaic_0001>

<llo_original>
// kernel: basic_block_pallas.1
$region0: #{basic_block_pallas.1}
  #allocation0 [shape = 'u32[]', space=smem, size = 0x4, offset = 0x4, fixed_abs, tag = 'smem constant byte address 0x4 - core index']
  #allocation1 [shape = 'u32[72,128]{1,0:T(1,128)}', space=vmem, size = 0x9000, scoped, tag = 'internal scratch']
  #allocation2 [shape = 'bf16[2,6,10,256]{3,2,1,0:T(8,128)(2,1)}', space=vmem, size = 0x18000, scoped, tag = 'scratch operand']
  %s0 = inlined_call_operand.vmem [shape: bf16[2,6,10,256], index: 0, kind: input, shape index: {}]
  %s1 = inlined_call_operand.vmem [shape: f32[2,32,256], index: 1, kind: input, shape index: {}]
  %s2 = inlined_call_operand.hbm [shape: bf16[9,256,256], index: 2, kind: input, shape index: {}]
  %s3 = inlined_call_operand.hbm [shape: f32[1,256], index: 3, kind: input, shape index: {}]
  %s4 = inlined_call_operand.hbm [shape: f32[1,256], index: 4, kind: input, shape index: {}]
  %s5 = inlined_call_operand.hbm [shape: bf16[9,256,256], index: 5, kind: input, shape index: {}]
  %s6 = inlined_call_operand.hbm [shape: f32[1,256], index: 6, kind: input, shape index: {}]
  %s7 = inlined_call_operand.hbm [shape: f32[1,256], index: 7, kind: input, shape index: {}]
  %s8 = inlined_call_operand.vmem [shape: f32[2,32,256], index: 8, kind: output, shape index: {}]
  %s9 = sld [smem:[#allocation0]]
  $region66: #{basic_block_pallas.1} parent=0
    _
  %s11 = ssub.s32 1, %s9
  %s12 = scalar_select 0, %s11, %s9
  $region1: #{basic_block_pallas.1} parent=0
    #allocation3 [shape = 'u8[1179648]{0}', space=vmem, size = 0x120000, scoped, tag = 'input window, operand 2, single buffered']
    #allocation4 [shape = 's32[1]{0}', space=sflag, size = 0x4, scoped, tag = 'scoped memory for basic_block_pallas.1']
    #allocation5 [shape = 'u8[1024]{0}', space=vmem, size = 0x400, scoped, tag = 'input window, operand 3, single buffered']
    #allocation6 [shape = 's32[1]{0}', space=sflag, size = 0x4, scoped, tag = 'scoped memory for basic_block_pallas.1']
    #allocation7 [shape = 'u8[1024]{0}', space=vmem, size = 0x400, scoped, tag = 'input window, operand 4, single buffered']
    #allocation8 [shape = 'u8[1179648]{0}', space=vmem, size = 0x120000, scoped, tag = 'input window, operand 5, single buffered']
    #allocation9 [shape = 's32[1]{0}', space=sflag, size = 0x4, scoped, tag = 'scoped memory for basic_block_pallas.1']
    #allocation10 [shape = 'u8[1024]{0}', space=vmem, size = 0x400, scoped, tag = 'input window, operand 6, single buffered']
    #allocation11 [shape = 'u8[1024]{0}', space=vmem, size = 0x400, scoped, tag = 'input window, operand 7, single buffered']
    #allocation12 [shape = 's32[1]{0}', space=sflag, size = 0x4, scoped, tag = 'scoped memory for basic_block_pallas.1']
    %13 = vsyncpa [#allocation4], 0
    %14 = vsyncpa [#allocation6], 0
    %15 = vsyncpa [#allocation9], 0
    %16 = vsyncpa [#allocation12], 0
    // Predicated region
    $region2: #{basic_block_pallas.1} parent=1 // pred_check
      _
    $region3: #{basic_block_pallas.1} parent=1 // pred_check_branch
      %18 = sbr.rel (0) target = $region5
    $region4: #{basic_block_pallas.1} parent=1 // pred_region
      _
    $region5: #{basic_block_pallas.1} parent=1 // pred_fallthru
      _
    // Predicated region
    $region6: #{basic_block_pallas.1} parent=1 // pred_check
      _
    $region7: #{basic_block_pallas.1} parent=1 // pred_check_branch
      %20 = sbr.rel (0) target = $region9
    $region8: #{basic_block_pallas.1} parent=1 // pred_region
      _
    $region9: #{basic_block_pallas.1} parent=1 // pred_fallthru
      _
    // Predicated region
    $region10: #{basic_block_pallas.1} parent=1 // pred_check
      _
    $region11: #{basic_block_pallas.1} parent=1 // pred_check_branch
      %22 = sbr.rel (0) target = $region13
    $region12: #{basic_block_pallas.1} parent=1 // pred_region
      %24 = vsyncadd [#allocation4], 0
      %s25 = sshll.u32 %s2, 4
      %s26 = int_to_ptr.hbm [resolvable:$true] %s25
      %s27 = sshll.u32 [#allocation3], 4
      %s28 = int_to_ptr.vmem [resolvable:$true] %s27
      %33 = dma.hbm_to_vmem [thread:$0]  %s26, 36864, %s28, [#allocation4], 128, 128, 8
    $region13: #{basic_block_pallas.1} parent=1 // pred_fallthru
      _
    // Predicated region
    $region14: #{basic_block_pallas.1} parent=1 // pred_check
      _
    $region15: #{basic_block_pallas.1} parent=1 // pred_check_branch
      %35 = sbr.rel (0) target = $region17
    $region16: #{basic_block_pallas.1} parent=1 // pred_region
      %37 = vsyncadd [#allocation6], 0
      %s39 = sshll.u32 %s3, 4
      %s40 = int_to_ptr.hbm [resolvable:$true] %s39
      %s41 = sshll.u32 [#allocation5], 4
      %s42 = int_to_ptr.vmem [resolvable:$true] %s41
      %44 = dma.hbm_to_vmem [thread:$0]  %s40, 32, %s42, [#allocation6]
    $region17: #{basic_block_pallas.1} parent=1 // pred_fallthru
      _
    // Predicated region
    $region18: #{basic_block_pallas.1} parent=1 // pred_check
      _
    $region19: #{basic_block_pallas.1} parent=1 // pred_check_branch
      %46 = sbr.rel (0) target = $region21
    $region20: #{basic_block_pallas.1} parent=1 // pred_region
      %48 = vsyncadd [#allocation6], 0
      %s50 = sshll.u32 %s4, 4
      %s51 = int_to_ptr.hbm [resolvable:$true] %s50
      %s52 = sshll.u32 [#allocation7], 4
      %s53 = int_to_ptr.vmem [resolvable:$true] %s52
      %55 = dma.hbm_to_vmem [thread:$0]  %s51, 32, %s53, [#allocation6]
    $region21: #{basic_block_pallas.1} parent=1 // pred_fallthru
      _
    // Predicated region
    $region22: #{basic_block_pallas.1} parent=1 // pred_check
      _
    $region23: #{basic_block_pallas.1} parent=1 // pred_check_branch
      %57 = sbr.rel (0) target = $region25
    $region24: #{basic_block_pallas.1} parent=1 // pred_region
      %59 = vsyncadd [#allocation9], 0
      %s60 = sshll.u32 %s5, 4
      %s61 = int_to_ptr.hbm [resolvable:$true] %s60
      %s62 = sshll.u32 [#allocation8], 4
      %s63 = int_to_ptr.vmem [resolvable:$true] %s62
      %68 = dma.hbm_to_vmem [thread:$0]  %s61, 36864, %s63, [#allocation9], 128, 128, 8
    $region25: #{basic_block_pallas.1} parent=1 // pred_fallthru
      _
    // Predicated region
    $region26: #{basic_block_pallas.1} parent=1 // pred_check
      _
    $region27: #{basic_block_pallas.1} parent=1 // pred_check_branch
      %70 = sbr.rel (0) target = $region29
    $region28: #{basic_block_pallas.1} parent=1 // pred_region
      %72 = vsyncadd [#allocation9], 0
      %s74 = sshll.u32 %s6, 4
      %s75 = int_to_ptr.hbm [resolvable:$true] %s74
      %s76 = sshll.u32 [#allocation10], 4
      %s77 = int_to_ptr.vmem [resolvable:$true] %s76
      %79 = dma.hbm_to_vmem [thread:$0]  %s75, 32, %s77, [#allocation9]
    $region29: #{basic_block_pallas.1} parent=1 // pred_fallthru
      _
    // Predicated region
    $region30: #{basic_block_pallas.1} parent=1 // pred_check
      _
    $region31: #{basic_block_pallas.1} parent=1 // pred_check_branch
      %81 = sbr.rel (0) target = $region33
    $region32: #{basic_block_pallas.1} parent=1 // pred_region
      %83 = vsyncadd [#allocation12], 0
      %s85 = sshll.u32 %s7, 4
      %s86 = int_to_ptr.hbm [resolvable:$true] %s85
      %s87 = sshll.u32 [#allocation11], 4
      %s88 = int_to_ptr.vmem [resolvable:$true] %s87
      %90 = dma.hbm_to_vmem [thread:$0]  %s86, 32, %s88, [#allocation12]
    $region33: #{basic_block_pallas.1} parent=1 // pred_fallthru
      _
    // Predicated region
    $region34: #{basic_block_pallas.1} parent=1 // pred_check
      _
    $region35: #{basic_block_pallas.1} parent=1 // pred_check_branch
      %92 = sbr.rel (0) target = $region37
    $region36: #{basic_block_pallas.1} parent=1 // pred_region
      %94 = dma.done [#allocation4], 36864
    $region37: #{basic_block_pallas.1} parent=1 // pred_fallthru
      _
    // Predicated region
    $region38: #{basic_block_pallas.1} parent=1 // pred_check
      _
    $region39: #{basic_block_pallas.1} parent=1 // pred_check_branch
      %96 = sbr.rel (0) target = $region41
    $region40: #{basic_block_pallas.1} parent=1 // pred_region
      %98 = dma.done [#allocation6], 32
    $region41: #{basic_block_pallas.1} parent=1 // pred_fallthru
      _
    // Predicated region
    $region42: #{basic_block_pallas.1} parent=1 // pred_check
      _
    $region43: #{basic_block_pallas.1} parent=1 // pred_check_branch
      %100 = sbr.rel (0) target = $region45
    $region44: #{basic_block_pallas.1} parent=1 // pred_region
      %102 = dma.done [#allocation6], 32
    $region45: #{basic_block_pallas.1} parent=1 // pred_fallthru
      _
    // Predicated region
    $region46: #{basic_block_pallas.1} parent=1 // pred_check
      _
    $region47: #{basic_block_pallas.1} parent=1 // pred_check_branch
      %104 = sbr.rel (0) target = $region49
    $region48: #{basic_block_pallas.1} parent=1 // pred_region
      %106 = dma.done [#allocation9], 36864
    $region49: #{basic_block_pallas.1} parent=1 // pred_fallthru
      _
    // Predicated region
    $region50: #{basic_block_pallas.1} parent=1 // pred_check
      _
    $region51: #{basic_block_pallas.1} parent=1 // pred_check_branch
      %108 = sbr.rel (0) target = $region53
    $region52: #{basic_block_pallas.1} parent=1 // pred_region
      %110 = dma.done [#allocation9], 32
    $region53: #{basic_block_pallas.1} parent=1 // pred_fallthru
      _
    // Predicated region
    $region54: #{basic_block_pallas.1} parent=1 // pred_check
      _
    $region55: #{basic_block_pallas.1} parent=1 // pred_check_branch
      %112 = sbr.rel (0) target = $region57
    $region56: #{basic_block_pallas.1} parent=1 // pred_region
      %114 = dma.done [#allocation12], 32
    $region57: #{basic_block_pallas.1} parent=1 // pred_fallthru
      _
    %v116 = vld [vmem:[%s0] sm:$0xff]
    %v117 = vld [vmem:[%s0 + $0x8] sm:$0x11]
    %v118 = vld [vmem:[%s0 + $0x10] sm:$0xff]
    %v119 = vld [vmem:[%s0 + $0x18] sm:$0x11]
    %v120 = vld [vmem:[%s0 + $0x20] sm:$0xff]
    %v121 = vld [vmem:[%s0 + $0x28] sm:$0x11]
    %v122 = vld [vmem:[%s0 + $0x30] sm:$0xff]
    %v123 = vld [vmem:[%s0 + $0x38] sm:$0x11]
    %v124 = vld [vmem:[%s0 + $0x40] sm:$0xff]
    %v125 = vld [vmem:[%s0 + $0x48] sm:$0x11]
    %v126 = vld [vmem:[%s0 + $0x50] sm:$0xff]
    %v127 = vld [vmem:[%s0 + $0x58] sm:$0x11]
    %v128 = vld [vmem:[%s0 + $0x60] sm:$0xff]
    %v129 = vld [vmem:[%s0 + $0x68] sm:$0x11]
    %v130 = vld [vmem:[%s0 + $0x70] sm:$0xff]
    %v131 = vld [vmem:[%s0 + $0x78] sm:$0x11]
    %v132 = vld [vmem:[%s0 + $0x80] sm:$0xff]
    %v133 = vld [vmem:[%s0 + $0x88] sm:$0x11]
    %v134 = vld [vmem:[%s0 + $0x90] sm:$0xff]
    %v135 = vld [vmem:[%s0 + $0x98] sm:$0x11]
    %v136 = vld [vmem:[%s0 + $0xa0] sm:$0xff]
    %v137 = vld [vmem:[%s0 + $0xa8] sm:$0x11]
    %v138 = vld [vmem:[%s0 + $0xb0] sm:$0xff]
    %v139 = vld [vmem:[%s0 + $0xb8] sm:$0x11]
    %v140 = vld [vmem:[#allocation3] sm:$0xff]
    %v141 = vld [vmem:[#allocation3 + $0x8] sm:$0xff]
    %v142 = vld [vmem:[#allocation3 + $0x10] sm:$0xff]
    %v143 = vld [vmem:[#allocation3 + $0x18] sm:$0xff]
    %v144 = vld [vmem:[#allocation3 + $0x20] sm:$0xff]
    %v145 = vld [vmem:[#allocation3 + $0x28] sm:$0xff]
    %v146 = vld [vmem:[#allocation3 + $0x30] sm:$0xff]
    %v147 = vld [vmem:[#allocation3 + $0x38] sm:$0xff]
    %v148 = vld [vmem:[#allocation3 + $0x40] sm:$0xff]
    %v149 = vld [vmem:[#allocation3 + $0x48] sm:$0xff]
    %v150 = vld [vmem:[#allocation3 + $0x50] sm:$0xff]
    %v151 = vld [vmem:[#allocation3 + $0x58] sm:$0xff]
    %v152 = vld [vmem:[#allocation3 + $0x60] sm:$0xff]
    %v153 = vld [vmem:[#allocation3 + $0x68] sm:$0xff]
    %v154 = vld [vmem:[#allocation3 + $0x70] sm:$0xff]
    %v155 = vld [vmem:[#allocation3 + $0x78] sm:$0xff]
    %v156 = vld [vmem:[#allocation3 + $0x80] sm:$0xff]
    %v157 = vld [vmem:[#allocation3 + $0x88] sm:$0xff]
    %v158 = vld [vmem:[#allocation3 + $0x90] sm:$0xff]
    %v159 = vld [vmem:[#allocation3 + $0x98] sm:$0xff]
    %v160 = vld [vmem:[#allocation3 + $0xa0] sm:$0xff]
    %v161 = vld [vmem:[#allocation3 + $0xa8] sm:$0xff]
    %v162 = vld [vmem:[#allocation3 + $0xb0] sm:$0xff]
    %v163 = vld [vmem:[#allocation3 + $0xb8] sm:$0xff]
    %v164 = vld [vmem:[#allocation3 + $0xc0] sm:$0xff]
    %v165 = vld [vmem:[#allocation3 + $0xc8] sm:$0xff]
    %v166 = vld [vmem:[#allocation3 + $0xd0] sm:$0xff]
    %v167 = vld [vmem:[#allocation3 + $0xd8] sm:$0xff]
    %v168 = vld [vmem:[#allocation3 + $0xe0] sm:$0xff]
    %v169 = vld [vmem:[#allocation3 + $0xe8] sm:$0xff]
    %v170 = vld [vmem:[#allocation3 + $0xf0] sm:$0xff]
    %v171 = vld [vmem:[#allocation3 + $0xf8] sm:$0xff]
    %s172 = scalar_lea.vmem [#allocation3], 768
    %v173 = vld [vmem:[%s172] sm:$0xff]
    %v174 = vld [vmem:[%s172 + $0x8] sm:$0xff]
    %v175 = vld [vmem:[%s172 + $0x10] sm:$0xff]
    %v176 = vld [vmem:[%s172 + $0x18] sm:$0xff]
    %v177 = vld [vmem:[%s172 + $0x20] sm:$0xff]
    %v178 = vld [vmem:[%s172 + $0x28] sm:$0xff]
    %v179 = vld [vmem:[%s172 + $0x30] sm:$0xff]
    %v180 = vld [vmem:[%s172 + $0x38] sm:$0xff]
    %v181 = vld [vmem:[%s172 + $0x40] sm:$0xff]
    %v182 = vld [vmem:[%s172 + $0x48] sm:$0xff]
    %v183 = vld [vmem:[%s172 + $0x50] sm:$0xff]
    %v184 = vld [vmem:[%s172 + $0x58] sm:$0xff]
    %v185 = vld [vmem:[%s172 + $0x60] sm:$0xff]
    %v186 = vld [vmem:[%s172 + $0x68] sm:$0xff]
    %v187 = vld [vmem:[%s172 + $0x70] sm:$0xff]
    %v188 = vld [vmem:[%s172 + $0x78] sm:$0xff]
    %v189 = vld [vmem:[%s172 + $0x80] sm:$0xff]
    %v190 = vld [vmem:[%s172 + $0x88] sm:$0xff]
    %v191 = vld [vmem:[%s172 + $0x90] sm:$0xff]
    %v192 = vld [vmem:[%s172 + $0x98] sm:$0xff]
    %v193 = vld [vmem:[%s172 + $0xa0] sm:$0xff]
    %v194 = vld [vmem:[%s172 + $0xa8] sm:$0xff]
    %v195 = vld [vmem:[%s172 + $0xb0] sm:$0xff]
    %v196 = vld [vmem:[%s172 + $0xb8] sm:$0xff]
    %v197 = vld [vmem:[%s172 + $0xc0] sm:$0xff]
    %v198 = vld [vmem:[%s172 + $0xc8] sm:$0xff]
    %v199 = vld [vmem:[%s172 + $0xd0] sm:$0xff]
    %v200 = vld [vmem:[%s172 + $0xd8] sm:$0xff]
    %v201 = vld [vmem:[%s172 + $0xe0] sm:$0xff]
    %v202 = vld [vmem:[%s172 + $0xe8] sm:$0xff]
    %v203 = vld [vmem:[%s172 + $0xf0] sm:$0xff]
    %v204 = vld [vmem:[%s172 + $0xf8] sm:$0xff]
    %v213 = vunpack.c.l.b16 %v118
    %v214 = vunpack.c.h.b16 %v118
    %v215 = vunpack.c.l.b16 %v120
    %v216 = vunpack.c.h.b16 %v120
    %v217 = vunpack.c.l.b16 %v122
    %v218 = vunpack.c.h.b16 %v122
    %v219 = vunpack.c.l.b16 %v124
    %v220 = vunpack.c.h.b16 %v124
    %v221 = vunpack.c.l.b16 %v130
    %v222 = vunpack.c.h.b16 %v130
    %v223 = vunpack.c.l.b16 %v132
    %v224 = vunpack.c.h.b16 %v132
    %v225 = vunpack.c.l.b16 %v134
    %v226 = vunpack.c.h.b16 %v134
    %v227 = vunpack.c.l.b16 %v136
    %v228 = vunpack.c.h.b16 %v136
    %v229 = vpack.c.b16 %v215, %v213
    %v230 = vpack.c.b16 %v216, %v214
    %v231 = vpack.c.b16 %v219, %v217
    %v232 = vpack.c.b16 %v220, %v218
    %v233 = vpack.c.b16 %v223, %v221
    %v234 = vpack.c.b16 %v224, %v222
    %v235 = vpack.c.b16 %v227, %v225
    %v236 = vpack.c.b16 %v228, %v226
    %v277 = vunpack.c.l.b16 %v173
    %v278 = vunpack.c.h.b16 %v173
    %v279 = vunpack.c.l.b16 %v174
    %v280 = vunpack.c.h.b16 %v174
    %v281 = vunpack.c.l.b16 %v175
    %v282 = vunpack.c.h.b16 %v175
    %v283 = vunpack.c.l.b16 %v176
    %v284 = vunpack.c.h.b16 %v176
    %v285 = vunpack.c.l.b16 %v177
    %v286 = vunpack.c.h.b16 %v177
    %v287 = vunpack.c.l.b16 %v178
    %v288 = vunpack.c.h.b16 %v178
    %v289 = vunpack.c.l.b16 %v179
    %v290 = vunpack.c.h.b16 %v179
    %v291 = vunpack.c.l.b16 %v180
    %v292 = vunpack.c.h.b16 %v180
    %v293 = vunpack.c.l.b16 %v181
    %v294 = vunpack.c.h.b16 %v181
    %v295 = vunpack.c.l.b16 %v182
    %v296 = vunpack.c.h.b16 %v182
    %v297 = vunpack.c.l.b16 %v183
    %v298 = vunpack.c.h.b16 %v183
    %v299 = vunpack.c.l.b16 %v184
    %v300 = vunpack.c.h.b16 %v184
    %v301 = vunpack.c.l.b16 %v185
    %v302 = vunpack.c.h.b16 %v185
    %v303 = vunpack.c.l.b16 %v186
    %v304 = vunpack.c.h.b16 %v186
    %v305 = vunpack.c.l.b16 %v187
    %v306 = vunpack.c.h.b16 %v187
    %v307 = vunpack.c.l.b16 %v188
    %v308 = vunpack.c.h.b16 %v188
    %v309 = vunpack.c.l.b16 %v189
    %v310 = vunpack.c.h.b16 %v189
    %v311 = vunpack.c.l.b16 %v190
    %v312 = vunpack.c.h.b16 %v190
    %v313 = vunpack.c.l.b16 %v191
    %v314 = vunpack.c.h.b16 %v191
    %v315 = vunpack.c.l.b16 %v192
    %v316 = vunpack.c.h.b16 %v192
    %v317 = vunpack.c.l.b16 %v193
    %v318 = vunpack.c.h.b16 %v193
    %v319 = vunpack.c.l.b16 %v194
    %v320 = vunpack.c.h.b16 %v194
    %v321 = vunpack.c.l.b16 %v195
    %v322 = vunpack.c.h.b16 %v195
    %v323 = vunpack.c.l.b16 %v196
    %v324 = vunpack.c.h.b16 %v196
    %v325 = vunpack.c.l.b16 %v197
    %v326 = vunpack.c.h.b16 %v197
    %v327 = vunpack.c.l.b16 %v198
    %v328 = vunpack.c.h.b16 %v198
    %v329 = vunpack.c.l.b16 %v199
    %v330 = vunpack.c.h.b16 %v199
    %v331 = vunpack.c.l.b16 %v200
    %v332 = vunpack.c.h.b16 %v200
    %v333 = vunpack.c.l.b16 %v201
    %v334 = vunpack.c.h.b16 %v201
    %v335 = vunpack.c.l.b16 %v202
    %v336 = vunpack.c.h.b16 %v202
    %v337 = vunpack.c.l.b16 %v203
    %v338 = vunpack.c.h.b16 %v203
    %v339 = vunpack.c.l.b16 %v204
    %v340 = vunpack.c.h.b16 %v204
    %v341 = vpack.c.b16 %v279, %v277
    %v342 = vpack.c.b16 %v280, %v278
    %v343 = vpack.c.b16 %v283, %v281
    %v344 = vpack.c.b16 %v284, %v282
    %v345 = vpack.c.b16 %v287, %v285
    %v346 = vpack.c.b16 %v288, %v286
    %v347 = vpack.c.b16 %v291, %v289
    %v348 = vpack.c.b16 %v292, %v290
    %v349 = vpack.c.b16 %v295, %v293
    %v350 = vpack.c.b16 %v296, %v294
    %v351 = vpack.c.b16 %v299, %v297
    %v352 = vpack.c.b16 %v300, %v298
    %v353 = vpack.c.b16 %v303, %v301
    %v354 = vpack.c.b16 %v304, %v302
    %v355 = vpack.c.b16 %v307, %v305
    %v356 = vpack.c.b16 %v308, %v306
    %v357 = vpack.c.b16 %v311, %v309
    %v358 = vpack.c.b16 %v312, %v310
    %v359 = vpack.c.b16 %v315, %v313
    %v360 = vpack.c.b16 %v316, %v314
    %v361 = vpack.c.b16 %v319, %v317
    %v362 = vpack.c.b16 %v320, %v318
    %v363 = vpack.c.b16 %v323, %v321
    %v364 = vpack.c.b16 %v324, %v322
    %v365 = vpack.c.b16 %v327, %v325
    %v366 = vpack.c.b16 %v328, %v326
    %v367 = vpack.c.b16 %v331, %v329
    %v368 = vpack.c.b16 %v332, %v330
    %v369 = vpack.c.b16 %v335, %v333
    %v370 = vpack.c.b16 %v336, %v334
    %v371 = vpack.c.b16 %v339, %v337
    %v372 = vpack.c.b16 %v340, %v338
    %405 = vmatpush.bf16.msra.mxu0 %v355
    %406 = vmatpush.bf16.msra.mxu0 %v353
    %407 = vmatpush.bf16.msra.mxu0 %v351
    %408 = vmatpush.bf16.msra.mxu0 %v349
    %409 = vmatpush.bf16.msra.mxu0 %v347
    %410 = vmatpush.bf16.msra.mxu0 %v345
    %411 = vmatpush.bf16.msra.mxu0 %v343
    %412 = vmatpush.bf16.msra.mxu0 %v341
    %413 = vmatmul.bf16.gmra.mxu0 %v229
    %v414 = vpop.f32.mrf.mxu0
    %v415 = vadd.f32 0.0, %v414
    %v416 = vpop.f32.mrf.mxu0
    %v417 = vadd.f32 0.0, %v416
    %418 = vmatmul.bf16.gmra.mxu0 %v231
    %v419 = vpop.f32.mrf.mxu0
    %v420 = vadd.f32 0.0, %v419
    %v421 = vpop.f32.mrf.mxu0
    %v422 = vadd.f32 0.0, %v421
    %423 = vmatmul.bf16.gmra.mxu0 %v233
    %v424 = vpop.f32.mrf.mxu0
    %v425 = vadd.f32 0.0, %v424
    %v426 = vpop.f32.mrf.mxu0
    %v427 = vadd.f32 0.0, %v426
    %428 = vmatmul.bf16.gmra.mxu0 %v235
    %v429 = vpop.f32.mrf.mxu0
    %v430 = vadd.f32 0.0, %v429
    %v431 = vpop.f32.mrf.mxu0
    %v432 = vadd.f32 0.0, %v431
    %433 = vdwg.mxu0
    %434 = vmatpush.bf16.msra.mxu0 %v371
    %435 = vmatpush.bf16.msra.mxu0 %v369
    %436 = vmatpush.bf16.msra.mxu0 %v367
    %437 = vmatpush.bf16.msra.mxu0 %v365
    %438 = vmatpush.bf16.msra.mxu0 %v363
    %439 = vmatpush.bf16.msra.mxu0 %v361
    %440 = vmatpush.bf16.msra.mxu0 %v359
    %441 = vmatpush.bf16.msra.mxu0 %v357
    %442 = vmatmul.bf16.gmra.mxu0 %v230
    %v443 = vpop.f32.mrf.mxu0
    %v444 = vadd.f32 %v415, %v443
    %v445 = vpop.f32.mrf.mxu0
    %v446 = vadd.f32 %v417, %v445
    %447 = vmatmul.bf16.gmra.mxu0 %v232
    %v448 = vpop.f32.mrf.mxu0
    %v449 = vadd.f32 %v420, %v448
    %v450 = vpop.f32.mrf.mxu0
    %v451 = vadd.f32 %v422, %v450
    %452 = vmatmul.bf16.gmra.mxu0 %v234
    %v453 = vpop.f32.mrf.mxu0
    %v454 = vadd.f32 %v425, %v453
    %v455 = vpop.f32.mrf.mxu0
    %v456 = vadd.f32 %v427, %v455
    %457 = vmatmul.bf16.gmra.mxu0 %v236
    %v458 = vpop.f32.mrf.mxu0
    %v459 = vadd.f32 %v430, %v458
    %v460 = vpop.f32.mrf.mxu0
    %v461 = vadd.f32 %v432, %v460
    %462 = vdwg.mxu0
    %463 = vmatpush.bf16.msra.mxu0 %v356
    %464 = vmatpush.bf16.msra.mxu0 %v354
    %465 = vmatpush.bf16.msra.mxu0 %v352
    %466 = vmatpush.bf16.msra.mxu0 %v350
    %467 = vmatpush.bf16.msra.mxu0 %v348
    %468 = vmatpush.bf16.msra.mxu0 %v346
    %469 = vmatpush.bf16.msra.mxu0 %v344
    %470 = vmatpush.bf16.msra.mxu0 %v342
    %471 = vmatmul.bf16.gmra.mxu0 %v229
    %v472 = vpop.f32.mrf.mxu0
    %v473 = vadd.f32 0.0, %v472
    %v474 = vpop.f32.mrf.mxu0
    %v475 = vadd.f32 0.0, %v474
    %476 = vmatmul.bf16.gmra.mxu0 %v231
    %v477 = vpop.f32.mrf.mxu0
    %v478 = vadd.f32 0.0, %v477
    %v479 = vpop.f32.mrf.mxu0
    %v480 = vadd.f32 0.0, %v479
    %481 = vmatmul.bf16.gmra.mxu0 %v233
    %v482 = vpop.f32.mrf.mxu0
    %v483 = vadd.f32 0.0, %v482
    %v484 = vpop.f32.mrf.mxu0
    %v485 = vadd.f32 0.0, %v484
    %486 = vmatmul.bf16.gmra.mxu0 %v235
    %v487 = vpop.f32.mrf.mxu0
    %v488 = vadd.f32 0.0, %v487
    %v489 = vpop.f32.mrf.mxu0
    %v490 = vadd.f32 0.0, %v489
    %491 = vdwg.mxu0
    %492 = vmatpush.bf16.msra.mxu0 %v372
    %493 = vmatpush.bf16.msra.mxu0 %v370
    %494 = vmatpush.bf16.msra.mxu0 %v368
    %495 = vmatpush.bf16.msra.mxu0 %v366
    %496 = vmatpush.bf16.msra.mxu0 %v364
    %497 = vmatpush.bf16.msra.mxu0 %v362
    %498 = vmatpush.bf16.msra.mxu0 %v360
    %499 = vmatpush.bf16.msra.mxu0 %v358
    %500 = vmatmul.bf16.gmra.mxu0 %v230
    %v501 = vpop.f32.mrf.mxu0
    %v502 = vadd.f32 %v473, %v501
    %v503 = vpop.f32.mrf.mxu0
    %v504 = vadd.f32 %v475, %v503
    %505 = vmatmul.bf16.gmra.mxu0 %v232
    %v506 = vpop.f32.mrf.mxu0
    %v507 = vadd.f32 %v478, %v506
    %v508 = vpop.f32.mrf.mxu0
    %v509 = vadd.f32 %v480, %v508
    %510 = vmatmul.bf16.gmra.mxu0 %v234
    %v511 = vpop.f32.mrf.mxu0
    %v512 = vadd.f32 %v483, %v511
    %v513 = vpop.f32.mrf.mxu0
    %v514 = vadd.f32 %v485, %v513
    %515 = vmatmul.bf16.gmra.mxu0 %v236
    %v516 = vpop.f32.mrf.mxu0
    %v517 = vadd.f32 %v488, %v516
    %v518 = vpop.f32.mrf.mxu0
    %v519 = vadd.f32 %v490, %v518
    %520 = vdwg.mxu0
    %v523 = vunpack.c.l.b16 %v116
    %v524 = vunpack.c.h.b16 %v116
    %v525 = vunpack.c.l.b16 %v128
    %v526 = vunpack.c.h.b16 %v128
    %v527 = vpack.c.b16 %v213, %v523
    %v528 = vpack.c.b16 %v214, %v524
    %v529 = vpack.c.b16 %v217, %v215
    %v530 = vpack.c.b16 %v218, %v216
    %v531 = vpack.c.b16 %v221, %v525
    %v532 = vpack.c.b16 %v222, %v526
    %v533 = vpack.c.b16 %v225, %v223
    %v534 = vpack.c.b16 %v226, %v224
    %v575 = vunpack.c.l.b16 %v140
    %v576 = vunpack.c.h.b16 %v140
    %v577 = vunpack.c.l.b16 %v141
    %v578 = vunpack.c.h.b16 %v141
    %v579 = vunpack.c.l.b16 %v142
    %v580 = vunpack.c.h.b16 %v142
    %v581 = vunpack.c.l.b16 %v143
    %v582 = vunpack.c.h.b16 %v143
    %v583 = vunpack.c.l.b16 %v144
    %v584 = vunpack.c.h.b16 %v144
    %v585 = vunpack.c.l.b16 %v145
    %v586 = vunpack.c.h.b16 %v145
    %v587 = vunpack.c.l.b16 %v146
    %v588 = vunpack.c.h.b16 %v146
    %v589 = vunpack.c.l.b16 %v147
    %v590 = vunpack.c.h.b16 %v147
    %v591 = vunpack.c.l.b16 %v148
    %v592 = vunpack.c.h.b16 %v148
    %v593 = vunpack.c.l.b16 %v149
    %v594 = vunpack.c.h.b16 %v149
    %v595 = vunpack.c.l.b16 %v150
    %v596 = vunpack.c.h.b16 %v150
    %v597 = vunpack.c.l.b16 %v151
    %v598 = vunpack.c.h.b16 %v151
    %v599 = vunpack.c.l.b16 %v152
    %v600 = vunpack.c.h.b16 %v152
    %v601 = vunpack.c.l.b16 %v153
    %v602 = vunpack.c.h.b16 %v153
    %v603 = vunpack.c.l.b16 %v154
    %v604 = vunpack.c.h.b16 %v154
    %v605 = vunpack.c.l.b16 %v155
    %v606 = vunpack.c.h.b16 %v155
    %v607 = vunpack.c.l.b16 %v156
    %v608 = vunpack.c.h.b16 %v156
    %v609 = vunpack.c.l.b16 %v157
    %v610 = vunpack.c.h.b16 %v157
    %v611 = vunpack.c.l.b16 %v158
    %v612 = vunpack.c.h.b16 %v158
    %v613 = vunpack.c.l.b16 %v159
    %v614 = vunpack.c.h.b16 %v159
    %v615 = vunpack.c.l.b16 %v160
    %v616 = vunpack.c.h.b16 %v160
    %v617 = vunpack.c.l.b16 %v161
    %v618 = vunpack.c.h.b16 %v161
    %v619 = vunpack.c.l.b16 %v162
    %v620 = vunpack.c.h.b16 %v162
    %v621 = vunpack.c.l.b16 %v163
    %v622 = vunpack.c.h.b16 %v163
    %v623 = vunpack.c.l.b16 %v164
    %v624 = vunpack.c.h.b16 %v164
    %v625 = vunpack.c.l.b16 %v165
    %v626 = vunpack.c.h.b16 %v165
    %v627 = vunpack.c.l.b16 %v166
    %v628 = vunpack.c.h.b16 %v166
    %v629 = vunpack.c.l.b16 %v167
    %v630 = vunpack.c.h.b16 %v167
    %v631 = vunpack.c.l.b16 %v168
    %v632 = vunpack.c.h.b16 %v168
    %v633 = vunpack.c.l.b16 %v169
    %v634 = vunpack.c.h.b16 %v169
    %v635 = vunpack.c.l.b16 %v170
    %v636 = vunpack.c.h.b16 %v170
    %v637 = vunpack.c.l.b16 %v171
    %v638 = vunpack.c.h.b16 %v171
    %v639 = vpack.c.b16 %v577, %v575
    %v640 = vpack.c.b16 %v578, %v576
    %v641 = vpack.c.b16 %v581, %v579
    %v642 = vpack.c.b16 %v582, %v580
    %v643 = vpack.c.b16 %v585, %v583
    %v644 = vpack.c.b16 %v586, %v584
    %v645 = vpack.c.b16 %v589, %v587
    %v646 = vpack.c.b16 %v590, %v588
    %v647 = vpack.c.b16 %v593, %v591
    %v648 = vpack.c.b16 %v594, %v592
    %v649 = vpack.c.b16 %v597, %v595
    %v650 = vpack.c.b16 %v598, %v596
    %v651 = vpack.c.b16 %v601, %v599
    %v652 = vpack.c.b16 %v602, %v600
    %v653 = vpack.c.b16 %v605, %v603
    %v654 = vpack.c.b16 %v606, %v604
    %v655 = vpack.c.b16 %v609, %v607
    %v656 = vpack.c.b16 %v610, %v608
    %v657 = vpack.c.b16 %v613, %v611
    %v658 = vpack.c.b16 %v614, %v612
    %v659 = vpack.c.b16 %v617, %v615
    %v660 = vpack.c.b16 %v618, %v616
    %v661 = vpack.c.b16 %v621, %v619
    %v662 = vpack.c.b16 %v622, %v620
    %v663 = vpack.c.b16 %v625, %v623
    %v664 = vpack.c.b16 %v626, %v624
    %v665 = vpack.c.b16 %v629, %v627
    %v666 = vpack.c.b16 %v630, %v628
    %v667 = vpack.c.b16 %v633, %v631
    %v668 = vpack.c.b16 %v634, %v632
    %v669 = vpack.c.b16 %v637, %v635
    %v670 = vpack.c.b16 %v638, %v636
    %703 = vmatpush.bf16.msra.mxu0 %v653
    %704 = vmatpush.bf16.msra.mxu0 %v651
    %705 = vmatpush.bf16.msra.mxu0 %v649
    %706 = vmatpush.bf16.msra.mxu0 %v647
    %707 = vmatpush.bf16.msra.mxu0 %v645
    %708 = vmatpush.bf16.msra.mxu0 %v643
    %709 = vmatpush.bf16.msra.mxu0 %v641
    %710 = vmatpush.bf16.msra.mxu0 %v639
    %711 = vmatmul.bf16.gmra.mxu0 %v527
    %v712 = vpop.f32.mrf.mxu0
    %v713 = vadd.f32 %v444, %v712
    %v714 = vpop.f32.mrf.mxu0
    %v715 = vadd.f32 %v446, %v714
    %716 = vmatmul.bf16.gmra.mxu0 %v529
    %v717 = vpop.f32.mrf.mxu0
    %v718 = vadd.f32 %v449, %v717
    %v719 = vpop.f32.mrf.mxu0
    %v720 = vadd.f32 %v451, %v719
    %721 = vmatmul.bf16.gmra.mxu0 %v531
    %v722 = vpop.f32.mrf.mxu0
    %v723 = vadd.f32 %v454, %v722
    %v724 = vpop.f32.mrf.mxu0
    %v725 = vadd.f32 %v456, %v724
    %726 = vmatmul.bf16.gmra.mxu0 %v533
    %v727 = vpop.f32.mrf.mxu0
    %v728 = vadd.f32 %v459, %v727
    %v729 = vpop.f32.mrf.mxu0
    %v730 = vadd.f32 %v461, %v729
    %731 = vdwg.mxu0
    %732 = vmatpush.bf16.msra.mxu0 %v669
    %733 = vmatpush.bf16.msra.mxu0 %v667
    %734 = vmatpush.bf16.msra.mxu0 %v665
    %735 = vmatpush.bf16.msra.mxu0 %v663
    %736 = vmatpush.bf16.msra.mxu0 %v661
    %737 = vmatpush.bf16.msra.mxu0 %v659
    %738 = vmatpush.bf16.msra.mxu0 %v657
    %739 = vmatpush.bf16.msra.mxu0 %v655
    %740 = vmatmul.bf16.gmra.mxu0 %v528
    %v741 = vpop.f32.mrf.mxu0
    %v742 = vadd.f32 %v713, %v741
    %v743 = vpop.f32.mrf.mxu0
    %v744 = vadd.f32 %v715, %v743
    %745 = vmatmul.bf16.gmra.mxu0 %v530
    %v746 = vpop.f32.mrf.mxu0
    %v747 = vadd.f32 %v718, %v746
    %v748 = vpop.f32.mrf.mxu0
    %v749 = vadd.f32 %v720, %v748
    %750 = vmatmul.bf16.gmra.mxu0 %v532
    %v751 = vpop.f32.mrf.mxu0
    %v752 = vadd.f32 %v723, %v751
    %v753 = vpop.f32.mrf.mxu0
    %v754 = vadd.f32 %v725, %v753
    %755 = vmatmul.bf16.gmra.mxu0 %v534
    %v756 = vpop.f32.mrf.mxu0
    %v757 = vadd.f32 %v728, %v756
    %v758 = vpop.f32.mrf.mxu0
    %v759 = vadd.f32 %v730, %v758
    %760 = vdwg.mxu0
    %761 = vmatpush.bf16.msra.mxu0 %v654
    %762 = vmatpush.bf16.msra.mxu0 %v652
    %763 = vmatpush.bf16.msra.mxu0 %v650
    %764 = vmatpush.bf16.msra.mxu0 %v648
    %765 = vmatpush.bf16.msra.mxu0 %v646
    %766 = vmatpush.bf16.msra.mxu0 %v644
    %767 = vmatpush.bf16.msra.mxu0 %v642
    %768 = vmatpush.bf16.msra.mxu0 %v640
    %769 = vmatmul.bf16.gmra.mxu0 %v527
    %v770 = vpop.f32.mrf.mxu0
    %v771 = vadd.f32 %v502, %v770
    %v772 = vpop.f32.mrf.mxu0
    %v773 = vadd.f32 %v504, %v772
    %774 = vmatmul.bf16.gmra.mxu0 %v529
    %v775 = vpop.f32.mrf.mxu0
    %v776 = vadd.f32 %v507, %v775
    %v777 = vpop.f32.mrf.mxu0
    %v778 = vadd.f32 %v509, %v777
    %779 = vmatmul.bf16.gmra.mxu0 %v531
    %v780 = vpop.f32.mrf.mxu0
    %v781 = vadd.f32 %v512, %v780
    %v782 = vpop.f32.mrf.mxu0
    %v783 = vadd.f32 %v514, %v782
    %784 = vmatmul.bf16.gmra.mxu0 %v533
    %v785 = vpop.f32.mrf.mxu0
    %v786 = vadd.f32 %v517, %v785
    %v787 = vpop.f32.mrf.mxu0
    %v788 = vadd.f32 %v519, %v787
    %789 = vdwg.mxu0
    %790 = vmatpush.bf16.msra.mxu0 %v670
    %791 = vmatpush.bf16.msra.mxu0 %v668
    %792 = vmatpush.bf16.msra.mxu0 %v666
    %793 = vmatpush.bf16.msra.mxu0 %v664
    %794 = vmatpush.bf16.msra.mxu0 %v662
    %795 = vmatpush.bf16.msra.mxu0 %v660
    %796 = vmatpush.bf16.msra.mxu0 %v658
    %797 = vmatpush.bf16.msra.mxu0 %v656
    %798 = vmatmul.bf16.gmra.mxu0 %v528
    %v799 = vpop.f32.mrf.mxu0
    %v800 = vadd.f32 %v771, %v799
    %v801 = vpop.f32.mrf.mxu0
    %v802 = vadd.f32 %v773, %v801
    %803 = vmatmul.bf16.gmra.mxu0 %v530
    %v804 = vpop.f32.mrf.mxu0
    %v805 = vadd.f32 %v776, %v804
    %v806 = vpop.f32.mrf.mxu0
    %v807 = vadd.f32 %v778, %v806
    %808 = vmatmul.bf16.gmra.mxu0 %v532
    %v809 = vpop.f32.mrf.mxu0
    %v810 = vadd.f32 %v781, %v809
    %v811 = vpop.f32.mrf.mxu0
    %v812 = vadd.f32 %v783, %v811
    %813 = vmatmul.bf16.gmra.mxu0 %v534
    %v814 = vpop.f32.mrf.mxu0
    %v815 = vadd.f32 %v786, %v814
    %v816 = vpop.f32.mrf.mxu0
    %v817 = vadd.f32 %v788, %v816
    %818 = vdwg.mxu0
    %s819 = scalar_lea.vmem [#allocation3], 1536
    %v820 = vld [vmem:[%s819] sm:$0xff]
    %v821 = vld [vmem:[%s819 + $0x8] sm:$0xff]
    %v822 = vld [vmem:[%s819 + $0x10] sm:$0xff]
    %v823 = vld [vmem:[%s819 + $0x18] sm:$0xff]
    %v824 = vld [vmem:[%s819 + $0x20] sm:$0xff]
    %v825 = vld [vmem:[%s819 + $0x28] sm:$0xff]
    %v826 = vld [vmem:[%s819 + $0x30] sm:$0xff]
    %v827 = vld [vmem:[%s819 + $0x38] sm:$0xff]
    %v828 = vld [vmem:[%s819 + $0x40] sm:$0xff]
    %v829 = vld [vmem:[%s819 + $0x48] sm:$0xff]
    %v830 = vld [vmem:[%s819 + $0x50] sm:$0xff]
    %v831 = vld [vmem:[%s819 + $0x58] sm:$0xff]
    %v832 = vld [vmem:[%s819 + $0x60] sm:$0xff]
    %v833 = vld [vmem:[%s819 + $0x68] sm:$0xff]
    %v834 = vld [vmem:[%s819 + $0x70] sm:$0xff]
    %v835 = vld [vmem:[%s819 + $0x78] sm:$0xff]
    %v836 = vld [vmem:[%s819 + $0x80] sm:$0xff]
    %v837 = vld [vmem:[%s819 + $0x88] sm:$0xff]
    %v838 = vld [vmem:[%s819 + $0x90] sm:$0xff]
    %v839 = vld [vmem:[%s819 + $0x98] sm:$0xff]
    %v840 = vld [vmem:[%s819 + $0xa0] sm:$0xff]
    %v841 = vld [vmem:[%s819 + $0xa8] sm:$0xff]
    %v842 = vld [vmem:[%s819 + $0xb0] sm:$0xff]
    %v843 = vld [vmem:[%s819 + $0xb8] sm:$0xff]
    %v844 = vld [vmem:[%s819 + $0xc0] sm:$0xff]
    %v845 = vld [vmem:[%s819 + $0xc8] sm:$0xff]
    %v846 = vld [vmem:[%s819 + $0xd0] sm:$0xff]
    %v847 = vld [vmem:[%s819 + $0xd8] sm:$0xff]
    %v848 = vld [vmem:[%s819 + $0xe0] sm:$0xff]
    %v849 = vld [vmem:[%s819 + $0xe8] sm:$0xff]
    %v850 = vld [vmem:[%s819 + $0xf0] sm:$0xff]
    %v851 = vld [vmem:[%s819 + $0xf8] sm:$0xff]
    %v854 = vunpack.c.l.b16 %v126
    %v855 = vunpack.c.h.b16 %v126
    %v856 = vunpack.c.l.b16 %v138
    %v857 = vunpack.c.h.b16 %v138
    %v858 = vpack.c.b16 %v854, %v219
    %v859 = vpack.c.b16 %v855, %v220
    %v860 = vpack.c.b16 %v856, %v227
    %v861 = vpack.c.b16 %v857, %v228
    %v898 = vunpack.c.l.b16 %v820
    %v899 = vunpack.c.h.b16 %v820
    %v900 = vunpack.c.l.b16 %v821
    %v901 = vunpack.c.h.b16 %v821
    %v902 = vunpack.c.l.b16 %v822
    %v903 = vunpack.c.h.b16 %v822
    %v904 = vunpack.c.l.b16 %v823
    %v905 = vunpack.c.h.b16 %v823
    %v906 = vunpack.c.l.b16 %v824
    %v907 = vunpack.c.h.b16 %v824
    %v908 = vunpack.c.l.b16 %v825
    %v909 = vunpack.c.h.b16 %v825
    %v910 = vunpack.c.l.b16 %v826
    %v911 = vunpack.c.h.b16 %v826
    %v912 = vunpack.c.l.b16 %v827
    %v913 = vunpack.c.h.b16 %v827
    %v914 = vunpack.c.l.b16 %v828
    %v915 = vunpack.c.h.b16 %v828
    %v916 = vunpack.c.l.b16 %v829
    %v917 = vunpack.c.h.b16 %v829
    %v918 = vunpack.c.l.b16 %v830
    %v919 = vunpack.c.h.b16 %v830
    %v920 = vunpack.c.l.b16 %v831
    %v921 = vunpack.c.h.b16 %v831
    %v922 = vunpack.c.l.b16 %v832
    %v923 = vunpack.c.h.b16 %v832
    %v924 = vunpack.c.l.b16 %v833
    %v925 = vunpack.c.h.b16 %v833
    %v926 = vunpack.c.l.b16 %v834
    %v927 = vunpack.c.h.b16 %v834
    %v928 = vunpack.c.l.b16 %v835
    %v929 = vunpack.c.h.b16 %v835
    %v930 = vunpack.c.l.b16 %v836
    %v931 = vunpack.c.h.b16 %v836
    %v932 = vunpack.c.l.b16 %v837
    %v933 = vunpack.c.h.b16 %v837
    %v934 = vunpack.c.l.b16 %v838
    %v935 = vunpack.c.h.b16 %v838
    %v936 = vunpack.c.l.b16 %v839
    %v937 = vunpack.c.h.b16 %v839
    %v938 = vunpack.c.l.b16 %v840
    %v939 = vunpack.c.h.b16 %v840
    %v940 = vunpack.c.l.b16 %v841
    %v941 = vunpack.c.h.b16 %v841
    %v942 = vunpack.c.l.b16 %v842
    %v943 = vunpack.c.h.b16 %v842
    %v944 = vunpack.c.l.b16 %v843
    %v945 = vunpack.c.h.b16 %v843
    %v946 = vunpack.c.l.b16 %v844
    %v947 = vunpack.c.h.b16 %v844
    %v948 = vunpack.c.l.b16 %v845
    %v949 = vunpack.c.h.b16 %v845
    %v950 = vunpack.c.l.b16 %v846
    %v951 = vunpack.c.h.b16 %v846
    %v952 = vunpack.c.l.b16 %v847
    %v953 = vunpack.c.h.b16 %v847
    %v954 = vunpack.c.l.b16 %v848
    %v955 = vunpack.c.h.b16 %v848
    %v956 = vunpack.c.l.b16 %v849
    %v957 = vunpack.c.h.b16 %v849
    %v958 = vunpack.c.l.b16 %v850
    %v959 = vunpack.c.h.b16 %v850
    %v960 = vunpack.c.l.b16 %v851
    %v961 = vunpack.c.h.b16 %v851
    %v962 = vpack.c.b16 %v900, %v898
    %v963 = vpack.c.b16 %v901, %v899
    %v964 = vpack.c.b16 %v904, %v902
    %v965 = vpack.c.b16 %v905, %v903
    %v966 = vpack.c.b16 %v908, %v906
    %v967 = vpack.c.b16 %v909, %v907
    %v968 = vpack.c.b16 %v912, %v910
    %v969 = vpack.c.b16 %v913, %v911
    %v970 = vpack.c.b16 %v916, %v914
    %v971 = vpack.c.b16 %v917, %v915
    %v972 = vpack.c.b16 %v920, %v918
    %v973 = vpack.c.b16 %v921, %v919
    %v974 = vpack.c.b16 %v924, %v922
    %v975 = vpack.c.b16 %v925, %v923
    %v976 = vpack.c.b16 %v928, %v926
    %v977 = vpack.c.b16 %v929, %v927
    %v978 = vpack.c.b16 %v932, %v930
    %v979 = vpack.c.b16 %v933, %v931
    %v980 = vpack.c.b16 %v936, %v934
    %v981 = vpack.c.b16 %v937, %v935
    %v982 = vpack.c.b16 %v940, %v938
    %v983 = vpack.c.b16 %v941, %v939
    %v984 = vpack.c.b16 %v944, %v942
    %v985 = vpack.c.b16 %v945, %v943
    %v986 = vpack.c.b16 %v948, %v946
    %v987 = vpack.c.b16 %v949, %v947
    %v988 = vpack.c.b16 %v952, %v950
    %v989 = vpack.c.b16 %v953, %v951
    %v990 = vpack.c.b16 %v956, %v954
    %v991 = vpack.c.b16 %v957, %v955
    %v992 = vpack.c.b16 %v960, %v958
    %v993 = vpack.c.b16 %v961, %v959
    %1026 = vmatpush.bf16.msra.mxu0 %v976
    %1027 = vmatpush.bf16.msra.mxu0 %v974
    %1028 = vmatpush.bf16.msra.mxu0 %v972
    %1029 = vmatpush.bf16.msra.mxu0 %v970
    %1030 = vmatpush.bf16.msra.mxu0 %v968
    %1031 = vmatpush.bf16.msra.mxu0 %v966
    %1032 = vmatpush.bf16.msra.mxu0 %v964
    %1033 = vmatpush.bf16.msra.mxu0 %v962
    %1034 = vmatmul.bf16.gmra.mxu0 %v529
    %v1035 = vpop.f32.mrf.mxu0
    %v1036 = vadd.f32 0.0, %v1035
    %v1037 = vpop.f32.mrf.mxu0
    %v1038 = vadd.f32 0.0, %v1037
    %1039 = vmatmul.bf16.gmra.mxu0 %v858
    %v1040 = vpop.f32.mrf.mxu0
    %v1041 = vadd.f32 0.0, %v1040
    %v1042 = vpop.f32.mrf.mxu0
    %v1043 = vadd.f32 0.0, %v1042
    %1044 = vmatmul.bf16.gmra.mxu0 %v533
    %v1045 = vpop.f32.mrf.mxu0
    %v1046 = vadd.f32 0.0, %v1045
    %v1047 = vpop.f32.mrf.mxu0
    %v1048 = vadd.f32 0.0, %v1047
    %1049 = vmatmul.bf16.gmra.mxu0 %v860
    %v1050 = vpop.f32.mrf.mxu0
    %v1051 = vadd.f32 0.0, %v1050
    %v1052 = vpop.f32.mrf.mxu0
    %v1053 = vadd.f32 0.0, %v1052
    %1054 = vdwg.mxu0
    %1055 = vmatpush.bf16.msra.mxu0 %v992
    %1056 = vmatpush.bf16.msra.mxu0 %v990
    %1057 = vmatpush.bf16.msra.mxu0 %v988
    %1058 = vmatpush.bf16.msra.mxu0 %v986
    %1059 = vmatpush.bf16.msra.mxu0 %v984
    %1060 = vmatpush.bf16.msra.mxu0 %v982
    %1061 = vmatpush.bf16.msra.mxu0 %v980
    %1062 = vmatpush.bf16.msra.mxu0 %v978
    %1063 = vmatmul.bf16.gmra.mxu0 %v530
    %v1064 = vpop.f32.mrf.mxu0
    %v1065 = vadd.f32 %v1036, %v1064
    %v1066 = vpop.f32.mrf.mxu0
    %v1067 = vadd.f32 %v1038, %v1066
    %1068 = vmatmul.bf16.gmra.mxu0 %v859
    %v1069 = vpop.f32.mrf.mxu0
    %v1070 = vadd.f32 %v1041, %v1069
    %v1071 = vpop.f32.mrf.mxu0
    %v1072 = vadd.f32 %v1043, %v1071
    %1073 = vmatmul.bf16.gmra.mxu0 %v534
    %v1074 = vpop.f32.mrf.mxu0
    %v1075 = vadd.f32 %v1046, %v1074
    %v1076 = vpop.f32.mrf.mxu0
    %v1077 = vadd.f32 %v1048, %v1076
    %1078 = vmatmul.bf16.gmra.mxu0 %v861
    %v1079 = vpop.f32.mrf.mxu0
    %v1080 = vadd.f32 %v1051, %v1079
    %v1081 = vpop.f32.mrf.mxu0
    %v1082 = vadd.f32 %v1053, %v1081
    %1083 = vdwg.mxu0
    %1084 = vmatpush.bf16.msra.mxu0 %v977
    %1085 = vmatpush.bf16.msra.mxu0 %v975
    %1086 = vmatpush.bf16.msra.mxu0 %v973
    %1087 = vmatpush.bf16.msra.mxu0 %v971
    %1088 = vmatpush.bf16.msra.mxu0 %v969
    %1089 = vmatpush.bf16.msra.mxu0 %v967
    %1090 = vmatpush.bf16.msra.mxu0 %v965
    %1091 = vmatpush.bf16.msra.mxu0 %v963
    %1092 = vmatmul.bf16.gmra.mxu0 %v529
    %v1093 = vpop.f32.mrf.mxu0
    %v1094 = vadd.f32 0.0, %v1093
    %v1095 = vpop.f32.mrf.mxu0
    %v1096 = vadd.f32 0.0, %v1095
    %1097 = vmatmul.bf16.gmra.mxu0 %v858
    %v1098 = vpop.f32.mrf.mxu0
    %v1099 = vadd.f32 0.0, %v1098
    %v1100 = vpop.f32.mrf.mxu0
    %v1101 = vadd.f32 0.0, %v1100
    %1102 = vmatmul.bf16.gmra.mxu0 %v533
    %v1103 = vpop.f32.mrf.mxu0
    %v1104 = vadd.f32 0.0, %v1103
    %v1105 = vpop.f32.mrf.mxu0
    %v1106 = vadd.f32 0.0, %v1105
    %1107 = vmatmul.bf16.gmra.mxu0 %v860
    %v1108 = vpop.f32.mrf.mxu0
    %v1109 = vadd.f32 0.0, %v1108
    %v1110 = vpop.f32.mrf.mxu0
    %v1111 = vadd.f32 0.0, %v1110
    %1112 = vdwg.mxu0
    %1113 = vmatpush.bf16.msra.mxu0 %v993
    %1114 = vmatpush.bf16.msra.mxu0 %v991
    %1115 = vmatpush.bf16.msra.mxu0 %v989
    %1116 = vmatpush.bf16.msra.mxu0 %v987
    %1117 = vmatpush.bf16.msra.mxu0 %v985
    %1118 = vmatpush.bf16.msra.mxu0 %v983
    %1119 = vmatpush.bf16.msra.mxu0 %v981
    %1120 = vmatpush.bf16.msra.mxu0 %v979
    %1121 = vmatmul.bf16.gmra.mxu0 %v530
    %v1122 = vpop.f32.mrf.mxu0
    %v1123 = vadd.f32 %v1094, %v1122
    %v1124 = vpop.f32.mrf.mxu0
    %v1125 = vadd.f32 %v1096, %v1124
    %1126 = vmatmul.bf16.gmra.mxu0 %v859
    %v1127 = vpop.f32.mrf.mxu0
    %v1128 = vadd.f32 %v1099, %v1127
    %v1129 = vpop.f32.mrf.mxu0
    %v1130 = vadd.f32 %v1101, %v1129
    %1131 = vmatmul.bf16.gmra.mxu0 %v534
    %v1132 = vpop.f32.mrf.mxu0
    %v1133 = vadd.f32 %v1104, %v1132
    %v1134 = vpop.f32.mrf.mxu0
    %v1135 = vadd.f32 %v1106, %v1134
    %1136 = vmatmul.bf16.gmra.mxu0 %v861
    %v1137 = vpop.f32.mrf.mxu0
    %v1138 = vadd.f32 %v1109, %v1137
    %v1139 = vpop.f32.mrf.mxu0
    %v1140 = vadd.f32 %v1111, %v1139
    %1141 = vdwg.mxu0
    %v1142 = vadd.f32 %v742, %v1065
    %v1143 = vadd.f32 %v800, %v1123
    %v1144 = vadd.f32 %v744, %v1067
    %v1145 = vadd.f32 %v802, %v1125
    %v1146 = vadd.f32 %v747, %v1070
    %v1147 = vadd.f32 %v805, %v1128
    %v1148 = vadd.f32 %v749, %v1072
    %v1149 = vadd.f32 %v807, %v1130
    %v1150 = vadd.f32 %v752, %v1075
    %v1151 = vadd.f32 %v810, %v1133
    %v1152 = vadd.f32 %v754, %v1077
    %v1153 = vadd.f32 %v812, %v1135
    %v1154 = vadd.f32 %v757, %v1080
    %v1155 = vadd.f32 %v815, %v1138
    %v1156 = vadd.f32 %v759, %v1082
    %v1157 = vadd.f32 %v817, %v1140
    %vm1158 = vsmask.f32 3328
    %vm1159 = vsmask.f32 7440
    %vm1160 = vmor %vm1158, %vm1159
    %v1162 = vshrl.u32 %v116, 16
    %v1164 = vrot.slane %v1162, 4
    %v1165 = vshll.u32 %v116, 16
    %v1167 = vrot.slane %v1165, 5
    %v1168 = vor.u32 %v1164, %v1167
    %v1169 = vrot.slane %v1168, 4
    %v1171 = vshll.u32 %v117, 16
    %v1173 = vrot.slane %v1171, 5
    %v1174 = vsel %vm1160, %v1169, %v1173
    %v1176 = vshrl.u32 %v118, 16
    %v1178 = vrot.slane %v1176, 4
    %v1179 = vshll.u32 %v118, 16
    %v1181 = vrot.slane %v1179, 5
    %v1182 = vor.u32 %v1178, %v1181
    %v1183 = vrot.slane %v1182, 4
    %v1185 = vshll.u32 %v119, 16
    %v1187 = vrot.slane %v1185, 5
    %v1188 = vsel %vm1160, %v1183, %v1187
    %v1190 = vshrl.u32 %v120, 16
    %v1192 = vrot.slane %v1190, 4
    %v1193 = vshll.u32 %v120, 16
    %v1195 = vrot.slane %v1193, 5
    %v1196 = vor.u32 %v1192, %v1195
    %v1197 = vrot.slane %v1196, 4
    %v1199 = vshll.u32 %v121, 16
    %v1201 = vrot.slane %v1199, 5
    %v1202 = vsel %vm1160, %v1197, %v1201
    %v1204 = vshrl.u32 %v122, 16
    %v1206 = vrot.slane %v1204, 4
    %v1207 = vshll.u32 %v122, 16
    %v1209 = vrot.slane %v1207, 5
    %v1210 = vor.u32 %v1206, %v1209
    %v1211 = vrot.slane %v1210, 4
    %v1213 = vshll.u32 %v123, 16
    %v1215 = vrot.slane %v1213, 5
    %v1216 = vsel %vm1160, %v1211, %v1215
    %v1218 = vshrl.u32 %v128, 16
    %v1220 = vrot.slane %v1218, 4
    %v1221 = vshll.u32 %v128, 16
    %v1223 = vrot.slane %v1221, 5
    %v1224 = vor.u32 %v1220, %v1223
    %v1225 = vrot.slane %v1224, 4
    %v1227 = vshll.u32 %v129, 16
    %v1229 = vrot.slane %v1227, 5
    %v1230 = vsel %vm1160, %v1225, %v1229
    %v1232 = vshrl.u32 %v130, 16
    %v1234 = vrot.slane %v1232, 4
    %v1235 = vshll.u32 %v130, 16
    %v1237 = vrot.slane %v1235, 5
    %v1238 = vor.u32 %v1234, %v1237
    %v1239 = vrot.slane %v1238, 4
    %v1241 = vshll.u32 %v131, 16
    %v1243 = vrot.slane %v1241, 5
    %v1244 = vsel %vm1160, %v1239, %v1243
    %v1246 = vshrl.u32 %v132, 16
    %v1248 = vrot.slane %v1246, 4
    %v1249 = vshll.u32 %v132, 16
    %v1251 = vrot.slane %v1249, 5
    %v1252 = vor.u32 %v1248, %v1251
    %v1253 = vrot.slane %v1252, 4
    %v1255 = vshll.u32 %v133, 16
    %v1257 = vrot.slane %v1255, 5
    %v1258 = vsel %vm1160, %v1253, %v1257
    %v1260 = vshrl.u32 %v134, 16
    %v1262 = vrot.slane %v1260, 4
    %v1263 = vshll.u32 %v134, 16
    %v1265 = vrot.slane %v1263, 5
    %v1266 = vor.u32 %v1262, %v1265
    %v1267 = vrot.slane %v1266, 4
    %v1269 = vshll.u32 %v135, 16
    %v1271 = vrot.slane %v1269, 5
    %v1272 = vsel %vm1160, %v1267, %v1271
    %s1273 = scalar_lea.vmem [#allocation3], 256
    %v1274 = vld [vmem:[%s1273] sm:$0xff]
    %v1275 = vld [vmem:[%s1273 + $0x8] sm:$0xff]
    %v1276 = vld [vmem:[%s1273 + $0x10] sm:$0xff]
    %v1277 = vld [vmem:[%s1273 + $0x18] sm:$0xff]
    %v1278 = vld [vmem:[%s1273 + $0x20] sm:$0xff]
    %v1279 = vld [vmem:[%s1273 + $0x28] sm:$0xff]
    %v1280 = vld [vmem:[%s1273 + $0x30] sm:$0xff]
    %v1281 = vld [vmem:[%s1273 + $0x38] sm:$0xff]
    %v1282 = vld [vmem:[%s1273 + $0x40] sm:$0xff]
    %v1283 = vld [vmem:[%s1273 + $0x48] sm:$0xff]
    %v1284 = vld [vmem:[%s1273 + $0x50] sm:$0xff]
    %v1285 = vld [vmem:[%s1273 + $0x58] sm:$0xff]
    %v1286 = vld [vmem:[%s1273 + $0x60] sm:$0xff]
    %v1287 = vld [vmem:[%s1273 + $0x68] sm:$0xff]
    %v1288 = vld [vmem:[%s1273 + $0x70] sm:$0xff]
    %v1289 = vld [vmem:[%s1273 + $0x78] sm:$0xff]
    %v1290 = vld [vmem:[%s1273 + $0x80] sm:$0xff]
    %v1291 = vld [vmem:[%s1273 + $0x88] sm:$0xff]
    %v1292 = vld [vmem:[%s1273 + $0x90] sm:$0xff]
    %v1293 = vld [vmem:[%s1273 + $0x98] sm:$0xff]
    %v1294 = vld [vmem:[%s1273 + $0xa0] sm:$0xff]
    %v1295 = vld [vmem:[%s1273 + $0xa8] sm:$0xff]
    %v1296 = vld [vmem:[%s1273 + $0xb0] sm:$0xff]
    %v1297 = vld [vmem:[%s1273 + $0xb8] sm:$0xff]
    %v1298 = vld [vmem:[%s1273 + $0xc0] sm:$0xff]
    %v1299 = vld [vmem:[%s1273 + $0xc8] sm:$0xff]
    %v1300 = vld [vmem:[%s1273 + $0xd0] sm:$0xff]
    %v1301 = vld [vmem:[%s1273 + $0xd8] sm:$0xff]
    %v1302 = vld [vmem:[%s1273 + $0xe0] sm:$0xff]
    %v1303 = vld [vmem:[%s1273 + $0xe8] sm:$0xff]
    %v1304 = vld [vmem:[%s1273 + $0xf0] sm:$0xff]
    %v1305 = vld [vmem:[%s1273 + $0xf8] sm:$0xff]
    %v1306 = vunpack.c.l.b16 %v1174
    %v1307 = vunpack.c.h.b16 %v1174
    %v1308 = vunpack.c.l.b16 %v1188
    %v1309 = vunpack.c.h.b16 %v1188
    %v1310 = vunpack.c.l.b16 %v1202
    %v1311 = vunpack.c.h.b16 %v1202
    %v1312 = vunpack.c.l.b16 %v1216
    %v1313 = vunpack.c.h.b16 %v1216
    %v1314 = vunpack.c.l.b16 %v1230
    %v1315 = vunpack.c.h.b16 %v1230
    %v1316 = vunpack.c.l.b16 %v1244
    %v1317 = vunpack.c.h.b16 %v1244
    %v1318 = vunpack.c.l.b16 %v1258
    %v1319 = vunpack.c.h.b16 %v1258
    %v1320 = vunpack.c.l.b16 %v1272
    %v1321 = vunpack.c.h.b16 %v1272
    %v1322 = vpack.c.b16 %v1308, %v1306
    %v1323 = vpack.c.b16 %v1309, %v1307
    %v1324 = vpack.c.b16 %v1312, %v1310
    %v1325 = vpack.c.b16 %v1313, %v1311
    %v1326 = vpack.c.b16 %v1316, %v1314
    %v1327 = vpack.c.b16 %v1317, %v1315
    %v1328 = vpack.c.b16 %v1320, %v1318
    %v1329 = vpack.c.b16 %v1321, %v1319
    %v1370 = vunpack.c.l.b16 %v1274
    %v1371 = vunpack.c.h.b16 %v1274
    %v1372 = vunpack.c.l.b16 %v1275
    %v1373 = vunpack.c.h.b16 %v1275
    %v1374 = vunpack.c.l.b16 %v1276
    %v1375 = vunpack.c.h.b16 %v1276
    %v1376 = vunpack.c.l.b16 %v1277
    %v1377 = vunpack.c.h.b16 %v1277
    %v1378 = vunpack.c.l.b16 %v1278
    %v1379 = vunpack.c.h.b16 %v1278
    %v1380 = vunpack.c.l.b16 %v1279
    %v1381 = vunpack.c.h.b16 %v1279
    %v1382 = vunpack.c.l.b16 %v1280
    %v1383 = vunpack.c.h.b16 %v1280
    %v1384 = vunpack.c.l.b16 %v1281
    %v1385 = vunpack.c.h.b16 %v1281
    %v1386 = vunpack.c.l.b16 %v1282
    %v1387 = vunpack.c.h.b16 %v1282
    %v1388 = vunpack.c.l.b16 %v1283
    %v1389 = vunpack.c.h.b16 %v1283
    %v1390 = vunpack.c.l.b16 %v1284
    %v1391 = vunpack.c.h.b16 %v1284
    %v1392 = vunpack.c.l.b16 %v1285
    %v1393 = vunpack.c.h.b16 %v1285
    %v1394 = vunpack.c.l.b16 %v1286
    %v1395 = vunpack.c.h.b16 %v1286
    %v1396 = vunpack.c.l.b16 %v1287
    %v1397 = vunpack.c.h.b16 %v1287
    %v1398 = vunpack.c.l.b16 %v1288
    %v1399 = vunpack.c.h.b16 %v1288
    %v1400 = vunpack.c.l.b16 %v1289
    %v1401 = vunpack.c.h.b16 %v1289
    %v1402 = vunpack.c.l.b16 %v1290
    %v1403 = vunpack.c.h.b16 %v1290
    %v1404 = vunpack.c.l.b16 %v1291
    %v1405 = vunpack.c.h.b16 %v1291
    %v1406 = vunpack.c.l.b16 %v1292
    %v1407 = vunpack.c.h.b16 %v1292
    %v1408 = vunpack.c.l.b16 %v1293
    %v1409 = vunpack.c.h.b16 %v1293
    %v1410 = vunpack.c.l.b16 %v1294
    %v1411 = vunpack.c.h.b16 %v1294
    %v1412 = vunpack.c.l.b16 %v1295
    %v1413 = vunpack.c.h.b16 %v1295
    %v1414 = vunpack.c.l.b16 %v1296
    %v1415 = vunpack.c.h.b16 %v1296
    %v1416 = vunpack.c.l.b16 %v1297
    %v1417 = vunpack.c.h.b16 %v1297
    %v1418 = vunpack.c.l.b16 %v1298
    %v1419 = vunpack.c.h.b16 %v1298
    %v1420 = vunpack.c.l.b16 %v1299
    %v1421 = vunpack.c.h.b16 %v1299
    %v1422 = vunpack.c.l.b16 %v1300
    %v1423 = vunpack.c.h.b16 %v1300
    %v1424 = vunpack.c.l.b16 %v1301
    %v1425 = vunpack.c.h.b16 %v1301
    %v1426 = vunpack.c.l.b16 %v1302
    %v1427 = vunpack.c.h.b16 %v1302
    %v1428 = vunpack.c.l.b16 %v1303
    %v1429 = vunpack.c.h.b16 %v1303
    %v1430 = vunpack.c.l.b16 %v1304
    %v1431 = vunpack.c.h.b16 %v1304
    %v1432 = vunpack.c.l.b16 %v1305
    %v1433 = vunpack.c.h.b16 %v1305
    %v1434 = vpack.c.b16 %v1372, %v1370
    %v1435 = vpack.c.b16 %v1373, %v1371
    %v1436 = vpack.c.b16 %v1376, %v1374
    %v1437 = vpack.c.b16 %v1377, %v1375
    %v1438 = vpack.c.b16 %v1380, %v1378
    %v1439 = vpack.c.b16 %v1381, %v1379
    %v1440 = vpack.c.b16 %v1384, %v1382
    %v1441 = vpack.c.b16 %v1385, %v1383
    %v1442 = vpack.c.b16 %v1388, %v1386
    %v1443 = vpack.c.b16 %v1389, %v1387
    %v1444 = vpack.c.b16 %v1392, %v1390
    %v1445 = vpack.c.b16 %v1393, %v1391
    %v1446 = vpack.c.b16 %v1396, %v1394
    %v1447 = vpack.c.b16 %v1397, %v1395
    %v1448 = vpack.c.b16 %v1400, %v1398
    %v1449 = vpack.c.b16 %v1401, %v1399
    %v1450 = vpack.c.b16 %v1404, %v1402
    %v1451 = vpack.c.b16 %v1405, %v1403
    %v1452 = vpack.c.b16 %v1408, %v1406
    %v1453 = vpack.c.b16 %v1409, %v1407
    %v1454 = vpack.c.b16 %v1412, %v1410
    %v1455 = vpack.c.b16 %v1413, %v1411
    %v1456 = vpack.c.b16 %v1416, %v1414
    %v1457 = vpack.c.b16 %v1417, %v1415
    %v1458 = vpack.c.b16 %v1420, %v1418
    %v1459 = vpack.c.b16 %v1421, %v1419
    %v1460 = vpack.c.b16 %v1424, %v1422
    %v1461 = vpack.c.b16 %v1425, %v1423
    %v1462 = vpack.c.b16 %v1428, %v1426
    %v1463 = vpack.c.b16 %v1429, %v1427
    %v1464 = vpack.c.b16 %v1432, %v1430
    %v1465 = vpack.c.b16 %v1433, %v1431
    %1498 = vmatpush.bf16.msra.mxu0 %v1448
    %1499 = vmatpush.bf16.msra.mxu0 %v1446
    %1500 = vmatpush.bf16.msra.mxu0 %v1444
    %1501 = vmatpush.bf16.msra.mxu0 %v1442
    %1502 = vmatpush.bf16.msra.mxu0 %v1440
    %1503 = vmatpush.bf16.msra.mxu0 %v1438
    %1504 = vmatpush.bf16.msra.mxu0 %v1436
    %1505 = vmatpush.bf16.msra.mxu0 %v1434
    %1506 = vmatmul.bf16.gmra.mxu0 %v1322
    %v1507 = vpop.f32.mrf.mxu0
    %v1508 = vadd.f32 0.0, %v1507
    %v1509 = vpop.f32.mrf.mxu0
    %v1510 = vadd.f32 0.0, %v1509
    %1511 = vmatmul.bf16.gmra.mxu0 %v1324
    %v1512 = vpop.f32.mrf.mxu0
    %v1513 = vadd.f32 0.0, %v1512
    %v1514 = vpop.f32.mrf.mxu0
    %v1515 = vadd.f32 0.0, %v1514
    %1516 = vmatmul.bf16.gmra.mxu0 %v1326
    %v1517 = vpop.f32.mrf.mxu0
    %v1518 = vadd.f32 0.0, %v1517
    %v1519 = vpop.f32.mrf.mxu0
    %v1520 = vadd.f32 0.0, %v1519
    %1521 = vmatmul.bf16.gmra.mxu0 %v1328
    %v1522 = vpop.f32.mrf.mxu0
    %v1523 = vadd.f32 0.0, %v1522
    %v1524 = vpop.f32.mrf.mxu0
    %v1525 = vadd.f32 0.0, %v1524
    %1526 = vdwg.mxu0
    %1527 = vmatpush.bf16.msra.mxu0 %v1464
    %1528 = vmatpush.bf16.msra.mxu0 %v1462
    %1529 = vmatpush.bf16.msra.mxu0 %v1460
    %1530 = vmatpush.bf16.msra.mxu0 %v1458
    %1531 = vmatpush.bf16.msra.mxu0 %v1456
    %1532 = vmatpush.bf16.msra.mxu0 %v1454
    %1533 = vmatpush.bf16.msra.mxu0 %v1452
    %1534 = vmatpush.bf16.msra.mxu0 %v1450
    %1535 = vmatmul.bf16.gmra.mxu0 %v1323
    %v1536 = vpop.f32.mrf.mxu0
    %v1537 = vadd.f32 %v1508, %v1536
    %v1538 = vpop.f32.mrf.mxu0
    %v1539 = vadd.f32 %v1510, %v1538
    %1540 = vmatmul.bf16.gmra.mxu0 %v1325
    %v1541 = vpop.f32.mrf.mxu0
    %v1542 = vadd.f32 %v1513, %v1541
    %v1543 = vpop.f32.mrf.mxu0
    %v1544 = vadd.f32 %v1515, %v1543
    %1545 = vmatmul.bf16.gmra.mxu0 %v1327
    %v1546 = vpop.f32.mrf.mxu0
    %v1547 = vadd.f32 %v1518, %v1546
    %v1548 = vpop.f32.mrf.mxu0
    %v1549 = vadd.f32 %v1520, %v1548
    %1550 = vmatmul.bf16.gmra.mxu0 %v1329
    %v1551 = vpop.f32.mrf.mxu0
    %v1552 = vadd.f32 %v1523, %v1551
    %v1553 = vpop.f32.mrf.mxu0
    %v1554 = vadd.f32 %v1525, %v1553
    %1555 = vdwg.mxu0
    %1556 = vmatpush.bf16.msra.mxu0 %v1449
    %1557 = vmatpush.bf16.msra.mxu0 %v1447
    %1558 = vmatpush.bf16.msra.mxu0 %v1445
    %1559 = vmatpush.bf16.msra.mxu0 %v1443
    %1560 = vmatpush.bf16.msra.mxu0 %v1441
    %1561 = vmatpush.bf16.msra.mxu0 %v1439
    %1562 = vmatpush.bf16.msra.mxu0 %v1437
    %1563 = vmatpush.bf16.msra.mxu0 %v1435
    %1564 = vmatmul.bf16.gmra.mxu0 %v1322
    %v1565 = vpop.f32.mrf.mxu0
    %v1566 = vadd.f32 0.0, %v1565
    %v1567 = vpop.f32.mrf.mxu0
    %v1568 = vadd.f32 0.0, %v1567
    %1569 = vmatmul.bf16.gmra.mxu0 %v1324
    %v1570 = vpop.f32.mrf.mxu0
    %v1571 = vadd.f32 0.0, %v1570
    %v1572 = vpop.f32.mrf.mxu0
    %v1573 = vadd.f32 0.0, %v1572
    %1574 = vmatmul.bf16.gmra.mxu0 %v1326
    %v1575 = vpop.f32.mrf.mxu0
    %v1576 = vadd.f32 0.0, %v1575
    %v1577 = vpop.f32.mrf.mxu0
    %v1578 = vadd.f32 0.0, %v1577
    %1579 = vmatmul.bf16.gmra.mxu0 %v1328
    %v1580 = vpop.f32.mrf.mxu0
    %v1581 = vadd.f32 0.0, %v1580
    %v1582 = vpop.f32.mrf.mxu0
    %v1583 = vadd.f32 0.0, %v1582
    %1584 = vdwg.mxu0
    %1585 = vmatpush.bf16.msra.mxu0 %v1465
    %1586 = vmatpush.bf16.msra.mxu0 %v1463
    %1587 = vmatpush.bf16.msra.mxu0 %v1461
    %1588 = vmatpush.bf16.msra.mxu0 %v1459
    %1589 = vmatpush.bf16.msra.mxu0 %v1457
    %1590 = vmatpush.bf16.msra.mxu0 %v1455
    %1591 = vmatpush.bf16.msra.mxu0 %v1453
    %1592 = vmatpush.bf16.msra.mxu0 %v1451
    %1593 = vmatmul.bf16.gmra.mxu0 %v1323
    %v1594 = vpop.f32.mrf.mxu0
    %v1595 = vadd.f32 %v1566, %v1594
    %v1596 = vpop.f32.mrf.mxu0
    %v1597 = vadd.f32 %v1568, %v1596
    %1598 = vmatmul.bf16.gmra.mxu0 %v1325
    %v1599 = vpop.f32.mrf.mxu0
    %v1600 = vadd.f32 %v1571, %v1599
    %v1601 = vpop.f32.mrf.mxu0
    %v1602 = vadd.f32 %v1573, %v1601
    %1603 = vmatmul.bf16.gmra.mxu0 %v1327
    %v1604 = vpop.f32.mrf.mxu0
    %v1605 = vadd.f32 %v1576, %v1604
    %v1606 = vpop.f32.mrf.mxu0
    %v1607 = vadd.f32 %v1578, %v1606
    %1608 = vmatmul.bf16.gmra.mxu0 %v1329
    %v1609 = vpop.f32.mrf.mxu0
    %v1610 = vadd.f32 %v1581, %v1609
    %v1611 = vpop.f32.mrf.mxu0
    %v1612 = vadd.f32 %v1583, %v1611
    %1613 = vdwg.mxu0
    %v1614 = vadd.f32 %v1142, %v1537
    %v1615 = vadd.f32 %v1143, %v1595
    %v1616 = vadd.f32 %v1144, %v1539
    %v1617 = vadd.f32 %v1145, %v1597
    %v1618 = vadd.f32 %v1146, %v1542
    %v1619 = vadd.f32 %v1147, %v1600
    %v1620 = vadd.f32 %v1148, %v1544
    %v1621 = vadd.f32 %v1149, %v1602
    %v1622 = vadd.f32 %v1150, %v1547
    %v1623 = vadd.f32 %v1151, %v1605
    %v1624 = vadd.f32 %v1152, %v1549
    %v1625 = vadd.f32 %v1153, %v1607
    %v1626 = vadd.f32 %v1154, %v1552
    %v1627 = vadd.f32 %v1155, %v1610
    %v1628 = vadd.f32 %v1156, %v1554
    %v1629 = vadd.f32 %v1157, %v1612
    %v1631 = vshrl.u32 %v124, 16
    %v1633 = vrot.slane %v1631, 4
    %v1634 = vshll.u32 %v124, 16
    %v1636 = vrot.slane %v1634, 5
    %v1637 = vor.u32 %v1633, %v1636
    %v1638 = vrot.slane %v1637, 4
    %v1640 = vshll.u32 %v125, 16
    %v1642 = vrot.slane %v1640, 5
    %v1643 = vsel %vm1160, %v1638, %v1642
    %v1645 = vshrl.u32 %v136, 16
    %v1647 = vrot.slane %v1645, 4
    %v1648 = vshll.u32 %v136, 16
    %v1650 = vrot.slane %v1648, 5
    %v1651 = vor.u32 %v1647, %v1650
    %v1652 = vrot.slane %v1651, 4
    %v1654 = vshll.u32 %v137, 16
    %v1656 = vrot.slane %v1654, 5
    %v1657 = vsel %vm1160, %v1652, %v1656
    %s1658 = scalar_lea.vmem [#allocation3], 1024
    %v1659 = vld [vmem:[%s1658] sm:$0xff]
    %v1660 = vld [vmem:[%s1658 + $0x8] sm:$0xff]
    %v1661 = vld [vmem:[%s1658 + $0x10] sm:$0xff]
    %v1662 = vld [vmem:[%s1658 + $0x18] sm:$0xff]
    %v1663 = vld [vmem:[%s1658 + $0x20] sm:$0xff]
    %v1664 = vld [vmem:[%s1658 + $0x28] sm:$0xff]
    %v1665 = vld [vmem:[%s1658 + $0x30] sm:$0xff]
    %v1666 = vld [vmem:[%s1658 + $0x38] sm:$0xff]
    %v1667 = vld [vmem:[%s1658 + $0x40] sm:$0xff]
    %v1668 = vld [vmem:[%s1658 + $0x48] sm:$0xff]
    %v1669 = vld [vmem:[%s1658 + $0x50] sm:$0xff]
    %v1670 = vld [vmem:[%s1658 + $0x58] sm:$0xff]
    %v1671 = vld [vmem:[%s1658 + $0x60] sm:$0xff]
    %v1672 = vld [vmem:[%s1658 + $0x68] sm:$0xff]
    %v1673 = vld [vmem:[%s1658 + $0x70] sm:$0xff]
    %v1674 = vld [vmem:[%s1658 + $0x78] sm:$0xff]
    %v1675 = vld [vmem:[%s1658 + $0x80] sm:$0xff]
    %v1676 = vld [vmem:[%s1658 + $0x88] sm:$0xff]
    %v1677 = vld [vmem:[%s1658 + $0x90] sm:$0xff]
    %v1678 = vld [vmem:[%s1658 + $0x98] sm:$0xff]
    %v1679 = vld [vmem:[%s1658 + $0xa0] sm:$0xff]
    %v1680 = vld [vmem:[%s1658 + $0xa8] sm:$0xff]
    %v1681 = vld [vmem:[%s1658 + $0xb0] sm:$0xff]
    %v1682 = vld [vmem:[%s1658 + $0xb8] sm:$0xff]
    %v1683 = vld [vmem:[%s1658 + $0xc0] sm:$0xff]
    %v1684 = vld [vmem:[%s1658 + $0xc8] sm:$0xff]
    %v1685 = vld [vmem:[%s1658 + $0xd0] sm:$0xff]
    %v1686 = vld [vmem:[%s1658 + $0xd8] sm:$0xff]
    %v1687 = vld [vmem:[%s1658 + $0xe0] sm:$0xff]
    %v1688 = vld [vmem:[%s1658 + $0xe8] sm:$0xff]
    %v1689 = vld [vmem:[%s1658 + $0xf0] sm:$0xff]
    %v1690 = vld [vmem:[%s1658 + $0xf8] sm:$0xff]
    %v1691 = vunpack.c.l.b16 %v1643
    %v1692 = vunpack.c.h.b16 %v1643
    %v1693 = vunpack.c.l.b16 %v1657
    %v1694 = vunpack.c.h.b16 %v1657
    %v1695 = vpack.c.b16 %v1310, %v1308
    %v1696 = vpack.c.b16 %v1311, %v1309
    %v1697 = vpack.c.b16 %v1691, %v1312
    %v1698 = vpack.c.b16 %v1692, %v1313
    %v1699 = vpack.c.b16 %v1318, %v1316
    %v1700 = vpack.c.b16 %v1319, %v1317
    %v1701 = vpack.c.b16 %v1693, %v1320
    %v1702 = vpack.c.b16 %v1694, %v1321
    %v1743 = vunpack.c.l.b16 %v1659
    %v1744 = vunpack.c.h.b16 %v1659
    %v1745 = vunpack.c.l.b16 %v1660
    %v1746 = vunpack.c.h.b16 %v1660
    %v1747 = vunpack.c.l.b16 %v1661
    %v1748 = vunpack.c.h.b16 %v1661
    %v1749 = vunpack.c.l.b16 %v1662
    %v1750 = vunpack.c.h.b16 %v1662
    %v1751 = vunpack.c.l.b16 %v1663
    %v1752 = vunpack.c.h.b16 %v1663
    %v1753 = vunpack.c.l.b16 %v1664
    %v1754 = vunpack.c.h.b16 %v1664
    %v1755 = vunpack.c.l.b16 %v1665
    %v1756 = vunpack.c.h.b16 %v1665
    %v1757 = vunpack.c.l.b16 %v1666
    %v1758 = vunpack.c.h.b16 %v1666
    %v1759 = vunpack.c.l.b16 %v1667
    %v1760 = vunpack.c.h.b16 %v1667
    %v1761 = vunpack.c.l.b16 %v1668
    %v1762 = vunpack.c.h.b16 %v1668
    %v1763 = vunpack.c.l.b16 %v1669
    %v1764 = vunpack.c.h.b16 %v1669
    %v1765 = vunpack.c.l.b16 %v1670
    %v1766 = vunpack.c.h.b16 %v1670
    %v1767 = vunpack.c.l.b16 %v1671
    %v1768 = vunpack.c.h.b16 %v1671
    %v1769 = vunpack.c.l.b16 %v1672
    %v1770 = vunpack.c.h.b16 %v1672
    %v1771 = vunpack.c.l.b16 %v1673
    %v1772 = vunpack.c.h.b16 %v1673
    %v1773 = vunpack.c.l.b16 %v1674
    %v1774 = vunpack.c.h.b16 %v1674
    %v1775 = vunpack.c.l.b16 %v1675
    %v1776 = vunpack.c.h.b16 %v1675
    %v1777 = vunpack.c.l.b16 %v1676
    %v1778 = vunpack.c.h.b16 %v1676
    %v1779 = vunpack.c.l.b16 %v1677
    %v1780 = vunpack.c.h.b16 %v1677
    %v1781 = vunpack.c.l.b16 %v1678
    %v1782 = vunpack.c.h.b16 %v1678
    %v1783 = vunpack.c.l.b16 %v1679
    %v1784 = vunpack.c.h.b16 %v1679
    %v1785 = vunpack.c.l.b16 %v1680
    %v1786 = vunpack.c.h.b16 %v1680
    %v1787 = vunpack.c.l.b16 %v1681
    %v1788 = vunpack.c.h.b16 %v1681
    %v1789 = vunpack.c.l.b16 %v1682
    %v1790 = vunpack.c.h.b16 %v1682
    %v1791 = vunpack.c.l.b16 %v1683
    %v1792 = vunpack.c.h.b16 %v1683
    %v1793 = vunpack.c.l.b16 %v1684
    %v1794 = vunpack.c.h.b16 %v1684
    %v1795 = vunpack.c.l.b16 %v1685
    %v1796 = vunpack.c.h.b16 %v1685
    %v1797 = vunpack.c.l.b16 %v1686
    %v1798 = vunpack.c.h.b16 %v1686
    %v1799 = vunpack.c.l.b16 %v1687
    %v1800 = vunpack.c.h.b16 %v1687
    %v1801 = vunpack.c.l.b16 %v1688
    %v1802 = vunpack.c.h.b16 %v1688
    %v1803 = vunpack.c.l.b16 %v1689
    %v1804 = vunpack.c.h.b16 %v1689
    %v1805 = vunpack.c.l.b16 %v1690
    %v1806 = vunpack.c.h.b16 %v1690
    %v1807 = vpack.c.b16 %v1745, %v1743
    %v1808 = vpack.c.b16 %v1746, %v1744
    %v1809 = vpack.c.b16 %v1749, %v1747
    %v1810 = vpack.c.b16 %v1750, %v1748
    %v1811 = vpack.c.b16 %v1753, %v1751
    %v1812 = vpack.c.b16 %v1754, %v1752
    %v1813 = vpack.c.b16 %v1757, %v1755
    %v1814 = vpack.c.b16 %v1758, %v1756
    %v1815 = vpack.c.b16 %v1761, %v1759
    %v1816 = vpack.c.b16 %v1762, %v1760
    %v1817 = vpack.c.b16 %v1765, %v1763
    %v1818 = vpack.c.b16 %v1766, %v1764
    %v1819 = vpack.c.b16 %v1769, %v1767
    %v1820 = vpack.c.b16 %v1770, %v1768
    %v1821 = vpack.c.b16 %v1773, %v1771
    %v1822 = vpack.c.b16 %v1774, %v1772
    %v1823 = vpack.c.b16 %v1777, %v1775
    %v1824 = vpack.c.b16 %v1778, %v1776
    %v1825 = vpack.c.b16 %v1781, %v1779
    %v1826 = vpack.c.b16 %v1782, %v1780
    %v1827 = vpack.c.b16 %v1785, %v1783
    %v1828 = vpack.c.b16 %v1786, %v1784
    %v1829 = vpack.c.b16 %v1789, %v1787
    %v1830 = vpack.c.b16 %v1790, %v1788
    %v1831 = vpack.c.b16 %v1793, %v1791
    %v1832 = vpack.c.b16 %v1794, %v1792
    %v1833 = vpack.c.b16 %v1797, %v1795
    %v1834 = vpack.c.b16 %v1798, %v1796
    %v1835 = vpack.c.b16 %v1801, %v1799
    %v1836 = vpack.c.b16 %v1802, %v1800
    %v1837 = vpack.c.b16 %v1805, %v1803
    %v1838 = vpack.c.b16 %v1806, %v1804
    %1871 = vmatpush.bf16.msra.mxu0 %v1821
    %1872 = vmatpush.bf16.msra.mxu0 %v1819
    %1873 = vmatpush.bf16.msra.mxu0 %v1817
    %1874 = vmatpush.bf16.msra.mxu0 %v1815
    %1875 = vmatpush.bf16.msra.mxu0 %v1813
    %1876 = vmatpush.bf16.msra.mxu0 %v1811
    %1877 = vmatpush.bf16.msra.mxu0 %v1809
    %1878 = vmatpush.bf16.msra.mxu0 %v1807
    %1879 = vmatmul.bf16.gmra.mxu0 %v1695
    %v1880 = vpop.f32.mrf.mxu0
    %v1881 = vadd.f32 0.0, %v1880
    %v1882 = vpop.f32.mrf.mxu0
    %v1883 = vadd.f32 0.0, %v1882
    %1884 = vmatmul.bf16.gmra.mxu0 %v1697
    %v1885 = vpop.f32.mrf.mxu0
    %v1886 = vadd.f32 0.0, %v1885
    %v1887 = vpop.f32.mrf.mxu0
    %v1888 = vadd.f32 0.0, %v1887
    %1889 = vmatmul.bf16.gmra.mxu0 %v1699
    %v1890 = vpop.f32.mrf.mxu0
    %v1891 = vadd.f32 0.0, %v1890
    %v1892 = vpop.f32.mrf.mxu0
    %v1893 = vadd.f32 0.0, %v1892
    %1894 = vmatmul.bf16.gmra.mxu0 %v1701
    %v1895 = vpop.f32.mrf.mxu0
    %v1896 = vadd.f32 0.0, %v1895
    %v1897 = vpop.f32.mrf.mxu0
    %v1898 = vadd.f32 0.0, %v1897
    %1899 = vdwg.mxu0
    %1900 = vmatpush.bf16.msra.mxu0 %v1837
    %1901 = vmatpush.bf16.msra.mxu0 %v1835
    %1902 = vmatpush.bf16.msra.mxu0 %v1833
    %1903 = vmatpush.bf16.msra.mxu0 %v1831
    %1904 = vmatpush.bf16.msra.mxu0 %v1829
    %1905 = vmatpush.bf16.msra.mxu0 %v1827
    %1906 = vmatpush.bf16.msra.mxu0 %v1825
    %1907 = vmatpush.bf16.msra.mxu0 %v1823
    %1908 = vmatmul.bf16.gmra.mxu0 %v1696
    %v1909 = vpop.f32.mrf.mxu0
    %v1910 = vadd.f32 %v1881, %v1909
    %v1911 = vpop.f32.mrf.mxu0
    %v1912 = vadd.f32 %v1883, %v1911
    %1913 = vmatmul.bf16.gmra.mxu0 %v1698
    %v1914 = vpop.f32.mrf.mxu0
    %v1915 = vadd.f32 %v1886, %v1914
    %v1916 = vpop.f32.mrf.mxu0
    %v1917 = vadd.f32 %v1888, %v1916
    %1918 = vmatmul.bf16.gmra.mxu0 %v1700
    %v1919 = vpop.f32.mrf.mxu0
    %v1920 = vadd.f32 %v1891, %v1919
    %v1921 = vpop.f32.mrf.mxu0
    %v1922 = vadd.f32 %v1893, %v1921
    %1923 = vmatmul.bf16.gmra.mxu0 %v1702
    %v1924 = vpop.f32.mrf.mxu0
    %v1925 = vadd.f32 %v1896, %v1924
    %v1926 = vpop.f32.mrf.mxu0
    %v1927 = vadd.f32 %v1898, %v1926
    %1928 = vdwg.mxu0
    %1929 = vmatpush.bf16.msra.mxu0 %v1822
    %1930 = vmatpush.bf16.msra.mxu0 %v1820
    %1931 = vmatpush.bf16.msra.mxu0 %v1818
    %1932 = vmatpush.bf16.msra.mxu0 %v1816
    %1933 = vmatpush.bf16.msra.mxu0 %v1814
    %1934 = vmatpush.bf16.msra.mxu0 %v1812
    %1935 = vmatpush.bf16.msra.mxu0 %v1810
    %1936 = vmatpush.bf16.msra.mxu0 %v1808
    %1937 = vmatmul.bf16.gmra.mxu0 %v1695
    %v1938 = vpop.f32.mrf.mxu0
    %v1939 = vadd.f32 0.0, %v1938
    %v1940 = vpop.f32.mrf.mxu0
    %v1941 = vadd.f32 0.0, %v1940
    %1942 = vmatmul.bf16.gmra.mxu0 %v1697
    %v1943 = vpop.f32.mrf.mxu0
    %v1944 = vadd.f32 0.0, %v1943
    %v1945 = vpop.f32.mrf.mxu0
    %v1946 = vadd.f32 0.0, %v1945
    %1947 = vmatmul.bf16.gmra.mxu0 %v1699
    %v1948 = vpop.f32.mrf.mxu0
    %v1949 = vadd.f32 0.0, %v1948
    %v1950 = vpop.f32.mrf.mxu0
    %v1951 = vadd.f32 0.0, %v1950
    %1952 = vmatmul.bf16.gmra.mxu0 %v1701
    %v1953 = vpop.f32.mrf.mxu0
    %v1954 = vadd.f32 0.0, %v1953
    %v1955 = vpop.f32.mrf.mxu0
    %v1956 = vadd.f32 0.0, %v1955
    %1957 = vdwg.mxu0
    %1958 = vmatpush.bf16.msra.mxu0 %v1838
    %1959 = vmatpush.bf16.msra.mxu0 %v1836
    %1960 = vmatpush.bf16.msra.mxu0 %v1834
    %1961 = vmatpush.bf16.msra.mxu0 %v1832
    %1962 = vmatpush.bf16.msra.mxu0 %v1830
    %1963 = vmatpush.bf16.msra.mxu0 %v1828
    %1964 = vmatpush.bf16.msra.mxu0 %v1826
    %1965 = vmatpush.bf16.msra.mxu0 %v1824
    %1966 = vmatmul.bf16.gmra.mxu0 %v1696
    %v1967 = vpop.f32.mrf.mxu0
    %v1968 = vadd.f32 %v1939, %v1967
    %v1969 = vpop.f32.mrf.mxu0
    %v1970 = vadd.f32 %v1941, %v1969
    %1971 = vmatmul.bf16.gmra.mxu0 %v1698
    %v1972 = vpop.f32.mrf.mxu0
    %v1973 = vadd.f32 %v1944, %v1972
    %v1974 = vpop.f32.mrf.mxu0
    %v1975 = vadd.f32 %v1946, %v1974
    %1976 = vmatmul.bf16.gmra.mxu0 %v1700
    %v1977 = vpop.f32.mrf.mxu0
    %v1978 = vadd.f32 %v1949, %v1977
    %v1979 = vpop.f32.mrf.mxu0
    %v1980 = vadd.f32 %v1951, %v1979
    %1981 = vmatmul.bf16.gmra.mxu0 %v1702
    %v1982 = vpop.f32.mrf.mxu0
    %v1983 = vadd.f32 %v1954, %v1982
    %v1984 = vpop.f32.mrf.mxu0
    %v1985 = vadd.f32 %v1956, %v1984
    %1986 = vdwg.mxu0
    %v1987 = vadd.f32 %v1614, %v1910
    %v1988 = vadd.f32 %v1615, %v1968
    %v1989 = vadd.f32 %v1616, %v1912
    %v1990 = vadd.f32 %v1617, %v1970
    %v1991 = vadd.f32 %v1618, %v1915
    %v1992 = vadd.f32 %v1619, %v1973
    %v1993 = vadd.f32 %v1620, %v1917
    %v1994 = vadd.f32 %v1621, %v1975
    %v1995 = vadd.f32 %v1622, %v1920
    %v1996 = vadd.f32 %v1623, %v1978
    %v1997 = vadd.f32 %v1624, %v1922
    %v1998 = vadd.f32 %v1625, %v1980
    %v1999 = vadd.f32 %v1626, %v1925
    %v2000 = vadd.f32 %v1627, %v1983
    %v2001 = vadd.f32 %v1628, %v1927
    %v2002 = vadd.f32 %v1629, %v1985
    %v2004 = vshrl.u32 %v126, 16
    %v2006 = vrot.slane %v2004, 4
    %v2007 = vshll.u32 %v126, 16
    %v2009 = vrot.slane %v2007, 5
    %v2010 = vor.u32 %v2006, %v2009
    %v2011 = vrot.slane %v2010, 4
    %v2013 = vshll.u32 %v127, 16
    %v2015 = vrot.slane %v2013, 5
    %v2016 = vsel %vm1160, %v2011, %v2015
    %v2018 = vshrl.u32 %v138, 16
    %v2020 = vrot.slane %v2018, 4
    %v2021 = vshll.u32 %v138, 16
    %v2023 = vrot.slane %v2021, 5
    %v2024 = vor.u32 %v2020, %v2023
    %v2025 = vrot.slane %v2024, 4
    %v2027 = vshll.u32 %v139, 16
    %v2029 = vrot.slane %v2027, 5
    %v2030 = vsel %vm1160, %v2025, %v2029
    %s2031 = scalar_lea.vmem [#allocation3], 1792
    %v2032 = vld [vmem:[%s2031] sm:$0xff]
    %v2033 = vld [vmem:[%s2031 + $0x8] sm:$0xff]
    %v2034 = vld [vmem:[%s2031 + $0x10] sm:$0xff]
    %v2035 = vld [vmem:[%s2031 + $0x18] sm:$0xff]
    %v2036 = vld [vmem:[%s2031 + $0x20] sm:$0xff]
    %v2037 = vld [vmem:[%s2031 + $0x28] sm:$0xff]
    %v2038 = vld [vmem:[%s2031 + $0x30] sm:$0xff]
    %v2039 = vld [vmem:[%s2031 + $0x38] sm:$0xff]
    %v2040 = vld [vmem:[%s2031 + $0x40] sm:$0xff]
    %v2041 = vld [vmem:[%s2031 + $0x48] sm:$0xff]
    %v2042 = vld [vmem:[%s2031 + $0x50] sm:$0xff]
    %v2043 = vld [vmem:[%s2031 + $0x58] sm:$0xff]
    %v2044 = vld [vmem:[%s2031 + $0x60] sm:$0xff]
    %v2045 = vld [vmem:[%s2031 + $0x68] sm:$0xff]
    %v2046 = vld [vmem:[%s2031 + $0x70] sm:$0xff]
    %v2047 = vld [vmem:[%s2031 + $0x78] sm:$0xff]
    %v2048 = vld [vmem:[%s2031 + $0x80] sm:$0xff]
    %v2049 = vld [vmem:[%s2031 + $0x88] sm:$0xff]
    %v2050 = vld [vmem:[%s2031 + $0x90] sm:$0xff]
    %v2051 = vld [vmem:[%s2031 + $0x98] sm:$0xff]
    %v2052 = vld [vmem:[%s2031 + $0xa0] sm:$0xff]
    %v2053 = vld [vmem:[%s2031 + $0xa8] sm:$0xff]
    %v2054 = vld [vmem:[%s2031 + $0xb0] sm:$0xff]
    %v2055 = vld [vmem:[%s2031 + $0xb8] sm:$0xff]
    %v2056 = vld [vmem:[%s2031 + $0xc0] sm:$0xff]
    %v2057 = vld [vmem:[%s2031 + $0xc8] sm:$0xff]
    %v2058 = vld [vmem:[%s2031 + $0xd0] sm:$0xff]
    %v2059 = vld [vmem:[%s2031 + $0xd8] sm:$0xff]
    %v2060 = vld [vmem:[%s2031 + $0xe0] sm:$0xff]
    %v2061 = vld [vmem:[%s2031 + $0xe8] sm:$0xff]
    %v2062 = vld [vmem:[%s2031 + $0xf0] sm:$0xff]
    %v2063 = vld [vmem:[%s2031 + $0xf8] sm:$0xff]
    %v2064 = vunpack.c.l.b16 %v2016
    %v2065 = vunpack.c.h.b16 %v2016
    %v2066 = vunpack.c.l.b16 %v2030
    %v2067 = vunpack.c.h.b16 %v2030
    %v2068 = vpack.c.b16 %v2064, %v1691
    %v2069 = vpack.c.b16 %v2065, %v1692
    %v2070 = vpack.c.b16 %v2066, %v1693
    %v2071 = vpack.c.b16 %v2067, %v1694
    %v2108 = vunpack.c.l.b16 %v2032
    %v2109 = vunpack.c.h.b16 %v2032
    %v2110 = vunpack.c.l.b16 %v2033
    %v2111 = vunpack.c.h.b16 %v2033
    %v2112 = vunpack.c.l.b16 %v2034
    %v2113 = vunpack.c.h.b16 %v2034
    %v2114 = vunpack.c.l.b16 %v2035
    %v2115 = vunpack.c.h.b16 %v2035
    %v2116 = vunpack.c.l.b16 %v2036
    %v2117 = vunpack.c.h.b16 %v2036
    %v2118 = vunpack.c.l.b16 %v2037
    %v2119 = vunpack.c.h.b16 %v2037
    %v2120 = vunpack.c.l.b16 %v2038
    %v2121 = vunpack.c.h.b16 %v2038
    %v2122 = vunpack.c.l.b16 %v2039
    %v2123 = vunpack.c.h.b16 %v2039
    %v2124 = vunpack.c.l.b16 %v2040
    %v2125 = vunpack.c.h.b16 %v2040
    %v2126 = vunpack.c.l.b16 %v2041
    %v2127 = vunpack.c.h.b16 %v2041
    %v2128 = vunpack.c.l.b16 %v2042
    %v2129 = vunpack.c.h.b16 %v2042
    %v2130 = vunpack.c.l.b16 %v2043
    %v2131 = vunpack.c.h.b16 %v2043
    %v2132 = vunpack.c.l.b16 %v2044
    %v2133 = vunpack.c.h.b16 %v2044
    %v2134 = vunpack.c.l.b16 %v2045
    %v2135 = vunpack.c.h.b16 %v2045
    %v2136 = vunpack.c.l.b16 %v2046
    %v2137 = vunpack.c.h.b16 %v2046
    %v2138 = vunpack.c.l.b16 %v2047
    %v2139 = vunpack.c.h.b16 %v2047
    %v2140 = vunpack.c.l.b16 %v2048
    %v2141 = vunpack.c.h.b16 %v2048
    %v2142 = vunpack.c.l.b16 %v2049
    %v2143 = vunpack.c.h.b16 %v2049
    %v2144 = vunpack.c.l.b16 %v2050
    %v2145 = vunpack.c.h.b16 %v2050
    %v2146 = vunpack.c.l.b16 %v2051
    %v2147 = vunpack.c.h.b16 %v2051
    %v2148 = vunpack.c.l.b16 %v2052
    %v2149 = vunpack.c.h.b16 %v2052
    %v2150 = vunpack.c.l.b16 %v2053
    %v2151 = vunpack.c.h.b16 %v2053
    %v2152 = vunpack.c.l.b16 %v2054
    %v2153 = vunpack.c.h.b16 %v2054
    %v2154 = vunpack.c.l.b16 %v2055
    %v2155 = vunpack.c.h.b16 %v2055
    %v2156 = vunpack.c.l.b16 %v2056
    %v2157 = vunpack.c.h.b16 %v2056
    %v2158 = vunpack.c.l.b16 %v2057
    %v2159 = vunpack.c.h.b16 %v2057
    %v2160 = vunpack.c.l.b16 %v2058
    %v2161 = vunpack.c.h.b16 %v2058
    %v2162 = vunpack.c.l.b16 %v2059
    %v2163 = vunpack.c.h.b16 %v2059
    %v2164 = vunpack.c.l.b16 %v2060
    %v2165 = vunpack.c.h.b16 %v2060
    %v2166 = vunpack.c.l.b16 %v2061
    %v2167 = vunpack.c.h.b16 %v2061
    %v2168 = vunpack.c.l.b16 %v2062
    %v2169 = vunpack.c.h.b16 %v2062
    %v2170 = vunpack.c.l.b16 %v2063
    %v2171 = vunpack.c.h.b16 %v2063
    %v2172 = vpack.c.b16 %v2110, %v2108
    %v2173 = vpack.c.b16 %v2111, %v2109
    %v2174 = vpack.c.b16 %v2114, %v2112
    %v2175 = vpack.c.b16 %v2115, %v2113
    %v2176 = vpack.c.b16 %v2118, %v2116
    %v2177 = vpack.c.b16 %v2119, %v2117
    %v2178 = vpack.c.b16 %v2122, %v2120
    %v2179 = vpack.c.b16 %v2123, %v2121
    %v2180 = vpack.c.b16 %v2126, %v2124
    %v2181 = vpack.c.b16 %v2127, %v2125
    %v2182 = vpack.c.b16 %v2130, %v2128
    %v2183 = vpack.c.b16 %v2131, %v2129
    %v2184 = vpack.c.b16 %v2134, %v2132
    %v2185 = vpack.c.b16 %v2135, %v2133
    %v2186 = vpack.c.b16 %v2138, %v2136
    %v2187 = vpack.c.b16 %v2139, %v2137
    %v2188 = vpack.c.b16 %v2142, %v2140
    %v2189 = vpack.c.b16 %v2143, %v2141
    %v2190 = vpack.c.b16 %v2146, %v2144
    %v2191 = vpack.c.b16 %v2147, %v2145
    %v2192 = vpack.c.b16 %v2150, %v2148
    %v2193 = vpack.c.b16 %v2151, %v2149
    %v2194 = vpack.c.b16 %v2154, %v2152
    %v2195 = vpack.c.b16 %v2155, %v2153
    %v2196 = vpack.c.b16 %v2158, %v2156
    %v2197 = vpack.c.b16 %v2159, %v2157
    %v2198 = vpack.c.b16 %v2162, %v2160
    %v2199 = vpack.c.b16 %v2163, %v2161
    %v2200 = vpack.c.b16 %v2166, %v2164
    %v2201 = vpack.c.b16 %v2167, %v2165
    %v2202 = vpack.c.b16 %v2170, %v2168
    %v2203 = vpack.c.b16 %v2171, %v2169
    %2236 = vmatpush.bf16.msra.mxu0 %v2186
    %2237 = vmatpush.bf16.msra.mxu0 %v2184
    %2238 = vmatpush.bf16.msra.mxu0 %v2182
    %2239 = vmatpush.bf16.msra.mxu0 %v2180
    %2240 = vmatpush.bf16.msra.mxu0 %v2178
    %2241 = vmatpush.bf16.msra.mxu0 %v2176
    %2242 = vmatpush.bf16.msra.mxu0 %v2174
    %2243 = vmatpush.bf16.msra.mxu0 %v2172
    %2244 = vmatmul.bf16.gmra.mxu0 %v1324
    %v2245 = vpop.f32.mrf.mxu0
    %v2246 = vadd.f32 0.0, %v2245
    %v2247 = vpop.f32.mrf.mxu0
    %v2248 = vadd.f32 0.0, %v2247
    %2249 = vmatmul.bf16.gmra.mxu0 %v2068
    %v2250 = vpop.f32.mrf.mxu0
    %v2251 = vadd.f32 0.0, %v2250
    %v2252 = vpop.f32.mrf.mxu0
    %v2253 = vadd.f32 0.0, %v2252
    %2254 = vmatmul.bf16.gmra.mxu0 %v1328
    %v2255 = vpop.f32.mrf.mxu0
    %v2256 = vadd.f32 0.0, %v2255
    %v2257 = vpop.f32.mrf.mxu0
    %v2258 = vadd.f32 0.0, %v2257
    %2259 = vmatmul.bf16.gmra.mxu0 %v2070
    %v2260 = vpop.f32.mrf.mxu0
    %v2261 = vadd.f32 0.0, %v2260
    %v2262 = vpop.f32.mrf.mxu0
    %v2263 = vadd.f32 0.0, %v2262
    %2264 = vdwg.mxu0
    %2265 = vmatpush.bf16.msra.mxu0 %v2202
    %2266 = vmatpush.bf16.msra.mxu0 %v2200
    %2267 = vmatpush.bf16.msra.mxu0 %v2198
    %2268 = vmatpush.bf16.msra.mxu0 %v2196
    %2269 = vmatpush.bf16.msra.mxu0 %v2194
    %2270 = vmatpush.bf16.msra.mxu0 %v2192
    %2271 = vmatpush.bf16.msra.mxu0 %v2190
    %2272 = vmatpush.bf16.msra.mxu0 %v2188
    %2273 = vmatmul.bf16.gmra.mxu0 %v1325
    %v2274 = vpop.f32.mrf.mxu0
    %v2275 = vadd.f32 %v2246, %v2274
    %v2276 = vpop.f32.mrf.mxu0
    %v2277 = vadd.f32 %v2248, %v2276
    %2278 = vmatmul.bf16.gmra.mxu0 %v2069
    %v2279 = vpop.f32.mrf.mxu0
    %v2280 = vadd.f32 %v2251, %v2279
    %v2281 = vpop.f32.mrf.mxu0
    %v2282 = vadd.f32 %v2253, %v2281
    %2283 = vmatmul.bf16.gmra.mxu0 %v1329
    %v2284 = vpop.f32.mrf.mxu0
    %v2285 = vadd.f32 %v2256, %v2284
    %v2286 = vpop.f32.mrf.mxu0
    %v2287 = vadd.f32 %v2258, %v2286
    %2288 = vmatmul.bf16.gmra.mxu0 %v2071
    %v2289 = vpop.f32.mrf.mxu0
    %v2290 = vadd.f32 %v2261, %v2289
    %v2291 = vpop.f32.mrf.mxu0
    %v2292 = vadd.f32 %v2263, %v2291
    %2293 = vdwg.mxu0
    %2294 = vmatpush.bf16.msra.mxu0 %v2187
    %2295 = vmatpush.bf16.msra.mxu0 %v2185
    %2296 = vmatpush.bf16.msra.mxu0 %v2183
    %2297 = vmatpush.bf16.msra.mxu0 %v2181
    %2298 = vmatpush.bf16.msra.mxu0 %v2179
    %2299 = vmatpush.bf16.msra.mxu0 %v2177
    %2300 = vmatpush.bf16.msra.mxu0 %v2175
    %2301 = vmatpush.bf16.msra.mxu0 %v2173
    %2302 = vmatmul.bf16.gmra.mxu0 %v1324
    %v2303 = vpop.f32.mrf.mxu0
    %v2304 = vadd.f32 0.0, %v2303
    %v2305 = vpop.f32.mrf.mxu0
    %v2306 = vadd.f32 0.0, %v2305
    %2307 = vmatmul.bf16.gmra.mxu0 %v2068
    %v2308 = vpop.f32.mrf.mxu0
    %v2309 = vadd.f32 0.0, %v2308
    %v2310 = vpop.f32.mrf.mxu0
    %v2311 = vadd.f32 0.0, %v2310
    %2312 = vmatmul.bf16.gmra.mxu0 %v1328
    %v2313 = vpop.f32.mrf.mxu0
    %v2314 = vadd.f32 0.0, %v2313
    %v2315 = vpop.f32.mrf.mxu0
    %v2316 = vadd.f32 0.0, %v2315
    %2317 = vmatmul.bf16.gmra.mxu0 %v2070
    %v2318 = vpop.f32.mrf.mxu0
    %v2319 = vadd.f32 0.0, %v2318
    %v2320 = vpop.f32.mrf.mxu0
    %v2321 = vadd.f32 0.0, %v2320
    %2322 = vdwg.mxu0
    %2323 = vmatpush.bf16.msra.mxu0 %v2203
    %2324 = vmatpush.bf16.msra.mxu0 %v2201
    %2325 = vmatpush.bf16.msra.mxu0 %v2199
    %2326 = vmatpush.bf16.msra.mxu0 %v2197
    %2327 = vmatpush.bf16.msra.mxu0 %v2195
    %2328 = vmatpush.bf16.msra.mxu0 %v2193
    %2329 = vmatpush.bf16.msra.mxu0 %v2191
    %2330 = vmatpush.bf16.msra.mxu0 %v2189
    %2331 = vmatmul.bf16.gmra.mxu0 %v1325
    %v2332 = vpop.f32.mrf.mxu0
    %v2333 = vadd.f32 %v2304, %v2332
    %v2334 = vpop.f32.mrf.mxu0
    %v2335 = vadd.f32 %v2306, %v2334
    %2336 = vmatmul.bf16.gmra.mxu0 %v2069
    %v2337 = vpop.f32.mrf.mxu0
    %v2338 = vadd.f32 %v2309, %v2337
    %v2339 = vpop.f32.mrf.mxu0
    %v2340 = vadd.f32 %v2311, %v2339
    %2341 = vmatmul.bf16.gmra.mxu0 %v1329
    %v2342 = vpop.f32.mrf.mxu0
    %v2343 = vadd.f32 %v2314, %v2342
    %v2344 = vpop.f32.mrf.mxu0
    %v2345 = vadd.f32 %v2316, %v2344
    %2346 = vmatmul.bf16.gmra.mxu0 %v2071
    %v2347 = vpop.f32.mrf.mxu0
    %v2348 = vadd.f32 %v2319, %v2347
    %v2349 = vpop.f32.mrf.mxu0
    %v2350 = vadd.f32 %v2321, %v2349
    %2351 = vdwg.mxu0
    %v2352 = vadd.f32 %v1987, %v2275
    %v2353 = vadd.f32 %v1988, %v2333
    %v2354 = vadd.f32 %v1989, %v2277
    %v2355 = vadd.f32 %v1990, %v2335
    %v2356 = vadd.f32 %v1991, %v2280
    %v2357 = vadd.f32 %v1992, %v2338
    %v2358 = vadd.f32 %v1993, %v2282
    %v2359 = vadd.f32 %v1994, %v2340
    %v2360 = vadd.f32 %v1995, %v2285
    %v2361 = vadd.f32 %v1996, %v2343
    %v2362 = vadd.f32 %v1997, %v2287
    %v2363 = vadd.f32 %v1998, %v2345
    %v2364 = vadd.f32 %v1999, %v2290
    %v2365 = vadd.f32 %v2000, %v2348
    %v2366 = vadd.f32 %v2001, %v2292
    %v2367 = vadd.f32 %v2002, %v2350
    %vm2376 = vcmask 1042432
    %vm2377 = vcmask 1046532
    %vm2378 = vmor %vm2376, %vm2377
    %v2379 = vrot.slane %v116, 5
    %v2380 = vrot.slane %v2379, 4
    %v2381 = vrot.slane %v117, 5
    %v2382 = vsel %vm2378, %v2380, %v2381
    %v2383 = vrot.slane %v118, 5
    %v2384 = vrot.slane %v2383, 4
    %v2385 = vrot.slane %v119, 5
    %v2386 = vsel %vm2378, %v2384, %v2385
    %v2387 = vrot.slane %v120, 5
    %v2388 = vrot.slane %v2387, 4
    %v2389 = vrot.slane %v121, 5
    %v2390 = vsel %vm2378, %v2388, %v2389
    %v2391 = vrot.slane %v122, 5
    %v2392 = vrot.slane %v2391, 4
    %v2393 = vrot.slane %v123, 5
    %v2394 = vsel %vm2378, %v2392, %v2393
    %v2395 = vrot.slane %v128, 5
    %v2396 = vrot.slane %v2395, 4
    %v2397 = vrot.slane %v129, 5
    %v2398 = vsel %vm2378, %v2396, %v2397
    %v2399 = vrot.slane %v130, 5
    %v2400 = vrot.slane %v2399, 4
    %v2401 = vrot.slane %v131, 5
    %v2402 = vsel %vm2378, %v2400, %v2401
    %v2403 = vrot.slane %v132, 5
    %v2404 = vrot.slane %v2403, 4
    %v2405 = vrot.slane %v133, 5
    %v2406 = vsel %vm2378, %v2404, %v2405
    %v2407 = vrot.slane %v134, 5
    %v2408 = vrot.slane %v2407, 4
    %v2409 = vrot.slane %v135, 5
    %v2410 = vsel %vm2378, %v2408, %v2409
    %s2411 = scalar_lea.vmem [#allocation3], 512
    %v2412 = vld [vmem:[%s2411] sm:$0xff]
    %v2413 = vld [vmem:[%s2411 + $0x8] sm:$0xff]
    %v2414 = vld [vmem:[%s2411 + $0x10] sm:$0xff]
    %v2415 = vld [vmem:[%s2411 + $0x18] sm:$0xff]
    %v2416 = vld [vmem:[%s2411 + $0x20] sm:$0xff]
    %v2417 = vld [vmem:[%s2411 + $0x28] sm:$0xff]
    %v2418 = vld [vmem:[%s2411 + $0x30] sm:$0xff]
    %v2419 = vld [vmem:[%s2411 + $0x38] sm:$0xff]
    %v2420 = vld [vmem:[%s2411 + $0x40] sm:$0xff]
    %v2421 = vld [vmem:[%s2411 + $0x48] sm:$0xff]
    %v2422 = vld [vmem:[%s2411 + $0x50] sm:$0xff]
    %v2423 = vld [vmem:[%s2411 + $0x58] sm:$0xff]
    %v2424 = vld [vmem:[%s2411 + $0x60] sm:$0xff]
    %v2425 = vld [vmem:[%s2411 + $0x68] sm:$0xff]
    %v2426 = vld [vmem:[%s2411 + $0x70] sm:$0xff]
    %v2427 = vld [vmem:[%s2411 + $0x78] sm:$0xff]
    %v2428 = vld [vmem:[%s2411 + $0x80] sm:$0xff]
    %v2429 = vld [vmem:[%s2411 + $0x88] sm:$0xff]
    %v2430 = vld [vmem:[%s2411 + $0x90] sm:$0xff]
    %v2431 = vld [vmem:[%s2411 + $0x98] sm:$0xff]
    %v2432 = vld [vmem:[%s2411 + $0xa0] sm:$0xff]
    %v2433 = vld [vmem:[%s2411 + $0xa8] sm:$0xff]
    %v2434 = vld [vmem:[%s2411 + $0xb0] sm:$0xff]
    %v2435 = vld [vmem:[%s2411 + $0xb8] sm:$0xff]
    %v2436 = vld [vmem:[%s2411 + $0xc0] sm:$0xff]
    %v2437 = vld [vmem:[%s2411 + $0xc8] sm:$0xff]
    %v2438 = vld [vmem:[%s2411 + $0xd0] sm:$0xff]
    %v2439 = vld [vmem:[%s2411 + $0xd8] sm:$0xff]
    %v2440 = vld [vmem:[%s2411 + $0xe0] sm:$0xff]
    %v2441 = vld [vmem:[%s2411 + $0xe8] sm:$0xff]
    %v2442 = vld [vmem:[%s2411 + $0xf0] sm:$0xff]
    %v2443 = vld [vmem:[%s2411 + $0xf8] sm:$0xff]
    %v2444 = vunpack.c.l.b16 %v2382
    %v2445 = vunpack.c.h.b16 %v2382
    %v2446 = vunpack.c.l.b16 %v2386
    %v2447 = vunpack.c.h.b16 %v2386
    %v2448 = vunpack.c.l.b16 %v2390
    %v2449 = vunpack.c.h.b16 %v2390
    %v2450 = vunpack.c.l.b16 %v2394
    %v2451 = vunpack.c.h.b16 %v2394
    %v2452 = vunpack.c.l.b16 %v2398
    %v2453 = vunpack.c.h.b16 %v2398
    %v2454 = vunpack.c.l.b16 %v2402
    %v2455 = vunpack.c.h.b16 %v2402
    %v2456 = vunpack.c.l.b16 %v2406
    %v2457 = vunpack.c.h.b16 %v2406
    %v2458 = vunpack.c.l.b16 %v2410
    %v2459 = vunpack.c.h.b16 %v2410
    %v2460 = vpack.c.b16 %v2446, %v2444
    %v2461 = vpack.c.b16 %v2447, %v2445
    %v2462 = vpack.c.b16 %v2450, %v2448
    %v2463 = vpack.c.b16 %v2451, %v2449
    %v2464 = vpack.c.b16 %v2454, %v2452
    %v2465 = vpack.c.b16 %v2455, %v2453
    %v2466 = vpack.c.b16 %v2458, %v2456
    %v2467 = vpack.c.b16 %v2459, %v2457
    %v2508 = vunpack.c.l.b16 %v2412
    %v2509 = vunpack.c.h.b16 %v2412
    %v2510 = vunpack.c.l.b16 %v2413
    %v2511 = vunpack.c.h.b16 %v2413
    %v2512 = vunpack.c.l.b16 %v2414
    %v2513 = vunpack.c.h.b16 %v2414
    %v2514 = vunpack.c.l.b16 %v2415
    %v2515 = vunpack.c.h.b16 %v2415
    %v2516 = vunpack.c.l.b16 %v2416
    %v2517 = vunpack.c.h.b16 %v2416
    %v2518 = vunpack.c.l.b16 %v2417
    %v2519 = vunpack.c.h.b16 %v2417
    %v2520 = vunpack.c.l.b16 %v2418
    %v2521 = vunpack.c.h.b16 %v2418
    %v2522 = vunpack.c.l.b16 %v2419
    %v2523 = vunpack.c.h.b16 %v2419
    %v2524 = vunpack.c.l.b16 %v2420
    %v2525 = vunpack.c.h.b16 %v2420
    %v2526 = vunpack.c.l.b16 %v2421
    %v2527 = vunpack.c.h.b16 %v2421
    %v2528 = vunpack.c.l.b16 %v2422
    %v2529 = vunpack.c.h.b16 %v2422
    %v2530 = vunpack.c.l.b16 %v2423
    %v2531 = vunpack.c.h.b16 %v2423
    %v2532 = vunpack.c.l.b16 %v2424
    %v2533 = vunpack.c.h.b16 %v2424
    %v2534 = vunpack.c.l.b16 %v2425
    %v2535 = vunpack.c.h.b16 %v2425
    %v2536 = vunpack.c.l.b16 %v2426
    %v2537 = vunpack.c.h.b16 %v2426
    %v2538 = vunpack.c.l.b16 %v2427
    %v2539 = vunpack.c.h.b16 %v2427
    %v2540 = vunpack.c.l.b16 %v2428
    %v2541 = vunpack.c.h.b16 %v2428
    %v2542 = vunpack.c.l.b16 %v2429
    %v2543 = vunpack.c.h.b16 %v2429
    %v2544 = vunpack.c.l.b16 %v2430
    %v2545 = vunpack.c.h.b16 %v2430
    %v2546 = vunpack.c.l.b16 %v2431
    %v2547 = vunpack.c.h.b16 %v2431
    %v2548 = vunpack.c.l.b16 %v2432
    %v2549 = vunpack.c.h.b16 %v2432
    %v2550 = vunpack.c.l.b16 %v2433
    %v2551 = vunpack.c.h.b16 %v2433
    %v2552 = vunpack.c.l.b16 %v2434
    %v2553 = vunpack.c.h.b16 %v2434
    %v2554 = vunpack.c.l.b16 %v2435
    %v2555 = vunpack.c.h.b16 %v2435
    %v2556 = vunpack.c.l.b16 %v2436
    %v2557 = vunpack.c.h.b16 %v2436
    %v2558 = vunpack.c.l.b16 %v2437
    %v2559 = vunpack.c.h.b16 %v2437
    %v2560 = vunpack.c.l.b16 %v2438
    %v2561 = vunpack.c.h.b16 %v2438
    %v2562 = vunpack.c.l.b16 %v2439
    %v2563 = vunpack.c.h.b16 %v2439
    %v2564 = vunpack.c.l.b16 %v2440
    %v2565 = vunpack.c.h.b16 %v2440
    %v2566 = vunpack.c.l.b16 %v2441
    %v2567 = vunpack.c.h.b16 %v2441
    %v2568 = vunpack.c.l.b16 %v2442
    %v2569 = vunpack.c.h.b16 %v2442
    %v2570 = vunpack.c.l.b16 %v2443
    %v2571 = vunpack.c.h.b16 %v2443
    %v2572 = vpack.c.b16 %v2510, %v2508
    %v2573 = vpack.c.b16 %v2511, %v2509
    %v2574 = vpack.c.b16 %v2514, %v2512
    %v2575 = vpack.c.b16 %v2515, %v2513
    %v2576 = vpack.c.b16 %v2518, %v2516
    %v2577 = vpack.c.b16 %v2519, %v2517
    %v2578 = vpack.c.b16 %v2522, %v2520
    %v2579 = vpack.c.b16 %v2523, %v2521
    %v2580 = vpack.c.b16 %v2526, %v2524
    %v2581 = vpack.c.b16 %v2527, %v2525
    %v2582 = vpack.c.b16 %v2530, %v2528
    %v2583 = vpack.c.b16 %v2531, %v2529
    %v2584 = vpack.c.b16 %v2534, %v2532
    %v2585 = vpack.c.b16 %v2535, %v2533
    %v2586 = vpack.c.b16 %v2538, %v2536
    %v2587 = vpack.c.b16 %v2539, %v2537
    %v2588 = vpack.c.b16 %v2542, %v2540
    %v2589 = vpack.c.b16 %v2543, %v2541
    %v2590 = vpack.c.b16 %v2546, %v2544
    %v2591 = vpack.c.b16 %v2547, %v2545
    %v2592 = vpack.c.b16 %v2550, %v2548
    %v2593 = vpack.c.b16 %v2551, %v2549
    %v2594 = vpack.c.b16 %v2554, %v2552
    %v2595 = vpack.c.b16 %v2555, %v2553
    %v2596 = vpack.c.b16 %v2558, %v2556
    %v2597 = vpack.c.b16 %v2559, %v2557
    %v2598 = vpack.c.b16 %v2562, %v2560
    %v2599 = vpack.c.b16 %v2563, %v2561
    %v2600 = vpack.c.b16 %v2566, %v2564
    %v2601 = vpack.c.b16 %v2567, %v2565
    %v2602 = vpack.c.b16 %v2570, %v2568
    %v2603 = vpack.c.b16 %v2571, %v2569
    %2636 = vmatpush.bf16.msra.mxu0 %v2586
    %2637 = vmatpush.bf16.msra.mxu0 %v2584
    %2638 = vmatpush.bf16.msra.mxu0 %v2582
    %2639 = vmatpush.bf16.msra.mxu0 %v2580
    %2640 = vmatpush.bf16.msra.mxu0 %v2578
    %2641 = vmatpush.bf16.msra.mxu0 %v2576
    %2642 = vmatpush.bf16.msra.mxu0 %v2574
    %2643 = vmatpush.bf16.msra.mxu0 %v2572
    %2644 = vmatmul.bf16.gmra.mxu0 %v2460
    %v2645 = vpop.f32.mrf.mxu0
    %v2646 = vadd.f32 0.0, %v2645
    %v2647 = vpop.f32.mrf.mxu0
    %v2648 = vadd.f32 0.0, %v2647
    %2649 = vmatmul.bf16.gmra.mxu0 %v2462
    %v2650 = vpop.f32.mrf.mxu0
    %v2651 = vadd.f32 0.0, %v2650
    %v2652 = vpop.f32.mrf.mxu0
    %v2653 = vadd.f32 0.0, %v2652
    %2654 = vmatmul.bf16.gmra.mxu0 %v2464
    %v2655 = vpop.f32.mrf.mxu0
    %v2656 = vadd.f32 0.0, %v2655
    %v2657 = vpop.f32.mrf.mxu0
    %v2658 = vadd.f32 0.0, %v2657
    %2659 = vmatmul.bf16.gmra.mxu0 %v2466
    %v2660 = vpop.f32.mrf.mxu0
    %v2661 = vadd.f32 0.0, %v2660
    %v2662 = vpop.f32.mrf.mxu0
    %v2663 = vadd.f32 0.0, %v2662
    %2664 = vdwg.mxu0
    %2665 = vmatpush.bf16.msra.mxu0 %v2602
    %2666 = vmatpush.bf16.msra.mxu0 %v2600
    %2667 = vmatpush.bf16.msra.mxu0 %v2598
    %2668 = vmatpush.bf16.msra.mxu0 %v2596
    %2669 = vmatpush.bf16.msra.mxu0 %v2594
    %2670 = vmatpush.bf16.msra.mxu0 %v2592
    %2671 = vmatpush.bf16.msra.mxu0 %v2590
    %2672 = vmatpush.bf16.msra.mxu0 %v2588
    %2673 = vmatmul.bf16.gmra.mxu0 %v2461
    %v2674 = vpop.f32.mrf.mxu0
    %v2675 = vadd.f32 %v2646, %v2674
    %v2676 = vpop.f32.mrf.mxu0
    %v2677 = vadd.f32 %v2648, %v2676
    %2678 = vmatmul.bf16.gmra.mxu0 %v2463
    %v2679 = vpop.f32.mrf.mxu0
    %v2680 = vadd.f32 %v2651, %v2679
    %v2681 = vpop.f32.mrf.mxu0
    %v2682 = vadd.f32 %v2653, %v2681
    %2683 = vmatmul.bf16.gmra.mxu0 %v2465
    %v2684 = vpop.f32.mrf.mxu0
    %v2685 = vadd.f32 %v2656, %v2684
    %v2686 = vpop.f32.mrf.mxu0
    %v2687 = vadd.f32 %v2658, %v2686
    %2688 = vmatmul.bf16.gmra.mxu0 %v2467
    %v2689 = vpop.f32.mrf.mxu0
    %v2690 = vadd.f32 %v2661, %v2689
    %v2691 = vpop.f32.mrf.mxu0
    %v2692 = vadd.f32 %v2663, %v2691
    %2693 = vdwg.mxu0
    %2694 = vmatpush.bf16.msra.mxu0 %v2587
    %2695 = vmatpush.bf16.msra.mxu0 %v2585
    %2696 = vmatpush.bf16.msra.mxu0 %v2583
    %2697 = vmatpush.bf16.msra.mxu0 %v2581
    %2698 = vmatpush.bf16.msra.mxu0 %v2579
    %2699 = vmatpush.bf16.msra.mxu0 %v2577
    %2700 = vmatpush.bf16.msra.mxu0 %v2575
    %2701 = vmatpush.bf16.msra.mxu0 %v2573
    %2702 = vmatmul.bf16.gmra.mxu0 %v2460
    %v2703 = vpop.f32.mrf.mxu0
    %v2704 = vadd.f32 0.0, %v2703
    %v2705 = vpop.f32.mrf.mxu0
    %v2706 = vadd.f32 0.0, %v2705
    %2707 = vmatmul.bf16.gmra.mxu0 %v2462
    %v2708 = vpop.f32.mrf.mxu0
    %v2709 = vadd.f32 0.0, %v2708
    %v2710 = vpop.f32.mrf.mxu0
    %v2711 = vadd.f32 0.0, %v2710
    %2712 = vmatmul.bf16.gmra.mxu0 %v2464
    %v2713 = vpop.f32.mrf.mxu0
    %v2714 = vadd.f32 0.0, %v2713
    %v2715 = vpop.f32.mrf.mxu0
    %v2716 = vadd.f32 0.0, %v2715
    %2717 = vmatmul.bf16.gmra.mxu0 %v2466
    %v2718 = vpop.f32.mrf.mxu0
    %v2719 = vadd.f32 0.0, %v2718
    %v2720 = vpop.f32.mrf.mxu0
    %v2721 = vadd.f32 0.0, %v2720
    %2722 = vdwg.mxu0
    %2723 = vmatpush.bf16.msra.mxu0 %v2603
    %2724 = vmatpush.bf16.msra.mxu0 %v2601
    %2725 = vmatpush.bf16.msra.mxu0 %v2599
    %2726 = vmatpush.bf16.msra.mxu0 %v2597
    %2727 = vmatpush.bf16.msra.mxu0 %v2595
    %2728 = vmatpush.bf16.msra.mxu0 %v2593
    %2729 = vmatpush.bf16.msra.mxu0 %v2591
    %2730 = vmatpush.bf16.msra.mxu0 %v2589
    %2731 = vmatmul.bf16.gmra.mxu0 %v2461
    %v2732 = vpop.f32.mrf.mxu0
    %v2733 = vadd.f32 %v2704, %v2732
    %v2734 = vpop.f32.mrf.mxu0
    %v2735 = vadd.f32 %v2706, %v2734
    %2736 = vmatmul.bf16.gmra.mxu0 %v2463
    %v2737 = vpop.f32.mrf.mxu0
    %v2738 = vadd.f32 %v2709, %v2737
    %v2739 = vpop.f32.mrf.mxu0
    %v2740 = vadd.f32 %v2711, %v2739
    %2741 = vmatmul.bf16.gmra.mxu0 %v2465
    %v2742 = vpop.f32.mrf.mxu0
    %v2743 = vadd.f32 %v2714, %v2742
    %v2744 = vpop.f32.mrf.mxu0
    %v2745 = vadd.f32 %v2716, %v2744
    %2746 = vmatmul.bf16.gmra.mxu0 %v2467
    %v2747 = vpop.f32.mrf.mxu0
    %v2748 = vadd.f32 %v2719, %v2747
    %v2749 = vpop.f32.mrf.mxu0
    %v2750 = vadd.f32 %v2721, %v2749
    %2751 = vdwg.mxu0
    %v2752 = vadd.f32 %v2352, %v2675
    %v2753 = vadd.f32 %v2353, %v2733
    %v2754 = vadd.f32 %v2354, %v2677
    %v2755 = vadd.f32 %v2355, %v2735
    %v2756 = vadd.f32 %v2356, %v2680
    %v2757 = vadd.f32 %v2357, %v2738
    %v2758 = vadd.f32 %v2358, %v2682
    %v2759 = vadd.f32 %v2359, %v2740
    %v2760 = vadd.f32 %v2360, %v2685
    %v2761 = vadd.f32 %v2361, %v2743
    %v2762 = vadd.f32 %v2362, %v2687
    %v2763 = vadd.f32 %v2363, %v2745
    %v2764 = vadd.f32 %v2364, %v2690
    %v2765 = vadd.f32 %v2365, %v2748
    %v2766 = vadd.f32 %v2366, %v2692
    %v2767 = vadd.f32 %v2367, %v2750
    %v2770 = vrot.slane %v124, 5
    %v2771 = vrot.slane %v2770, 4
    %v2772 = vrot.slane %v125, 5
    %v2773 = vsel %vm2378, %v2771, %v2772
    %v2774 = vrot.slane %v136, 5
    %v2775 = vrot.slane %v2774, 4
    %v2776 = vrot.slane %v137, 5
    %v2777 = vsel %vm2378, %v2775, %v2776
    %s2778 = scalar_lea.vmem [#allocation3], 1280
    %v2779 = vld [vmem:[%s2778] sm:$0xff]
    %v2780 = vld [vmem:[%s2778 + $0x8] sm:$0xff]
    %v2781 = vld [vmem:[%s2778 + $0x10] sm:$0xff]
    %v2782 = vld [vmem:[%s2778 + $0x18] sm:$0xff]
    %v2783 = vld [vmem:[%s2778 + $0x20] sm:$0xff]
    %v2784 = vld [vmem:[%s2778 + $0x28] sm:$0xff]
    %v2785 = vld [vmem:[%s2778 + $0x30] sm:$0xff]
    %v2786 = vld [vmem:[%s2778 + $0x38] sm:$0xff]
    %v2787 = vld [vmem:[%s2778 + $0x40] sm:$0xff]
    %v2788 = vld [vmem:[%s2778 + $0x48] sm:$0xff]
    %v2789 = vld [vmem:[%s2778 + $0x50] sm:$0xff]
    %v2790 = vld [vmem:[%s2778 + $0x58] sm:$0xff]
    %v2791 = vld [vmem:[%s2778 + $0x60] sm:$0xff]
    %v2792 = vld [vmem:[%s2778 + $0x68] sm:$0xff]
    %v2793 = vld [vmem:[%s2778 + $0x70] sm:$0xff]
    %v2794 = vld [vmem:[%s2778 + $0x78] sm:$0xff]
    %v2795 = vld [vmem:[%s2778 + $0x80] sm:$0xff]
    %v2796 = vld [vmem:[%s2778 + $0x88] sm:$0xff]
    %v2797 = vld [vmem:[%s2778 + $0x90] sm:$0xff]
    %v2798 = vld [vmem:[%s2778 + $0x98] sm:$0xff]
    %v2799 = vld [vmem:[%s2778 + $0xa0] sm:$0xff]
    %v2800 = vld [vmem:[%s2778 + $0xa8] sm:$0xff]
    %v2801 = vld [vmem:[%s2778 + $0xb0] sm:$0xff]
    %v2802 = vld [vmem:[%s2778 + $0xb8] sm:$0xff]
    %v2803 = vld [vmem:[%s2778 + $0xc0] sm:$0xff]
    %v2804 = vld [vmem:[%s2778 + $0xc8] sm:$0xff]
    %v2805 = vld [vmem:[%s2778 + $0xd0] sm:$0xff]
    %v2806 = vld [vmem:[%s2778 + $0xd8] sm:$0xff]
    %v2807 = vld [vmem:[%s2778 + $0xe0] sm:$0xff]
    %v2808 = vld [vmem:[%s2778 + $0xe8] sm:$0xff]
    %v2809 = vld [vmem:[%s2778 + $0xf0] sm:$0xff]
    %v2810 = vld [vmem:[%s2778 + $0xf8] sm:$0xff]
    %v2811 = vunpack.c.l.b16 %v2773
    %v2812 = vunpack.c.h.b16 %v2773
    %v2813 = vunpack.c.l.b16 %v2777
    %v2814 = vunpack.c.h.b16 %v2777
    %v2815 = vpack.c.b16 %v2448, %v2446
    %v2816 = vpack.c.b16 %v2449, %v2447
    %v2817 = vpack.c.b16 %v2811, %v2450
    %v2818 = vpack.c.b16 %v2812, %v2451
    %v2819 = vpack.c.b16 %v2456, %v2454
    %v2820 = vpack.c.b16 %v2457, %v2455
    %v2821 = vpack.c.b16 %v2813, %v2458
    %v2822 = vpack.c.b16 %v2814, %v2459
    %v2863 = vunpack.c.l.b16 %v2779
    %v2864 = vunpack.c.h.b16 %v2779
    %v2865 = vunpack.c.l.b16 %v2780
    %v2866 = vunpack.c.h.b16 %v2780
    %v2867 = vunpack.c.l.b16 %v2781
    %v2868 = vunpack.c.h.b16 %v2781
    %v2869 = vunpack.c.l.b16 %v2782
    %v2870 = vunpack.c.h.b16 %v2782
    %v2871 = vunpack.c.l.b16 %v2783
    %v2872 = vunpack.c.h.b16 %v2783
    %v2873 = vunpack.c.l.b16 %v2784
    %v2874 = vunpack.c.h.b16 %v2784
    %v2875 = vunpack.c.l.b16 %v2785
    %v2876 = vunpack.c.h.b16 %v2785
    %v2877 = vunpack.c.l.b16 %v2786
    %v2878 = vunpack.c.h.b16 %v2786
    %v2879 = vunpack.c.l.b16 %v2787
    %v2880 = vunpack.c.h.b16 %v2787
    %v2881 = vunpack.c.l.b16 %v2788
    %v2882 = vunpack.c.h.b16 %v2788
    %v2883 = vunpack.c.l.b16 %v2789
    %v2884 = vunpack.c.h.b16 %v2789
    %v2885 = vunpack.c.l.b16 %v2790
    %v2886 = vunpack.c.h.b16 %v2790
    %v2887 = vunpack.c.l.b16 %v2791
    %v2888 = vunpack.c.h.b16 %v2791
    %v2889 = vunpack.c.l.b16 %v2792
    %v2890 = vunpack.c.h.b16 %v2792
    %v2891 = vunpack.c.l.b16 %v2793
    %v2892 = vunpack.c.h.b16 %v2793
    %v2893 = vunpack.c.l.b16 %v2794
    %v2894 = vunpack.c.h.b16 %v2794
    %v2895 = vunpack.c.l.b16 %v2795
    %v2896 = vunpack.c.h.b16 %v2795
    %v2897 = vunpack.c.l.b16 %v2796
    %v2898 = vunpack.c.h.b16 %v2796
    %v2899 = vunpack.c.l.b16 %v2797
    %v2900 = vunpack.c.h.b16 %v2797
    %v2901 = vunpack.c.l.b16 %v2798
    %v2902 = vunpack.c.h.b16 %v2798
    %v2903 = vunpack.c.l.b16 %v2799
    %v2904 = vunpack.c.h.b16 %v2799
    %v2905 = vunpack.c.l.b16 %v2800
    %v2906 = vunpack.c.h.b16 %v2800
    %v2907 = vunpack.c.l.b16 %v2801
    %v2908 = vunpack.c.h.b16 %v2801
    %v2909 = vunpack.c.l.b16 %v2802
    %v2910 = vunpack.c.h.b16 %v2802
    %v2911 = vunpack.c.l.b16 %v2803
    %v2912 = vunpack.c.h.b16 %v2803
    %v2913 = vunpack.c.l.b16 %v2804
    %v2914 = vunpack.c.h.b16 %v2804
    %v2915 = vunpack.c.l.b16 %v2805
    %v2916 = vunpack.c.h.b16 %v2805
    %v2917 = vunpack.c.l.b16 %v2806
    %v2918 = vunpack.c.h.b16 %v2806
    %v2919 = vunpack.c.l.b16 %v2807
    %v2920 = vunpack.c.h.b16 %v2807
    %v2921 = vunpack.c.l.b16 %v2808
    %v2922 = vunpack.c.h.b16 %v2808
    %v2923 = vunpack.c.l.b16 %v2809
    %v2924 = vunpack.c.h.b16 %v2809
    %v2925 = vunpack.c.l.b16 %v2810
    %v2926 = vunpack.c.h.b16 %v2810
    %v2927 = vpack.c.b16 %v2865, %v2863
    %v2928 = vpack.c.b16 %v2866, %v2864
    %v2929 = vpack.c.b16 %v2869, %v2867
    %v2930 = vpack.c.b16 %v2870, %v2868
    %v2931 = vpack.c.b16 %v2873, %v2871
    %v2932 = vpack.c.b16 %v2874, %v2872
    %v2933 = vpack.c.b16 %v2877, %v2875
    %v2934 = vpack.c.b16 %v2878, %v2876
    %v2935 = vpack.c.b16 %v2881, %v2879
    %v2936 = vpack.c.b16 %v2882, %v2880
    %v2937 = vpack.c.b16 %v2885, %v2883
    %v2938 = vpack.c.b16 %v2886, %v2884
    %v2939 = vpack.c.b16 %v2889, %v2887
    %v2940 = vpack.c.b16 %v2890, %v2888
    %v2941 = vpack.c.b16 %v2893, %v2891
    %v2942 = vpack.c.b16 %v2894, %v2892
    %v2943 = vpack.c.b16 %v2897, %v2895
    %v2944 = vpack.c.b16 %v2898, %v2896
    %v2945 = vpack.c.b16 %v2901, %v2899
    %v2946 = vpack.c.b16 %v2902, %v2900
    %v2947 = vpack.c.b16 %v2905, %v2903
    %v2948 = vpack.c.b16 %v2906, %v2904
    %v2949 = vpack.c.b16 %v2909, %v2907
    %v2950 = vpack.c.b16 %v2910, %v2908
    %v2951 = vpack.c.b16 %v2913, %v2911
    %v2952 = vpack.c.b16 %v2914, %v2912
    %v2953 = vpack.c.b16 %v2917, %v2915
    %v2954 = vpack.c.b16 %v2918, %v2916
    %v2955 = vpack.c.b16 %v2921, %v2919
    %v2956 = vpack.c.b16 %v2922, %v2920
    %v2957 = vpack.c.b16 %v2925, %v2923
    %v2958 = vpack.c.b16 %v2926, %v2924
    %2991 = vmatpush.bf16.msra.mxu0 %v2941
    %2992 = vmatpush.bf16.msra.mxu0 %v2939
    %2993 = vmatpush.bf16.msra.mxu0 %v2937
    %2994 = vmatpush.bf16.msra.mxu0 %v2935
    %2995 = vmatpush.bf16.msra.mxu0 %v2933
    %2996 = vmatpush.bf16.msra.mxu0 %v2931
    %2997 = vmatpush.bf16.msra.mxu0 %v2929
    %2998 = vmatpush.bf16.msra.mxu0 %v2927
    %2999 = vmatmul.bf16.gmra.mxu0 %v2815
    %v3000 = vpop.f32.mrf.mxu0
    %v3001 = vadd.f32 0.0, %v3000
    %v3002 = vpop.f32.mrf.mxu0
    %v3003 = vadd.f32 0.0, %v3002
    %3004 = vmatmul.bf16.gmra.mxu0 %v2817
    %v3005 = vpop.f32.mrf.mxu0
    %v3006 = vadd.f32 0.0, %v3005
    %v3007 = vpop.f32.mrf.mxu0
    %v3008 = vadd.f32 0.0, %v3007
    %3009 = vmatmul.bf16.gmra.mxu0 %v2819
    %v3010 = vpop.f32.mrf.mxu0
    %v3011 = vadd.f32 0.0, %v3010
    %v3012 = vpop.f32.mrf.mxu0
    %v3013 = vadd.f32 0.0, %v3012
    %3014 = vmatmul.bf16.gmra.mxu0 %v2821
    %v3015 = vpop.f32.mrf.mxu0
    %v3016 = vadd.f32 0.0, %v3015
    %v3017 = vpop.f32.mrf.mxu0
    %v3018 = vadd.f32 0.0, %v3017
    %3019 = vdwg.mxu0
    %3020 = vmatpush.bf16.msra.mxu0 %v2957
    %3021 = vmatpush.bf16.msra.mxu0 %v2955
    %3022 = vmatpush.bf16.msra.mxu0 %v2953
    %3023 = vmatpush.bf16.msra.mxu0 %v2951
    %3024 = vmatpush.bf16.msra.mxu0 %v2949
    %3025 = vmatpush.bf16.msra.mxu0 %v2947
    %3026 = vmatpush.bf16.msra.mxu0 %v2945
    %3027 = vmatpush.bf16.msra.mxu0 %v2943
    %3028 = vmatmul.bf16.gmra.mxu0 %v2816
    %v3029 = vpop.f32.mrf.mxu0
    %v3030 = vadd.f32 %v3001, %v3029
    %v3031 = vpop.f32.mrf.mxu0
    %v3032 = vadd.f32 %v3003, %v3031
    %3033 = vmatmul.bf16.gmra.mxu0 %v2818
    %v3034 = vpop.f32.mrf.mxu0
    %v3035 = vadd.f32 %v3006, %v3034
    %v3036 = vpop.f32.mrf.mxu0
    %v3037 = vadd.f32 %v3008, %v3036
    %3038 = vmatmul.bf16.gmra.mxu0 %v2820
    %v3039 = vpop.f32.mrf.mxu0
    %v3040 = vadd.f32 %v3011, %v3039
    %v3041 = vpop.f32.mrf.mxu0
    %v3042 = vadd.f32 %v3013, %v3041
    %3043 = vmatmul.bf16.gmra.mxu0 %v2822
    %v3044 = vpop.f32.mrf.mxu0
    %v3045 = vadd.f32 %v3016, %v3044
    %v3046 = vpop.f32.mrf.mxu0
    %v3047 = vadd.f32 %v3018, %v3046
    %3048 = vdwg.mxu0
    %3049 = vmatpush.bf16.msra.mxu0 %v2942
    %3050 = vmatpush.bf16.msra.mxu0 %v2940
    %3051 = vmatpush.bf16.msra.mxu0 %v2938
    %3052 = vmatpush.bf16.msra.mxu0 %v2936
    %3053 = vmatpush.bf16.msra.mxu0 %v2934
    %3054 = vmatpush.bf16.msra.mxu0 %v2932
    %3055 = vmatpush.bf16.msra.mxu0 %v2930
    %3056 = vmatpush.bf16.msra.mxu0 %v2928
    %3057 = vmatmul.bf16.gmra.mxu0 %v2815
    %v3058 = vpop.f32.mrf.mxu0
    %v3059 = vadd.f32 0.0, %v3058
    %v3060 = vpop.f32.mrf.mxu0
    %v3061 = vadd.f32 0.0, %v3060
    %3062 = vmatmul.bf16.gmra.mxu0 %v2817
    %v3063 = vpop.f32.mrf.mxu0
    %v3064 = vadd.f32 0.0, %v3063
    %v3065 = vpop.f32.mrf.mxu0
    %v3066 = vadd.f32 0.0, %v3065
    %3067 = vmatmul.bf16.gmra.mxu0 %v2819
    %v3068 = vpop.f32.mrf.mxu0
    %v3069 = vadd.f32 0.0, %v3068
    %v3070 = vpop.f32.mrf.mxu0
    %v3071 = vadd.f32 0.0, %v3070
    %3072 = vmatmul.bf16.gmra.mxu0 %v2821
    %v3073 = vpop.f32.mrf.mxu0
    %v3074 = vadd.f32 0.0, %v3073
    %v3075 = vpop.f32.mrf.mxu0
    %v3076 = vadd.f32 0.0, %v3075
    %3077 = vdwg.mxu0
    %3078 = vmatpush.bf16.msra.mxu0 %v2958
    %3079 = vmatpush.bf16.msra.mxu0 %v2956
    %3080 = vmatpush.bf16.msra.mxu0 %v2954
    %3081 = vmatpush.bf16.msra.mxu0 %v2952
    %3082 = vmatpush.bf16.msra.mxu0 %v2950
    %3083 = vmatpush.bf16.msra.mxu0 %v2948
    %3084 = vmatpush.bf16.msra.mxu0 %v2946
    %3085 = vmatpush.bf16.msra.mxu0 %v2944
    %3086 = vmatmul.bf16.gmra.mxu0 %v2816
    %v3087 = vpop.f32.mrf.mxu0
    %v3088 = vadd.f32 %v3059, %v3087
    %v3089 = vpop.f32.mrf.mxu0
    %v3090 = vadd.f32 %v3061, %v3089
    %3091 = vmatmul.bf16.gmra.mxu0 %v2818
    %v3092 = vpop.f32.mrf.mxu0
    %v3093 = vadd.f32 %v3064, %v3092
    %v3094 = vpop.f32.mrf.mxu0
    %v3095 = vadd.f32 %v3066, %v3094
    %3096 = vmatmul.bf16.gmra.mxu0 %v2820
    %v3097 = vpop.f32.mrf.mxu0
    %v3098 = vadd.f32 %v3069, %v3097
    %v3099 = vpop.f32.mrf.mxu0
    %v3100 = vadd.f32 %v3071, %v3099
    %3101 = vmatmul.bf16.gmra.mxu0 %v2822
    %v3102 = vpop.f32.mrf.mxu0
    %v3103 = vadd.f32 %v3074, %v3102
    %v3104 = vpop.f32.mrf.mxu0
    %v3105 = vadd.f32 %v3076, %v3104
    %3106 = vdwg.mxu0
    %v3107 = vadd.f32 %v2752, %v3030
    %v3108 = vadd.f32 %v2753, %v3088
    %v3109 = vadd.f32 %v2754, %v3032
    %v3110 = vadd.f32 %v2755, %v3090
    %v3111 = vadd.f32 %v2756, %v3035
    %v3112 = vadd.f32 %v2757, %v3093
    %v3113 = vadd.f32 %v2758, %v3037
    %v3114 = vadd.f32 %v2759, %v3095
    %v3115 = vadd.f32 %v2760, %v3040
    %v3116 = vadd.f32 %v2761, %v3098
    %v3117 = vadd.f32 %v2762, %v3042
    %v3118 = vadd.f32 %v2763, %v3100
    %v3119 = vadd.f32 %v2764, %v3045
    %v3120 = vadd.f32 %v2765, %v3103
    %v3121 = vadd.f32 %v2766, %v3047
    %v3122 = vadd.f32 %v2767, %v3105
    %v3125 = vrot.slane %v126, 5
    %v3126 = vrot.slane %v3125, 4
    %v3127 = vrot.slane %v127, 5
    %v3128 = vsel %vm2378, %v3126, %v3127
    %v3129 = vrot.slane %v138, 5
    %v3130 = vrot.slane %v3129, 4
    %v3131 = vrot.slane %v139, 5
    %v3132 = vsel %vm2378, %v3130, %v3131
    %s3133 = scalar_lea.vmem [#allocation3], 2048
    %v3134 = vld [vmem:[%s3133] sm:$0xff]
    %v3135 = vld [vmem:[%s3133 + $0x8] sm:$0xff]
    %v3136 = vld [vmem:[%s3133 + $0x10] sm:$0xff]
    %v3137 = vld [vmem:[%s3133 + $0x18] sm:$0xff]
    %v3138 = vld [vmem:[%s3133 + $0x20] sm:$0xff]
    %v3139 = vld [vmem:[%s3133 + $0x28] sm:$0xff]
    %v3140 = vld [vmem:[%s3133 + $0x30] sm:$0xff]
    %v3141 = vld [vmem:[%s3133 + $0x38] sm:$0xff]
    %v3142 = vld [vmem:[%s3133 + $0x40] sm:$0xff]
    %v3143 = vld [vmem:[%s3133 + $0x48] sm:$0xff]
    %v3144 = vld [vmem:[%s3133 + $0x50] sm:$0xff]
    %v3145 = vld [vmem:[%s3133 + $0x58] sm:$0xff]
    %v3146 = vld [vmem:[%s3133 + $0x60] sm:$0xff]
    %v3147 = vld [vmem:[%s3133 + $0x68] sm:$0xff]
    %v3148 = vld [vmem:[%s3133 + $0x70] sm:$0xff]
    %v3149 = vld [vmem:[%s3133 + $0x78] sm:$0xff]
    %v3150 = vld [vmem:[%s3133 + $0x80] sm:$0xff]
    %v3151 = vld [vmem:[%s3133 + $0x88] sm:$0xff]
    %v3152 = vld [vmem:[%s3133 + $0x90] sm:$0xff]
    %v3153 = vld [vmem:[%s3133 + $0x98] sm:$0xff]
    %v3154 = vld [vmem:[%s3133 + $0xa0] sm:$0xff]
    %v3155 = vld [vmem:[%s3133 + $0xa8] sm:$0xff]
    %v3156 = vld [vmem:[%s3133 + $0xb0] sm:$0xff]
    %v3157 = vld [vmem:[%s3133 + $0xb8] sm:$0xff]
    %v3158 = vld [vmem:[%s3133 + $0xc0] sm:$0xff]
    %v3159 = vld [vmem:[%s3133 + $0xc8] sm:$0xff]
    %v3160 = vld [vmem:[%s3133 + $0xd0] sm:$0xff]
    %v3161 = vld [vmem:[%s3133 + $0xd8] sm:$0xff]
    %v3162 = vld [vmem:[%s3133 + $0xe0] sm:$0xff]
    %v3163 = vld [vmem:[%s3133 + $0xe8] sm:$0xff]
    %v3164 = vld [vmem:[%s3133 + $0xf0] sm:$0xff]
    %v3165 = vld [vmem:[%s3133 + $0xf8] sm:$0xff]
    %v3166 = vunpack.c.l.b16 %v3128
    %v3167 = vunpack.c.h.b16 %v3128
    %v3168 = vunpack.c.l.b16 %v3132
    %v3169 = vunpack.c.h.b16 %v3132
    %v3170 = vpack.c.b16 %v3166, %v2811
    %v3171 = vpack.c.b16 %v3167, %v2812
    %v3172 = vpack.c.b16 %v3168, %v2813
    %v3173 = vpack.c.b16 %v3169, %v2814
    %v3210 = vunpack.c.l.b16 %v3134
    %v3211 = vunpack.c.h.b16 %v3134
    %v3212 = vunpack.c.l.b16 %v3135
    %v3213 = vunpack.c.h.b16 %v3135
    %v3214 = vunpack.c.l.b16 %v3136
    %v3215 = vunpack.c.h.b16 %v3136
    %v3216 = vunpack.c.l.b16 %v3137
    %v3217 = vunpack.c.h.b16 %v3137
    %v3218 = vunpack.c.l.b16 %v3138
    %v3219 = vunpack.c.h.b16 %v3138
    %v3220 = vunpack.c.l.b16 %v3139
    %v3221 = vunpack.c.h.b16 %v3139
    %v3222 = vunpack.c.l.b16 %v3140
    %v3223 = vunpack.c.h.b16 %v3140
    %v3224 = vunpack.c.l.b16 %v3141
    %v3225 = vunpack.c.h.b16 %v3141
    %v3226 = vunpack.c.l.b16 %v3142
    %v3227 = vunpack.c.h.b16 %v3142
    %v3228 = vunpack.c.l.b16 %v3143
    %v3229 = vunpack.c.h.b16 %v3143
    %v3230 = vunpack.c.l.b16 %v3144
    %v3231 = vunpack.c.h.b16 %v3144
    %v3232 = vunpack.c.l.b16 %v3145
    %v3233 = vunpack.c.h.b16 %v3145
    %v3234 = vunpack.c.l.b16 %v3146
    %v3235 = vunpack.c.h.b16 %v3146
    %v3236 = vunpack.c.l.b16 %v3147
    %v3237 = vunpack.c.h.b16 %v3147
    %v3238 = vunpack.c.l.b16 %v3148
    %v3239 = vunpack.c.h.b16 %v3148
    %v3240 = vunpack.c.l.b16 %v3149
    %v3241 = vunpack.c.h.b16 %v3149
    %v3242 = vunpack.c.l.b16 %v3150
    %v3243 = vunpack.c.h.b16 %v3150
    %v3244 = vunpack.c.l.b16 %v3151
    %v3245 = vunpack.c.h.b16 %v3151
    %v3246 = vunpack.c.l.b16 %v3152
    %v3247 = vunpack.c.h.b16 %v3152
    %v3248 = vunpack.c.l.b16 %v3153
    %v3249 = vunpack.c.h.b16 %v3153
    %v3250 = vunpack.c.l.b16 %v3154
    %v3251 = vunpack.c.h.b16 %v3154
    %v3252 = vunpack.c.l.b16 %v3155
    %v3253 = vunpack.c.h.b16 %v3155
    %v3254 = vunpack.c.l.b16 %v3156
    %v3255 = vunpack.c.h.b16 %v3156
    %v3256 = vunpack.c.l.b16 %v3157
    %v3257 = vunpack.c.h.b16 %v3157
    %v3258 = vunpack.c.l.b16 %v3158
    %v3259 = vunpack.c.h.b16 %v3158
    %v3260 = vunpack.c.l.b16 %v3159
    %v3261 = vunpack.c.h.b16 %v3159
    %v3262 = vunpack.c.l.b16 %v3160
    %v3263 = vunpack.c.h.b16 %v3160
    %v3264 = vunpack.c.l.b16 %v3161
    %v3265 = vunpack.c.h.b16 %v3161
    %v3266 = vunpack.c.l.b16 %v3162
    %v3267 = vunpack.c.h.b16 %v3162
    %v3268 = vunpack.c.l.b16 %v3163
    %v3269 = vunpack.c.h.b16 %v3163
    %v3270 = vunpack.c.l.b16 %v3164
    %v3271 = vunpack.c.h.b16 %v3164
    %v3272 = vunpack.c.l.b16 %v3165
    %v3273 = vunpack.c.h.b16 %v3165
    %v3274 = vpack.c.b16 %v3212, %v3210
    %v3275 = vpack.c.b16 %v3213, %v3211
    %v3276 = vpack.c.b16 %v3216, %v3214
    %v3277 = vpack.c.b16 %v3217, %v3215
    %v3278 = vpack.c.b16 %v3220, %v3218
    %v3279 = vpack.c.b16 %v3221, %v3219
    %v3280 = vpack.c.b16 %v3224, %v3222
    %v3281 = vpack.c.b16 %v3225, %v3223
    %v3282 = vpack.c.b16 %v3228, %v3226
    %v3283 = vpack.c.b16 %v3229, %v3227
    %v3284 = vpack.c.b16 %v3232, %v3230
    %v3285 = vpack.c.b16 %v3233, %v3231
    %v3286 = vpack.c.b16 %v3236, %v3234
    %v3287 = vpack.c.b16 %v3237, %v3235
    %v3288 = vpack.c.b16 %v3240, %v3238
    %v3289 = vpack.c.b16 %v3241, %v3239
    %v3290 = vpack.c.b16 %v3244, %v3242
    %v3291 = vpack.c.b16 %v3245, %v3243
    %v3292 = vpack.c.b16 %v3248, %v3246
    %v3293 = vpack.c.b16 %v3249, %v3247
    %v3294 = vpack.c.b16 %v3252, %v3250
    %v3295 = vpack.c.b16 %v3253, %v3251
    %v3296 = vpack.c.b16 %v3256, %v3254
    %v3297 = vpack.c.b16 %v3257, %v3255
    %v3298 = vpack.c.b16 %v3260, %v3258
    %v3299 = vpack.c.b16 %v3261, %v3259
    %v3300 = vpack.c.b16 %v3264, %v3262
    %v3301 = vpack.c.b16 %v3265, %v3263
    %v3302 = vpack.c.b16 %v3268, %v3266
    %v3303 = vpack.c.b16 %v3269, %v3267
    %v3304 = vpack.c.b16 %v3272, %v3270
    %v3305 = vpack.c.b16 %v3273, %v3271
    %3338 = vmatpush.bf16.msra.mxu0 %v3288
    %3339 = vmatpush.bf16.msra.mxu0 %v3286
    %3340 = vmatpush.bf16.msra.mxu0 %v3284
    %3341 = vmatpush.bf16.msra.mxu0 %v3282
    %3342 = vmatpush.bf16.msra.mxu0 %v3280
    %3343 = vmatpush.bf16.msra.mxu0 %v3278
    %3344 = vmatpush.bf16.msra.mxu0 %v3276
    %3345 = vmatpush.bf16.msra.mxu0 %v3274
    %3346 = vmatmul.bf16.gmra.mxu0 %v2462
    %v3347 = vpop.f32.mrf.mxu0
    %v3348 = vadd.f32 0.0, %v3347
    %v3349 = vpop.f32.mrf.mxu0
    %v3350 = vadd.f32 0.0, %v3349
    %3351 = vmatmul.bf16.gmra.mxu0 %v3170
    %v3352 = vpop.f32.mrf.mxu0
    %v3353 = vadd.f32 0.0, %v3352
    %v3354 = vpop.f32.mrf.mxu0
    %v3355 = vadd.f32 0.0, %v3354
    %3356 = vmatmul.bf16.gmra.mxu0 %v2466
    %v3357 = vpop.f32.mrf.mxu0
    %v3358 = vadd.f32 0.0, %v3357
    %v3359 = vpop.f32.mrf.mxu0
    %v3360 = vadd.f32 0.0, %v3359
    %3361 = vmatmul.bf16.gmra.mxu0 %v3172
    %v3362 = vpop.f32.mrf.mxu0
    %v3363 = vadd.f32 0.0, %v3362
    %v3364 = vpop.f32.mrf.mxu0
    %v3365 = vadd.f32 0.0, %v3364
    %3366 = vdwg.mxu0
    %3367 = vmatpush.bf16.msra.mxu0 %v3304
    %3368 = vmatpush.bf16.msra.mxu0 %v3302
    %3369 = vmatpush.bf16.msra.mxu0 %v3300
    %3370 = vmatpush.bf16.msra.mxu0 %v3298
    %3371 = vmatpush.bf16.msra.mxu0 %v3296
    %3372 = vmatpush.bf16.msra.mxu0 %v3294
    %3373 = vmatpush.bf16.msra.mxu0 %v3292
    %3374 = vmatpush.bf16.msra.mxu0 %v3290
    %3375 = vmatmul.bf16.gmra.mxu0 %v2463
    %v3376 = vpop.f32.mrf.mxu0
    %v3377 = vadd.f32 %v3348, %v3376
    %v3378 = vpop.f32.mrf.mxu0
    %v3379 = vadd.f32 %v3350, %v3378
    %3380 = vmatmul.bf16.gmra.mxu0 %v3171
    %v3381 = vpop.f32.mrf.mxu0
    %v3382 = vadd.f32 %v3353, %v3381
    %v3383 = vpop.f32.mrf.mxu0
    %v3384 = vadd.f32 %v3355, %v3383
    %3385 = vmatmul.bf16.gmra.mxu0 %v2467
    %v3386 = vpop.f32.mrf.mxu0
    %v3387 = vadd.f32 %v3358, %v3386
    %v3388 = vpop.f32.mrf.mxu0
    %v3389 = vadd.f32 %v3360, %v3388
    %3390 = vmatmul.bf16.gmra.mxu0 %v3173
    %v3391 = vpop.f32.mrf.mxu0
    %v3392 = vadd.f32 %v3363, %v3391
    %v3393 = vpop.f32.mrf.mxu0
    %v3394 = vadd.f32 %v3365, %v3393
    %3395 = vdwg.mxu0
    %3396 = vmatpush.bf16.msra.mxu0 %v3289
    %3397 = vmatpush.bf16.msra.mxu0 %v3287
    %3398 = vmatpush.bf16.msra.mxu0 %v3285
    %3399 = vmatpush.bf16.msra.mxu0 %v3283
    %3400 = vmatpush.bf16.msra.mxu0 %v3281
    %3401 = vmatpush.bf16.msra.mxu0 %v3279
    %3402 = vmatpush.bf16.msra.mxu0 %v3277
    %3403 = vmatpush.bf16.msra.mxu0 %v3275
    %3404 = vmatmul.bf16.gmra.mxu0 %v2462
    %v3405 = vpop.f32.mrf.mxu0
    %v3406 = vadd.f32 0.0, %v3405
    %v3407 = vpop.f32.mrf.mxu0
    %v3408 = vadd.f32 0.0, %v3407
    %3409 = vmatmul.bf16.gmra.mxu0 %v3170
    %v3410 = vpop.f32.mrf.mxu0
    %v3411 = vadd.f32 0.0, %v3410
    %v3412 = vpop.f32.mrf.mxu0
    %v3413 = vadd.f32 0.0, %v3412
    %3414 = vmatmul.bf16.gmra.mxu0 %v2466
    %v3415 = vpop.f32.mrf.mxu0
    %v3416 = vadd.f32 0.0, %v3415
    %v3417 = vpop.f32.mrf.mxu0
    %v3418 = vadd.f32 0.0, %v3417
    %3419 = vmatmul.bf16.gmra.mxu0 %v3172
    %v3420 = vpop.f32.mrf.mxu0
    %v3421 = vadd.f32 0.0, %v3420
    %v3422 = vpop.f32.mrf.mxu0
    %v3423 = vadd.f32 0.0, %v3422
    %3424 = vdwg.mxu0
    %3425 = vmatpush.bf16.msra.mxu0 %v3305
    %3426 = vmatpush.bf16.msra.mxu0 %v3303
    %3427 = vmatpush.bf16.msra.mxu0 %v3301
    %3428 = vmatpush.bf16.msra.mxu0 %v3299
    %3429 = vmatpush.bf16.msra.mxu0 %v3297
    %3430 = vmatpush.bf16.msra.mxu0 %v3295
    %3431 = vmatpush.bf16.msra.mxu0 %v3293
    %3432 = vmatpush.bf16.msra.mxu0 %v3291
    %3433 = vmatmul.bf16.gmra.mxu0 %v2463
    %v3434 = vpop.f32.mrf.mxu0
    %v3435 = vadd.f32 %v3406, %v3434
    %v3436 = vpop.f32.mrf.mxu0
    %v3437 = vadd.f32 %v3408, %v3436
    %3438 = vmatmul.bf16.gmra.mxu0 %v3171
    %v3439 = vpop.f32.mrf.mxu0
    %v3440 = vadd.f32 %v3411, %v3439
    %v3441 = vpop.f32.mrf.mxu0
    %v3442 = vadd.f32 %v3413, %v3441
    %3443 = vmatmul.bf16.gmra.mxu0 %v2467
    %v3444 = vpop.f32.mrf.mxu0
    %v3445 = vadd.f32 %v3416, %v3444
    %v3446 = vpop.f32.mrf.mxu0
    %v3447 = vadd.f32 %v3418, %v3446
    %3448 = vmatmul.bf16.gmra.mxu0 %v3173
    %v3449 = vpop.f32.mrf.mxu0
    %v3450 = vadd.f32 %v3421, %v3449
    %v3451 = vpop.f32.mrf.mxu0
    %v3452 = vadd.f32 %v3423, %v3451
    %3453 = vdwg.mxu0
    %v3454 = vadd.f32 %v3107, %v3377
    %v3455 = vadd.f32 %v3108, %v3435
    %v3456 = vadd.f32 %v3109, %v3379
    %v3457 = vadd.f32 %v3110, %v3437
    %v3458 = vadd.f32 %v3111, %v3382
    %v3459 = vadd.f32 %v3112, %v3440
    %v3460 = vadd.f32 %v3113, %v3384
    %v3461 = vadd.f32 %v3114, %v3442
    %v3462 = vadd.f32 %v3115, %v3387
    %v3463 = vadd.f32 %v3116, %v3445
    %v3464 = vadd.f32 %v3117, %v3389
    %v3465 = vadd.f32 %v3118, %v3447
    %v3466 = vadd.f32 %v3119, %v3392
    %v3467 = vadd.f32 %v3120, %v3450
    %v3468 = vadd.f32 %v3121, %v3394
    %v3469 = vadd.f32 %v3122, %v3452
    %v3470 = vadd.f32 %v3454, %v3456
    %v3471 = vadd.f32 %v3470, %v3458
    %v3472 = vadd.f32 %v3471, %v3460
    %v3473 = vrot.slane %v3472, 4
    %v3474 = vadd.f32 %v3472, %v3473
    %v3475 = vrot.slane %v3474, 2
    %v3476 = vadd.f32 %v3474, %v3475
    %v3477 = vrot.slane %v3476, 1
    %v3478 = vadd.f32 %v3476, %v3477
    %v3479 = vadd.f32 %v3455, %v3457
    %v3480 = vadd.f32 %v3479, %v3459
    %v3481 = vadd.f32 %v3480, %v3461
    %v3482 = vrot.slane %v3481, 4
    %v3483 = vadd.f32 %v3481, %v3482
    %v3484 = vrot.slane %v3483, 2
    %v3485 = vadd.f32 %v3483, %v3484
    %v3486 = vrot.slane %v3485, 1
    %v3487 = vadd.f32 %v3485, %v3486
    %v3488 = vadd.f32 %v3462, %v3464
    %v3489 = vadd.f32 %v3488, %v3466
    %v3490 = vadd.f32 %v3489, %v3468
    %v3491 = vrot.slane %v3490, 4
    %v3492 = vadd.f32 %v3490, %v3491
    %v3493 = vrot.slane %v3492, 2
    %v3494 = vadd.f32 %v3492, %v3493
    %v3495 = vrot.slane %v3494, 1
    %v3496 = vadd.f32 %v3494, %v3495
    %v3497 = vadd.f32 %v3463, %v3465
    %v3498 = vadd.f32 %v3497, %v3467
    %v3499 = vadd.f32 %v3498, %v3469
    %v3500 = vrot.slane %v3499, 4
    %v3501 = vadd.f32 %v3499, %v3500
    %v3502 = vrot.slane %v3501, 2
    %v3503 = vadd.f32 %v3501, %v3502
    %v3504 = vrot.slane %v3503, 1
    %v3505 = vadd.f32 %v3503, %v3504
    %vm3510 = vcmask 1041409
    %v3511 = vsel %vm3510, %v3496, %v3478
    %v3512 = vsel %vm3510, %v3505, %v3487
    %3515 = vrot.lane.b32.xlu0 %v3511, 32
    %v3516 = vpop.permute.xlu0 %3515
    %3517 = vrot.lane.b32.xlu0 %v3512, 32
    %v3518 = vpop.permute.xlu0 %3517
    %v3519 = vlaneseq
    %v3520 = vand.u32 %v3519, 127
    %vm3521 = vcmp.lt.s32.totalorder %v3520, 32
    %v3522 = vsel %vm3521, %v3516, %v3518
    %v3523 = vsel %vm3521, %v3518, %v3516
    %v3526 = vrot.slane %v3523, 1
    %v3527 = vrot.slane %v3522, 1
    %v3532 = vadd.f32 %v3478, %v3523
    %v3533 = vadd.f32 %v3487, %v3522
    %v3534 = vadd.f32 %v3496, %v3526
    %v3535 = vadd.f32 %v3505, %v3527
    %v3540 = vrot.slane %v3534, 7
    %v3541 = vsel %vm3510, %v3540, %v3532
    %v3542 = vrot.slane %v3535, 7
    %v3543 = vsel %vm3510, %v3542, %v3533
    %3546 = vrot.lane.b32.xlu0 %v3541, 64
    %v3547 = vpop.permute.xlu0 %3546
    %3548 = vrot.lane.b32.xlu0 %v3543, 64
    %v3549 = vpop.permute.xlu0 %3548
    %vm3550 = vcmp.lt.s32.totalorder %v3520, 64
    %v3551 = vsel %vm3550, %v3547, %v3549
    %v3552 = vsel %vm3550, %v3549, %v3547
    %v3555 = vrot.slane %v3552, 1
    %v3556 = vrot.slane %v3551, 1
    %v3561 = vadd.f32 %v3532, %v3552
    %v3562 = vadd.f32 %v3533, %v3551
    %v3563 = vadd.f32 %v3534, %v3555
    %v3564 = vadd.f32 %v3535, %v3556
    %v3569 = vrot.slane %v3563, 7
    %v3570 = vsel %vm3510, %v3569, %v3561
    %v3571 = vrot.slane %v3564, 7
    %v3572 = vsel %vm3510, %v3571, %v3562
    %v3573 = vrot.slane %v3572, 1
    %v3574 = vrot.slane %v3570, 1
    %v3579 = vadd.f32 %v3561, %v3572
    %v3580 = vadd.f32 %v3562, %v3570
    %v3581 = vadd.f32 %v3563, %v3573
    %v3582 = vadd.f32 %v3564, %v3574
    %v3587 = vrot.slane %v3581, 7
    %v3588 = vsel %vm3510, %v3587, %v3579
    %v3589 = vrot.slane %v3582, 7
    %v3590 = vsel %vm3510, %v3589, %v3580
    %3593 = vrot.lane.b32.xlu0 %v3588, 127
    %v3594 = vpop.permute.xlu0 %3593
    %3595 = vrot.lane.b32.xlu0 %v3590, 127
    %v3596 = vpop.permute.xlu0 %3595
    %vm3597 = vcmp.lt.s32.totalorder %v3520, 127
    %v3598 = vsel %vm3597, %v3594, %v3596
    %v3599 = vsel %vm3597, %v3596, %v3594
    %v3602 = vrot.slane %v3598, 1
    %v3603 = vrot.slane %v3599, 1
    %v3608 = vadd.f32 %v3579, %v3598
    %v3609 = vadd.f32 %v3580, %v3599
    %v3610 = vadd.f32 %v3581, %v3602
    %v3611 = vadd.f32 %v3582, %v3603
    %v3612 = vadd.s32 %v3520, 128
    %vm3613 = vcmp.lt.s32.totalorder %v3520, 0
    %v3614 = vsub.s32 0, %v3520
    %v3615 = vsel %vm3613, %v3614, %v3520
    %v3616 = vshrl.u32 %v3615, 1
    %v3617 = vand.u32 %v3615, 1
    %v3618 = vsub.s32 0, %v3617
    %v3619 = vsel %vm3613, %v3618, %v3617
    %vm3620 = vcmp.lt.s32.totalorder %v3612, 0
    %v3621 = vsub.s32 0, %v3612
    %v3622 = vsel %vm3620, %v3621, %v3612
    %v3623 = vshrl.u32 %v3622, 1
    %v3624 = vand.u32 %v3622, 1
    %v3625 = vsub.s32 0, %v3624
    %v3626 = vsel %vm3620, %v3625, %v3624
    %vm3627 = vcmp.ne.s32.totalorder %v3619, 0
    %vm3628 = vcmp.ne.s32.totalorder %v3626, 0
    %vm3629 = vcmp.lt.s32.totalorder %v3619, 0
    %vm3630 = vcmp.lt.s32.totalorder %v3626, 0
    %vm3631 = vmand %vm3629, %vm3627
    %vm3632 = vmand %vm3630, %vm3628
    %v3633 = vadd.s32 %v3619, 2
    %v3634 = vadd.s32 %v3626, 2
    %v3635 = vsel %vm3631, %v3633, %v3619
    %v3636 = vsel %vm3632, %v3634, %v3626
    %vm3637 = vcmp.eq.s32.totalorder %v3635, 0
    %vm3638 = vcmp.eq.s32.totalorder %v3636, 0
    %v3643 = vrot.slane %v3610, 7
    %v3644 = vsel %vm3510, %v3643, %v3608
    %v3645 = vrot.slane %v3611, 7
    %v3646 = vsel %vm3510, %v3645, %v3609
    %3649 = vrot.lane.b32.xlu0 %v3644, 1
    %v3650 = vpop.permute.xlu0 %3649
    %3651 = vrot.lane.b32.xlu0 %v3646, 1
    %v3652 = vpop.permute.xlu0 %3651
    %vm3653 = vcmp.lt.s32.totalorder %v3520, 1
    %v3654 = vsel %vm3653, %v3650, %v3652
    %v3655 = vsel %vm3653, %v3652, %v3650
    %v3656 = vsel %vm3637, %v3644, %v3655
    %v3657 = vsel %vm3638, %v3646, %v3654
    %v3658 = vmul.f32 %v3656, 0.001953125
    %v3659 = vmul.f32 %v3657, 0.001953125
    %v3662 = vrot.slane %v3659, 7
    %vm3663 = vcmask 1040384
    %v3664 = vsel %vm3663, %v3658, %v3662
    %v3665 = vsel %vm3510, %v3658, %v3662
    %v3666 = vrot.slane %v3665, 1
    %v3667 = vperm.slane %v3664, 0
    %v3668 = vperm.slane %v3664, 1
    %v3669 = vperm.slane %v3666, 0
    %v3670 = vperm.slane %v3666, 1
    %v3675 = vsub.f32 %v3454, %v3667
    %v3676 = vsub.f32 %v3455, %v3668
    %v3677 = vsub.f32 %v3456, %v3667
    %v3678 = vsub.f32 %v3457, %v3668
    %v3679 = vsub.f32 %v3458, %v3667
    %v3680 = vsub.f32 %v3459, %v3668
    %v3681 = vsub.f32 %v3460, %v3667
    %v3682 = vsub.f32 %v3461, %v3668
    %v3683 = vsub.f32 %v3462, %v3669
    %v3684 = vsub.f32 %v3463, %v3670
    %v3685 = vsub.f32 %v3464, %v3669
    %v3686 = vsub.f32 %v3465, %v3670
    %v3687 = vsub.f32 %v3466, %v3669
    %v3688 = vsub.f32 %v3467, %v3670
    %v3689 = vsub.f32 %v3468, %v3669
    %v3690 = vsub.f32 %v3469, %v3670
    %v3691 = vmul.f32 %v3675, %v3675
    %v3692 = vmul.f32 %v3676, %v3676
    %v3693 = vmul.f32 %v3677, %v3677
    %v3694 = vmul.f32 %v3678, %v3678
    %v3695 = vmul.f32 %v3679, %v3679
    %v3696 = vmul.f32 %v3680, %v3680
    %v3697 = vmul.f32 %v3681, %v3681
    %v3698 = vmul.f32 %v3682, %v3682
    %v3699 = vmul.f32 %v3683, %v3683
    %v3700 = vmul.f32 %v3684, %v3684
    %v3701 = vmul.f32 %v3685, %v3685
    %v3702 = vmul.f32 %v3686, %v3686
    %v3703 = vmul.f32 %v3687, %v3687
    %v3704 = vmul.f32 %v3688, %v3688
    %v3705 = vmul.f32 %v3689, %v3689
    %v3706 = vmul.f32 %v3690, %v3690
    %v3707 = vadd.f32 %v3691, %v3693
    %v3708 = vadd.f32 %v3707, %v3695
    %v3709 = vadd.f32 %v3708, %v3697
    %v3710 = vrot.slane %v3709, 4
    %v3711 = vadd.f32 %v3709, %v3710
    %v3712 = vrot.slane %v3711, 2
    %v3713 = vadd.f32 %v3711, %v3712
    %v3714 = vrot.slane %v3713, 1
    %v3715 = vadd.f32 %v3713, %v3714
    %v3716 = vadd.f32 %v3692, %v3694
    %v3717 = vadd.f32 %v3716, %v3696
    %v3718 = vadd.f32 %v3717, %v3698
    %v3719 = vrot.slane %v3718, 4
    %v3720 = vadd.f32 %v3718, %v3719
    %v3721 = vrot.slane %v3720, 2
    %v3722 = vadd.f32 %v3720, %v3721
    %v3723 = vrot.slane %v3722, 1
    %v3724 = vadd.f32 %v3722, %v3723
    %v3725 = vadd.f32 %v3699, %v3701
    %v3726 = vadd.f32 %v3725, %v3703
    %v3727 = vadd.f32 %v3726, %v3705
    %v3728 = vrot.slane %v3727, 4
    %v3729 = vadd.f32 %v3727, %v3728
    %v3730 = vrot.slane %v3729, 2
    %v3731 = vadd.f32 %v3729, %v3730
    %v3732 = vrot.slane %v3731, 1
    %v3733 = vadd.f32 %v3731, %v3732
    %v3734 = vadd.f32 %v3700, %v3702
    %v3735 = vadd.f32 %v3734, %v3704
    %v3736 = vadd.f32 %v3735, %v3706
    %v3737 = vrot.slane %v3736, 4
    %v3738 = vadd.f32 %v3736, %v3737
    %v3739 = vrot.slane %v3738, 2
    %v3740 = vadd.f32 %v3738, %v3739
    %v3741 = vrot.slane %v3740, 1
    %v3742 = vadd.f32 %v3740, %v3741
    %v3747 = vsel %vm3510, %v3733, %v3715
    %v3748 = vsel %vm3510, %v3742, %v3724
    %3751 = vrot.lane.b32.xlu0 %v3747, 32
    %v3752 = vpop.permute.xlu0 %3751
    %3753 = vrot.lane.b32.xlu0 %v3748, 32
    %v3754 = vpop.permute.xlu0 %3753
    %v3755 = vsel %vm3521, %v3752, %v3754
    %v3756 = vsel %vm3521, %v3754, %v3752
    %v3759 = vrot.slane %v3756, 1
    %v3760 = vrot.slane %v3755, 1
    %v3765 = vadd.f32 %v3715, %v3756
    %v3766 = vadd.f32 %v3724, %v3755
    %v3767 = vadd.f32 %v3733, %v3759
    %v3768 = vadd.f32 %v3742, %v3760
    %v3773 = vrot.slane %v3767, 7
    %v3774 = vsel %vm3510, %v3773, %v3765
    %v3775 = vrot.slane %v3768, 7
    %v3776 = vsel %vm3510, %v3775, %v3766
    %3779 = vrot.lane.b32.xlu0 %v3774, 64
    %v3780 = vpop.permute.xlu0 %3779
    %3781 = vrot.lane.b32.xlu0 %v3776, 64
    %v3782 = vpop.permute.xlu0 %3781
    %v3783 = vsel %vm3550, %v3780, %v3782
    %v3784 = vsel %vm3550, %v3782, %v3780
    %v3787 = vrot.slane %v3784, 1
    %v3788 = vrot.slane %v3783, 1
    %v3793 = vadd.f32 %v3765, %v3784
    %v3794 = vadd.f32 %v3766, %v3783
    %v3795 = vadd.f32 %v3767, %v3787
    %v3796 = vadd.f32 %v3768, %v3788
    %v3801 = vrot.slane %v3795, 7
    %v3802 = vsel %vm3510, %v3801, %v3793
    %v3803 = vrot.slane %v3796, 7
    %v3804 = vsel %vm3510, %v3803, %v3794
    %v3805 = vrot.slane %v3804, 1
    %v3806 = vrot.slane %v3802, 1
    %v3811 = vadd.f32 %v3793, %v3804
    %v3812 = vadd.f32 %v3794, %v3802
    %v3813 = vadd.f32 %v3795, %v3805
    %v3814 = vadd.f32 %v3796, %v3806
    %v3819 = vrot.slane %v3813, 7
    %v3820 = vsel %vm3510, %v3819, %v3811
    %v3821 = vrot.slane %v3814, 7
    %v3822 = vsel %vm3510, %v3821, %v3812
    %3825 = vrot.lane.b32.xlu0 %v3820, 127
    %v3826 = vpop.permute.xlu0 %3825
    %3827 = vrot.lane.b32.xlu0 %v3822, 127
    %v3828 = vpop.permute.xlu0 %3827
    %v3829 = vsel %vm3597, %v3826, %v3828
    %v3830 = vsel %vm3597, %v3828, %v3826
    %v3833 = vrot.slane %v3829, 1
    %v3834 = vrot.slane %v3830, 1
    %v3839 = vadd.f32 %v3811, %v3829
    %v3840 = vadd.f32 %v3812, %v3830
    %v3841 = vadd.f32 %v3813, %v3833
    %v3842 = vadd.f32 %v3814, %v3834
    %v3847 = vrot.slane %v3841, 7
    %v3848 = vsel %vm3510, %v3847, %v3839
    %v3849 = vrot.slane %v3842, 7
    %v3850 = vsel %vm3510, %v3849, %v3840
    %3853 = vrot.lane.b32.xlu0 %v3848, 1
    %v3854 = vpop.permute.xlu0 %3853
    %3855 = vrot.lane.b32.xlu0 %v3850, 1
    %v3856 = vpop.permute.xlu0 %3855
    %v3857 = vsel %vm3653, %v3854, %v3856
    %v3858 = vsel %vm3653, %v3856, %v3854
    %v3859 = vsel %vm3637, %v3848, %v3858
    %v3860 = vsel %vm3638, %v3850, %v3857
    %v3861 = vmul.f32 %v3859, 0.001953125
    %v3862 = vmul.f32 %v3860, 0.001953125
    %v3863 = vadd.f32 %v3861, 1e-05
    %v3864 = vadd.f32 %v3862, 1e-05
    %v3865 = vrsqrt.pop %v3863
    %v3866 = vmul.f32 %v3865, %v3863
    %v3867 = vmul.f32 %v3866, %v3865
    %v3868 = vmul.f32 0.5, %v3867
    %v3869 = vsub.f32 1.5, %v3868
    %v3870 = vmul.f32 %v3865, %v3869
    %vm3871 = vweird.f32 %v3863
    %vm3872 = vweird.f32 %v3865
    %vm3873 = vmor %vm3871, %vm3872
    %v3874 = vsel %vm3873, %v3865, %v3870
    %v3875 = vrsqrt.pop %v3864
    %v3876 = vmul.f32 %v3875, %v3864
    %v3877 = vmul.f32 %v3876, %v3875
    %v3878 = vmul.f32 0.5, %v3877
    %v3879 = vsub.f32 1.5, %v3878
    %v3880 = vmul.f32 %v3875, %v3879
    %vm3881 = vweird.f32 %v3864
    %vm3882 = vweird.f32 %v3875
    %vm3883 = vmor %vm3881, %vm3882
    %v3884 = vsel %vm3883, %v3875, %v3880
    %v3887 = vrot.slane %v3884, 7
    %v3888 = vsel %vm3663, %v3874, %v3887
    %v3889 = vsel %vm3510, %v3874, %v3887
    %v3890 = vrot.slane %v3889, 1
    %v3891 = vperm.slane %v3888, 0
    %v3892 = vperm.slane %v3888, 1
    %v3893 = vperm.slane %v3890, 0
    %v3894 = vperm.slane %v3890, 1
    %v3899 = vmul.f32 %v3675, %v3891
    %v3900 = vmul.f32 %v3676, %v3892
    %v3901 = vmul.f32 %v3677, %v3891
    %v3902 = vmul.f32 %v3678, %v3892
    %v3903 = vmul.f32 %v3679, %v3891
    %v3904 = vmul.f32 %v3680, %v3892
    %v3905 = vmul.f32 %v3681, %v3891
    %v3906 = vmul.f32 %v3682, %v3892
    %v3907 = vmul.f32 %v3683, %v3893
    %v3908 = vmul.f32 %v3684, %v3894
    %v3909 = vmul.f32 %v3685, %v3893
    %v3910 = vmul.f32 %v3686, %v3894
    %v3911 = vmul.f32 %v3687, %v3893
    %v3912 = vmul.f32 %v3688, %v3894
    %v3913 = vmul.f32 %v3689, %v3893
    %v3914 = vmul.f32 %v3690, %v3894
    %v3915 = vld [vmem:[#allocation5] sm:$0x3]
    %v3917 = vperm.slane %v3915, 0
    %v3918 = vperm.slane %v3915, 1
    %v3921 = vmul.f32 %v3899, %v3917
    %v3922 = vmul.f32 %v3900, %v3918
    %v3923 = vmul.f32 %v3901, %v3917
    %v3924 = vmul.f32 %v3902, %v3918
    %v3925 = vmul.f32 %v3903, %v3917
    %v3926 = vmul.f32 %v3904, %v3918
    %v3927 = vmul.f32 %v3905, %v3917
    %v3928 = vmul.f32 %v3906, %v3918
    %v3929 = vmul.f32 %v3907, %v3917
    %v3930 = vmul.f32 %v3908, %v3918
    %v3931 = vmul.f32 %v3909, %v3917
    %v3932 = vmul.f32 %v3910, %v3918
    %v3933 = vmul.f32 %v3911, %v3917
    %v3934 = vmul.f32 %v3912, %v3918
    %v3935 = vmul.f32 %v3913, %v3917
    %v3936 = vmul.f32 %v3914, %v3918
    %v3937 = vld [vmem:[#allocation7] sm:$0x3]
    %v3939 = vperm.slane %v3937, 0
    %v3940 = vperm.slane %v3937, 1
    %v3943 = vadd.f32 %v3921, %v3939
    %v3944 = vadd.f32 %v3922, %v3940
    %v3945 = vadd.f32 %v3923, %v3939
    %v3946 = vadd.f32 %v3924, %v3940
    %v3947 = vadd.f32 %v3925, %v3939
    %v3948 = vadd.f32 %v3926, %v3940
    %v3949 = vadd.f32 %v3927, %v3939
    %v3950 = vadd.f32 %v3928, %v3940
    %v3951 = vadd.f32 %v3929, %v3939
    %v3952 = vadd.f32 %v3930, %v3940
    %v3953 = vadd.f32 %v3931, %v3939
    %v3954 = vadd.f32 %v3932, %v3940
    %v3955 = vadd.f32 %v3933, %v3939
    %v3956 = vadd.f32 %v3934, %v3940
    %v3957 = vadd.f32 %v3935, %v3939
    %v3958 = vadd.f32 %v3936, %v3940
    %v3959 = vmax.f32 %v3943, 0.0
    %v3960 = vmax.f32 %v3944, 0.0
    %v3961 = vmax.f32 %v3945, 0.0
    %v3962 = vmax.f32 %v3946, 0.0
    %v3963 = vmax.f32 %v3947, 0.0
    %v3964 = vmax.f32 %v3948, 0.0
    %v3965 = vmax.f32 %v3949, 0.0
    %v3966 = vmax.f32 %v3950, 0.0
    %v3967 = vmax.f32 %v3951, 0.0
    %v3968 = vmax.f32 %v3952, 0.0
    %v3969 = vmax.f32 %v3953, 0.0
    %v3970 = vmax.f32 %v3954, 0.0
    %v3971 = vmax.f32 %v3955, 0.0
    %v3972 = vmax.f32 %v3956, 0.0
    %v3973 = vmax.f32 %v3957, 0.0
    %v3974 = vmax.f32 %v3958, 0.0
    %3975 = vst [vmem:[#allocation2] sm:$0xff] 0
    %3976 = vst [vmem:[#allocation2 + $0x8] sm:$0x11] 0
    %3977 = vst [vmem:[#allocation2 + $0x10] sm:$0xff] 0
    %3978 = vst [vmem:[#allocation2 + $0x18] sm:$0x11] 0
    %3979 = vst [vmem:[#allocation2 + $0x20] sm:$0xff] 0
    %3980 = vst [vmem:[#allocation2 + $0x28] sm:$0x11] 0
    %3981 = vst [vmem:[#allocation2 + $0x30] sm:$0xff] 0
    %3982 = vst [vmem:[#allocation2 + $0x38] sm:$0x11] 0
    %3983 = vst [vmem:[#allocation2 + $0x40] sm:$0xff] 0
    %3984 = vst [vmem:[#allocation2 + $0x48] sm:$0x11] 0
    %3985 = vst [vmem:[#allocation2 + $0x50] sm:$0xff] 0
    %3986 = vst [vmem:[#allocation2 + $0x58] sm:$0x11] 0
    %3987 = vst [vmem:[#allocation2 + $0x60] sm:$0xff] 0
    %3988 = vst [vmem:[#allocation2 + $0x68] sm:$0x11] 0
    %3989 = vst [vmem:[#allocation2 + $0x70] sm:$0xff] 0
    %3990 = vst [vmem:[#allocation2 + $0x78] sm:$0x11] 0
    %3991 = vst [vmem:[#allocation2 + $0x80] sm:$0xff] 0
    %3992 = vst [vmem:[#allocation2 + $0x88] sm:$0x11] 0
    %3993 = vst [vmem:[#allocation2 + $0x90] sm:$0xff] 0
    %3994 = vst [vmem:[#allocation2 + $0x98] sm:$0x11] 0
    %3995 = vst [vmem:[#allocation2 + $0xa0] sm:$0xff] 0
    %3996 = vst [vmem:[#allocation2 + $0xa8] sm:$0x11] 0
    %3997 = vst [vmem:[#allocation2 + $0xb0] sm:$0xff] 0
    %3998 = vst [vmem:[#allocation2 + $0xb8] sm:$0x11] 0
    %v3999 = vpack.c.bf16 %v3960, %v3959
    %v4000 = vpack.c.bf16 %v3962, %v3961
    %v4001 = vpack.c.bf16 %v3964, %v3963
    %v4002 = vpack.c.bf16 %v3966, %v3965
    %v4003 = vpack.c.bf16 %v3968, %v3967
    %v4004 = vpack.c.bf16 %v3970, %v3969
    %v4005 = vpack.c.bf16 %v3972, %v3971
    %v4006 = vpack.c.bf16 %v3974, %v3973
    %v4008 = vshrl.u32 %v3999, 16
    %v4010 = vrot.slane %v4008, 7
    %v4011 = vshll.u32 %v3999, 16
    %v4013 = vor.u32 %v4010, %v4011
    %v4014 = vrot.slane %v4010, 4
    %v4016 = vshrl.u32 %v4000, 16
    %v4018 = vrot.slane %v4016, 7
    %v4019 = vshll.u32 %v4000, 16
    %v4021 = vor.u32 %v4018, %v4019
    %v4022 = vrot.slane %v4018, 4
    %v4024 = vshrl.u32 %v4001, 16
    %v4026 = vrot.slane %v4024, 7
    %v4027 = vshll.u32 %v4001, 16
    %v4029 = vor.u32 %v4026, %v4027
    %v4030 = vrot.slane %v4026, 4
    %v4032 = vshrl.u32 %v4002, 16
    %v4034 = vrot.slane %v4032, 7
    %v4035 = vshll.u32 %v4002, 16
    %v4037 = vor.u32 %v4034, %v4035
    %v4038 = vrot.slane %v4034, 4
    %v4040 = vshrl.u32 %v4003, 16
    %v4042 = vrot.slane %v4040, 7
    %v4043 = vshll.u32 %v4003, 16
    %v4045 = vor.u32 %v4042, %v4043
    %v4046 = vrot.slane %v4042, 4
    %v4048 = vshrl.u32 %v4004, 16
    %v4050 = vrot.slane %v4048, 7
    %v4051 = vshll.u32 %v4004, 16
    %v4053 = vor.u32 %v4050, %v4051
    %v4054 = vrot.slane %v4050, 4
    %v4056 = vshrl.u32 %v4005, 16
    %v4058 = vrot.slane %v4056, 7
    %v4059 = vshll.u32 %v4005, 16
    %v4061 = vor.u32 %v4058, %v4059
    %v4062 = vrot.slane %v4058, 4
    %v4064 = vshrl.u32 %v4006, 16
    %v4066 = vrot.slane %v4064, 7
    %v4067 = vshll.u32 %v4006, 16
    %v4069 = vor.u32 %v4066, %v4067
    %v4070 = vrot.slane %v4066, 4
    %s4087 = scalar_lea.vmem [#allocation2], 16
    %vm4088 = vcmask 1043456
    %vm4089 = vsmask.f32 7938
    %vm4090 = vmand %vm4088, %vm4089
    %vm4091 = vcmask 1047556
    %vm4092 = vsmask.f32 7954
    %vm4093 = vmand %vm4091, %vm4092
    %vm4094 = vmor %vm4093, %vm4090
    %v4095 = vld [vmem:[%s4087] sm:$0xff]
    %v4096 = vsel %vm4094, %v4013, %v4095
    %4097 = vst [vmem:[%s4087] sm:$0xff] %v4096
    %vm4098 = vcmask 1040384
    %vm4099 = vsmask.f32 256
    %vm4100 = vmand %vm4098, %vm4099
    %vm4101 = vcmask 1044484
    %vm4102 = vsmask.f32 4352
    %vm4103 = vmand %vm4101, %vm4102
    %vm4104 = vmor %vm4103, %vm4100
    %v4105 = vld [vmem:[%s4087 + $0x8] sm:$0x11]
    %v4106 = vsel %vm4104, %v4014, %v4105
    %4107 = vst [vmem:[%s4087 + $0x8] sm:$0x11] %v4106
    %v4108 = vld [vmem:[%s4087 + $0x10] sm:$0xff]
    %v4109 = vsel %vm4094, %v4021, %v4108
    %4110 = vst [vmem:[%s4087 + $0x10] sm:$0xff] %v4109
    %v4111 = vld [vmem:[%s4087 + $0x18] sm:$0x11]
    %v4112 = vsel %vm4104, %v4022, %v4111
    %4113 = vst [vmem:[%s4087 + $0x18] sm:$0x11] %v4112
    %v4114 = vld [vmem:[%s4087 + $0x20] sm:$0xff]
    %v4115 = vsel %vm4094, %v4029, %v4114
    %4116 = vst [vmem:[%s4087 + $0x20] sm:$0xff] %v4115
    %v4117 = vld [vmem:[%s4087 + $0x28] sm:$0x11]
    %v4118 = vsel %vm4104, %v4030, %v4117
    %4119 = vst [vmem:[%s4087 + $0x28] sm:$0x11] %v4118
    %v4120 = vld [vmem:[%s4087 + $0x30] sm:$0xff]
    %v4121 = vsel %vm4094, %v4037, %v4120
    %4122 = vst [vmem:[%s4087 + $0x30] sm:$0xff] %v4121
    %v4123 = vld [vmem:[%s4087 + $0x38] sm:$0x11]
    %v4124 = vsel %vm4104, %v4038, %v4123
    %4125 = vst [vmem:[%s4087 + $0x38] sm:$0x11] %v4124
    %v4126 = vld [vmem:[%s4087 + $0x60] sm:$0xff]
    %v4127 = vsel %vm4094, %v4045, %v4126
    %4128 = vst [vmem:[%s4087 + $0x60] sm:$0xff] %v4127
    %v4129 = vld [vmem:[%s4087 + $0x68] sm:$0x11]
    %v4130 = vsel %vm4104, %v4046, %v4129
    %4131 = vst [vmem:[%s4087 + $0x68] sm:$0x11] %v4130
    %v4132 = vld [vmem:[%s4087 + $0x70] sm:$0xff]
    %v4133 = vsel %vm4094, %v4053, %v4132
    %4134 = vst [vmem:[%s4087 + $0x70] sm:$0xff] %v4133
    %v4135 = vld [vmem:[%s4087 + $0x78] sm:$0x11]
    %v4136 = vsel %vm4104, %v4054, %v4135
    %4137 = vst [vmem:[%s4087 + $0x78] sm:$0x11] %v4136
    %v4138 = vld [vmem:[%s4087 + $0x80] sm:$0xff]
    %v4139 = vsel %vm4094, %v4061, %v4138
    %4140 = vst [vmem:[%s4087 + $0x80] sm:$0xff] %v4139
    %v4141 = vld [vmem:[%s4087 + $0x88] sm:$0x11]
    %v4142 = vsel %vm4104, %v4062, %v4141
    %4143 = vst [vmem:[%s4087 + $0x88] sm:$0x11] %v4142
    %v4144 = vld [vmem:[%s4087 + $0x90] sm:$0xff]
    %v4145 = vsel %vm4094, %v4069, %v4144
    %4146 = vst [vmem:[%s4087 + $0x90] sm:$0xff] %v4145
    %v4147 = vld [vmem:[%s4087 + $0x98] sm:$0x11]
    %v4148 = vsel %vm4104, %v4070, %v4147
    %4149 = vst [vmem:[%s4087 + $0x98] sm:$0x11] %v4148
    %v4150 = vld [vmem:[#allocation2] sm:$0xff]
    %v4151 = vld [vmem:[#allocation2 + $0x8] sm:$0x11]
    %v4152 = vld [vmem:[#allocation2 + $0x10] sm:$0xff]
    %v4153 = vld [vmem:[#allocation2 + $0x18] sm:$0x11]
    %v4154 = vld [vmem:[#allocation2 + $0x20] sm:$0xff]
    %v4155 = vld [vmem:[#allocation2 + $0x28] sm:$0x11]
    %v4156 = vld [vmem:[#allocation2 + $0x30] sm:$0xff]
    %v4157 = vld [vmem:[#allocation2 + $0x38] sm:$0x11]
    %v4158 = vld [vmem:[#allocation2 + $0x40] sm:$0xff]
    %v4159 = vld [vmem:[#allocation2 + $0x48] sm:$0x11]
    %v4160 = vld [vmem:[#allocation2 + $0x50] sm:$0xff]
    %v4161 = vld [vmem:[#allocation2 + $0x58] sm:$0x11]
    %v4162 = vld [vmem:[#allocation2 + $0x60] sm:$0xff]
    %v4163 = vld [vmem:[#allocation2 + $0x68] sm:$0x11]
    %v4164 = vld [vmem:[#allocation2 + $0x70] sm:$0xff]
    %v4165 = vld [vmem:[#allocation2 + $0x78] sm:$0x11]
    %v4166 = vld [vmem:[#allocation2 + $0x80] sm:$0xff]
    %v4167 = vld [vmem:[#allocation2 + $0x88] sm:$0x11]
    %v4168 = vld [vmem:[#allocation2 + $0x90] sm:$0xff]
    %v4169 = vld [vmem:[#allocation2 + $0x98] sm:$0x11]
    %v4170 = vld [vmem:[#allocation2 + $0xa0] sm:$0xff]
    %v4171 = vld [vmem:[#allocation2 + $0xa8] sm:$0x11]
    %v4172 = vld [vmem:[#allocation2 + $0xb0] sm:$0xff]
    %v4173 = vld [vmem:[#allocation2 + $0xb8] sm:$0x11]
    %v4174 = vld [vmem:[#allocation8] sm:$0xff]
    %v4175 = vld [vmem:[#allocation8 + $0x8] sm:$0xff]
    %v4176 = vld [vmem:[#allocation8 + $0x10] sm:$0xff]
    %v4177 = vld [vmem:[#allocation8 + $0x18] sm:$0xff]
    %v4178 = vld [vmem:[#allocation8 + $0x20] sm:$0xff]
    %v4179 = vld [vmem:[#allocation8 + $0x28] sm:$0xff]
    %v4180 = vld [vmem:[#allocation8 + $0x30] sm:$0xff]
    %v4181 = vld [vmem:[#allocation8 + $0x38] sm:$0xff]
    %v4182 = vld [vmem:[#allocation8 + $0x40] sm:$0xff]
    %v4183 = vld [vmem:[#allocation8 + $0x48] sm:$0xff]
    %v4184 = vld [vmem:[#allocation8 + $0x50] sm:$0xff]
    %v4185 = vld [vmem:[#allocation8 + $0x58] sm:$0xff]
    %v4186 = vld [vmem:[#allocation8 + $0x60] sm:$0xff]
    %v4187 = vld [vmem:[#allocation8 + $0x68] sm:$0xff]
    %v4188 = vld [vmem:[#allocation8 + $0x70] sm:$0xff]
    %v4189 = vld [vmem:[#allocation8 + $0x78] sm:$0xff]
    %v4190 = vld [vmem:[#allocation8 + $0x80] sm:$0xff]
    %v4191 = vld [vmem:[#allocation8 + $0x88] sm:$0xff]
    %v4192 = vld [vmem:[#allocation8 + $0x90] sm:$0xff]
    %v4193 = vld [vmem:[#allocation8 + $0x98] sm:$0xff]
    %v4194 = vld [vmem:[#allocation8 + $0xa0] sm:$0xff]
    %v4195 = vld [vmem:[#allocation8 + $0xa8] sm:$0xff]
    %v4196 = vld [vmem:[#allocation8 + $0xb0] sm:$0xff]
    %v4197 = vld [vmem:[#allocation8 + $0xb8] sm:$0xff]
    %v4198 = vld [vmem:[#allocation8 + $0xc0] sm:$0xff]
    %v4199 = vld [vmem:[#allocation8 + $0xc8] sm:$0xff]
    %v4200 = vld [vmem:[#allocation8 + $0xd0] sm:$0xff]
    %v4201 = vld [vmem:[#allocation8 + $0xd8] sm:$0xff]
    %v4202 = vld [vmem:[#allocation8 + $0xe0] sm:$0xff]
    %v4203 = vld [vmem:[#allocation8 + $0xe8] sm:$0xff]
    %v4204 = vld [vmem:[#allocation8 + $0xf0] sm:$0xff]
    %v4205 = vld [vmem:[#allocation8 + $0xf8] sm:$0xff]
    %s4206 = scalar_lea.vmem [#allocation8], 768
    %v4207 = vld [vmem:[%s4206] sm:$0xff]
    %v4208 = vld [vmem:[%s4206 + $0x8] sm:$0xff]
    %v4209 = vld [vmem:[%s4206 + $0x10] sm:$0xff]
    %v4210 = vld [vmem:[%s4206 + $0x18] sm:$0xff]
    %v4211 = vld [vmem:[%s4206 + $0x20] sm:$0xff]
    %v4212 = vld [vmem:[%s4206 + $0x28] sm:$0xff]
    %v4213 = vld [vmem:[%s4206 + $0x30] sm:$0xff]
    %v4214 = vld [vmem:[%s4206 + $0x38] sm:$0xff]
    %v4215 = vld [vmem:[%s4206 + $0x40] sm:$0xff]
    %v4216 = vld [vmem:[%s4206 + $0x48] sm:$0xff]
    %v4217 = vld [vmem:[%s4206 + $0x50] sm:$0xff]
    %v4218 = vld [vmem:[%s4206 + $0x58] sm:$0xff]
    %v4219 = vld [vmem:[%s4206 + $0x60] sm:$0xff]
    %v4220 = vld [vmem:[%s4206 + $0x68] sm:$0xff]
    %v4221 = vld [vmem:[%s4206 + $0x70] sm:$0xff]
    %v4222 = vld [vmem:[%s4206 + $0x78] sm:$0xff]
    %v4223 = vld [vmem:[%s4206 + $0x80] sm:$0xff]
    %v4224 = vld [vmem:[%s4206 + $0x88] sm:$0xff]
    %v4225 = vld [vmem:[%s4206 + $0x90] sm:$0xff]
    %v4226 = vld [vmem:[%s4206 + $0x98] sm:$0xff]
    %v4227 = vld [vmem:[%s4206 + $0xa0] sm:$0xff]
    %v4228 = vld [vmem:[%s4206 + $0xa8] sm:$0xff]
    %v4229 = vld [vmem:[%s4206 + $0xb0] sm:$0xff]
    %v4230 = vld [vmem:[%s4206 + $0xb8] sm:$0xff]
    %v4231 = vld [vmem:[%s4206 + $0xc0] sm:$0xff]
    %v4232 = vld [vmem:[%s4206 + $0xc8] sm:$0xff]
    %v4233 = vld [vmem:[%s4206 + $0xd0] sm:$0xff]
    %v4234 = vld [vmem:[%s4206 + $0xd8] sm:$0xff]
    %v4235 = vld [vmem:[%s4206 + $0xe0] sm:$0xff]
    %v4236 = vld [vmem:[%s4206 + $0xe8] sm:$0xff]
    %v4237 = vld [vmem:[%s4206 + $0xf0] sm:$0xff]
    %v4238 = vld [vmem:[%s4206 + $0xf8] sm:$0xff]
    %v4247 = vunpack.c.l.b16 %v4152
    %v4248 = vunpack.c.h.b16 %v4152
    %v4249 = vunpack.c.l.b16 %v4154
    %v4250 = vunpack.c.h.b16 %v4154
    %v4251 = vunpack.c.l.b16 %v4156
    %v4252 = vunpack.c.h.b16 %v4156
    %v4253 = vunpack.c.l.b16 %v4158
    %v4254 = vunpack.c.h.b16 %v4158
    %v4255 = vunpack.c.l.b16 %v4164
    %v4256 = vunpack.c.h.b16 %v4164
    %v4257 = vunpack.c.l.b16 %v4166
    %v4258 = vunpack.c.h.b16 %v4166
    %v4259 = vunpack.c.l.b16 %v4168
    %v4260 = vunpack.c.h.b16 %v4168
    %v4261 = vunpack.c.l.b16 %v4170
    %v4262 = vunpack.c.h.b16 %v4170
    %v4263 = vpack.c.b16 %v4249, %v4247
    %v4264 = vpack.c.b16 %v4250, %v4248
    %v4265 = vpack.c.b16 %v4253, %v4251
    %v4266 = vpack.c.b16 %v4254, %v4252
    %v4267 = vpack.c.b16 %v4257, %v4255
    %v4268 = vpack.c.b16 %v4258, %v4256
    %v4269 = vpack.c.b16 %v4261, %v4259
    %v4270 = vpack.c.b16 %v4262, %v4260
    %v4311 = vunpack.c.l.b16 %v4207
    %v4312 = vunpack.c.h.b16 %v4207
    %v4313 = vunpack.c.l.b16 %v4208
    %v4314 = vunpack.c.h.b16 %v4208
    %v4315 = vunpack.c.l.b16 %v4209
    %v4316 = vunpack.c.h.b16 %v4209
    %v4317 = vunpack.c.l.b16 %v4210
    %v4318 = vunpack.c.h.b16 %v4210
    %v4319 = vunpack.c.l.b16 %v4211
    %v4320 = vunpack.c.h.b16 %v4211
    %v4321 = vunpack.c.l.b16 %v4212
    %v4322 = vunpack.c.h.b16 %v4212
    %v4323 = vunpack.c.l.b16 %v4213
    %v4324 = vunpack.c.h.b16 %v4213
    %v4325 = vunpack.c.l.b16 %v4214
    %v4326 = vunpack.c.h.b16 %v4214
    %v4327 = vunpack.c.l.b16 %v4215
    %v4328 = vunpack.c.h.b16 %v4215
    %v4329 = vunpack.c.l.b16 %v4216
    %v4330 = vunpack.c.h.b16 %v4216
    %v4331 = vunpack.c.l.b16 %v4217
    %v4332 = vunpack.c.h.b16 %v4217
    %v4333 = vunpack.c.l.b16 %v4218
    %v4334 = vunpack.c.h.b16 %v4218
    %v4335 = vunpack.c.l.b16 %v4219
    %v4336 = vunpack.c.h.b16 %v4219
    %v4337 = vunpack.c.l.b16 %v4220
    %v4338 = vunpack.c.h.b16 %v4220
    %v4339 = vunpack.c.l.b16 %v4221
    %v4340 = vunpack.c.h.b16 %v4221
    %v4341 = vunpack.c.l.b16 %v4222
    %v4342 = vunpack.c.h.b16 %v4222
    %v4343 = vunpack.c.l.b16 %v4223
    %v4344 = vunpack.c.h.b16 %v4223
    %v4345 = vunpack.c.l.b16 %v4224
    %v4346 = vunpack.c.h.b16 %v4224
    %v4347 = vunpack.c.l.b16 %v4225
    %v4348 = vunpack.c.h.b16 %v4225
    %v4349 = vunpack.c.l.b16 %v4226
    %v4350 = vunpack.c.h.b16 %v4226
    %v4351 = vunpack.c.l.b16 %v4227
    %v4352 = vunpack.c.h.b16 %v4227
    %v4353 = vunpack.c.l.b16 %v4228
    %v4354 = vunpack.c.h.b16 %v4228
    %v4355 = vunpack.c.l.b16 %v4229
    %v4356 = vunpack.c.h.b16 %v4229
    %v4357 = vunpack.c.l.b16 %v4230
    %v4358 = vunpack.c.h.b16 %v4230
    %v4359 = vunpack.c.l.b16 %v4231
    %v4360 = vunpack.c.h.b16 %v4231
    %v4361 = vunpack.c.l.b16 %v4232
    %v4362 = vunpack.c.h.b16 %v4232
    %v4363 = vunpack.c.l.b16 %v4233
    %v4364 = vunpack.c.h.b16 %v4233
    %v4365 = vunpack.c.l.b16 %v4234
    %v4366 = vunpack.c.h.b16 %v4234
    %v4367 = vunpack.c.l.b16 %v4235
    %v4368 = vunpack.c.h.b16 %v4235
    %v4369 = vunpack.c.l.b16 %v4236
    %v4370 = vunpack.c.h.b16 %v4236
    %v4371 = vunpack.c.l.b16 %v4237
    %v4372 = vunpack.c.h.b16 %v4237
    %v4373 = vunpack.c.l.b16 %v4238
    %v4374 = vunpack.c.h.b16 %v4238
    %v4375 = vpack.c.b16 %v4313, %v4311
    %v4376 = vpack.c.b16 %v4314, %v4312
    %v4377 = vpack.c.b16 %v4317, %v4315
    %v4378 = vpack.c.b16 %v4318, %v4316
    %v4379 = vpack.c.b16 %v4321, %v4319
    %v4380 = vpack.c.b16 %v4322, %v4320
    %v4381 = vpack.c.b16 %v4325, %v4323
    %v4382 = vpack.c.b16 %v4326, %v4324
    %v4383 = vpack.c.b16 %v4329, %v4327
    %v4384 = vpack.c.b16 %v4330, %v4328
    %v4385 = vpack.c.b16 %v4333, %v4331
    %v4386 = vpack.c.b16 %v4334, %v4332
    %v4387 = vpack.c.b16 %v4337, %v4335
    %v4388 = vpack.c.b16 %v4338, %v4336
    %v4389 = vpack.c.b16 %v4341, %v4339
    %v4390 = vpack.c.b16 %v4342, %v4340
    %v4391 = vpack.c.b16 %v4345, %v4343
    %v4392 = vpack.c.b16 %v4346, %v4344
    %v4393 = vpack.c.b16 %v4349, %v4347
    %v4394 = vpack.c.b16 %v4350, %v4348
    %v4395 = vpack.c.b16 %v4353, %v4351
    %v4396 = vpack.c.b16 %v4354, %v4352
    %v4397 = vpack.c.b16 %v4357, %v4355
    %v4398 = vpack.c.b16 %v4358, %v4356
    %v4399 = vpack.c.b16 %v4361, %v4359
    %v4400 = vpack.c.b16 %v4362, %v4360
    %v4401 = vpack.c.b16 %v4365, %v4363
    %v4402 = vpack.c.b16 %v4366, %v4364
    %v4403 = vpack.c.b16 %v4369, %v4367
    %v4404 = vpack.c.b16 %v4370, %v4368
    %v4405 = vpack.c.b16 %v4373, %v4371
    %v4406 = vpack.c.b16 %v4374, %v4372
    %4439 = vmatpush.bf16.msra.mxu0 %v4389
    %4440 = vmatpush.bf16.msra.mxu0 %v4387
    %4441 = vmatpush.bf16.msra.mxu0 %v4385
    %4442 = vmatpush.bf16.msra.mxu0 %v4383
    %4443 = vmatpush.bf16.msra.mxu0 %v4381
    %4444 = vmatpush.bf16.msra.mxu0 %v4379
    %4445 = vmatpush.bf16.msra.mxu0 %v4377
    %4446 = vmatpush.bf16.msra.mxu0 %v4375
    %4447 = vmatmul.bf16.gmra.mxu0 %v4263
    %v4448 = vpop.f32.mrf.mxu0
    %v4449 = vadd.f32 0.0, %v4448
    %v4450 = vpop.f32.mrf.mxu0
    %v4451 = vadd.f32 0.0, %v4450
    %4452 = vmatmul.bf16.gmra.mxu0 %v4265
    %v4453 = vpop.f32.mrf.mxu0
    %v4454 = vadd.f32 0.0, %v4453
    %v4455 = vpop.f32.mrf.mxu0
    %v4456 = vadd.f32 0.0, %v4455
    %4457 = vmatmul.bf16.gmra.mxu0 %v4267
    %v4458 = vpop.f32.mrf.mxu0
    %v4459 = vadd.f32 0.0, %v4458
    %v4460 = vpop.f32.mrf.mxu0
    %v4461 = vadd.f32 0.0, %v4460
    %4462 = vmatmul.bf16.gmra.mxu0 %v4269
    %v4463 = vpop.f32.mrf.mxu0
    %v4464 = vadd.f32 0.0, %v4463
    %v4465 = vpop.f32.mrf.mxu0
    %v4466 = vadd.f32 0.0, %v4465
    %4467 = vdwg.mxu0
    %4468 = vmatpush.bf16.msra.mxu0 %v4405
    %4469 = vmatpush.bf16.msra.mxu0 %v4403
    %4470 = vmatpush.bf16.msra.mxu0 %v4401
    %4471 = vmatpush.bf16.msra.mxu0 %v4399
    %4472 = vmatpush.bf16.msra.mxu0 %v4397
    %4473 = vmatpush.bf16.msra.mxu0 %v4395
    %4474 = vmatpush.bf16.msra.mxu0 %v4393
    %4475 = vmatpush.bf16.msra.mxu0 %v4391
    %4476 = vmatmul.bf16.gmra.mxu0 %v4264
    %v4477 = vpop.f32.mrf.mxu0
    %v4478 = vadd.f32 %v4449, %v4477
    %v4479 = vpop.f32.mrf.mxu0
    %v4480 = vadd.f32 %v4451, %v4479
    %4481 = vmatmul.bf16.gmra.mxu0 %v4266
    %v4482 = vpop.f32.mrf.mxu0
    %v4483 = vadd.f32 %v4454, %v4482
    %v4484 = vpop.f32.mrf.mxu0
    %v4485 = vadd.f32 %v4456, %v4484
    %4486 = vmatmul.bf16.gmra.mxu0 %v4268
    %v4487 = vpop.f32.mrf.mxu0
    %v4488 = vadd.f32 %v4459, %v4487
    %v4489 = vpop.f32.mrf.mxu0
    %v4490 = vadd.f32 %v4461, %v4489
    %4491 = vmatmul.bf16.gmra.mxu0 %v4270
    %v4492 = vpop.f32.mrf.mxu0
    %v4493 = vadd.f32 %v4464, %v4492
    %v4494 = vpop.f32.mrf.mxu0
    %v4495 = vadd.f32 %v4466, %v4494
    %4496 = vdwg.mxu0
    %4497 = vmatpush.bf16.msra.mxu0 %v4390
    %4498 = vmatpush.bf16.msra.mxu0 %v4388
    %4499 = vmatpush.bf16.msra.mxu0 %v4386
    %4500 = vmatpush.bf16.msra.mxu0 %v4384
    %4501 = vmatpush.bf16.msra.mxu0 %v4382
    %4502 = vmatpush.bf16.msra.mxu0 %v4380
    %4503 = vmatpush.bf16.msra.mxu0 %v4378
    %4504 = vmatpush.bf16.msra.mxu0 %v4376
    %4505 = vmatmul.bf16.gmra.mxu0 %v4263
    %v4506 = vpop.f32.mrf.mxu0
    %v4507 = vadd.f32 0.0, %v4506
    %v4508 = vpop.f32.mrf.mxu0
    %v4509 = vadd.f32 0.0, %v4508
    %4510 = vmatmul.bf16.gmra.mxu0 %v4265
    %v4511 = vpop.f32.mrf.mxu0
    %v4512 = vadd.f32 0.0, %v4511
    %v4513 = vpop.f32.mrf.mxu0
    %v4514 = vadd.f32 0.0, %v4513
    %4515 = vmatmul.bf16.gmra.mxu0 %v4267
    %v4516 = vpop.f32.mrf.mxu0
    %v4517 = vadd.f32 0.0, %v4516
    %v4518 = vpop.f32.mrf.mxu0
    %v4519 = vadd.f32 0.0, %v4518
    %4520 = vmatmul.bf16.gmra.mxu0 %v4269
    %v4521 = vpop.f32.mrf.mxu0
    %v4522 = vadd.f32 0.0, %v4521
    %v4523 = vpop.f32.mrf.mxu0
    %v4524 = vadd.f32 0.0, %v4523
    %4525 = vdwg.mxu0
    %4526 = vmatpush.bf16.msra.mxu0 %v4406
    %4527 = vmatpush.bf16.msra.mxu0 %v4404
    %4528 = vmatpush.bf16.msra.mxu0 %v4402
    %4529 = vmatpush.bf16.msra.mxu0 %v4400
    %4530 = vmatpush.bf16.msra.mxu0 %v4398
    %4531 = vmatpush.bf16.msra.mxu0 %v4396
    %4532 = vmatpush.bf16.msra.mxu0 %v4394
    %4533 = vmatpush.bf16.msra.mxu0 %v4392
    %4534 = vmatmul.bf16.gmra.mxu0 %v4264
    %v4535 = vpop.f32.mrf.mxu0
    %v4536 = vadd.f32 %v4507, %v4535
    %v4537 = vpop.f32.mrf.mxu0
    %v4538 = vadd.f32 %v4509, %v4537
    %4539 = vmatmul.bf16.gmra.mxu0 %v4266
    %v4540 = vpop.f32.mrf.mxu0
    %v4541 = vadd.f32 %v4512, %v4540
    %v4542 = vpop.f32.mrf.mxu0
    %v4543 = vadd.f32 %v4514, %v4542
    %4544 = vmatmul.bf16.gmra.mxu0 %v4268
    %v4545 = vpop.f32.mrf.mxu0
    %v4546 = vadd.f32 %v4517, %v4545
    %v4547 = vpop.f32.mrf.mxu0
    %v4548 = vadd.f32 %v4519, %v4547
    %4549 = vmatmul.bf16.gmra.mxu0 %v4270
    %v4550 = vpop.f32.mrf.mxu0
    %v4551 = vadd.f32 %v4522, %v4550
    %v4552 = vpop.f32.mrf.mxu0
    %v4553 = vadd.f32 %v4524, %v4552
    %4554 = vdwg.mxu0
    %v4557 = vunpack.c.l.b16 %v4150
    %v4558 = vunpack.c.h.b16 %v4150
    %v4559 = vunpack.c.l.b16 %v4162
    %v4560 = vunpack.c.h.b16 %v4162
    %v4561 = vpack.c.b16 %v4247, %v4557
    %v4562 = vpack.c.b16 %v4248, %v4558
    %v4563 = vpack.c.b16 %v4251, %v4249
    %v4564 = vpack.c.b16 %v4252, %v4250
    %v4565 = vpack.c.b16 %v4255, %v4559
    %v4566 = vpack.c.b16 %v4256, %v4560
    %v4567 = vpack.c.b16 %v4259, %v4257
    %v4568 = vpack.c.b16 %v4260, %v4258
    %v4609 = vunpack.c.l.b16 %v4174
    %v4610 = vunpack.c.h.b16 %v4174
    %v4611 = vunpack.c.l.b16 %v4175
    %v4612 = vunpack.c.h.b16 %v4175
    %v4613 = vunpack.c.l.b16 %v4176
    %v4614 = vunpack.c.h.b16 %v4176
    %v4615 = vunpack.c.l.b16 %v4177
    %v4616 = vunpack.c.h.b16 %v4177
    %v4617 = vunpack.c.l.b16 %v4178
    %v4618 = vunpack.c.h.b16 %v4178
    %v4619 = vunpack.c.l.b16 %v4179
    %v4620 = vunpack.c.h.b16 %v4179
    %v4621 = vunpack.c.l.b16 %v4180
    %v4622 = vunpack.c.h.b16 %v4180
    %v4623 = vunpack.c.l.b16 %v4181
    %v4624 = vunpack.c.h.b16 %v4181
    %v4625 = vunpack.c.l.b16 %v4182
    %v4626 = vunpack.c.h.b16 %v4182
    %v4627 = vunpack.c.l.b16 %v4183
    %v4628 = vunpack.c.h.b16 %v4183
    %v4629 = vunpack.c.l.b16 %v4184
    %v4630 = vunpack.c.h.b16 %v4184
    %v4631 = vunpack.c.l.b16 %v4185
    %v4632 = vunpack.c.h.b16 %v4185
    %v4633 = vunpack.c.l.b16 %v4186
    %v4634 = vunpack.c.h.b16 %v4186
    %v4635 = vunpack.c.l.b16 %v4187
    %v4636 = vunpack.c.h.b16 %v4187
    %v4637 = vunpack.c.l.b16 %v4188
    %v4638 = vunpack.c.h.b16 %v4188
    %v4639 = vunpack.c.l.b16 %v4189
    %v4640 = vunpack.c.h.b16 %v4189
    %v4641 = vunpack.c.l.b16 %v4190
    %v4642 = vunpack.c.h.b16 %v4190
    %v4643 = vunpack.c.l.b16 %v4191
    %v4644 = vunpack.c.h.b16 %v4191
    %v4645 = vunpack.c.l.b16 %v4192
    %v4646 = vunpack.c.h.b16 %v4192
    %v4647 = vunpack.c.l.b16 %v4193
    %v4648 = vunpack.c.h.b16 %v4193
    %v4649 = vunpack.c.l.b16 %v4194
    %v4650 = vunpack.c.h.b16 %v4194
    %v4651 = vunpack.c.l.b16 %v4195
    %v4652 = vunpack.c.h.b16 %v4195
    %v4653 = vunpack.c.l.b16 %v4196
    %v4654 = vunpack.c.h.b16 %v4196
    %v4655 = vunpack.c.l.b16 %v4197
    %v4656 = vunpack.c.h.b16 %v4197
    %v4657 = vunpack.c.l.b16 %v4198
    %v4658 = vunpack.c.h.b16 %v4198
    %v4659 = vunpack.c.l.b16 %v4199
    %v4660 = vunpack.c.h.b16 %v4199
    %v4661 = vunpack.c.l.b16 %v4200
    %v4662 = vunpack.c.h.b16 %v4200
    %v4663 = vunpack.c.l.b16 %v4201
    %v4664 = vunpack.c.h.b16 %v4201
    %v4665 = vunpack.c.l.b16 %v4202
    %v4666 = vunpack.c.h.b16 %v4202
    %v4667 = vunpack.c.l.b16 %v4203
    %v4668 = vunpack.c.h.b16 %v4203
    %v4669 = vunpack.c.l.b16 %v4204
    %v4670 = vunpack.c.h.b16 %v4204
    %v4671 = vunpack.c.l.b16 %v4205
    %v4672 = vunpack.c.h.b16 %v4205
    %v4673 = vpack.c.b16 %v4611, %v4609
    %v4674 = vpack.c.b16 %v4612, %v4610
    %v4675 = vpack.c.b16 %v4615, %v4613
    %v4676 = vpack.c.b16 %v4616, %v4614
    %v4677 = vpack.c.b16 %v4619, %v4617
    %v4678 = vpack.c.b16 %v4620, %v4618
    %v4679 = vpack.c.b16 %v4623, %v4621
    %v4680 = vpack.c.b16 %v4624, %v4622
    %v4681 = vpack.c.b16 %v4627, %v4625
    %v4682 = vpack.c.b16 %v4628, %v4626
    %v4683 = vpack.c.b16 %v4631, %v4629
    %v4684 = vpack.c.b16 %v4632, %v4630
    %v4685 = vpack.c.b16 %v4635, %v4633
    %v4686 = vpack.c.b16 %v4636, %v4634
    %v4687 = vpack.c.b16 %v4639, %v4637
    %v4688 = vpack.c.b16 %v4640, %v4638
    %v4689 = vpack.c.b16 %v4643, %v4641
    %v4690 = vpack.c.b16 %v4644, %v4642
    %v4691 = vpack.c.b16 %v4647, %v4645
    %v4692 = vpack.c.b16 %v4648, %v4646
    %v4693 = vpack.c.b16 %v4651, %v4649
    %v4694 = vpack.c.b16 %v4652, %v4650
    %v4695 = vpack.c.b16 %v4655, %v4653
    %v4696 = vpack.c.b16 %v4656, %v4654
    %v4697 = vpack.c.b16 %v4659, %v4657
    %v4698 = vpack.c.b16 %v4660, %v4658
    %v4699 = vpack.c.b16 %v4663, %v4661
    %v4700 = vpack.c.b16 %v4664, %v4662
    %v4701 = vpack.c.b16 %v4667, %v4665
    %v4702 = vpack.c.b16 %v4668, %v4666
    %v4703 = vpack.c.b16 %v4671, %v4669
    %v4704 = vpack.c.b16 %v4672, %v4670
    %4737 = vmatpush.bf16.msra.mxu0 %v4687
    %4738 = vmatpush.bf16.msra.mxu0 %v4685
    %4739 = vmatpush.bf16.msra.mxu0 %v4683
    %4740 = vmatpush.bf16.msra.mxu0 %v4681
    %4741 = vmatpush.bf16.msra.mxu0 %v4679
    %4742 = vmatpush.bf16.msra.mxu0 %v4677
    %4743 = vmatpush.bf16.msra.mxu0 %v4675
    %4744 = vmatpush.bf16.msra.mxu0 %v4673
    %4745 = vmatmul.bf16.gmra.mxu0 %v4561
    %v4746 = vpop.f32.mrf.mxu0
    %v4747 = vadd.f32 %v4478, %v4746
    %v4748 = vpop.f32.mrf.mxu0
    %v4749 = vadd.f32 %v4480, %v4748
    %4750 = vmatmul.bf16.gmra.mxu0 %v4563
    %v4751 = vpop.f32.mrf.mxu0
    %v4752 = vadd.f32 %v4483, %v4751
    %v4753 = vpop.f32.mrf.mxu0
    %v4754 = vadd.f32 %v4485, %v4753
    %4755 = vmatmul.bf16.gmra.mxu0 %v4565
    %v4756 = vpop.f32.mrf.mxu0
    %v4757 = vadd.f32 %v4488, %v4756
    %v4758 = vpop.f32.mrf.mxu0
    %v4759 = vadd.f32 %v4490, %v4758
    %4760 = vmatmul.bf16.gmra.mxu0 %v4567
    %v4761 = vpop.f32.mrf.mxu0
    %v4762 = vadd.f32 %v4493, %v4761
    %v4763 = vpop.f32.mrf.mxu0
    %v4764 = vadd.f32 %v4495, %v4763
    %4765 = vdwg.mxu0
    %4766 = vmatpush.bf16.msra.mxu0 %v4703
    %4767 = vmatpush.bf16.msra.mxu0 %v4701
    %4768 = vmatpush.bf16.msra.mxu0 %v4699
    %4769 = vmatpush.bf16.msra.mxu0 %v4697
    %4770 = vmatpush.bf16.msra.mxu0 %v4695
    %4771 = vmatpush.bf16.msra.mxu0 %v4693
    %4772 = vmatpush.bf16.msra.mxu0 %v4691
    %4773 = vmatpush.bf16.msra.mxu0 %v4689
    %4774 = vmatmul.bf16.gmra.mxu0 %v4562
    %v4775 = vpop.f32.mrf.mxu0
    %v4776 = vadd.f32 %v4747, %v4775
    %v4777 = vpop.f32.mrf.mxu0
    %v4778 = vadd.f32 %v4749, %v4777
    %4779 = vmatmul.bf16.gmra.mxu0 %v4564
    %v4780 = vpop.f32.mrf.mxu0
    %v4781 = vadd.f32 %v4752, %v4780
    %v4782 = vpop.f32.mrf.mxu0
    %v4783 = vadd.f32 %v4754, %v4782
    %4784 = vmatmul.bf16.gmra.mxu0 %v4566
    %v4785 = vpop.f32.mrf.mxu0
    %v4786 = vadd.f32 %v4757, %v4785
    %v4787 = vpop.f32.mrf.mxu0
    %v4788 = vadd.f32 %v4759, %v4787
    %4789 = vmatmul.bf16.gmra.mxu0 %v4568
    %v4790 = vpop.f32.mrf.mxu0
    %v4791 = vadd.f32 %v4762, %v4790
    %v4792 = vpop.f32.mrf.mxu0
    %v4793 = vadd.f32 %v4764, %v4792
    %4794 = vdwg.mxu0
    %4795 = vmatpush.bf16.msra.mxu0 %v4688
    %4796 = vmatpush.bf16.msra.mxu0 %v4686
    %4797 = vmatpush.bf16.msra.mxu0 %v4684
    %4798 = vmatpush.bf16.msra.mxu0 %v4682
    %4799 = vmatpush.bf16.msra.mxu0 %v4680
    %4800 = vmatpush.bf16.msra.mxu0 %v4678
    %4801 = vmatpush.bf16.msra.mxu0 %v4676
    %4802 = vmatpush.bf16.msra.mxu0 %v4674
    %4803 = vmatmul.bf16.gmra.mxu0 %v4561
    %v4804 = vpop.f32.mrf.mxu0
    %v4805 = vadd.f32 %v4536, %v4804
    %v4806 = vpop.f32.mrf.mxu0
    %v4807 = vadd.f32 %v4538, %v4806
    %4808 = vmatmul.bf16.gmra.mxu0 %v4563
    %v4809 = vpop.f32.mrf.mxu0
    %v4810 = vadd.f32 %v4541, %v4809
    %v4811 = vpop.f32.mrf.mxu0
    %v4812 = vadd.f32 %v4543, %v4811
    %4813 = vmatmul.bf16.gmra.mxu0 %v4565
    %v4814 = vpop.f32.mrf.mxu0
    %v4815 = vadd.f32 %v4546, %v4814
    %v4816 = vpop.f32.mrf.mxu0
    %v4817 = vadd.f32 %v4548, %v4816
    %4818 = vmatmul.bf16.gmra.mxu0 %v4567
    %v4819 = vpop.f32.mrf.mxu0
    %v4820 = vadd.f32 %v4551, %v4819
    %v4821 = vpop.f32.mrf.mxu0
    %v4822 = vadd.f32 %v4553, %v4821
    %4823 = vdwg.mxu0
    %4824 = vmatpush.bf16.msra.mxu0 %v4704
    %4825 = vmatpush.bf16.msra.mxu0 %v4702
    %4826 = vmatpush.bf16.msra.mxu0 %v4700
    %4827 = vmatpush.bf16.msra.mxu0 %v4698
    %4828 = vmatpush.bf16.msra.mxu0 %v4696
    %4829 = vmatpush.bf16.msra.mxu0 %v4694
    %4830 = vmatpush.bf16.msra.mxu0 %v4692
    %4831 = vmatpush.bf16.msra.mxu0 %v4690
    %4832 = vmatmul.bf16.gmra.mxu0 %v4562
    %v4833 = vpop.f32.mrf.mxu0
    %v4834 = vadd.f32 %v4805, %v4833
    %v4835 = vpop.f32.mrf.mxu0
    %v4836 = vadd.f32 %v4807, %v4835
    %4837 = vmatmul.bf16.gmra.mxu0 %v4564
    %v4838 = vpop.f32.mrf.mxu0
    %v4839 = vadd.f32 %v4810, %v4838
    %v4840 = vpop.f32.mrf.mxu0
    %v4841 = vadd.f32 %v4812, %v4840
    %4842 = vmatmul.bf16.gmra.mxu0 %v4566
    %v4843 = vpop.f32.mrf.mxu0
    %v4844 = vadd.f32 %v4815, %v4843
    %v4845 = vpop.f32.mrf.mxu0
    %v4846 = vadd.f32 %v4817, %v4845
    %4847 = vmatmul.bf16.gmra.mxu0 %v4568
    %v4848 = vpop.f32.mrf.mxu0
    %v4849 = vadd.f32 %v4820, %v4848
    %v4850 = vpop.f32.mrf.mxu0
    %v4851 = vadd.f32 %v4822, %v4850
    %4852 = vdwg.mxu0
    %s4853 = scalar_lea.vmem [#allocation8], 1536
    %v4854 = vld [vmem:[%s4853] sm:$0xff]
    %v4855 = vld [vmem:[%s4853 + $0x8] sm:$0xff]
    %v4856 = vld [vmem:[%s4853 + $0x10] sm:$0xff]
    %v4857 = vld [vmem:[%s4853 + $0x18] sm:$0xff]
    %v4858 = vld [vmem:[%s4853 + $0x20] sm:$0xff]
    %v4859 = vld [vmem:[%s4853 + $0x28] sm:$0xff]
    %v4860 = vld [vmem:[%s4853 + $0x30] sm:$0xff]
    %v4861 = vld [vmem:[%s4853 + $0x38] sm:$0xff]
    %v4862 = vld [vmem:[%s4853 + $0x40] sm:$0xff]
    %v4863 = vld [vmem:[%s4853 + $0x48] sm:$0xff]
    %v4864 = vld [vmem:[%s4853 + $0x50] sm:$0xff]
    %v4865 = vld [vmem:[%s4853 + $0x58] sm:$0xff]
    %v4866 = vld [vmem:[%s4853 + $0x60] sm:$0xff]
    %v4867 = vld [vmem:[%s4853 + $0x68] sm:$0xff]
    %v4868 = vld [vmem:[%s4853 + $0x70] sm:$0xff]
    %v4869 = vld [vmem:[%s4853 + $0x78] sm:$0xff]
    %v4870 = vld [vmem:[%s4853 + $0x80] sm:$0xff]
    %v4871 = vld [vmem:[%s4853 + $0x88] sm:$0xff]
    %v4872 = vld [vmem:[%s4853 + $0x90] sm:$0xff]
    %v4873 = vld [vmem:[%s4853 + $0x98] sm:$0xff]
    %v4874 = vld [vmem:[%s4853 + $0xa0] sm:$0xff]
    %v4875 = vld [vmem:[%s4853 + $0xa8] sm:$0xff]
    %v4876 = vld [vmem:[%s4853 + $0xb0] sm:$0xff]
    %v4877 = vld [vmem:[%s4853 + $0xb8] sm:$0xff]
    %v4878 = vld [vmem:[%s4853 + $0xc0] sm:$0xff]
    %v4879 = vld [vmem:[%s4853 + $0xc8] sm:$0xff]
    %v4880 = vld [vmem:[%s4853 + $0xd0] sm:$0xff]
    %v4881 = vld [vmem:[%s4853 + $0xd8] sm:$0xff]
    %v4882 = vld [vmem:[%s4853 + $0xe0] sm:$0xff]
    %v4883 = vld [vmem:[%s4853 + $0xe8] sm:$0xff]
    %v4884 = vld [vmem:[%s4853 + $0xf0] sm:$0xff]
    %v4885 = vld [vmem:[%s4853 + $0xf8] sm:$0xff]
    %v4888 = vunpack.c.l.b16 %v4160
    %v4889 = vunpack.c.h.b16 %v4160
    %v4890 = vunpack.c.l.b16 %v4172
    %v4891 = vunpack.c.h.b16 %v4172
    %v4892 = vpack.c.b16 %v4888, %v4253
    %v4893 = vpack.c.b16 %v4889, %v4254
    %v4894 = vpack.c.b16 %v4890, %v4261
    %v4895 = vpack.c.b16 %v4891, %v4262
    %v4932 = vunpack.c.l.b16 %v4854
    %v4933 = vunpack.c.h.b16 %v4854
    %v4934 = vunpack.c.l.b16 %v4855
    %v4935 = vunpack.c.h.b16 %v4855
    %v4936 = vunpack.c.l.b16 %v4856
    %v4937 = vunpack.c.h.b16 %v4856
    %v4938 = vunpack.c.l.b16 %v4857
    %v4939 = vunpack.c.h.b16 %v4857
    %v4940 = vunpack.c.l.b16 %v4858
    %v4941 = vunpack.c.h.b16 %v4858
    %v4942 = vunpack.c.l.b16 %v4859
    %v4943 = vunpack.c.h.b16 %v4859
    %v4944 = vunpack.c.l.b16 %v4860
    %v4945 = vunpack.c.h.b16 %v4860
    %v4946 = vunpack.c.l.b16 %v4861
    %v4947 = vunpack.c.h.b16 %v4861
    %v4948 = vunpack.c.l.b16 %v4862
    %v4949 = vunpack.c.h.b16 %v4862
    %v4950 = vunpack.c.l.b16 %v4863
    %v4951 = vunpack.c.h.b16 %v4863
    %v4952 = vunpack.c.l.b16 %v4864
    %v4953 = vunpack.c.h.b16 %v4864
    %v4954 = vunpack.c.l.b16 %v4865
    %v4955 = vunpack.c.h.b16 %v4865
    %v4956 = vunpack.c.l.b16 %v4866
    %v4957 = vunpack.c.h.b16 %v4866
    %v4958 = vunpack.c.l.b16 %v4867
    %v4959 = vunpack.c.h.b16 %v4867
    %v4960 = vunpack.c.l.b16 %v4868
    %v4961 = vunpack.c.h.b16 %v4868
    %v4962 = vunpack.c.l.b16 %v4869
    %v4963 = vunpack.c.h.b16 %v4869
    %v4964 = vunpack.c.l.b16 %v4870
    %v4965 = vunpack.c.h.b16 %v4870
    %v4966 = vunpack.c.l.b16 %v4871
    %v4967 = vunpack.c.h.b16 %v4871
    %v4968 = vunpack.c.l.b16 %v4872
    %v4969 = vunpack.c.h.b16 %v4872
    %v4970 = vunpack.c.l.b16 %v4873
    %v4971 = vunpack.c.h.b16 %v4873
    %v4972 = vunpack.c.l.b16 %v4874
    %v4973 = vunpack.c.h.b16 %v4874
    %v4974 = vunpack.c.l.b16 %v4875
    %v4975 = vunpack.c.h.b16 %v4875
    %v4976 = vunpack.c.l.b16 %v4876
    %v4977 = vunpack.c.h.b16 %v4876
    %v4978 = vunpack.c.l.b16 %v4877
    %v4979 = vunpack.c.h.b16 %v4877
    %v4980 = vunpack.c.l.b16 %v4878
    %v4981 = vunpack.c.h.b16 %v4878
    %v4982 = vunpack.c.l.b16 %v4879
    %v4983 = vunpack.c.h.b16 %v4879
    %v4984 = vunpack.c.l.b16 %v4880
    %v4985 = vunpack.c.h.b16 %v4880
    %v4986 = vunpack.c.l.b16 %v4881
    %v4987 = vunpack.c.h.b16 %v4881
    %v4988 = vunpack.c.l.b16 %v4882
    %v4989 = vunpack.c.h.b16 %v4882
    %v4990 = vunpack.c.l.b16 %v4883
    %v4991 = vunpack.c.h.b16 %v4883
    %v4992 = vunpack.c.l.b16 %v4884
    %v4993 = vunpack.c.h.b16 %v4884
    %v4994 = vunpack.c.l.b16 %v4885
    %v4995 = vunpack.c.h.b16 %v4885
    %v4996 = vpack.c.b16 %v4934, %v4932
    %v4997 = vpack.c.b16 %v4935, %v4933
    %v4998 = vpack.c.b16 %v4938, %v4936
    %v4999 = vpack.c.b16 %v4939, %v4937
    %v5000 = vpack.c.b16 %v4942, %v4940
    %v5001 = vpack.c.b16 %v4943, %v4941
    %v5002 = vpack.c.b16 %v4946, %v4944
    %v5003 = vpack.c.b16 %v4947, %v4945
    %v5004 = vpack.c.b16 %v4950, %v4948
    %v5005 = vpack.c.b16 %v4951, %v4949
    %v5006 = vpack.c.b16 %v4954, %v4952
    %v5007 = vpack.c.b16 %v4955, %v4953
    %v5008 = vpack.c.b16 %v4958, %v4956
    %v5009 = vpack.c.b16 %v4959, %v4957
    %v5010 = vpack.c.b16 %v4962, %v4960
    %v5011 = vpack.c.b16 %v4963, %v4961
    %v5012 = vpack.c.b16 %v4966, %v4964
    %v5013 = vpack.c.b16 %v4967, %v4965
    %v5014 = vpack.c.b16 %v4970, %v4968
    %v5015 = vpack.c.b16 %v4971, %v4969
    %v5016 = vpack.c.b16 %v4974, %v4972
    %v5017 = vpack.c.b16 %v4975, %v4973
    %v5018 = vpack.c.b16 %v4978, %v4976
    %v5019 = vpack.c.b16 %v4979, %v4977
    %v5020 = vpack.c.b16 %v4982, %v4980
    %v5021 = vpack.c.b16 %v4983, %v4981
    %v5022 = vpack.c.b16 %v4986, %v4984
    %v5023 = vpack.c.b16 %v4987, %v4985
    %v5024 = vpack.c.b16 %v4990, %v4988
    %v5025 = vpack.c.b16 %v4991, %v4989
    %v5026 = vpack.c.b16 %v4994, %v4992
    %v5027 = vpack.c.b16 %v4995, %v4993
    %5060 = vmatpush.bf16.msra.mxu0 %v5010
    %5061 = vmatpush.bf16.msra.mxu0 %v5008
    %5062 = vmatpush.bf16.msra.mxu0 %v5006
    %5063 = vmatpush.bf16.msra.mxu0 %v5004
    %5064 = vmatpush.bf16.msra.mxu0 %v5002
    %5065 = vmatpush.bf16.msra.mxu0 %v5000
    %5066 = vmatpush.bf16.msra.mxu0 %v4998
    %5067 = vmatpush.bf16.msra.mxu0 %v4996
    %5068 = vmatmul.bf16.gmra.mxu0 %v4563
    %v5069 = vpop.f32.mrf.mxu0
    %v5070 = vadd.f32 0.0, %v5069
    %v5071 = vpop.f32.mrf.mxu0
    %v5072 = vadd.f32 0.0, %v5071
    %5073 = vmatmul.bf16.gmra.mxu0 %v4892
    %v5074 = vpop.f32.mrf.mxu0
    %v5075 = vadd.f32 0.0, %v5074
    %v5076 = vpop.f32.mrf.mxu0
    %v5077 = vadd.f32 0.0, %v5076
    %5078 = vmatmul.bf16.gmra.mxu0 %v4567
    %v5079 = vpop.f32.mrf.mxu0
    %v5080 = vadd.f32 0.0, %v5079
    %v5081 = vpop.f32.mrf.mxu0
    %v5082 = vadd.f32 0.0, %v5081
    %5083 = vmatmul.bf16.gmra.mxu0 %v4894
    %v5084 = vpop.f32.mrf.mxu0
    %v5085 = vadd.f32 0.0, %v5084
    %v5086 = vpop.f32.mrf.mxu0
    %v5087 = vadd.f32 0.0, %v5086
    %5088 = vdwg.mxu0
    %5089 = vmatpush.bf16.msra.mxu0 %v5026
    %5090 = vmatpush.bf16.msra.mxu0 %v5024
    %5091 = vmatpush.bf16.msra.mxu0 %v5022
    %5092 = vmatpush.bf16.msra.mxu0 %v5020
    %5093 = vmatpush.bf16.msra.mxu0 %v5018
    %5094 = vmatpush.bf16.msra.mxu0 %v5016
    %5095 = vmatpush.bf16.msra.mxu0 %v5014
    %5096 = vmatpush.bf16.msra.mxu0 %v5012
    %5097 = vmatmul.bf16.gmra.mxu0 %v4564
    %v5098 = vpop.f32.mrf.mxu0
    %v5099 = vadd.f32 %v5070, %v5098
    %v5100 = vpop.f32.mrf.mxu0
    %v5101 = vadd.f32 %v5072, %v5100
    %5102 = vmatmul.bf16.gmra.mxu0 %v4893
    %v5103 = vpop.f32.mrf.mxu0
    %v5104 = vadd.f32 %v5075, %v5103
    %v5105 = vpop.f32.mrf.mxu0
    %v5106 = vadd.f32 %v5077, %v5105
    %5107 = vmatmul.bf16.gmra.mxu0 %v4568
    %v5108 = vpop.f32.mrf.mxu0
    %v5109 = vadd.f32 %v5080, %v5108
    %v5110 = vpop.f32.mrf.mxu0
    %v5111 = vadd.f32 %v5082, %v5110
    %5112 = vmatmul.bf16.gmra.mxu0 %v4895
    %v5113 = vpop.f32.mrf.mxu0
    %v5114 = vadd.f32 %v5085, %v5113
    %v5115 = vpop.f32.mrf.mxu0
    %v5116 = vadd.f32 %v5087, %v5115
    %5117 = vdwg.mxu0
    %5118 = vmatpush.bf16.msra.mxu0 %v5011
    %5119 = vmatpush.bf16.msra.mxu0 %v5009
    %5120 = vmatpush.bf16.msra.mxu0 %v5007
    %5121 = vmatpush.bf16.msra.mxu0 %v5005
    %5122 = vmatpush.bf16.msra.mxu0 %v5003
    %5123 = vmatpush.bf16.msra.mxu0 %v5001
    %5124 = vmatpush.bf16.msra.mxu0 %v4999
    %5125 = vmatpush.bf16.msra.mxu0 %v4997
    %5126 = vmatmul.bf16.gmra.mxu0 %v4563
    %v5127 = vpop.f32.mrf.mxu0
    %v5128 = vadd.f32 0.0, %v5127
    %v5129 = vpop.f32.mrf.mxu0
    %v5130 = vadd.f32 0.0, %v5129
    %5131 = vmatmul.bf16.gmra.mxu0 %v4892
    %v5132 = vpop.f32.mrf.mxu0
    %v5133 = vadd.f32 0.0, %v5132
    %v5134 = vpop.f32.mrf.mxu0
    %v5135 = vadd.f32 0.0, %v5134
    %5136 = vmatmul.bf16.gmra.mxu0 %v4567
    %v5137 = vpop.f32.mrf.mxu0
    %v5138 = vadd.f32 0.0, %v5137
    %v5139 = vpop.f32.mrf.mxu0
    %v5140 = vadd.f32 0.0, %v5139
    %5141 = vmatmul.bf16.gmra.mxu0 %v4894
    %v5142 = vpop.f32.mrf.mxu0
    %v5143 = vadd.f32 0.0, %v5142
    %v5144 = vpop.f32.mrf.mxu0
    %v5145 = vadd.f32 0.0, %v5144
    %5146 = vdwg.mxu0
    %5147 = vmatpush.bf16.msra.mxu0 %v5027
    %5148 = vmatpush.bf16.msra.mxu0 %v5025
    %5149 = vmatpush.bf16.msra.mxu0 %v5023
    %5150 = vmatpush.bf16.msra.mxu0 %v5021
    %5151 = vmatpush.bf16.msra.mxu0 %v5019
    %5152 = vmatpush.bf16.msra.mxu0 %v5017
    %5153 = vmatpush.bf16.msra.mxu0 %v5015
    %5154 = vmatpush.bf16.msra.mxu0 %v5013
    %5155 = vmatmul.bf16.gmra.mxu0 %v4564
    %v5156 = vpop.f32.mrf.mxu0
    %v5157 = vadd.f32 %v5128, %v5156
    %v5158 = vpop.f32.mrf.mxu0
    %v5159 = vadd.f32 %v5130, %v5158
    %5160 = vmatmul.bf16.gmra.mxu0 %v4893
    %v5161 = vpop.f32.mrf.mxu0
    %v5162 = vadd.f32 %v5133, %v5161
    %v5163 = vpop.f32.mrf.mxu0
    %v5164 = vadd.f32 %v5135, %v5163
    %5165 = vmatmul.bf16.gmra.mxu0 %v4568
    %v5166 = vpop.f32.mrf.mxu0
    %v5167 = vadd.f32 %v5138, %v5166
    %v5168 = vpop.f32.mrf.mxu0
    %v5169 = vadd.f32 %v5140, %v5168
    %5170 = vmatmul.bf16.gmra.mxu0 %v4895
    %v5171 = vpop.f32.mrf.mxu0
    %v5172 = vadd.f32 %v5143, %v5171
    %v5173 = vpop.f32.mrf.mxu0
    %v5174 = vadd.f32 %v5145, %v5173
    %5175 = vdwg.mxu0
    %v5176 = vadd.f32 %v4776, %v5099
    %v5177 = vadd.f32 %v4834, %v5157
    %v5178 = vadd.f32 %v4778, %v5101
    %v5179 = vadd.f32 %v4836, %v5159
    %v5180 = vadd.f32 %v4781, %v5104
    %v5181 = vadd.f32 %v4839, %v5162
    %v5182 = vadd.f32 %v4783, %v5106
    %v5183 = vadd.f32 %v4841, %v5164
    %v5184 = vadd.f32 %v4786, %v5109
    %v5185 = vadd.f32 %v4844, %v5167
    %v5186 = vadd.f32 %v4788, %v5111
    %v5187 = vadd.f32 %v4846, %v5169
    %v5188 = vadd.f32 %v4791, %v5114
    %v5189 = vadd.f32 %v4849, %v5172
    %v5190 = vadd.f32 %v4793, %v5116
    %v5191 = vadd.f32 %v4851, %v5174
    %v5193 = vshrl.u32 %v4150, 16
    %v5195 = vrot.slane %v5193, 4
    %v5196 = vshll.u32 %v4150, 16
    %v5198 = vrot.slane %v5196, 5
    %v5199 = vor.u32 %v5195, %v5198
    %v5200 = vrot.slane %v5199, 4
    %v5202 = vshll.u32 %v4151, 16
    %v5204 = vrot.slane %v5202, 5
    %v5205 = vsel %vm1160, %v5200, %v5204
    %v5207 = vshrl.u32 %v4152, 16
    %v5209 = vrot.slane %v5207, 4
    %v5210 = vshll.u32 %v4152, 16
    %v5212 = vrot.slane %v5210, 5
    %v5213 = vor.u32 %v5209, %v5212
    %v5214 = vrot.slane %v5213, 4
    %v5216 = vshll.u32 %v4153, 16
    %v5218 = vrot.slane %v5216, 5
    %v5219 = vsel %vm1160, %v5214, %v5218
    %v5221 = vshrl.u32 %v4154, 16
    %v5223 = vrot.slane %v5221, 4
    %v5224 = vshll.u32 %v4154, 16
    %v5226 = vrot.slane %v5224, 5
    %v5227 = vor.u32 %v5223, %v5226
    %v5228 = vrot.slane %v5227, 4
    %v5230 = vshll.u32 %v4155, 16
    %v5232 = vrot.slane %v5230, 5
    %v5233 = vsel %vm1160, %v5228, %v5232
    %v5235 = vshrl.u32 %v4156, 16
    %v5237 = vrot.slane %v5235, 4
    %v5238 = vshll.u32 %v4156, 16
    %v5240 = vrot.slane %v5238, 5
    %v5241 = vor.u32 %v5237, %v5240
    %v5242 = vrot.slane %v5241, 4
    %v5244 = vshll.u32 %v4157, 16
    %v5246 = vrot.slane %v5244, 5
    %v5247 = vsel %vm1160, %v5242, %v5246
    %v5249 = vshrl.u32 %v4162, 16
    %v5251 = vrot.slane %v5249, 4
    %v5252 = vshll.u32 %v4162, 16
    %v5254 = vrot.slane %v5252, 5
    %v5255 = vor.u32 %v5251, %v5254
    %v5256 = vrot.slane %v5255, 4
    %v5258 = vshll.u32 %v4163, 16
    %v5260 = vrot.slane %v5258, 5
    %v5261 = vsel %vm1160, %v5256, %v5260
    %v5263 = vshrl.u32 %v4164, 16
    %v5265 = vrot.slane %v5263, 4
    %v5266 = vshll.u32 %v4164, 16
    %v5268 = vrot.slane %v5266, 5
    %v5269 = vor.u32 %v5265, %v5268
    %v5270 = vrot.slane %v5269, 4
    %v5272 = vshll.u32 %v4165, 16
    %v5274 = vrot.slane %v5272, 5
    %v5275 = vsel %vm1160, %v5270, %v5274
    %v5277 = vshrl.u32 %v4166, 16
    %v5279 = vrot.slane %v5277, 4
    %v5280 = vshll.u32 %v4166, 16
    %v5282 = vrot.slane %v5280, 5
    %v5283 = vor.u32 %v5279, %v5282
    %v5284 = vrot.slane %v5283, 4
    %v5286 = vshll.u32 %v4167, 16
    %v5288 = vrot.slane %v5286, 5
    %v5289 = vsel %vm1160, %v5284, %v5288
    %v5291 = vshrl.u32 %v4168, 16
    %v5293 = vrot.slane %v5291, 4
    %v5294 = vshll.u32 %v4168, 16
    %v5296 = vrot.slane %v5294, 5
    %v5297 = vor.u32 %v5293, %v5296
    %v5298 = vrot.slane %v5297, 4
    %v5300 = vshll.u32 %v4169, 16
    %v5302 = vrot.slane %v5300, 5
    %v5303 = vsel %vm1160, %v5298, %v5302
    %s5304 = scalar_lea.vmem [#allocation8], 256
    %v5305 = vld [vmem:[%s5304] sm:$0xff]
    %v5306 = vld [vmem:[%s5304 + $0x8] sm:$0xff]
    %v5307 = vld [vmem:[%s5304 + $0x10] sm:$0xff]
    %v5308 = vld [vmem:[%s5304 + $0x18] sm:$0xff]
    %v5309 = vld [vmem:[%s5304 + $0x20] sm:$0xff]
    %v5310 = vld [vmem:[%s5304 + $0x28] sm:$0xff]
    %v5311 = vld [vmem:[%s5304 + $0x30] sm:$0xff]
    %v5312 = vld [vmem:[%s5304 + $0x38] sm:$0xff]
    %v5313 = vld [vmem:[%s5304 + $0x40] sm:$0xff]
    %v5314 = vld [vmem:[%s5304 + $0x48] sm:$0xff]
    %v5315 = vld [vmem:[%s5304 + $0x50] sm:$0xff]
    %v5316 = vld [vmem:[%s5304 + $0x58] sm:$0xff]
    %v5317 = vld [vmem:[%s5304 + $0x60] sm:$0xff]
    %v5318 = vld [vmem:[%s5304 + $0x68] sm:$0xff]
    %v5319 = vld [vmem:[%s5304 + $0x70] sm:$0xff]
    %v5320 = vld [vmem:[%s5304 + $0x78] sm:$0xff]
    %v5321 = vld [vmem:[%s5304 + $0x80] sm:$0xff]
    %v5322 = vld [vmem:[%s5304 + $0x88] sm:$0xff]
    %v5323 = vld [vmem:[%s5304 + $0x90] sm:$0xff]
    %v5324 = vld [vmem:[%s5304 + $0x98] sm:$0xff]
    %v5325 = vld [vmem:[%s5304 + $0xa0] sm:$0xff]
    %v5326 = vld [vmem:[%s5304 + $0xa8] sm:$0xff]
    %v5327 = vld [vmem:[%s5304 + $0xb0] sm:$0xff]
    %v5328 = vld [vmem:[%s5304 + $0xb8] sm:$0xff]
    %v5329 = vld [vmem:[%s5304 + $0xc0] sm:$0xff]
    %v5330 = vld [vmem:[%s5304 + $0xc8] sm:$0xff]
    %v5331 = vld [vmem:[%s5304 + $0xd0] sm:$0xff]
    %v5332 = vld [vmem:[%s5304 + $0xd8] sm:$0xff]
    %v5333 = vld [vmem:[%s5304 + $0xe0] sm:$0xff]
    %v5334 = vld [vmem:[%s5304 + $0xe8] sm:$0xff]
    %v5335 = vld [vmem:[%s5304 + $0xf0] sm:$0xff]
    %v5336 = vld [vmem:[%s5304 + $0xf8] sm:$0xff]
    %v5337 = vunpack.c.l.b16 %v5205
    %v5338 = vunpack.c.h.b16 %v5205
    %v5339 = vunpack.c.l.b16 %v5219
    %v5340 = vunpack.c.h.b16 %v5219
    %v5341 = vunpack.c.l.b16 %v5233
    %v5342 = vunpack.c.h.b16 %v5233
    %v5343 = vunpack.c.l.b16 %v5247
    %v5344 = vunpack.c.h.b16 %v5247
    %v5345 = vunpack.c.l.b16 %v5261
    %v5346 = vunpack.c.h.b16 %v5261
    %v5347 = vunpack.c.l.b16 %v5275
    %v5348 = vunpack.c.h.b16 %v5275
    %v5349 = vunpack.c.l.b16 %v5289
    %v5350 = vunpack.c.h.b16 %v5289
    %v5351 = vunpack.c.l.b16 %v5303
    %v5352 = vunpack.c.h.b16 %v5303
    %v5353 = vpack.c.b16 %v5339, %v5337
    %v5354 = vpack.c.b16 %v5340, %v5338
    %v5355 = vpack.c.b16 %v5343, %v5341
    %v5356 = vpack.c.b16 %v5344, %v5342
    %v5357 = vpack.c.b16 %v5347, %v5345
    %v5358 = vpack.c.b16 %v5348, %v5346
    %v5359 = vpack.c.b16 %v5351, %v5349
    %v5360 = vpack.c.b16 %v5352, %v5350
    %v5401 = vunpack.c.l.b16 %v5305
    %v5402 = vunpack.c.h.b16 %v5305
    %v5403 = vunpack.c.l.b16 %v5306
    %v5404 = vunpack.c.h.b16 %v5306
    %v5405 = vunpack.c.l.b16 %v5307
    %v5406 = vunpack.c.h.b16 %v5307
    %v5407 = vunpack.c.l.b16 %v5308
    %v5408 = vunpack.c.h.b16 %v5308
    %v5409 = vunpack.c.l.b16 %v5309
    %v5410 = vunpack.c.h.b16 %v5309
    %v5411 = vunpack.c.l.b16 %v5310
    %v5412 = vunpack.c.h.b16 %v5310
    %v5413 = vunpack.c.l.b16 %v5311
    %v5414 = vunpack.c.h.b16 %v5311
    %v5415 = vunpack.c.l.b16 %v5312
    %v5416 = vunpack.c.h.b16 %v5312
    %v5417 = vunpack.c.l.b16 %v5313
    %v5418 = vunpack.c.h.b16 %v5313
    %v5419 = vunpack.c.l.b16 %v5314
    %v5420 = vunpack.c.h.b16 %v5314
    %v5421 = vunpack.c.l.b16 %v5315
    %v5422 = vunpack.c.h.b16 %v5315
    %v5423 = vunpack.c.l.b16 %v5316
    %v5424 = vunpack.c.h.b16 %v5316
    %v5425 = vunpack.c.l.b16 %v5317
    %v5426 = vunpack.c.h.b16 %v5317
    %v5427 = vunpack.c.l.b16 %v5318
    %v5428 = vunpack.c.h.b16 %v5318
    %v5429 = vunpack.c.l.b16 %v5319
    %v5430 = vunpack.c.h.b16 %v5319
    %v5431 = vunpack.c.l.b16 %v5320
    %v5432 = vunpack.c.h.b16 %v5320
    %v5433 = vunpack.c.l.b16 %v5321
    %v5434 = vunpack.c.h.b16 %v5321
    %v5435 = vunpack.c.l.b16 %v5322
    %v5436 = vunpack.c.h.b16 %v5322
    %v5437 = vunpack.c.l.b16 %v5323
    %v5438 = vunpack.c.h.b16 %v5323
    %v5439 = vunpack.c.l.b16 %v5324
    %v5440 = vunpack.c.h.b16 %v5324
    %v5441 = vunpack.c.l.b16 %v5325
    %v5442 = vunpack.c.h.b16 %v5325
    %v5443 = vunpack.c.l.b16 %v5326
    %v5444 = vunpack.c.h.b16 %v5326
    %v5445 = vunpack.c.l.b16 %v5327
    %v5446 = vunpack.c.h.b16 %v5327
    %v5447 = vunpack.c.l.b16 %v5328
    %v5448 = vunpack.c.h.b16 %v5328
    %v5449 = vunpack.c.l.b16 %v5329
    %v5450 = vunpack.c.h.b16 %v5329
    %v5451 = vunpack.c.l.b16 %v5330
    %v5452 = vunpack.c.h.b16 %v5330
    %v5453 = vunpack.c.l.b16 %v5331
    %v5454 = vunpack.c.h.b16 %v5331
    %v5455 = vunpack.c.l.b16 %v5332
    %v5456 = vunpack.c.h.b16 %v5332
    %v5457 = vunpack.c.l.b16 %v5333
    %v5458 = vunpack.c.h.b16 %v5333
    %v5459 = vunpack.c.l.b16 %v5334
    %v5460 = vunpack.c.h.b16 %v5334
    %v5461 = vunpack.c.l.b16 %v5335
    %v5462 = vunpack.c.h.b16 %v5335
    %v5463 = vunpack.c.l.b16 %v5336
    %v5464 = vunpack.c.h.b16 %v5336
    %v5465 = vpack.c.b16 %v5403, %v5401
    %v5466 = vpack.c.b16 %v5404, %v5402
    %v5467 = vpack.c.b16 %v5407, %v5405
    %v5468 = vpack.c.b16 %v5408, %v5406
    %v5469 = vpack.c.b16 %v5411, %v5409
    %v5470 = vpack.c.b16 %v5412, %v5410
    %v5471 = vpack.c.b16 %v5415, %v5413
    %v5472 = vpack.c.b16 %v5416, %v5414
    %v5473 = vpack.c.b16 %v5419, %v5417
    %v5474 = vpack.c.b16 %v5420, %v5418
    %v5475 = vpack.c.b16 %v5423, %v5421
    %v5476 = vpack.c.b16 %v5424, %v5422
    %v5477 = vpack.c.b16 %v5427, %v5425
    %v5478 = vpack.c.b16 %v5428, %v5426
    %v5479 = vpack.c.b16 %v5431, %v5429
    %v5480 = vpack.c.b16 %v5432, %v5430
    %v5481 = vpack.c.b16 %v5435, %v5433
    %v5482 = vpack.c.b16 %v5436, %v5434
    %v5483 = vpack.c.b16 %v5439, %v5437
    %v5484 = vpack.c.b16 %v5440, %v5438
    %v5485 = vpack.c.b16 %v5443, %v5441
    %v5486 = vpack.c.b16 %v5444, %v5442
    %v5487 = vpack.c.b16 %v5447, %v5445
    %v5488 = vpack.c.b16 %v5448, %v5446
    %v5489 = vpack.c.b16 %v5451, %v5449
    %v5490 = vpack.c.b16 %v5452, %v5450
    %v5491 = vpack.c.b16 %v5455, %v5453
    %v5492 = vpack.c.b16 %v5456, %v5454
    %v5493 = vpack.c.b16 %v5459, %v5457
    %v5494 = vpack.c.b16 %v5460, %v5458
    %v5495 = vpack.c.b16 %v5463, %v5461
    %v5496 = vpack.c.b16 %v5464, %v5462
    %5529 = vmatpush.bf16.msra.mxu0 %v5479
    %5530 = vmatpush.bf16.msra.mxu0 %v5477
    %5531 = vmatpush.bf16.msra.mxu0 %v5475
    %5532 = vmatpush.bf16.msra.mxu0 %v5473
    %5533 = vmatpush.bf16.msra.mxu0 %v5471
    %5534 = vmatpush.bf16.msra.mxu0 %v5469
    %5535 = vmatpush.bf16.msra.mxu0 %v5467
    %5536 = vmatpush.bf16.msra.mxu0 %v5465
    %5537 = vmatmul.bf16.gmra.mxu0 %v5353
    %v5538 = vpop.f32.mrf.mxu0
    %v5539 = vadd.f32 0.0, %v5538
    %v5540 = vpop.f32.mrf.mxu0
    %v5541 = vadd.f32 0.0, %v5540
    %5542 = vmatmul.bf16.gmra.mxu0 %v5355
    %v5543 = vpop.f32.mrf.mxu0
    %v5544 = vadd.f32 0.0, %v5543
    %v5545 = vpop.f32.mrf.mxu0
    %v5546 = vadd.f32 0.0, %v5545
    %5547 = vmatmul.bf16.gmra.mxu0 %v5357
    %v5548 = vpop.f32.mrf.mxu0
    %v5549 = vadd.f32 0.0, %v5548
    %v5550 = vpop.f32.mrf.mxu0
    %v5551 = vadd.f32 0.0, %v5550
    %5552 = vmatmul.bf16.gmra.mxu0 %v5359
    %v5553 = vpop.f32.mrf.mxu0
    %v5554 = vadd.f32 0.0, %v5553
    %v5555 = vpop.f32.mrf.mxu0
    %v5556 = vadd.f32 0.0, %v5555
    %5557 = vdwg.mxu0
    %5558 = vmatpush.bf16.msra.mxu0 %v5495
    %5559 = vmatpush.bf16.msra.mxu0 %v5493
    %5560 = vmatpush.bf16.msra.mxu0 %v5491
    %5561 = vmatpush.bf16.msra.mxu0 %v5489
    %5562 = vmatpush.bf16.msra.mxu0 %v5487
    %5563 = vmatpush.bf16.msra.mxu0 %v5485
    %5564 = vmatpush.bf16.msra.mxu0 %v5483
    %5565 = vmatpush.bf16.msra.mxu0 %v5481
    %5566 = vmatmul.bf16.gmra.mxu0 %v5354
    %v5567 = vpop.f32.mrf.mxu0
    %v5568 = vadd.f32 %v5539, %v5567
    %v5569 = vpop.f32.mrf.mxu0
    %v5570 = vadd.f32 %v5541, %v5569
    %5571 = vmatmul.bf16.gmra.mxu0 %v5356
    %v5572 = vpop.f32.mrf.mxu0
    %v5573 = vadd.f32 %v5544, %v5572
    %v5574 = vpop.f32.mrf.mxu0
    %v5575 = vadd.f32 %v5546, %v5574
    %5576 = vmatmul.bf16.gmra.mxu0 %v5358
    %v5577 = vpop.f32.mrf.mxu0
    %v5578 = vadd.f32 %v5549, %v5577
    %v5579 = vpop.f32.mrf.mxu0
    %v5580 = vadd.f32 %v5551, %v5579
    %5581 = vmatmul.bf16.gmra.mxu0 %v5360
    %v5582 = vpop.f32.mrf.mxu0
    %v5583 = vadd.f32 %v5554, %v5582
    %v5584 = vpop.f32.mrf.mxu0
    %v5585 = vadd.f32 %v5556, %v5584
    %5586 = vdwg.mxu0
    %5587 = vmatpush.bf16.msra.mxu0 %v5480
    %5588 = vmatpush.bf16.msra.mxu0 %v5478
    %5589 = vmatpush.bf16.msra.mxu0 %v5476
    %5590 = vmatpush.bf16.msra.mxu0 %v5474
    %5591 = vmatpush.bf16.msra.mxu0 %v5472
    %5592 = vmatpush.bf16.msra.mxu0 %v5470
    %5593 = vmatpush.bf16.msra.mxu0 %v5468
    %5594 = vmatpush.bf16.msra.mxu0 %v5466
    %5595 = vmatmul.bf16.gmra.mxu0 %v5353
    %v5596 = vpop.f32.mrf.mxu0
    %v5597 = vadd.f32 0.0, %v5596
    %v5598 = vpop.f32.mrf.mxu0
    %v5599 = vadd.f32 0.0, %v5598
    %5600 = vmatmul.bf16.gmra.mxu0 %v5355
    %v5601 = vpop.f32.mrf.mxu0
    %v5602 = vadd.f32 0.0, %v5601
    %v5603 = vpop.f32.mrf.mxu0
    %v5604 = vadd.f32 0.0, %v5603
    %5605 = vmatmul.bf16.gmra.mxu0 %v5357
    %v5606 = vpop.f32.mrf.mxu0
    %v5607 = vadd.f32 0.0, %v5606
    %v5608 = vpop.f32.mrf.mxu0
    %v5609 = vadd.f32 0.0, %v5608
    %5610 = vmatmul.bf16.gmra.mxu0 %v5359
    %v5611 = vpop.f32.mrf.mxu0
    %v5612 = vadd.f32 0.0, %v5611
    %v5613 = vpop.f32.mrf.mxu0
    %v5614 = vadd.f32 0.0, %v5613
    %5615 = vdwg.mxu0
    %5616 = vmatpush.bf16.msra.mxu0 %v5496
    %5617 = vmatpush.bf16.msra.mxu0 %v5494
    %5618 = vmatpush.bf16.msra.mxu0 %v5492
    %5619 = vmatpush.bf16.msra.mxu0 %v5490
    %5620 = vmatpush.bf16.msra.mxu0 %v5488
    %5621 = vmatpush.bf16.msra.mxu0 %v5486
    %5622 = vmatpush.bf16.msra.mxu0 %v5484
    %5623 = vmatpush.bf16.msra.mxu0 %v5482
    %5624 = vmatmul.bf16.gmra.mxu0 %v5354
    %v5625 = vpop.f32.mrf.mxu0
    %v5626 = vadd.f32 %v5597, %v5625
    %v5627 = vpop.f32.mrf.mxu0
    %v5628 = vadd.f32 %v5599, %v5627
    %5629 = vmatmul.bf16.gmra.mxu0 %v5356
    %v5630 = vpop.f32.mrf.mxu0
    %v5631 = vadd.f32 %v5602, %v5630
    %v5632 = vpop.f32.mrf.mxu0
    %v5633 = vadd.f32 %v5604, %v5632
    %5634 = vmatmul.bf16.gmra.mxu0 %v5358
    %v5635 = vpop.f32.mrf.mxu0
    %v5636 = vadd.f32 %v5607, %v5635
    %v5637 = vpop.f32.mrf.mxu0
    %v5638 = vadd.f32 %v5609, %v5637
    %5639 = vmatmul.bf16.gmra.mxu0 %v5360
    %v5640 = vpop.f32.mrf.mxu0
    %v5641 = vadd.f32 %v5612, %v5640
    %v5642 = vpop.f32.mrf.mxu0
    %v5643 = vadd.f32 %v5614, %v5642
    %5644 = vdwg.mxu0
    %v5645 = vadd.f32 %v5176, %v5568
    %v5646 = vadd.f32 %v5177, %v5626
    %v5647 = vadd.f32 %v5178, %v5570
    %v5648 = vadd.f32 %v5179, %v5628
    %v5649 = vadd.f32 %v5180, %v5573
    %v5650 = vadd.f32 %v5181, %v5631
    %v5651 = vadd.f32 %v5182, %v5575
    %v5652 = vadd.f32 %v5183, %v5633
    %v5653 = vadd.f32 %v5184, %v5578
    %v5654 = vadd.f32 %v5185, %v5636
    %v5655 = vadd.f32 %v5186, %v5580
    %v5656 = vadd.f32 %v5187, %v5638
    %v5657 = vadd.f32 %v5188, %v5583
    %v5658 = vadd.f32 %v5189, %v5641
    %v5659 = vadd.f32 %v5190, %v5585
    %v5660 = vadd.f32 %v5191, %v5643
    %v5662 = vshrl.u32 %v4158, 16
    %v5664 = vrot.slane %v5662, 4
    %v5665 = vshll.u32 %v4158, 16
    %v5667 = vrot.slane %v5665, 5
    %v5668 = vor.u32 %v5664, %v5667
    %v5669 = vrot.slane %v5668, 4
    %v5671 = vshll.u32 %v4159, 16
    %v5673 = vrot.slane %v5671, 5
    %v5674 = vsel %vm1160, %v5669, %v5673
    %v5676 = vshrl.u32 %v4170, 16
    %v5678 = vrot.slane %v5676, 4
    %v5679 = vshll.u32 %v4170, 16
    %v5681 = vrot.slane %v5679, 5
    %v5682 = vor.u32 %v5678, %v5681
    %v5683 = vrot.slane %v5682, 4
    %v5685 = vshll.u32 %v4171, 16
    %v5687 = vrot.slane %v5685, 5
    %v5688 = vsel %vm1160, %v5683, %v5687
    %s5689 = scalar_lea.vmem [#allocation8], 1024
    %v5690 = vld [vmem:[%s5689] sm:$0xff]
    %v5691 = vld [vmem:[%s5689 + $0x8] sm:$0xff]
    %v5692 = vld [vmem:[%s5689 + $0x10] sm:$0xff]
    %v5693 = vld [vmem:[%s5689 + $0x18] sm:$0xff]
    %v5694 = vld [vmem:[%s5689 + $0x20] sm:$0xff]
    %v5695 = vld [vmem:[%s5689 + $0x28] sm:$0xff]
    %v5696 = vld [vmem:[%s5689 + $0x30] sm:$0xff]
    %v5697 = vld [vmem:[%s5689 + $0x38] sm:$0xff]
    %v5698 = vld [vmem:[%s5689 + $0x40] sm:$0xff]
    %v5699 = vld [vmem:[%s5689 + $0x48] sm:$0xff]
    %v5700 = vld [vmem:[%s5689 + $0x50] sm:$0xff]
    %v5701 = vld [vmem:[%s5689 + $0x58] sm:$0xff]
    %v5702 = vld [vmem:[%s5689 + $0x60] sm:$0xff]
    %v5703 = vld [vmem:[%s5689 + $0x68] sm:$0xff]
    %v5704 = vld [vmem:[%s5689 + $0x70] sm:$0xff]
    %v5705 = vld [vmem:[%s5689 + $0x78] sm:$0xff]
    %v5706 = vld [vmem:[%s5689 + $0x80] sm:$0xff]
    %v5707 = vld [vmem:[%s5689 + $0x88] sm:$0xff]
    %v5708 = vld [vmem:[%s5689 + $0x90] sm:$0xff]
    %v5709 = vld [vmem:[%s5689 + $0x98] sm:$0xff]
    %v5710 = vld [vmem:[%s5689 + $0xa0] sm:$0xff]
    %v5711 = vld [vmem:[%s5689 + $0xa8] sm:$0xff]
    %v5712 = vld [vmem:[%s5689 + $0xb0] sm:$0xff]
    %v5713 = vld [vmem:[%s5689 + $0xb8] sm:$0xff]
    %v5714 = vld [vmem:[%s5689 + $0xc0] sm:$0xff]
    %v5715 = vld [vmem:[%s5689 + $0xc8] sm:$0xff]
    %v5716 = vld [vmem:[%s5689 + $0xd0] sm:$0xff]
    %v5717 = vld [vmem:[%s5689 + $0xd8] sm:$0xff]
    %v5718 = vld [vmem:[%s5689 + $0xe0] sm:$0xff]
    %v5719 = vld [vmem:[%s5689 + $0xe8] sm:$0xff]
    %v5720 = vld [vmem:[%s5689 + $0xf0] sm:$0xff]
    %v5721 = vld [vmem:[%s5689 + $0xf8] sm:$0xff]
    %v5722 = vunpack.c.l.b16 %v5674
    %v5723 = vunpack.c.h.b16 %v5674
    %v5724 = vunpack.c.l.b16 %v5688
    %v5725 = vunpack.c.h.b16 %v5688
    %v5726 = vpack.c.b16 %v5341, %v5339
    %v5727 = vpack.c.b16 %v5342, %v5340
    %v5728 = vpack.c.b16 %v5722, %v5343
    %v5729 = vpack.c.b16 %v5723, %v5344
    %v5730 = vpack.c.b16 %v5349, %v5347
    %v5731 = vpack.c.b16 %v5350, %v5348
    %v5732 = vpack.c.b16 %v5724, %v5351
    %v5733 = vpack.c.b16 %v5725, %v5352
    %v5774 = vunpack.c.l.b16 %v5690
    %v5775 = vunpack.c.h.b16 %v5690
    %v5776 = vunpack.c.l.b16 %v5691
    %v5777 = vunpack.c.h.b16 %v5691
    %v5778 = vunpack.c.l.b16 %v5692
    %v5779 = vunpack.c.h.b16 %v5692
    %v5780 = vunpack.c.l.b16 %v5693
    %v5781 = vunpack.c.h.b16 %v5693
    %v5782 = vunpack.c.l.b16 %v5694
    %v5783 = vunpack.c.h.b16 %v5694
    %v5784 = vunpack.c.l.b16 %v5695
    %v5785 = vunpack.c.h.b16 %v5695
    %v5786 = vunpack.c.l.b16 %v5696
    %v5787 = vunpack.c.h.b16 %v5696
    %v5788 = vunpack.c.l.b16 %v5697
    %v5789 = vunpack.c.h.b16 %v5697
    %v5790 = vunpack.c.l.b16 %v5698
    %v5791 = vunpack.c.h.b16 %v5698
    %v5792 = vunpack.c.l.b16 %v5699
    %v5793 = vunpack.c.h.b16 %v5699
    %v5794 = vunpack.c.l.b16 %v5700
    %v5795 = vunpack.c.h.b16 %v5700
    %v5796 = vunpack.c.l.b16 %v5701
    %v5797 = vunpack.c.h.b16 %v5701
    %v5798 = vunpack.c.l.b16 %v5702
    %v5799 = vunpack.c.h.b16 %v5702
    %v5800 = vunpack.c.l.b16 %v5703
    %v5801 = vunpack.c.h.b16 %v5703
    %v5802 = vunpack.c.l.b16 %v5704
    %v5803 = vunpack.c.h.b16 %v5704
    %v5804 = vunpack.c.l.b16 %v5705
    %v5805 = vunpack.c.h.b16 %v5705
    %v5806 = vunpack.c.l.b16 %v5706
    %v5807 = vunpack.c.h.b16 %v5706
    %v5808 = vunpack.c.l.b16 %v5707
    %v5809 = vunpack.c.h.b16 %v5707
    %v5810 = vunpack.c.l.b16 %v5708
    %v5811 = vunpack.c.h.b16 %v5708
    %v5812 = vunpack.c.l.b16 %v5709
    %v5813 = vunpack.c.h.b16 %v5709
    %v5814 = vunpack.c.l.b16 %v5710
    %v5815 = vunpack.c.h.b16 %v5710
    %v5816 = vunpack.c.l.b16 %v5711
    %v5817 = vunpack.c.h.b16 %v5711
    %v5818 = vunpack.c.l.b16 %v5712
    %v5819 = vunpack.c.h.b16 %v5712
    %v5820 = vunpack.c.l.b16 %v5713
    %v5821 = vunpack.c.h.b16 %v5713
    %v5822 = vunpack.c.l.b16 %v5714
    %v5823 = vunpack.c.h.b16 %v5714
    %v5824 = vunpack.c.l.b16 %v5715
    %v5825 = vunpack.c.h.b16 %v5715
    %v5826 = vunpack.c.l.b16 %v5716
    %v5827 = vunpack.c.h.b16 %v5716
    %v5828 = vunpack.c.l.b16 %v5717
    %v5829 = vunpack.c.h.b16 %v5717
    %v5830 = vunpack.c.l.b16 %v5718
    %v5831 = vunpack.c.h.b16 %v5718
    %v5832 = vunpack.c.l.b16 %v5719
    %v5833 = vunpack.c.h.b16 %v5719
    %v5834 = vunpack.c.l.b16 %v5720
    %v5835 = vunpack.c.h.b16 %v5720
    %v5836 = vunpack.c.l.b16 %v5721
    %v5837 = vunpack.c.h.b16 %v5721
    %v5838 = vpack.c.b16 %v5776, %v5774
    %v5839 = vpack.c.b16 %v5777, %v5775
    %v5840 = vpack.c.b16 %v5780, %v5778
    %v5841 = vpack.c.b16 %v5781, %v5779
    %v5842 = vpack.c.b16 %v5784, %v5782
    %v5843 = vpack.c.b16 %v5785, %v5783
    %v5844 = vpack.c.b16 %v5788, %v5786
    %v5845 = vpack.c.b16 %v5789, %v5787
    %v5846 = vpack.c.b16 %v5792, %v5790
    %v5847 = vpack.c.b16 %v5793, %v5791
    %v5848 = vpack.c.b16 %v5796, %v5794
    %v5849 = vpack.c.b16 %v5797, %v5795
    %v5850 = vpack.c.b16 %v5800, %v5798
    %v5851 = vpack.c.b16 %v5801, %v5799
    %v5852 = vpack.c.b16 %v5804, %v5802
    %v5853 = vpack.c.b16 %v5805, %v5803
    %v5854 = vpack.c.b16 %v5808, %v5806
    %v5855 = vpack.c.b16 %v5809, %v5807
    %v5856 = vpack.c.b16 %v5812, %v5810
    %v5857 = vpack.c.b16 %v5813, %v5811
    %v5858 = vpack.c.b16 %v5816, %v5814
    %v5859 = vpack.c.b16 %v5817, %v5815
    %v5860 = vpack.c.b16 %v5820, %v5818
    %v5861 = vpack.c.b16 %v5821, %v5819
    %v5862 = vpack.c.b16 %v5824, %v5822
    %v5863 = vpack.c.b16 %v5825, %v5823
    %v5864 = vpack.c.b16 %v5828, %v5826
    %v5865 = vpack.c.b16 %v5829, %v5827
    %v5866 = vpack.c.b16 %v5832, %v5830
    %v5867 = vpack.c.b16 %v5833, %v5831
    %v5868 = vpack.c.b16 %v5836, %v5834
    %v5869 = vpack.c.b16 %v5837, %v5835
    %5902 = vmatpush.bf16.msra.mxu0 %v5852
    %5903 = vmatpush.bf16.msra.mxu0 %v5850
    %5904 = vmatpush.bf16.msra.mxu0 %v5848
    %5905 = vmatpush.bf16.msra.mxu0 %v5846
    %5906 = vmatpush.bf16.msra.mxu0 %v5844
    %5907 = vmatpush.bf16.msra.mxu0 %v5842
    %5908 = vmatpush.bf16.msra.mxu0 %v5840
    %5909 = vmatpush.bf16.msra.mxu0 %v5838
    %5910 = vmatmul.bf16.gmra.mxu0 %v5726
    %v5911 = vpop.f32.mrf.mxu0
    %v5912 = vadd.f32 0.0, %v5911
    %v5913 = vpop.f32.mrf.mxu0
    %v5914 = vadd.f32 0.0, %v5913
    %5915 = vmatmul.bf16.gmra.mxu0 %v5728
    %v5916 = vpop.f32.mrf.mxu0
    %v5917 = vadd.f32 0.0, %v5916
    %v5918 = vpop.f32.mrf.mxu0
    %v5919 = vadd.f32 0.0, %v5918
    %5920 = vmatmul.bf16.gmra.mxu0 %v5730
    %v5921 = vpop.f32.mrf.mxu0
    %v5922 = vadd.f32 0.0, %v5921
    %v5923 = vpop.f32.mrf.mxu0
    %v5924 = vadd.f32 0.0, %v5923
    %5925 = vmatmul.bf16.gmra.mxu0 %v5732
    %v5926 = vpop.f32.mrf.mxu0
    %v5927 = vadd.f32 0.0, %v5926
    %v5928 = vpop.f32.mrf.mxu0
    %v5929 = vadd.f32 0.0, %v5928
    %5930 = vdwg.mxu0
    %5931 = vmatpush.bf16.msra.mxu0 %v5868
    %5932 = vmatpush.bf16.msra.mxu0 %v5866
    %5933 = vmatpush.bf16.msra.mxu0 %v5864
    %5934 = vmatpush.bf16.msra.mxu0 %v5862
    %5935 = vmatpush.bf16.msra.mxu0 %v5860
    %5936 = vmatpush.bf16.msra.mxu0 %v5858
    %5937 = vmatpush.bf16.msra.mxu0 %v5856
    %5938 = vmatpush.bf16.msra.mxu0 %v5854
    %5939 = vmatmul.bf16.gmra.mxu0 %v5727
    %v5940 = vpop.f32.mrf.mxu0
    %v5941 = vadd.f32 %v5912, %v5940
    %v5942 = vpop.f32.mrf.mxu0
    %v5943 = vadd.f32 %v5914, %v5942
    %5944 = vmatmul.bf16.gmra.mxu0 %v5729
    %v5945 = vpop.f32.mrf.mxu0
    %v5946 = vadd.f32 %v5917, %v5945
    %v5947 = vpop.f32.mrf.mxu0
    %v5948 = vadd.f32 %v5919, %v5947
    %5949 = vmatmul.bf16.gmra.mxu0 %v5731
    %v5950 = vpop.f32.mrf.mxu0
    %v5951 = vadd.f32 %v5922, %v5950
    %v5952 = vpop.f32.mrf.mxu0
    %v5953 = vadd.f32 %v5924, %v5952
    %5954 = vmatmul.bf16.gmra.mxu0 %v5733
    %v5955 = vpop.f32.mrf.mxu0
    %v5956 = vadd.f32 %v5927, %v5955
    %v5957 = vpop.f32.mrf.mxu0
    %v5958 = vadd.f32 %v5929, %v5957
    %5959 = vdwg.mxu0
    %5960 = vmatpush.bf16.msra.mxu0 %v5853
    %5961 = vmatpush.bf16.msra.mxu0 %v5851
    %5962 = vmatpush.bf16.msra.mxu0 %v5849
    %5963 = vmatpush.bf16.msra.mxu0 %v5847
    %5964 = vmatpush.bf16.msra.mxu0 %v5845
    %5965 = vmatpush.bf16.msra.mxu0 %v5843
    %5966 = vmatpush.bf16.msra.mxu0 %v5841
    %5967 = vmatpush.bf16.msra.mxu0 %v5839
    %5968 = vmatmul.bf16.gmra.mxu0 %v5726
    %v5969 = vpop.f32.mrf.mxu0
    %v5970 = vadd.f32 0.0, %v5969
    %v5971 = vpop.f32.mrf.mxu0
    %v5972 = vadd.f32 0.0, %v5971
    %5973 = vmatmul.bf16.gmra.mxu0 %v5728
    %v5974 = vpop.f32.mrf.mxu0
    %v5975 = vadd.f32 0.0, %v5974
    %v5976 = vpop.f32.mrf.mxu0
    %v5977 = vadd.f32 0.0, %v5976
    %5978 = vmatmul.bf16.gmra.mxu0 %v5730
    %v5979 = vpop.f32.mrf.mxu0
    %v5980 = vadd.f32 0.0, %v5979
    %v5981 = vpop.f32.mrf.mxu0
    %v5982 = vadd.f32 0.0, %v5981
    %5983 = vmatmul.bf16.gmra.mxu0 %v5732
    %v5984 = vpop.f32.mrf.mxu0
    %v5985 = vadd.f32 0.0, %v5984
    %v5986 = vpop.f32.mrf.mxu0
    %v5987 = vadd.f32 0.0, %v5986
    %5988 = vdwg.mxu0
    %5989 = vmatpush.bf16.msra.mxu0 %v5869
    %5990 = vmatpush.bf16.msra.mxu0 %v5867
    %5991 = vmatpush.bf16.msra.mxu0 %v5865
    %5992 = vmatpush.bf16.msra.mxu0 %v5863
    %5993 = vmatpush.bf16.msra.mxu0 %v5861
    %5994 = vmatpush.bf16.msra.mxu0 %v5859
    %5995 = vmatpush.bf16.msra.mxu0 %v5857
    %5996 = vmatpush.bf16.msra.mxu0 %v5855
    %5997 = vmatmul.bf16.gmra.mxu0 %v5727
    %v5998 = vpop.f32.mrf.mxu0
    %v5999 = vadd.f32 %v5970, %v5998
    %v6000 = vpop.f32.mrf.mxu0
    %v6001 = vadd.f32 %v5972, %v6000
    %6002 = vmatmul.bf16.gmra.mxu0 %v5729
    %v6003 = vpop.f32.mrf.mxu0
    %v6004 = vadd.f32 %v5975, %v6003
    %v6005 = vpop.f32.mrf.mxu0
    %v6006 = vadd.f32 %v5977, %v6005
    %6007 = vmatmul.bf16.gmra.mxu0 %v5731
    %v6008 = vpop.f32.mrf.mxu0
    %v6009 = vadd.f32 %v5980, %v6008
    %v6010 = vpop.f32.mrf.mxu0
    %v6011 = vadd.f32 %v5982, %v6010
    %6012 = vmatmul.bf16.gmra.mxu0 %v5733
    %v6013 = vpop.f32.mrf.mxu0
    %v6014 = vadd.f32 %v5985, %v6013
    %v6015 = vpop.f32.mrf.mxu0
    %v6016 = vadd.f32 %v5987, %v6015
    %6017 = vdwg.mxu0
    %v6018 = vadd.f32 %v5645, %v5941
    %v6019 = vadd.f32 %v5646, %v5999
    %v6020 = vadd.f32 %v5647, %v5943
    %v6021 = vadd.f32 %v5648, %v6001
    %v6022 = vadd.f32 %v5649, %v5946
    %v6023 = vadd.f32 %v5650, %v6004
    %v6024 = vadd.f32 %v5651, %v5948
    %v6025 = vadd.f32 %v5652, %v6006
    %v6026 = vadd.f32 %v5653, %v5951
    %v6027 = vadd.f32 %v5654, %v6009
    %v6028 = vadd.f32 %v5655, %v5953
    %v6029 = vadd.f32 %v5656, %v6011
    %v6030 = vadd.f32 %v5657, %v5956
    %v6031 = vadd.f32 %v5658, %v6014
    %v6032 = vadd.f32 %v5659, %v5958
    %v6033 = vadd.f32 %v5660, %v6016
    %v6035 = vshrl.u32 %v4160, 16
    %v6037 = vrot.slane %v6035, 4
    %v6038 = vshll.u32 %v4160, 16
    %v6040 = vrot.slane %v6038, 5
    %v6041 = vor.u32 %v6037, %v6040
    %v6042 = vrot.slane %v6041, 4
    %v6044 = vshll.u32 %v4161, 16
    %v6046 = vrot.slane %v6044, 5
    %v6047 = vsel %vm1160, %v6042, %v6046
    %v6049 = vshrl.u32 %v4172, 16
    %v6051 = vrot.slane %v6049, 4
    %v6052 = vshll.u32 %v4172, 16
    %v6054 = vrot.slane %v6052, 5
    %v6055 = vor.u32 %v6051, %v6054
    %v6056 = vrot.slane %v6055, 4
    %v6058 = vshll.u32 %v4173, 16
    %v6060 = vrot.slane %v6058, 5
    %v6061 = vsel %vm1160, %v6056, %v6060
    %s6062 = scalar_lea.vmem [#allocation8], 1792
    %v6063 = vld [vmem:[%s6062] sm:$0xff]
    %v6064 = vld [vmem:[%s6062 + $0x8] sm:$0xff]
    %v6065 = vld [vmem:[%s6062 + $0x10] sm:$0xff]
    %v6066 = vld [vmem:[%s6062 + $0x18] sm:$0xff]
    %v6067 = vld [vmem:[%s6062 + $0x20] sm:$0xff]
    %v6068 = vld [vmem:[%s6062 + $0x28] sm:$0xff]
    %v6069 = vld [vmem:[%s6062 + $0x30] sm:$0xff]
    %v6070 = vld [vmem:[%s6062 + $0x38] sm:$0xff]
    %v6071 = vld [vmem:[%s6062 + $0x40] sm:$0xff]
    %v6072 = vld [vmem:[%s6062 + $0x48] sm:$0xff]
    %v6073 = vld [vmem:[%s6062 + $0x50] sm:$0xff]
    %v6074 = vld [vmem:[%s6062 + $0x58] sm:$0xff]
    %v6075 = vld [vmem:[%s6062 + $0x60] sm:$0xff]
    %v6076 = vld [vmem:[%s6062 + $0x68] sm:$0xff]
    %v6077 = vld [vmem:[%s6062 + $0x70] sm:$0xff]
    %v6078 = vld [vmem:[%s6062 + $0x78] sm:$0xff]
    %v6079 = vld [vmem:[%s6062 + $0x80] sm:$0xff]
    %v6080 = vld [vmem:[%s6062 + $0x88] sm:$0xff]
    %v6081 = vld [vmem:[%s6062 + $0x90] sm:$0xff]
    %v6082 = vld [vmem:[%s6062 + $0x98] sm:$0xff]
    %v6083 = vld [vmem:[%s6062 + $0xa0] sm:$0xff]
    %v6084 = vld [vmem:[%s6062 + $0xa8] sm:$0xff]
    %v6085 = vld [vmem:[%s6062 + $0xb0] sm:$0xff]
    %v6086 = vld [vmem:[%s6062 + $0xb8] sm:$0xff]
    %v6087 = vld [vmem:[%s6062 + $0xc0] sm:$0xff]
    %v6088 = vld [vmem:[%s6062 + $0xc8] sm:$0xff]
    %v6089 = vld [vmem:[%s6062 + $0xd0] sm:$0xff]
    %v6090 = vld [vmem:[%s6062 + $0xd8] sm:$0xff]
    %v6091 = vld [vmem:[%s6062 + $0xe0] sm:$0xff]
    %v6092 = vld [vmem:[%s6062 + $0xe8] sm:$0xff]
    %v6093 = vld [vmem:[%s6062 + $0xf0] sm:$0xff]
    %v6094 = vld [vmem:[%s6062 + $0xf8] sm:$0xff]
    %v6095 = vunpack.c.l.b16 %v6047
    %v6096 = vunpack.c.h.b16 %v6047
    %v6097 = vunpack.c.l.b16 %v6061
    %v6098 = vunpack.c.h.b16 %v6061
    %v6099 = vpack.c.b16 %v6095, %v5722
    %v6100 = vpack.c.b16 %v6096, %v5723
    %v6101 = vpack.c.b16 %v6097, %v5724
    %v6102 = vpack.c.b16 %v6098, %v5725
    %v6139 = vunpack.c.l.b16 %v6063
    %v6140 = vunpack.c.h.b16 %v6063
    %v6141 = vunpack.c.l.b16 %v6064
    %v6142 = vunpack.c.h.b16 %v6064
    %v6143 = vunpack.c.l.b16 %v6065
    %v6144 = vunpack.c.h.b16 %v6065
    %v6145 = vunpack.c.l.b16 %v6066
    %v6146 = vunpack.c.h.b16 %v6066
    %v6147 = vunpack.c.l.b16 %v6067
    %v6148 = vunpack.c.h.b16 %v6067
    %v6149 = vunpack.c.l.b16 %v6068
    %v6150 = vunpack.c.h.b16 %v6068
    %v6151 = vunpack.c.l.b16 %v6069
    %v6152 = vunpack.c.h.b16 %v6069
    %v6153 = vunpack.c.l.b16 %v6070
    %v6154 = vunpack.c.h.b16 %v6070
    %v6155 = vunpack.c.l.b16 %v6071
    %v6156 = vunpack.c.h.b16 %v6071
    %v6157 = vunpack.c.l.b16 %v6072
    %v6158 = vunpack.c.h.b16 %v6072
    %v6159 = vunpack.c.l.b16 %v6073
    %v6160 = vunpack.c.h.b16 %v6073
    %v6161 = vunpack.c.l.b16 %v6074
    %v6162 = vunpack.c.h.b16 %v6074
    %v6163 = vunpack.c.l.b16 %v6075
    %v6164 = vunpack.c.h.b16 %v6075
    %v6165 = vunpack.c.l.b16 %v6076
    %v6166 = vunpack.c.h.b16 %v6076
    %v6167 = vunpack.c.l.b16 %v6077
    %v6168 = vunpack.c.h.b16 %v6077
    %v6169 = vunpack.c.l.b16 %v6078
    %v6170 = vunpack.c.h.b16 %v6078
    %v6171 = vunpack.c.l.b16 %v6079
    %v6172 = vunpack.c.h.b16 %v6079
    %v6173 = vunpack.c.l.b16 %v6080
    %v6174 = vunpack.c.h.b16 %v6080
    %v6175 = vunpack.c.l.b16 %v6081
    %v6176 = vunpack.c.h.b16 %v6081
    %v6177 = vunpack.c.l.b16 %v6082
    %v6178 = vunpack.c.h.b16 %v6082
    %v6179 = vunpack.c.l.b16 %v6083
    %v6180 = vunpack.c.h.b16 %v6083
    %v6181 = vunpack.c.l.b16 %v6084
    %v6182 = vunpack.c.h.b16 %v6084
    %v6183 = vunpack.c.l.b16 %v6085
    %v6184 = vunpack.c.h.b16 %v6085
    %v6185 = vunpack.c.l.b16 %v6086
    %v6186 = vunpack.c.h.b16 %v6086
    %v6187 = vunpack.c.l.b16 %v6087
    %v6188 = vunpack.c.h.b16 %v6087
    %v6189 = vunpack.c.l.b16 %v6088
    %v6190 = vunpack.c.h.b16 %v6088
    %v6191 = vunpack.c.l.b16 %v6089
    %v6192 = vunpack.c.h.b16 %v6089
    %v6193 = vunpack.c.l.b16 %v6090
    %v6194 = vunpack.c.h.b16 %v6090
    %v6195 = vunpack.c.l.b16 %v6091
    %v6196 = vunpack.c.h.b16 %v6091
    %v6197 = vunpack.c.l.b16 %v6092
    %v6198 = vunpack.c.h.b16 %v6092
    %v6199 = vunpack.c.l.b16 %v6093
    %v6200 = vunpack.c.h.b16 %v6093
    %v6201 = vunpack.c.l.b16 %v6094
    %v6202 = vunpack.c.h.b16 %v6094
    %v6203 = vpack.c.b16 %v6141, %v6139
    %v6204 = vpack.c.b16 %v6142, %v6140
    %v6205 = vpack.c.b16 %v6145, %v6143
    %v6206 = vpack.c.b16 %v6146, %v6144
    %v6207 = vpack.c.b16 %v6149, %v6147
    %v6208 = vpack.c.b16 %v6150, %v6148
    %v6209 = vpack.c.b16 %v6153, %v6151
    %v6210 = vpack.c.b16 %v6154, %v6152
    %v6211 = vpack.c.b16 %v6157, %v6155
    %v6212 = vpack.c.b16 %v6158, %v6156
    %v6213 = vpack.c.b16 %v6161, %v6159
    %v6214 = vpack.c.b16 %v6162, %v6160
    %v6215 = vpack.c.b16 %v6165, %v6163
    %v6216 = vpack.c.b16 %v6166, %v6164
    %v6217 = vpack.c.b16 %v6169, %v6167
    %v6218 = vpack.c.b16 %v6170, %v6168
    %v6219 = vpack.c.b16 %v6173, %v6171
    %v6220 = vpack.c.b16 %v6174, %v6172
    %v6221 = vpack.c.b16 %v6177, %v6175
    %v6222 = vpack.c.b16 %v6178, %v6176
    %v6223 = vpack.c.b16 %v6181, %v6179
    %v6224 = vpack.c.b16 %v6182, %v6180
    %v6225 = vpack.c.b16 %v6185, %v6183
    %v6226 = vpack.c.b16 %v6186, %v6184
    %v6227 = vpack.c.b16 %v6189, %v6187
    %v6228 = vpack.c.b16 %v6190, %v6188
    %v6229 = vpack.c.b16 %v6193, %v6191
    %v6230 = vpack.c.b16 %v6194, %v6192
    %v6231 = vpack.c.b16 %v6197, %v6195
    %v6232 = vpack.c.b16 %v6198, %v6196
    %v6233 = vpack.c.b16 %v6201, %v6199
    %v6234 = vpack.c.b16 %v6202, %v6200
    %6267 = vmatpush.bf16.msra.mxu0 %v6217
    %6268 = vmatpush.bf16.msra.mxu0 %v6215
    %6269 = vmatpush.bf16.msra.mxu0 %v6213
    %6270 = vmatpush.bf16.msra.mxu0 %v6211
    %6271 = vmatpush.bf16.msra.mxu0 %v6209
    %6272 = vmatpush.bf16.msra.mxu0 %v6207
    %6273 = vmatpush.bf16.msra.mxu0 %v6205
    %6274 = vmatpush.bf16.msra.mxu0 %v6203
    %6275 = vmatmul.bf16.gmra.mxu0 %v5355
    %v6276 = vpop.f32.mrf.mxu0
    %v6277 = vadd.f32 0.0, %v6276
    %v6278 = vpop.f32.mrf.mxu0
    %v6279 = vadd.f32 0.0, %v6278
    %6280 = vmatmul.bf16.gmra.mxu0 %v6099
    %v6281 = vpop.f32.mrf.mxu0
    %v6282 = vadd.f32 0.0, %v6281
    %v6283 = vpop.f32.mrf.mxu0
    %v6284 = vadd.f32 0.0, %v6283
    %6285 = vmatmul.bf16.gmra.mxu0 %v5359
    %v6286 = vpop.f32.mrf.mxu0
    %v6287 = vadd.f32 0.0, %v6286
    %v6288 = vpop.f32.mrf.mxu0
    %v6289 = vadd.f32 0.0, %v6288
    %6290 = vmatmul.bf16.gmra.mxu0 %v6101
    %v6291 = vpop.f32.mrf.mxu0
    %v6292 = vadd.f32 0.0, %v6291
    %v6293 = vpop.f32.mrf.mxu0
    %v6294 = vadd.f32 0.0, %v6293
    %6295 = vdwg.mxu0
    %6296 = vmatpush.bf16.msra.mxu0 %v6233
    %6297 = vmatpush.bf16.msra.mxu0 %v6231
    %6298 = vmatpush.bf16.msra.mxu0 %v6229
    %6299 = vmatpush.bf16.msra.mxu0 %v6227
    %6300 = vmatpush.bf16.msra.mxu0 %v6225
    %6301 = vmatpush.bf16.msra.mxu0 %v6223
    %6302 = vmatpush.bf16.msra.mxu0 %v6221
    %6303 = vmatpush.bf16.msra.mxu0 %v6219
    %6304 = vmatmul.bf16.gmra.mxu0 %v5356
    %v6305 = vpop.f32.mrf.mxu0
    %v6306 = vadd.f32 %v6277, %v6305
    %v6307 = vpop.f32.mrf.mxu0
    %v6308 = vadd.f32 %v6279, %v6307
    %6309 = vmatmul.bf16.gmra.mxu0 %v6100
    %v6310 = vpop.f32.mrf.mxu0
    %v6311 = vadd.f32 %v6282, %v6310
    %v6312 = vpop.f32.mrf.mxu0
    %v6313 = vadd.f32 %v6284, %v6312
    %6314 = vmatmul.bf16.gmra.mxu0 %v5360
    %v6315 = vpop.f32.mrf.mxu0
    %v6316 = vadd.f32 %v6287, %v6315
    %v6317 = vpop.f32.mrf.mxu0
    %v6318 = vadd.f32 %v6289, %v6317
    %6319 = vmatmul.bf16.gmra.mxu0 %v6102
    %v6320 = vpop.f32.mrf.mxu0
    %v6321 = vadd.f32 %v6292, %v6320
    %v6322 = vpop.f32.mrf.mxu0
    %v6323 = vadd.f32 %v6294, %v6322
    %6324 = vdwg.mxu0
    %6325 = vmatpush.bf16.msra.mxu0 %v6218
    %6326 = vmatpush.bf16.msra.mxu0 %v6216
    %6327 = vmatpush.bf16.msra.mxu0 %v6214
    %6328 = vmatpush.bf16.msra.mxu0 %v6212
    %6329 = vmatpush.bf16.msra.mxu0 %v6210
    %6330 = vmatpush.bf16.msra.mxu0 %v6208
    %6331 = vmatpush.bf16.msra.mxu0 %v6206
    %6332 = vmatpush.bf16.msra.mxu0 %v6204
    %6333 = vmatmul.bf16.gmra.mxu0 %v5355
    %v6334 = vpop.f32.mrf.mxu0
    %v6335 = vadd.f32 0.0, %v6334
    %v6336 = vpop.f32.mrf.mxu0
    %v6337 = vadd.f32 0.0, %v6336
    %6338 = vmatmul.bf16.gmra.mxu0 %v6099
    %v6339 = vpop.f32.mrf.mxu0
    %v6340 = vadd.f32 0.0, %v6339
    %v6341 = vpop.f32.mrf.mxu0
    %v6342 = vadd.f32 0.0, %v6341
    %6343 = vmatmul.bf16.gmra.mxu0 %v5359
    %v6344 = vpop.f32.mrf.mxu0
    %v6345 = vadd.f32 0.0, %v6344
    %v6346 = vpop.f32.mrf.mxu0
    %v6347 = vadd.f32 0.0, %v6346
    %6348 = vmatmul.bf16.gmra.mxu0 %v6101
    %v6349 = vpop.f32.mrf.mxu0
    %v6350 = vadd.f32 0.0, %v6349
    %v6351 = vpop.f32.mrf.mxu0
    %v6352 = vadd.f32 0.0, %v6351
    %6353 = vdwg.mxu0
    %6354 = vmatpush.bf16.msra.mxu0 %v6234
    %6355 = vmatpush.bf16.msra.mxu0 %v6232
    %6356 = vmatpush.bf16.msra.mxu0 %v6230
    %6357 = vmatpush.bf16.msra.mxu0 %v6228
    %6358 = vmatpush.bf16.msra.mxu0 %v6226
    %6359 = vmatpush.bf16.msra.mxu0 %v6224
    %6360 = vmatpush.bf16.msra.mxu0 %v6222
    %6361 = vmatpush.bf16.msra.mxu0 %v6220
    %6362 = vmatmul.bf16.gmra.mxu0 %v5356
    %v6363 = vpop.f32.mrf.mxu0
    %v6364 = vadd.f32 %v6335, %v6363
    %v6365 = vpop.f32.mrf.mxu0
    %v6366 = vadd.f32 %v6337, %v6365
    %6367 = vmatmul.bf16.gmra.mxu0 %v6100
    %v6368 = vpop.f32.mrf.mxu0
    %v6369 = vadd.f32 %v6340, %v6368
    %v6370 = vpop.f32.mrf.mxu0
    %v6371 = vadd.f32 %v6342, %v6370
    %6372 = vmatmul.bf16.gmra.mxu0 %v5360
    %v6373 = vpop.f32.mrf.mxu0
    %v6374 = vadd.f32 %v6345, %v6373
    %v6375 = vpop.f32.mrf.mxu0
    %v6376 = vadd.f32 %v6347, %v6375
    %6377 = vmatmul.bf16.gmra.mxu0 %v6102
    %v6378 = vpop.f32.mrf.mxu0
    %v6379 = vadd.f32 %v6350, %v6378
    %v6380 = vpop.f32.mrf.mxu0
    %v6381 = vadd.f32 %v6352, %v6380
    %6382 = vdwg.mxu0
    %v6383 = vadd.f32 %v6018, %v6306
    %v6384 = vadd.f32 %v6019, %v6364
    %v6385 = vadd.f32 %v6020, %v6308
    %v6386 = vadd.f32 %v6021, %v6366
    %v6387 = vadd.f32 %v6022, %v6311
    %v6388 = vadd.f32 %v6023, %v6369
    %v6389 = vadd.f32 %v6024, %v6313
    %v6390 = vadd.f32 %v6025, %v6371
    %v6391 = vadd.f32 %v6026, %v6316
    %v6392 = vadd.f32 %v6027, %v6374
    %v6393 = vadd.f32 %v6028, %v6318
    %v6394 = vadd.f32 %v6029, %v6376
    %v6395 = vadd.f32 %v6030, %v6321
    %v6396 = vadd.f32 %v6031, %v6379
    %v6397 = vadd.f32 %v6032, %v6323
    %v6398 = vadd.f32 %v6033, %v6381
    %v6407 = vrot.slane %v4150, 5
    %v6408 = vrot.slane %v6407, 4
    %v6409 = vrot.slane %v4151, 5
    %v6410 = vsel %vm2378, %v6408, %v6409
    %v6411 = vrot.slane %v4152, 5
    %v6412 = vrot.slane %v6411, 4
    %v6413 = vrot.slane %v4153, 5
    %v6414 = vsel %vm2378, %v6412, %v6413
    %v6415 = vrot.slane %v4154, 5
    %v6416 = vrot.slane %v6415, 4
    %v6417 = vrot.slane %v4155, 5
    %v6418 = vsel %vm2378, %v6416, %v6417
    %v6419 = vrot.slane %v4156, 5
    %v6420 = vrot.slane %v6419, 4
    %v6421 = vrot.slane %v4157, 5
    %v6422 = vsel %vm2378, %v6420, %v6421
    %v6423 = vrot.slane %v4162, 5
    %v6424 = vrot.slane %v6423, 4
    %v6425 = vrot.slane %v4163, 5
    %v6426 = vsel %vm2378, %v6424, %v6425
    %v6427 = vrot.slane %v4164, 5
    %v6428 = vrot.slane %v6427, 4
    %v6429 = vrot.slane %v4165, 5
    %v6430 = vsel %vm2378, %v6428, %v6429
    %v6431 = vrot.slane %v4166, 5
    %v6432 = vrot.slane %v6431, 4
    %v6433 = vrot.slane %v4167, 5
    %v6434 = vsel %vm2378, %v6432, %v6433
    %v6435 = vrot.slane %v4168, 5
    %v6436 = vrot.slane %v6435, 4
    %v6437 = vrot.slane %v4169, 5
    %v6438 = vsel %vm2378, %v6436, %v6437
    %s6439 = scalar_lea.vmem [#allocation8], 512
    %v6440 = vld [vmem:[%s6439] sm:$0xff]
    %v6441 = vld [vmem:[%s6439 + $0x8] sm:$0xff]
    %v6442 = vld [vmem:[%s6439 + $0x10] sm:$0xff]
    %v6443 = vld [vmem:[%s6439 + $0x18] sm:$0xff]
    %v6444 = vld [vmem:[%s6439 + $0x20] sm:$0xff]
    %v6445 = vld [vmem:[%s6439 + $0x28] sm:$0xff]
    %v6446 = vld [vmem:[%s6439 + $0x30] sm:$0xff]
    %v6447 = vld [vmem:[%s6439 + $0x38] sm:$0xff]
    %v6448 = vld [vmem:[%s6439 + $0x40] sm:$0xff]
    %v6449 = vld [vmem:[%s6439 + $0x48] sm:$0xff]
    %v6450 = vld [vmem:[%s6439 + $0x50] sm:$0xff]
    %v6451 = vld [vmem:[%s6439 + $0x58] sm:$0xff]
    %v6452 = vld [vmem:[%s6439 + $0x60] sm:$0xff]
    %v6453 = vld [vmem:[%s6439 + $0x68] sm:$0xff]
    %v6454 = vld [vmem:[%s6439 + $0x70] sm:$0xff]
    %v6455 = vld [vmem:[%s6439 + $0x78] sm:$0xff]
    %v6456 = vld [vmem:[%s6439 + $0x80] sm:$0xff]
    %v6457 = vld [vmem:[%s6439 + $0x88] sm:$0xff]
    %v6458 = vld [vmem:[%s6439 + $0x90] sm:$0xff]
    %v6459 = vld [vmem:[%s6439 + $0x98] sm:$0xff]
    %v6460 = vld [vmem:[%s6439 + $0xa0] sm:$0xff]
    %v6461 = vld [vmem:[%s6439 + $0xa8] sm:$0xff]
    %v6462 = vld [vmem:[%s6439 + $0xb0] sm:$0xff]
    %v6463 = vld [vmem:[%s6439 + $0xb8] sm:$0xff]
    %v6464 = vld [vmem:[%s6439 + $0xc0] sm:$0xff]
    %v6465 = vld [vmem:[%s6439 + $0xc8] sm:$0xff]
    %v6466 = vld [vmem:[%s6439 + $0xd0] sm:$0xff]
    %v6467 = vld [vmem:[%s6439 + $0xd8] sm:$0xff]
    %v6468 = vld [vmem:[%s6439 + $0xe0] sm:$0xff]
    %v6469 = vld [vmem:[%s6439 + $0xe8] sm:$0xff]
    %v6470 = vld [vmem:[%s6439 + $0xf0] sm:$0xff]
    %v6471 = vld [vmem:[%s6439 + $0xf8] sm:$0xff]
    %v6472 = vunpack.c.l.b16 %v6410
    %v6473 = vunpack.c.h.b16 %v6410
    %v6474 = vunpack.c.l.b16 %v6414
    %v6475 = vunpack.c.h.b16 %v6414
    %v6476 = vunpack.c.l.b16 %v6418
    %v6477 = vunpack.c.h.b16 %v6418
    %v6478 = vunpack.c.l.b16 %v6422
    %v6479 = vunpack.c.h.b16 %v6422
    %v6480 = vunpack.c.l.b16 %v6426
    %v6481 = vunpack.c.h.b16 %v6426
    %v6482 = vunpack.c.l.b16 %v6430
    %v6483 = vunpack.c.h.b16 %v6430
    %v6484 = vunpack.c.l.b16 %v6434
    %v6485 = vunpack.c.h.b16 %v6434
    %v6486 = vunpack.c.l.b16 %v6438
    %v6487 = vunpack.c.h.b16 %v6438
    %v6488 = vpack.c.b16 %v6474, %v6472
    %v6489 = vpack.c.b16 %v6475, %v6473
    %v6490 = vpack.c.b16 %v6478, %v6476
    %v6491 = vpack.c.b16 %v6479, %v6477
    %v6492 = vpack.c.b16 %v6482, %v6480
    %v6493 = vpack.c.b16 %v6483, %v6481
    %v6494 = vpack.c.b16 %v6486, %v6484
    %v6495 = vpack.c.b16 %v6487, %v6485
    %v6536 = vunpack.c.l.b16 %v6440
    %v6537 = vunpack.c.h.b16 %v6440
    %v6538 = vunpack.c.l.b16 %v6441
    %v6539 = vunpack.c.h.b16 %v6441
    %v6540 = vunpack.c.l.b16 %v6442
    %v6541 = vunpack.c.h.b16 %v6442
    %v6542 = vunpack.c.l.b16 %v6443
    %v6543 = vunpack.c.h.b16 %v6443
    %v6544 = vunpack.c.l.b16 %v6444
    %v6545 = vunpack.c.h.b16 %v6444
    %v6546 = vunpack.c.l.b16 %v6445
    %v6547 = vunpack.c.h.b16 %v6445
    %v6548 = vunpack.c.l.b16 %v6446
    %v6549 = vunpack.c.h.b16 %v6446
    %v6550 = vunpack.c.l.b16 %v6447
    %v6551 = vunpack.c.h.b16 %v6447
    %v6552 = vunpack.c.l.b16 %v6448
    %v6553 = vunpack.c.h.b16 %v6448
    %v6554 = vunpack.c.l.b16 %v6449
    %v6555 = vunpack.c.h.b16 %v6449
    %v6556 = vunpack.c.l.b16 %v6450
    %v6557 = vunpack.c.h.b16 %v6450
    %v6558 = vunpack.c.l.b16 %v6451
    %v6559 = vunpack.c.h.b16 %v6451
    %v6560 = vunpack.c.l.b16 %v6452
    %v6561 = vunpack.c.h.b16 %v6452
    %v6562 = vunpack.c.l.b16 %v6453
    %v6563 = vunpack.c.h.b16 %v6453
    %v6564 = vunpack.c.l.b16 %v6454
    %v6565 = vunpack.c.h.b16 %v6454
    %v6566 = vunpack.c.l.b16 %v6455
    %v6567 = vunpack.c.h.b16 %v6455
    %v6568 = vunpack.c.l.b16 %v6456
    %v6569 = vunpack.c.h.b16 %v6456
    %v6570 = vunpack.c.l.b16 %v6457
    %v6571 = vunpack.c.h.b16 %v6457
    %v6572 = vunpack.c.l.b16 %v6458
    %v6573 = vunpack.c.h.b16 %v6458
    %v6574 = vunpack.c.l.b16 %v6459
    %v6575 = vunpack.c.h.b16 %v6459
    %v6576 = vunpack.c.l.b16 %v6460
    %v6577 = vunpack.c.h.b16 %v6460
    %v6578 = vunpack.c.l.b16 %v6461
    %v6579 = vunpack.c.h.b16 %v6461
    %v6580 = vunpack.c.l.b16 %v6462
    %v6581 = vunpack.c.h.b16 %v6462
    %v6582 = vunpack.c.l.b16 %v6463
    %v6583 = vunpack.c.h.b16 %v6463
    %v6584 = vunpack.c.l.b16 %v6464
    %v6585 = vunpack.c.h.b16 %v6464
    %v6586 = vunpack.c.l.b16 %v6465
    %v6587 = vunpack.c.h.b16 %v6465
    %v6588 = vunpack.c.l.b16 %v6466
    %v6589 = vunpack.c.h.b16 %v6466
    %v6590 = vunpack.c.l.b16 %v6467
    %v6591 = vunpack.c.h.b16 %v6467
    %v6592 = vunpack.c.l.b16 %v6468
    %v6593 = vunpack.c.h.b16 %v6468
    %v6594 = vunpack.c.l.b16 %v6469
    %v6595 = vunpack.c.h.b16 %v6469
    %v6596 = vunpack.c.l.b16 %v6470
    %v6597 = vunpack.c.h.b16 %v6470
    %v6598 = vunpack.c.l.b16 %v6471
    %v6599 = vunpack.c.h.b16 %v6471
    %v6600 = vpack.c.b16 %v6538, %v6536
    %v6601 = vpack.c.b16 %v6539, %v6537
    %v6602 = vpack.c.b16 %v6542, %v6540
    %v6603 = vpack.c.b16 %v6543, %v6541
    %v6604 = vpack.c.b16 %v6546, %v6544
    %v6605 = vpack.c.b16 %v6547, %v6545
    %v6606 = vpack.c.b16 %v6550, %v6548
    %v6607 = vpack.c.b16 %v6551, %v6549
    %v6608 = vpack.c.b16 %v6554, %v6552
    %v6609 = vpack.c.b16 %v6555, %v6553
    %v6610 = vpack.c.b16 %v6558, %v6556
    %v6611 = vpack.c.b16 %v6559, %v6557
    %v6612 = vpack.c.b16 %v6562, %v6560
    %v6613 = vpack.c.b16 %v6563, %v6561
    %v6614 = vpack.c.b16 %v6566, %v6564
    %v6615 = vpack.c.b16 %v6567, %v6565
    %v6616 = vpack.c.b16 %v6570, %v6568
    %v6617 = vpack.c.b16 %v6571, %v6569
    %v6618 = vpack.c.b16 %v6574, %v6572
    %v6619 = vpack.c.b16 %v6575, %v6573
    %v6620 = vpack.c.b16 %v6578, %v6576
    %v6621 = vpack.c.b16 %v6579, %v6577
    %v6622 = vpack.c.b16 %v6582, %v6580
    %v6623 = vpack.c.b16 %v6583, %v6581
    %v6624 = vpack.c.b16 %v6586, %v6584
    %v6625 = vpack.c.b16 %v6587, %v6585
    %v6626 = vpack.c.b16 %v6590, %v6588
    %v6627 = vpack.c.b16 %v6591, %v6589
    %v6628 = vpack.c.b16 %v6594, %v6592
    %v6629 = vpack.c.b16 %v6595, %v6593
    %v6630 = vpack.c.b16 %v6598, %v6596
    %v6631 = vpack.c.b16 %v6599, %v6597
    %6664 = vmatpush.bf16.msra.mxu0 %v6614
    %6665 = vmatpush.bf16.msra.mxu0 %v6612
    %6666 = vmatpush.bf16.msra.mxu0 %v6610
    %6667 = vmatpush.bf16.msra.mxu0 %v6608
    %6668 = vmatpush.bf16.msra.mxu0 %v6606
    %6669 = vmatpush.bf16.msra.mxu0 %v6604
    %6670 = vmatpush.bf16.msra.mxu0 %v6602
    %6671 = vmatpush.bf16.msra.mxu0 %v6600
    %6672 = vmatmul.bf16.gmra.mxu0 %v6488
    %v6673 = vpop.f32.mrf.mxu0
    %v6674 = vadd.f32 0.0, %v6673
    %v6675 = vpop.f32.mrf.mxu0
    %v6676 = vadd.f32 0.0, %v6675
    %6677 = vmatmul.bf16.gmra.mxu0 %v6490
    %v6678 = vpop.f32.mrf.mxu0
    %v6679 = vadd.f32 0.0, %v6678
    %v6680 = vpop.f32.mrf.mxu0
    %v6681 = vadd.f32 0.0, %v6680
    %6682 = vmatmul.bf16.gmra.mxu0 %v6492
    %v6683 = vpop.f32.mrf.mxu0
    %v6684 = vadd.f32 0.0, %v6683
    %v6685 = vpop.f32.mrf.mxu0
    %v6686 = vadd.f32 0.0, %v6685
    %6687 = vmatmul.bf16.gmra.mxu0 %v6494
    %v6688 = vpop.f32.mrf.mxu0
    %v6689 = vadd.f32 0.0, %v6688
    %v6690 = vpop.f32.mrf.mxu0
    %v6691 = vadd.f32 0.0, %v6690
    %6692 = vdwg.mxu0
    %6693 = vmatpush.bf16.msra.mxu0 %v6630
    %6694 = vmatpush.bf16.msra.mxu0 %v6628
    %6695 = vmatpush.bf16.msra.mxu0 %v6626
    %6696 = vmatpush.bf16.msra.mxu0 %v6624
    %6697 = vmatpush.bf16.msra.mxu0 %v6622
    %6698 = vmatpush.bf16.msra.mxu0 %v6620
    %6699 = vmatpush.bf16.msra.mxu0 %v6618
    %6700 = vmatpush.bf16.msra.mxu0 %v6616
    %6701 = vmatmul.bf16.gmra.mxu0 %v6489
    %v6702 = vpop.f32.mrf.mxu0
    %v6703 = vadd.f32 %v6674, %v6702
    %v6704 = vpop.f32.mrf.mxu0
    %v6705 = vadd.f32 %v6676, %v6704
    %6706 = vmatmul.bf16.gmra.mxu0 %v6491
    %v6707 = vpop.f32.mrf.mxu0
    %v6708 = vadd.f32 %v6679, %v6707
    %v6709 = vpop.f32.mrf.mxu0
    %v6710 = vadd.f32 %v6681, %v6709
    %6711 = vmatmul.bf16.gmra.mxu0 %v6493
    %v6712 = vpop.f32.mrf.mxu0
    %v6713 = vadd.f32 %v6684, %v6712
    %v6714 = vpop.f32.mrf.mxu0
    %v6715 = vadd.f32 %v6686, %v6714
    %6716 = vmatmul.bf16.gmra.mxu0 %v6495
    %v6717 = vpop.f32.mrf.mxu0
    %v6718 = vadd.f32 %v6689, %v6717
    %v6719 = vpop.f32.mrf.mxu0
    %v6720 = vadd.f32 %v6691, %v6719
    %6721 = vdwg.mxu0
    %6722 = vmatpush.bf16.msra.mxu0 %v6615
    %6723 = vmatpush.bf16.msra.mxu0 %v6613
    %6724 = vmatpush.bf16.msra.mxu0 %v6611
    %6725 = vmatpush.bf16.msra.mxu0 %v6609
    %6726 = vmatpush.bf16.msra.mxu0 %v6607
    %6727 = vmatpush.bf16.msra.mxu0 %v6605
    %6728 = vmatpush.bf16.msra.mxu0 %v6603
    %6729 = vmatpush.bf16.msra.mxu0 %v6601
    %6730 = vmatmul.bf16.gmra.mxu0 %v6488
    %v6731 = vpop.f32.mrf.mxu0
    %v6732 = vadd.f32 0.0, %v6731
    %v6733 = vpop.f32.mrf.mxu0
    %v6734 = vadd.f32 0.0, %v6733
    %6735 = vmatmul.bf16.gmra.mxu0 %v6490
    %v6736 = vpop.f32.mrf.mxu0
    %v6737 = vadd.f32 0.0, %v6736
    %v6738 = vpop.f32.mrf.mxu0
    %v6739 = vadd.f32 0.0, %v6738
    %6740 = vmatmul.bf16.gmra.mxu0 %v6492
    %v6741 = vpop.f32.mrf.mxu0
    %v6742 = vadd.f32 0.0, %v6741
    %v6743 = vpop.f32.mrf.mxu0
    %v6744 = vadd.f32 0.0, %v6743
    %6745 = vmatmul.bf16.gmra.mxu0 %v6494
    %v6746 = vpop.f32.mrf.mxu0
    %v6747 = vadd.f32 0.0, %v6746
    %v6748 = vpop.f32.mrf.mxu0
    %v6749 = vadd.f32 0.0, %v6748
    %6750 = vdwg.mxu0
    %6751 = vmatpush.bf16.msra.mxu0 %v6631
    %6752 = vmatpush.bf16.msra.mxu0 %v6629
    %6753 = vmatpush.bf16.msra.mxu0 %v6627
    %6754 = vmatpush.bf16.msra.mxu0 %v6625
    %6755 = vmatpush.bf16.msra.mxu0 %v6623
    %6756 = vmatpush.bf16.msra.mxu0 %v6621
    %6757 = vmatpush.bf16.msra.mxu0 %v6619
    %6758 = vmatpush.bf16.msra.mxu0 %v6617
    %6759 = vmatmul.bf16.gmra.mxu0 %v6489
    %v6760 = vpop.f32.mrf.mxu0
    %v6761 = vadd.f32 %v6732, %v6760
    %v6762 = vpop.f32.mrf.mxu0
    %v6763 = vadd.f32 %v6734, %v6762
    %6764 = vmatmul.bf16.gmra.mxu0 %v6491
    %v6765 = vpop.f32.mrf.mxu0
    %v6766 = vadd.f32 %v6737, %v6765
    %v6767 = vpop.f32.mrf.mxu0
    %v6768 = vadd.f32 %v6739, %v6767
    %6769 = vmatmul.bf16.gmra.mxu0 %v6493
    %v6770 = vpop.f32.mrf.mxu0
    %v6771 = vadd.f32 %v6742, %v6770
    %v6772 = vpop.f32.mrf.mxu0
    %v6773 = vadd.f32 %v6744, %v6772
    %6774 = vmatmul.bf16.gmra.mxu0 %v6495
    %v6775 = vpop.f32.mrf.mxu0
    %v6776 = vadd.f32 %v6747, %v6775
    %v6777 = vpop.f32.mrf.mxu0
    %v6778 = vadd.f32 %v6749, %v6777
    %6779 = vdwg.mxu0
    %v6780 = vadd.f32 %v6383, %v6703
    %v6781 = vadd.f32 %v6384, %v6761
    %v6782 = vadd.f32 %v6385, %v6705
    %v6783 = vadd.f32 %v6386, %v6763
    %v6784 = vadd.f32 %v6387, %v6708
    %v6785 = vadd.f32 %v6388, %v6766
    %v6786 = vadd.f32 %v6389, %v6710
    %v6787 = vadd.f32 %v6390, %v6768
    %v6788 = vadd.f32 %v6391, %v6713
    %v6789 = vadd.f32 %v6392, %v6771
    %v6790 = vadd.f32 %v6393, %v6715
    %v6791 = vadd.f32 %v6394, %v6773
    %v6792 = vadd.f32 %v6395, %v6718
    %v6793 = vadd.f32 %v6396, %v6776
    %v6794 = vadd.f32 %v6397, %v6720
    %v6795 = vadd.f32 %v6398, %v6778
    %v6798 = vrot.slane %v4158, 5
    %v6799 = vrot.slane %v6798, 4
    %v6800 = vrot.slane %v4159, 5
    %v6801 = vsel %vm2378, %v6799, %v6800
    %v6802 = vrot.slane %v4170, 5
    %v6803 = vrot.slane %v6802, 4
    %v6804 = vrot.slane %v4171, 5
    %v6805 = vsel %vm2378, %v6803, %v6804
    %s6806 = scalar_lea.vmem [#allocation8], 1280
    %v6807 = vld [vmem:[%s6806] sm:$0xff]
    %v6808 = vld [vmem:[%s6806 + $0x8] sm:$0xff]
    %v6809 = vld [vmem:[%s6806 + $0x10] sm:$0xff]
    %v6810 = vld [vmem:[%s6806 + $0x18] sm:$0xff]
    %v6811 = vld [vmem:[%s6806 + $0x20] sm:$0xff]
    %v6812 = vld [vmem:[%s6806 + $0x28] sm:$0xff]
    %v6813 = vld [vmem:[%s6806 + $0x30] sm:$0xff]
    %v6814 = vld [vmem:[%s6806 + $0x38] sm:$0xff]
    %v6815 = vld [vmem:[%s6806 + $0x40] sm:$0xff]
    %v6816 = vld [vmem:[%s6806 + $0x48] sm:$0xff]
    %v6817 = vld [vmem:[%s6806 + $0x50] sm:$0xff]
    %v6818 = vld [vmem:[%s6806 + $0x58] sm:$0xff]
    %v6819 = vld [vmem:[%s6806 + $0x60] sm:$0xff]
    %v6820 = vld [vmem:[%s6806 + $0x68] sm:$0xff]
    %v6821 = vld [vmem:[%s6806 + $0x70] sm:$0xff]
    %v6822 = vld [vmem:[%s6806 + $0x78] sm:$0xff]
    %v6823 = vld [vmem:[%s6806 + $0x80] sm:$0xff]
    %v6824 = vld [vmem:[%s6806 + $0x88] sm:$0xff]
    %v6825 = vld [vmem:[%s6806 + $0x90] sm:$0xff]
    %v6826 = vld [vmem:[%s6806 + $0x98] sm:$0xff]
    %v6827 = vld [vmem:[%s6806 + $0xa0] sm:$0xff]
    %v6828 = vld [vmem:[%s6806 + $0xa8] sm:$0xff]
    %v6829 = vld [vmem:[%s6806 + $0xb0] sm:$0xff]
    %v6830 = vld [vmem:[%s6806 + $0xb8] sm:$0xff]
    %v6831 = vld [vmem:[%s6806 + $0xc0] sm:$0xff]
    %v6832 = vld [vmem:[%s6806 + $0xc8] sm:$0xff]
    %v6833 = vld [vmem:[%s6806 + $0xd0] sm:$0xff]
    %v6834 = vld [vmem:[%s6806 + $0xd8] sm:$0xff]
    %v6835 = vld [vmem:[%s6806 + $0xe0] sm:$0xff]
    %v6836 = vld [vmem:[%s6806 + $0xe8] sm:$0xff]
    %v6837 = vld [vmem:[%s6806 + $0xf0] sm:$0xff]
    %v6838 = vld [vmem:[%s6806 + $0xf8] sm:$0xff]
    %v6839 = vunpack.c.l.b16 %v6801
    %v6840 = vunpack.c.h.b16 %v6801
    %v6841 = vunpack.c.l.b16 %v6805
    %v6842 = vunpack.c.h.b16 %v6805
    %v6843 = vpack.c.b16 %v6476, %v6474
    %v6844 = vpack.c.b16 %v6477, %v6475
    %v6845 = vpack.c.b16 %v6839, %v6478
    %v6846 = vpack.c.b16 %v6840, %v6479
    %v6847 = vpack.c.b16 %v6484, %v6482
    %v6848 = vpack.c.b16 %v6485, %v6483
    %v6849 = vpack.c.b16 %v6841, %v6486
    %v6850 = vpack.c.b16 %v6842, %v6487
    %v6891 = vunpack.c.l.b16 %v6807
    %v6892 = vunpack.c.h.b16 %v6807
    %v6893 = vunpack.c.l.b16 %v6808
    %v6894 = vunpack.c.h.b16 %v6808
    %v6895 = vunpack.c.l.b16 %v6809
    %v6896 = vunpack.c.h.b16 %v6809
    %v6897 = vunpack.c.l.b16 %v6810
    %v6898 = vunpack.c.h.b16 %v6810
    %v6899 = vunpack.c.l.b16 %v6811
    %v6900 = vunpack.c.h.b16 %v6811
    %v6901 = vunpack.c.l.b16 %v6812
    %v6902 = vunpack.c.h.b16 %v6812
    %v6903 = vunpack.c.l.b16 %v6813
    %v6904 = vunpack.c.h.b16 %v6813
    %v6905 = vunpack.c.l.b16 %v6814
    %v6906 = vunpack.c.h.b16 %v6814
    %v6907 = vunpack.c.l.b16 %v6815
    %v6908 = vunpack.c.h.b16 %v6815
    %v6909 = vunpack.c.l.b16 %v6816
    %v6910 = vunpack.c.h.b16 %v6816
    %v6911 = vunpack.c.l.b16 %v6817
    %v6912 = vunpack.c.h.b16 %v6817
    %v6913 = vunpack.c.l.b16 %v6818
    %v6914 = vunpack.c.h.b16 %v6818
    %v6915 = vunpack.c.l.b16 %v6819
    %v6916 = vunpack.c.h.b16 %v6819
    %v6917 = vunpack.c.l.b16 %v6820
    %v6918 = vunpack.c.h.b16 %v6820
    %v6919 = vunpack.c.l.b16 %v6821
    %v6920 = vunpack.c.h.b16 %v6821
    %v6921 = vunpack.c.l.b16 %v6822
    %v6922 = vunpack.c.h.b16 %v6822
    %v6923 = vunpack.c.l.b16 %v6823
    %v6924 = vunpack.c.h.b16 %v6823
    %v6925 = vunpack.c.l.b16 %v6824
    %v6926 = vunpack.c.h.b16 %v6824
    %v6927 = vunpack.c.l.b16 %v6825
    %v6928 = vunpack.c.h.b16 %v6825
    %v6929 = vunpack.c.l.b16 %v6826
    %v6930 = vunpack.c.h.b16 %v6826
    %v6931 = vunpack.c.l.b16 %v6827
    %v6932 = vunpack.c.h.b16 %v6827
    %v6933 = vunpack.c.l.b16 %v6828
    %v6934 = vunpack.c.h.b16 %v6828
    %v6935 = vunpack.c.l.b16 %v6829
    %v6936 = vunpack.c.h.b16 %v6829
    %v6937 = vunpack.c.l.b16 %v6830
    %v6938 = vunpack.c.h.b16 %v6830
    %v6939 = vunpack.c.l.b16 %v6831
    %v6940 = vunpack.c.h.b16 %v6831
    %v6941 = vunpack.c.l.b16 %v6832
    %v6942 = vunpack.c.h.b16 %v6832
    %v6943 = vunpack.c.l.b16 %v6833
    %v6944 = vunpack.c.h.b16 %v6833
    %v6945 = vunpack.c.l.b16 %v6834
    %v6946 = vunpack.c.h.b16 %v6834
    %v6947 = vunpack.c.l.b16 %v6835
    %v6948 = vunpack.c.h.b16 %v6835
    %v6949 = vunpack.c.l.b16 %v6836
    %v6950 = vunpack.c.h.b16 %v6836
    %v6951 = vunpack.c.l.b16 %v6837
    %v6952 = vunpack.c.h.b16 %v6837
    %v6953 = vunpack.c.l.b16 %v6838
    %v6954 = vunpack.c.h.b16 %v6838
    %v6955 = vpack.c.b16 %v6893, %v6891
    %v6956 = vpack.c.b16 %v6894, %v6892
    %v6957 = vpack.c.b16 %v6897, %v6895
    %v6958 = vpack.c.b16 %v6898, %v6896
    %v6959 = vpack.c.b16 %v6901, %v6899
    %v6960 = vpack.c.b16 %v6902, %v6900
    %v6961 = vpack.c.b16 %v6905, %v6903
    %v6962 = vpack.c.b16 %v6906, %v6904
    %v6963 = vpack.c.b16 %v6909, %v6907
    %v6964 = vpack.c.b16 %v6910, %v6908
    %v6965 = vpack.c.b16 %v6913, %v6911
    %v6966 = vpack.c.b16 %v6914, %v6912
    %v6967 = vpack.c.b16 %v6917, %v6915
    %v6968 = vpack.c.b16 %v6918, %v6916
    %v6969 = vpack.c.b16 %v6921, %v6919
    %v6970 = vpack.c.b16 %v6922, %v6920
    %v6971 = vpack.c.b16 %v6925, %v6923
    %v6972 = vpack.c.b16 %v6926, %v6924
    %v6973 = vpack.c.b16 %v6929, %v6927
    %v6974 = vpack.c.b16 %v6930, %v6928
    %v6975 = vpack.c.b16 %v6933, %v6931
    %v6976 = vpack.c.b16 %v6934, %v6932
    %v6977 = vpack.c.b16 %v6937, %v6935
    %v6978 = vpack.c.b16 %v6938, %v6936
    %v6979 = vpack.c.b16 %v6941, %v6939
    %v6980 = vpack.c.b16 %v6942, %v6940
    %v6981 = vpack.c.b16 %v6945, %v6943
    %v6982 = vpack.c.b16 %v6946, %v6944
    %v6983 = vpack.c.b16 %v6949, %v6947
    %v6984 = vpack.c.b16 %v6950, %v6948
    %v6985 = vpack.c.b16 %v6953, %v6951
    %v6986 = vpack.c.b16 %v6954, %v6952
    %7019 = vmatpush.bf16.msra.mxu0 %v6969
    %7020 = vmatpush.bf16.msra.mxu0 %v6967
    %7021 = vmatpush.bf16.msra.mxu0 %v6965
    %7022 = vmatpush.bf16.msra.mxu0 %v6963
    %7023 = vmatpush.bf16.msra.mxu0 %v6961
    %7024 = vmatpush.bf16.msra.mxu0 %v6959
    %7025 = vmatpush.bf16.msra.mxu0 %v6957
    %7026 = vmatpush.bf16.msra.mxu0 %v6955
    %7027 = vmatmul.bf16.gmra.mxu0 %v6843
    %v7028 = vpop.f32.mrf.mxu0
    %v7029 = vadd.f32 0.0, %v7028
    %v7030 = vpop.f32.mrf.mxu0
    %v7031 = vadd.f32 0.0, %v7030
    %7032 = vmatmul.bf16.gmra.mxu0 %v6845
    %v7033 = vpop.f32.mrf.mxu0
    %v7034 = vadd.f32 0.0, %v7033
    %v7035 = vpop.f32.mrf.mxu0
    %v7036 = vadd.f32 0.0, %v7035
    %7037 = vmatmul.bf16.gmra.mxu0 %v6847
    %v7038 = vpop.f32.mrf.mxu0
    %v7039 = vadd.f32 0.0, %v7038
    %v7040 = vpop.f32.mrf.mxu0
    %v7041 = vadd.f32 0.0, %v7040
    %7042 = vmatmul.bf16.gmra.mxu0 %v6849
    %v7043 = vpop.f32.mrf.mxu0
    %v7044 = vadd.f32 0.0, %v7043
    %v7045 = vpop.f32.mrf.mxu0
    %v7046 = vadd.f32 0.0, %v7045
    %7047 = vdwg.mxu0
    %7048 = vmatpush.bf16.msra.mxu0 %v6985
    %7049 = vmatpush.bf16.msra.mxu0 %v6983
    %7050 = vmatpush.bf16.msra.mxu0 %v6981
    %7051 = vmatpush.bf16.msra.mxu0 %v6979
    %7052 = vmatpush.bf16.msra.mxu0 %v6977
    %7053 = vmatpush.bf16.msra.mxu0 %v6975
    %7054 = vmatpush.bf16.msra.mxu0 %v6973
    %7055 = vmatpush.bf16.msra.mxu0 %v6971
    %7056 = vmatmul.bf16.gmra.mxu0 %v6844
    %v7057 = vpop.f32.mrf.mxu0
    %v7058 = vadd.f32 %v7029, %v7057
    %v7059 = vpop.f32.mrf.mxu0
    %v7060 = vadd.f32 %v7031, %v7059
    %7061 = vmatmul.bf16.gmra.mxu0 %v6846
    %v7062 = vpop.f32.mrf.mxu0
    %v7063 = vadd.f32 %v7034, %v7062
    %v7064 = vpop.f32.mrf.mxu0
    %v7065 = vadd.f32 %v7036, %v7064
    %7066 = vmatmul.bf16.gmra.mxu0 %v6848
    %v7067 = vpop.f32.mrf.mxu0
    %v7068 = vadd.f32 %v7039, %v7067
    %v7069 = vpop.f32.mrf.mxu0
    %v7070 = vadd.f32 %v7041, %v7069
    %7071 = vmatmul.bf16.gmra.mxu0 %v6850
    %v7072 = vpop.f32.mrf.mxu0
    %v7073 = vadd.f32 %v7044, %v7072
    %v7074 = vpop.f32.mrf.mxu0
    %v7075 = vadd.f32 %v7046, %v7074
    %7076 = vdwg.mxu0
    %7077 = vmatpush.bf16.msra.mxu0 %v6970
    %7078 = vmatpush.bf16.msra.mxu0 %v6968
    %7079 = vmatpush.bf16.msra.mxu0 %v6966
    %7080 = vmatpush.bf16.msra.mxu0 %v6964
    %7081 = vmatpush.bf16.msra.mxu0 %v6962
    %7082 = vmatpush.bf16.msra.mxu0 %v6960
    %7083 = vmatpush.bf16.msra.mxu0 %v6958
    %7084 = vmatpush.bf16.msra.mxu0 %v6956
    %7085 = vmatmul.bf16.gmra.mxu0 %v6843
    %v7086 = vpop.f32.mrf.mxu0
    %v7087 = vadd.f32 0.0, %v7086
    %v7088 = vpop.f32.mrf.mxu0
    %v7089 = vadd.f32 0.0, %v7088
    %7090 = vmatmul.bf16.gmra.mxu0 %v6845
    %v7091 = vpop.f32.mrf.mxu0
    %v7092 = vadd.f32 0.0, %v7091
    %v7093 = vpop.f32.mrf.mxu0
    %v7094 = vadd.f32 0.0, %v7093
    %7095 = vmatmul.bf16.gmra.mxu0 %v6847
    %v7096 = vpop.f32.mrf.mxu0
    %v7097 = vadd.f32 0.0, %v7096
    %v7098 = vpop.f32.mrf.mxu0
    %v7099 = vadd.f32 0.0, %v7098
    %7100 = vmatmul.bf16.gmra.mxu0 %v6849
    %v7101 = vpop.f32.mrf.mxu0
    %v7102 = vadd.f32 0.0, %v7101
    %v7103 = vpop.f32.mrf.mxu0
    %v7104 = vadd.f32 0.0, %v7103
    %7105 = vdwg.mxu0
    %7106 = vmatpush.bf16.msra.mxu0 %v6986
    %7107 = vmatpush.bf16.msra.mxu0 %v6984
    %7108 = vmatpush.bf16.msra.mxu0 %v6982
    %7109 = vmatpush.bf16.msra.mxu0 %v6980
    %7110 = vmatpush.bf16.msra.mxu0 %v6978
    %7111 = vmatpush.bf16.msra.mxu0 %v6976
    %7112 = vmatpush.bf16.msra.mxu0 %v6974
    %7113 = vmatpush.bf16.msra.mxu0 %v6972
    %7114 = vmatmul.bf16.gmra.mxu0 %v6844
    %v7115 = vpop.f32.mrf.mxu0
    %v7116 = vadd.f32 %v7087, %v7115
    %v7117 = vpop.f32.mrf.mxu0
    %v7118 = vadd.f32 %v7089, %v7117
    %7119 = vmatmul.bf16.gmra.mxu0 %v6846
    %v7120 = vpop.f32.mrf.mxu0
    %v7121 = vadd.f32 %v7092, %v7120
    %v7122 = vpop.f32.mrf.mxu0
    %v7123 = vadd.f32 %v7094, %v7122
    %7124 = vmatmul.bf16.gmra.mxu0 %v6848
    %v7125 = vpop.f32.mrf.mxu0
    %v7126 = vadd.f32 %v7097, %v7125
    %v7127 = vpop.f32.mrf.mxu0
    %v7128 = vadd.f32 %v7099, %v7127
    %7129 = vmatmul.bf16.gmra.mxu0 %v6850
    %v7130 = vpop.f32.mrf.mxu0
    %v7131 = vadd.f32 %v7102, %v7130
    %v7132 = vpop.f32.mrf.mxu0
    %v7133 = vadd.f32 %v7104, %v7132
    %7134 = vdwg.mxu0
    %v7135 = vadd.f32 %v6780, %v7058
    %v7136 = vadd.f32 %v6781, %v7116
    %v7137 = vadd.f32 %v6782, %v7060
    %v7138 = vadd.f32 %v6783, %v7118
    %v7139 = vadd.f32 %v6784, %v7063
    %v7140 = vadd.f32 %v6785, %v7121
    %v7141 = vadd.f32 %v6786, %v7065
    %v7142 = vadd.f32 %v6787, %v7123
    %v7143 = vadd.f32 %v6788, %v7068
    %v7144 = vadd.f32 %v6789, %v7126
    %v7145 = vadd.f32 %v6790, %v7070
    %v7146 = vadd.f32 %v6791, %v7128
    %v7147 = vadd.f32 %v6792, %v7073
    %v7148 = vadd.f32 %v6793, %v7131
    %v7149 = vadd.f32 %v6794, %v7075
    %v7150 = vadd.f32 %v6795, %v7133
    %v7153 = vrot.slane %v4160, 5
    %v7154 = vrot.slane %v7153, 4
    %v7155 = vrot.slane %v4161, 5
    %v7156 = vsel %vm2378, %v7154, %v7155
    %v7157 = vrot.slane %v4172, 5
    %v7158 = vrot.slane %v7157, 4
    %v7159 = vrot.slane %v4173, 5
    %v7160 = vsel %vm2378, %v7158, %v7159
    %s7161 = scalar_lea.vmem [#allocation8], 2048
    %v7162 = vld [vmem:[%s7161] sm:$0xff]
    %v7163 = vld [vmem:[%s7161 + $0x8] sm:$0xff]
    %v7164 = vld [vmem:[%s7161 + $0x10] sm:$0xff]
    %v7165 = vld [vmem:[%s7161 + $0x18] sm:$0xff]
    %v7166 = vld [vmem:[%s7161 + $0x20] sm:$0xff]
    %v7167 = vld [vmem:[%s7161 + $0x28] sm:$0xff]
    %v7168 = vld [vmem:[%s7161 + $0x30] sm:$0xff]
    %v7169 = vld [vmem:[%s7161 + $0x38] sm:$0xff]
    %v7170 = vld [vmem:[%s7161 + $0x40] sm:$0xff]
    %v7171 = vld [vmem:[%s7161 + $0x48] sm:$0xff]
    %v7172 = vld [vmem:[%s7161 + $0x50] sm:$0xff]
    %v7173 = vld [vmem:[%s7161 + $0x58] sm:$0xff]
    %v7174 = vld [vmem:[%s7161 + $0x60] sm:$0xff]
    %v7175 = vld [vmem:[%s7161 + $0x68] sm:$0xff]
    %v7176 = vld [vmem:[%s7161 + $0x70] sm:$0xff]
    %v7177 = vld [vmem:[%s7161 + $0x78] sm:$0xff]
    %v7178 = vld [vmem:[%s7161 + $0x80] sm:$0xff]
    %v7179 = vld [vmem:[%s7161 + $0x88] sm:$0xff]
    %v7180 = vld [vmem:[%s7161 + $0x90] sm:$0xff]
    %v7181 = vld [vmem:[%s7161 + $0x98] sm:$0xff]
    %v7182 = vld [vmem:[%s7161 + $0xa0] sm:$0xff]
    %v7183 = vld [vmem:[%s7161 + $0xa8] sm:$0xff]
    %v7184 = vld [vmem:[%s7161 + $0xb0] sm:$0xff]
    %v7185 = vld [vmem:[%s7161 + $0xb8] sm:$0xff]
    %v7186 = vld [vmem:[%s7161 + $0xc0] sm:$0xff]
    %v7187 = vld [vmem:[%s7161 + $0xc8] sm:$0xff]
    %v7188 = vld [vmem:[%s7161 + $0xd0] sm:$0xff]
    %v7189 = vld [vmem:[%s7161 + $0xd8] sm:$0xff]
    %v7190 = vld [vmem:[%s7161 + $0xe0] sm:$0xff]
    %v7191 = vld [vmem:[%s7161 + $0xe8] sm:$0xff]
    %v7192 = vld [vmem:[%s7161 + $0xf0] sm:$0xff]
    %v7193 = vld [vmem:[%s7161 + $0xf8] sm:$0xff]
    %v7194 = vunpack.c.l.b16 %v7156
    %v7195 = vunpack.c.h.b16 %v7156
    %v7196 = vunpack.c.l.b16 %v7160
    %v7197 = vunpack.c.h.b16 %v7160
    %v7198 = vpack.c.b16 %v7194, %v6839
    %v7199 = vpack.c.b16 %v7195, %v6840
    %v7200 = vpack.c.b16 %v7196, %v6841
    %v7201 = vpack.c.b16 %v7197, %v6842
    %v7238 = vunpack.c.l.b16 %v7162
    %v7239 = vunpack.c.h.b16 %v7162
    %v7240 = vunpack.c.l.b16 %v7163
    %v7241 = vunpack.c.h.b16 %v7163
    %v7242 = vunpack.c.l.b16 %v7164
    %v7243 = vunpack.c.h.b16 %v7164
    %v7244 = vunpack.c.l.b16 %v7165
    %v7245 = vunpack.c.h.b16 %v7165
    %v7246 = vunpack.c.l.b16 %v7166
    %v7247 = vunpack.c.h.b16 %v7166
    %v7248 = vunpack.c.l.b16 %v7167
    %v7249 = vunpack.c.h.b16 %v7167
    %v7250 = vunpack.c.l.b16 %v7168
    %v7251 = vunpack.c.h.b16 %v7168
    %v7252 = vunpack.c.l.b16 %v7169
    %v7253 = vunpack.c.h.b16 %v7169
    %v7254 = vunpack.c.l.b16 %v7170
    %v7255 = vunpack.c.h.b16 %v7170
    %v7256 = vunpack.c.l.b16 %v7171
    %v7257 = vunpack.c.h.b16 %v7171
    %v7258 = vunpack.c.l.b16 %v7172
    %v7259 = vunpack.c.h.b16 %v7172
    %v7260 = vunpack.c.l.b16 %v7173
    %v7261 = vunpack.c.h.b16 %v7173
    %v7262 = vunpack.c.l.b16 %v7174
    %v7263 = vunpack.c.h.b16 %v7174
    %v7264 = vunpack.c.l.b16 %v7175
    %v7265 = vunpack.c.h.b16 %v7175
    %v7266 = vunpack.c.l.b16 %v7176
    %v7267 = vunpack.c.h.b16 %v7176
    %v7268 = vunpack.c.l.b16 %v7177
    %v7269 = vunpack.c.h.b16 %v7177
    %v7270 = vunpack.c.l.b16 %v7178
    %v7271 = vunpack.c.h.b16 %v7178
    %v7272 = vunpack.c.l.b16 %v7179
    %v7273 = vunpack.c.h.b16 %v7179
    %v7274 = vunpack.c.l.b16 %v7180
    %v7275 = vunpack.c.h.b16 %v7180
    %v7276 = vunpack.c.l.b16 %v7181
    %v7277 = vunpack.c.h.b16 %v7181
    %v7278 = vunpack.c.l.b16 %v7182
    %v7279 = vunpack.c.h.b16 %v7182
    %v7280 = vunpack.c.l.b16 %v7183
    %v7281 = vunpack.c.h.b16 %v7183
    %v7282 = vunpack.c.l.b16 %v7184
    %v7283 = vunpack.c.h.b16 %v7184
    %v7284 = vunpack.c.l.b16 %v7185
    %v7285 = vunpack.c.h.b16 %v7185
    %v7286 = vunpack.c.l.b16 %v7186
    %v7287 = vunpack.c.h.b16 %v7186
    %v7288 = vunpack.c.l.b16 %v7187
    %v7289 = vunpack.c.h.b16 %v7187
    %v7290 = vunpack.c.l.b16 %v7188
    %v7291 = vunpack.c.h.b16 %v7188
    %v7292 = vunpack.c.l.b16 %v7189
    %v7293 = vunpack.c.h.b16 %v7189
    %v7294 = vunpack.c.l.b16 %v7190
    %v7295 = vunpack.c.h.b16 %v7190
    %v7296 = vunpack.c.l.b16 %v7191
    %v7297 = vunpack.c.h.b16 %v7191
    %v7298 = vunpack.c.l.b16 %v7192
    %v7299 = vunpack.c.h.b16 %v7192
    %v7300 = vunpack.c.l.b16 %v7193
    %v7301 = vunpack.c.h.b16 %v7193
    %v7302 = vpack.c.b16 %v7240, %v7238
    %v7303 = vpack.c.b16 %v7241, %v7239
    %v7304 = vpack.c.b16 %v7244, %v7242
    %v7305 = vpack.c.b16 %v7245, %v7243
    %v7306 = vpack.c.b16 %v7248, %v7246
    %v7307 = vpack.c.b16 %v7249, %v7247
    %v7308 = vpack.c.b16 %v7252, %v7250
    %v7309 = vpack.c.b16 %v7253, %v7251
    %v7310 = vpack.c.b16 %v7256, %v7254
    %v7311 = vpack.c.b16 %v7257, %v7255
    %v7312 = vpack.c.b16 %v7260, %v7258
    %v7313 = vpack.c.b16 %v7261, %v7259
    %v7314 = vpack.c.b16 %v7264, %v7262
    %v7315 = vpack.c.b16 %v7265, %v7263
    %v7316 = vpack.c.b16 %v7268, %v7266
    %v7317 = vpack.c.b16 %v7269, %v7267
    %v7318 = vpack.c.b16 %v7272, %v7270
    %v7319 = vpack.c.b16 %v7273, %v7271
    %v7320 = vpack.c.b16 %v7276, %v7274
    %v7321 = vpack.c.b16 %v7277, %v7275
    %v7322 = vpack.c.b16 %v7280, %v7278
    %v7323 = vpack.c.b16 %v7281, %v7279
    %v7324 = vpack.c.b16 %v7284, %v7282
    %v7325 = vpack.c.b16 %v7285, %v7283
    %v7326 = vpack.c.b16 %v7288, %v7286
    %v7327 = vpack.c.b16 %v7289, %v7287
    %v7328 = vpack.c.b16 %v7292, %v7290
    %v7329 = vpack.c.b16 %v7293, %v7291
    %v7330 = vpack.c.b16 %v7296, %v7294
    %v7331 = vpack.c.b16 %v7297, %v7295
    %v7332 = vpack.c.b16 %v7300, %v7298
    %v7333 = vpack.c.b16 %v7301, %v7299
    %7366 = vmatpush.bf16.msra.mxu0 %v7316
    %7367 = vmatpush.bf16.msra.mxu0 %v7314
    %7368 = vmatpush.bf16.msra.mxu0 %v7312
    %7369 = vmatpush.bf16.msra.mxu0 %v7310
    %7370 = vmatpush.bf16.msra.mxu0 %v7308
    %7371 = vmatpush.bf16.msra.mxu0 %v7306
    %7372 = vmatpush.bf16.msra.mxu0 %v7304
    %7373 = vmatpush.bf16.msra.mxu0 %v7302
    %7374 = vmatmul.bf16.gmra.mxu0 %v6490
    %v7375 = vpop.f32.mrf.mxu0
    %v7376 = vadd.f32 0.0, %v7375
    %v7377 = vpop.f32.mrf.mxu0
    %v7378 = vadd.f32 0.0, %v7377
    %7379 = vmatmul.bf16.gmra.mxu0 %v7198
    %v7380 = vpop.f32.mrf.mxu0
    %v7381 = vadd.f32 0.0, %v7380
    %v7382 = vpop.f32.mrf.mxu0
    %v7383 = vadd.f32 0.0, %v7382
    %7384 = vmatmul.bf16.gmra.mxu0 %v6494
    %v7385 = vpop.f32.mrf.mxu0
    %v7386 = vadd.f32 0.0, %v7385
    %v7387 = vpop.f32.mrf.mxu0
    %v7388 = vadd.f32 0.0, %v7387
    %7389 = vmatmul.bf16.gmra.mxu0 %v7200
    %v7390 = vpop.f32.mrf.mxu0
    %v7391 = vadd.f32 0.0, %v7390
    %v7392 = vpop.f32.mrf.mxu0
    %v7393 = vadd.f32 0.0, %v7392
    %7394 = vdwg.mxu0
    %7395 = vmatpush.bf16.msra.mxu0 %v7332
    %7396 = vmatpush.bf16.msra.mxu0 %v7330
    %7397 = vmatpush.bf16.msra.mxu0 %v7328
    %7398 = vmatpush.bf16.msra.mxu0 %v7326
    %7399 = vmatpush.bf16.msra.mxu0 %v7324
    %7400 = vmatpush.bf16.msra.mxu0 %v7322
    %7401 = vmatpush.bf16.msra.mxu0 %v7320
    %7402 = vmatpush.bf16.msra.mxu0 %v7318
    %7403 = vmatmul.bf16.gmra.mxu0 %v6491
    %v7404 = vpop.f32.mrf.mxu0
    %v7405 = vadd.f32 %v7376, %v7404
    %v7406 = vpop.f32.mrf.mxu0
    %v7407 = vadd.f32 %v7378, %v7406
    %7408 = vmatmul.bf16.gmra.mxu0 %v7199
    %v7409 = vpop.f32.mrf.mxu0
    %v7410 = vadd.f32 %v7381, %v7409
    %v7411 = vpop.f32.mrf.mxu0
    %v7412 = vadd.f32 %v7383, %v7411
    %7413 = vmatmul.bf16.gmra.mxu0 %v6495
    %v7414 = vpop.f32.mrf.mxu0
    %v7415 = vadd.f32 %v7386, %v7414
    %v7416 = vpop.f32.mrf.mxu0
    %v7417 = vadd.f32 %v7388, %v7416
    %7418 = vmatmul.bf16.gmra.mxu0 %v7201
    %v7419 = vpop.f32.mrf.mxu0
    %v7420 = vadd.f32 %v7391, %v7419
    %v7421 = vpop.f32.mrf.mxu0
    %v7422 = vadd.f32 %v7393, %v7421
    %7423 = vdwg.mxu0
    %7424 = vmatpush.bf16.msra.mxu0 %v7317
    %7425 = vmatpush.bf16.msra.mxu0 %v7315
    %7426 = vmatpush.bf16.msra.mxu0 %v7313
    %7427 = vmatpush.bf16.msra.mxu0 %v7311
    %7428 = vmatpush.bf16.msra.mxu0 %v7309
    %7429 = vmatpush.bf16.msra.mxu0 %v7307
    %7430 = vmatpush.bf16.msra.mxu0 %v7305
    %7431 = vmatpush.bf16.msra.mxu0 %v7303
    %7432 = vmatmul.bf16.gmra.mxu0 %v6490
    %v7433 = vpop.f32.mrf.mxu0
    %v7434 = vadd.f32 0.0, %v7433
    %v7435 = vpop.f32.mrf.mxu0
    %v7436 = vadd.f32 0.0, %v7435
    %7437 = vmatmul.bf16.gmra.mxu0 %v7198
    %v7438 = vpop.f32.mrf.mxu0
    %v7439 = vadd.f32 0.0, %v7438
    %v7440 = vpop.f32.mrf.mxu0
    %v7441 = vadd.f32 0.0, %v7440
    %7442 = vmatmul.bf16.gmra.mxu0 %v6494
    %v7443 = vpop.f32.mrf.mxu0
    %v7444 = vadd.f32 0.0, %v7443
    %v7445 = vpop.f32.mrf.mxu0
    %v7446 = vadd.f32 0.0, %v7445
    %7447 = vmatmul.bf16.gmra.mxu0 %v7200
    %v7448 = vpop.f32.mrf.mxu0
    %v7449 = vadd.f32 0.0, %v7448
    %v7450 = vpop.f32.mrf.mxu0
    %v7451 = vadd.f32 0.0, %v7450
    %7452 = vdwg.mxu0
    %7453 = vmatpush.bf16.msra.mxu0 %v7333
    %7454 = vmatpush.bf16.msra.mxu0 %v7331
    %7455 = vmatpush.bf16.msra.mxu0 %v7329
    %7456 = vmatpush.bf16.msra.mxu0 %v7327
    %7457 = vmatpush.bf16.msra.mxu0 %v7325
    %7458 = vmatpush.bf16.msra.mxu0 %v7323
    %7459 = vmatpush.bf16.msra.mxu0 %v7321
    %7460 = vmatpush.bf16.msra.mxu0 %v7319
    %7461 = vmatmul.bf16.gmra.mxu0 %v6491
    %v7462 = vpop.f32.mrf.mxu0
    %v7463 = vadd.f32 %v7434, %v7462
    %v7464 = vpop.f32.mrf.mxu0
    %v7465 = vadd.f32 %v7436, %v7464
    %7466 = vmatmul.bf16.gmra.mxu0 %v7199
    %v7467 = vpop.f32.mrf.mxu0
    %v7468 = vadd.f32 %v7439, %v7467
    %v7469 = vpop.f32.mrf.mxu0
    %v7470 = vadd.f32 %v7441, %v7469
    %7471 = vmatmul.bf16.gmra.mxu0 %v6495
    %v7472 = vpop.f32.mrf.mxu0
    %v7473 = vadd.f32 %v7444, %v7472
    %v7474 = vpop.f32.mrf.mxu0
    %v7475 = vadd.f32 %v7446, %v7474
    %7476 = vmatmul.bf16.gmra.mxu0 %v7201
    %v7477 = vpop.f32.mrf.mxu0
    %v7478 = vadd.f32 %v7449, %v7477
    %v7479 = vpop.f32.mrf.mxu0
    %v7480 = vadd.f32 %v7451, %v7479
    %7481 = vdwg.mxu0
    %v7482 = vadd.f32 %v7135, %v7405
    %v7483 = vadd.f32 %v7136, %v7463
    %v7484 = vadd.f32 %v7137, %v7407
    %v7485 = vadd.f32 %v7138, %v7465
    %v7486 = vadd.f32 %v7139, %v7410
    %v7487 = vadd.f32 %v7140, %v7468
    %v7488 = vadd.f32 %v7141, %v7412
    %v7489 = vadd.f32 %v7142, %v7470
    %v7490 = vadd.f32 %v7143, %v7415
    %v7491 = vadd.f32 %v7144, %v7473
    %v7492 = vadd.f32 %v7145, %v7417
    %v7493 = vadd.f32 %v7146, %v7475
    %v7494 = vadd.f32 %v7147, %v7420
    %v7495 = vadd.f32 %v7148, %v7478
    %v7496 = vadd.f32 %v7149, %v7422
    %v7497 = vadd.f32 %v7150, %v7480
    %v7498 = vadd.f32 %v7482, %v7484
    %v7499 = vadd.f32 %v7498, %v7486
    %v7500 = vadd.f32 %v7499, %v7488
    %v7501 = vrot.slane %v7500, 4
    %v7502 = vadd.f32 %v7500, %v7501
    %v7503 = vrot.slane %v7502, 2
    %v7504 = vadd.f32 %v7502, %v7503
    %v7505 = vrot.slane %v7504, 1
    %v7506 = vadd.f32 %v7504, %v7505
    %v7507 = vadd.f32 %v7483, %v7485
    %v7508 = vadd.f32 %v7507, %v7487
    %v7509 = vadd.f32 %v7508, %v7489
    %v7510 = vrot.slane %v7509, 4
    %v7511 = vadd.f32 %v7509, %v7510
    %v7512 = vrot.slane %v7511, 2
    %v7513 = vadd.f32 %v7511, %v7512
    %v7514 = vrot.slane %v7513, 1
    %v7515 = vadd.f32 %v7513, %v7514
    %v7516 = vadd.f32 %v7490, %v7492
    %v7517 = vadd.f32 %v7516, %v7494
    %v7518 = vadd.f32 %v7517, %v7496
    %v7519 = vrot.slane %v7518, 4
    %v7520 = vadd.f32 %v7518, %v7519
    %v7521 = vrot.slane %v7520, 2
    %v7522 = vadd.f32 %v7520, %v7521
    %v7523 = vrot.slane %v7522, 1
    %v7524 = vadd.f32 %v7522, %v7523
    %v7525 = vadd.f32 %v7491, %v7493
    %v7526 = vadd.f32 %v7525, %v7495
    %v7527 = vadd.f32 %v7526, %v7497
    %v7528 = vrot.slane %v7527, 4
    %v7529 = vadd.f32 %v7527, %v7528
    %v7530 = vrot.slane %v7529, 2
    %v7531 = vadd.f32 %v7529, %v7530
    %v7532 = vrot.slane %v7531, 1
    %v7533 = vadd.f32 %v7531, %v7532
    %v7538 = vsel %vm3510, %v7524, %v7506
    %v7539 = vsel %vm3510, %v7533, %v7515
    %7542 = vrot.lane.b32.xlu0 %v7538, 32
    %v7543 = vpop.permute.xlu0 %7542
    %7544 = vrot.lane.b32.xlu0 %v7539, 32
    %v7545 = vpop.permute.xlu0 %7544
    %v7546 = vsel %vm3521, %v7543, %v7545
    %v7547 = vsel %vm3521, %v7545, %v7543
    %v7550 = vrot.slane %v7547, 1
    %v7551 = vrot.slane %v7546, 1
    %v7556 = vadd.f32 %v7506, %v7547
    %v7557 = vadd.f32 %v7515, %v7546
    %v7558 = vadd.f32 %v7524, %v7550
    %v7559 = vadd.f32 %v7533, %v7551
    %v7564 = vrot.slane %v7558, 7
    %v7565 = vsel %vm3510, %v7564, %v7556
    %v7566 = vrot.slane %v7559, 7
    %v7567 = vsel %vm3510, %v7566, %v7557
    %7570 = vrot.lane.b32.xlu0 %v7565, 64
    %v7571 = vpop.permute.xlu0 %7570
    %7572 = vrot.lane.b32.xlu0 %v7567, 64
    %v7573 = vpop.permute.xlu0 %7572
    %v7574 = vsel %vm3550, %v7571, %v7573
    %v7575 = vsel %vm3550, %v7573, %v7571
    %v7578 = vrot.slane %v7575, 1
    %v7579 = vrot.slane %v7574, 1
    %v7584 = vadd.f32 %v7556, %v7575
    %v7585 = vadd.f32 %v7557, %v7574
    %v7586 = vadd.f32 %v7558, %v7578
    %v7587 = vadd.f32 %v7559, %v7579
    %v7592 = vrot.slane %v7586, 7
    %v7593 = vsel %vm3510, %v7592, %v7584
    %v7594 = vrot.slane %v7587, 7
    %v7595 = vsel %vm3510, %v7594, %v7585
    %v7596 = vrot.slane %v7595, 1
    %v7597 = vrot.slane %v7593, 1
    %v7602 = vadd.f32 %v7584, %v7595
    %v7603 = vadd.f32 %v7585, %v7593
    %v7604 = vadd.f32 %v7586, %v7596
    %v7605 = vadd.f32 %v7587, %v7597
    %v7610 = vrot.slane %v7604, 7
    %v7611 = vsel %vm3510, %v7610, %v7602
    %v7612 = vrot.slane %v7605, 7
    %v7613 = vsel %vm3510, %v7612, %v7603
    %7616 = vrot.lane.b32.xlu0 %v7611, 127
    %v7617 = vpop.permute.xlu0 %7616
    %7618 = vrot.lane.b32.xlu0 %v7613, 127
    %v7619 = vpop.permute.xlu0 %7618
    %v7620 = vsel %vm3597, %v7617, %v7619
    %v7621 = vsel %vm3597, %v7619, %v7617
    %v7624 = vrot.slane %v7620, 1
    %v7625 = vrot.slane %v7621, 1
    %v7630 = vadd.f32 %v7602, %v7620
    %v7631 = vadd.f32 %v7603, %v7621
    %v7632 = vadd.f32 %v7604, %v7624
    %v7633 = vadd.f32 %v7605, %v7625
    %v7638 = vrot.slane %v7632, 7
    %v7639 = vsel %vm3510, %v7638, %v7630
    %v7640 = vrot.slane %v7633, 7
    %v7641 = vsel %vm3510, %v7640, %v7631
    %7644 = vrot.lane.b32.xlu0 %v7639, 1
    %v7645 = vpop.permute.xlu0 %7644
    %7646 = vrot.lane.b32.xlu0 %v7641, 1
    %v7647 = vpop.permute.xlu0 %7646
    %v7648 = vsel %vm3653, %v7645, %v7647
    %v7649 = vsel %vm3653, %v7647, %v7645
    %v7650 = vsel %vm3637, %v7639, %v7649
    %v7651 = vsel %vm3638, %v7641, %v7648
    %v7652 = vmul.f32 %v7650, 0.001953125
    %v7653 = vmul.f32 %v7651, 0.001953125
    %v7656 = vrot.slane %v7653, 7
    %v7657 = vsel %vm3663, %v7652, %v7656
    %v7658 = vsel %vm3510, %v7652, %v7656
    %v7659 = vrot.slane %v7658, 1
    %v7660 = vperm.slane %v7657, 0
    %v7661 = vperm.slane %v7657, 1
    %v7662 = vperm.slane %v7659, 0
    %v7663 = vperm.slane %v7659, 1
    %v7668 = vsub.f32 %v7482, %v7660
    %v7669 = vsub.f32 %v7483, %v7661
    %v7670 = vsub.f32 %v7484, %v7660
    %v7671 = vsub.f32 %v7485, %v7661
    %v7672 = vsub.f32 %v7486, %v7660
    %v7673 = vsub.f32 %v7487, %v7661
    %v7674 = vsub.f32 %v7488, %v7660
    %v7675 = vsub.f32 %v7489, %v7661
    %v7676 = vsub.f32 %v7490, %v7662
    %v7677 = vsub.f32 %v7491, %v7663
    %v7678 = vsub.f32 %v7492, %v7662
    %v7679 = vsub.f32 %v7493, %v7663
    %v7680 = vsub.f32 %v7494, %v7662
    %v7681 = vsub.f32 %v7495, %v7663
    %v7682 = vsub.f32 %v7496, %v7662
    %v7683 = vsub.f32 %v7497, %v7663
    %v7684 = vmul.f32 %v7668, %v7668
    %v7685 = vmul.f32 %v7669, %v7669
    %v7686 = vmul.f32 %v7670, %v7670
    %v7687 = vmul.f32 %v7671, %v7671
    %v7688 = vmul.f32 %v7672, %v7672
    %v7689 = vmul.f32 %v7673, %v7673
    %v7690 = vmul.f32 %v7674, %v7674
    %v7691 = vmul.f32 %v7675, %v7675
    %v7692 = vmul.f32 %v7676, %v7676
    %v7693 = vmul.f32 %v7677, %v7677
    %v7694 = vmul.f32 %v7678, %v7678
    %v7695 = vmul.f32 %v7679, %v7679
    %v7696 = vmul.f32 %v7680, %v7680
    %v7697 = vmul.f32 %v7681, %v7681
    %v7698 = vmul.f32 %v7682, %v7682
    %v7699 = vmul.f32 %v7683, %v7683
    %v7700 = vadd.f32 %v7684, %v7686
    %v7701 = vadd.f32 %v7700, %v7688
    %v7702 = vadd.f32 %v7701, %v7690
    %v7703 = vrot.slane %v7702, 4
    %v7704 = vadd.f32 %v7702, %v7703
    %v7705 = vrot.slane %v7704, 2
    %v7706 = vadd.f32 %v7704, %v7705
    %v7707 = vrot.slane %v7706, 1
    %v7708 = vadd.f32 %v7706, %v7707
    %v7709 = vadd.f32 %v7685, %v7687
    %v7710 = vadd.f32 %v7709, %v7689
    %v7711 = vadd.f32 %v7710, %v7691
    %v7712 = vrot.slane %v7711, 4
    %v7713 = vadd.f32 %v7711, %v7712
    %v7714 = vrot.slane %v7713, 2
    %v7715 = vadd.f32 %v7713, %v7714
    %v7716 = vrot.slane %v7715, 1
    %v7717 = vadd.f32 %v7715, %v7716
    %v7718 = vadd.f32 %v7692, %v7694
    %v7719 = vadd.f32 %v7718, %v7696
    %v7720 = vadd.f32 %v7719, %v7698
    %v7721 = vrot.slane %v7720, 4
    %v7722 = vadd.f32 %v7720, %v7721
    %v7723 = vrot.slane %v7722, 2
    %v7724 = vadd.f32 %v7722, %v7723
    %v7725 = vrot.slane %v7724, 1
    %v7726 = vadd.f32 %v7724, %v7725
    %v7727 = vadd.f32 %v7693, %v7695
    %v7728 = vadd.f32 %v7727, %v7697
    %v7729 = vadd.f32 %v7728, %v7699
    %v7730 = vrot.slane %v7729, 4
    %v7731 = vadd.f32 %v7729, %v7730
    %v7732 = vrot.slane %v7731, 2
    %v7733 = vadd.f32 %v7731, %v7732
    %v7734 = vrot.slane %v7733, 1
    %v7735 = vadd.f32 %v7733, %v7734
    %v7740 = vsel %vm3510, %v7726, %v7708
    %v7741 = vsel %vm3510, %v7735, %v7717
    %7744 = vrot.lane.b32.xlu0 %v7740, 32
    %v7745 = vpop.permute.xlu0 %7744
    %7746 = vrot.lane.b32.xlu0 %v7741, 32
    %v7747 = vpop.permute.xlu0 %7746
    %v7748 = vsel %vm3521, %v7745, %v7747
    %v7749 = vsel %vm3521, %v7747, %v7745
    %v7752 = vrot.slane %v7749, 1
    %v7753 = vrot.slane %v7748, 1
    %v7758 = vadd.f32 %v7708, %v7749
    %v7759 = vadd.f32 %v7717, %v7748
    %v7760 = vadd.f32 %v7726, %v7752
    %v7761 = vadd.f32 %v7735, %v7753
    %v7766 = vrot.slane %v7760, 7
    %v7767 = vsel %vm3510, %v7766, %v7758
    %v7768 = vrot.slane %v7761, 7
    %v7769 = vsel %vm3510, %v7768, %v7759
    %7772 = vrot.lane.b32.xlu0 %v7767, 64
    %v7773 = vpop.permute.xlu0 %7772
    %7774 = vrot.lane.b32.xlu0 %v7769, 64
    %v7775 = vpop.permute.xlu0 %7774
    %v7776 = vsel %vm3550, %v7773, %v7775
    %v7777 = vsel %vm3550, %v7775, %v7773
    %v7780 = vrot.slane %v7777, 1
    %v7781 = vrot.slane %v7776, 1
    %v7786 = vadd.f32 %v7758, %v7777
    %v7787 = vadd.f32 %v7759, %v7776
    %v7788 = vadd.f32 %v7760, %v7780
    %v7789 = vadd.f32 %v7761, %v7781
    %v7794 = vrot.slane %v7788, 7
    %v7795 = vsel %vm3510, %v7794, %v7786
    %v7796 = vrot.slane %v7789, 7
    %v7797 = vsel %vm3510, %v7796, %v7787
    %v7798 = vrot.slane %v7797, 1
    %v7799 = vrot.slane %v7795, 1
    %v7804 = vadd.f32 %v7786, %v7797
    %v7805 = vadd.f32 %v7787, %v7795
    %v7806 = vadd.f32 %v7788, %v7798
    %v7807 = vadd.f32 %v7789, %v7799
    %v7812 = vrot.slane %v7806, 7
    %v7813 = vsel %vm3510, %v7812, %v7804
    %v7814 = vrot.slane %v7807, 7
    %v7815 = vsel %vm3510, %v7814, %v7805
    %7818 = vrot.lane.b32.xlu0 %v7813, 127
    %v7819 = vpop.permute.xlu0 %7818
    %7820 = vrot.lane.b32.xlu0 %v7815, 127
    %v7821 = vpop.permute.xlu0 %7820
    %v7822 = vsel %vm3597, %v7819, %v7821
    %v7823 = vsel %vm3597, %v7821, %v7819
    %v7826 = vrot.slane %v7822, 1
    %v7827 = vrot.slane %v7823, 1
    %v7832 = vadd.f32 %v7804, %v7822
    %v7833 = vadd.f32 %v7805, %v7823
    %v7834 = vadd.f32 %v7806, %v7826
    %v7835 = vadd.f32 %v7807, %v7827
    %v7840 = vrot.slane %v7834, 7
    %v7841 = vsel %vm3510, %v7840, %v7832
    %v7842 = vrot.slane %v7835, 7
    %v7843 = vsel %vm3510, %v7842, %v7833
    %7846 = vrot.lane.b32.xlu0 %v7841, 1
    %v7847 = vpop.permute.xlu0 %7846
    %7848 = vrot.lane.b32.xlu0 %v7843, 1
    %v7849 = vpop.permute.xlu0 %7848
    %v7850 = vsel %vm3653, %v7847, %v7849
    %v7851 = vsel %vm3653, %v7849, %v7847
    %v7852 = vsel %vm3637, %v7841, %v7851
    %v7853 = vsel %vm3638, %v7843, %v7850
    %v7854 = vmul.f32 %v7852, 0.001953125
    %v7855 = vmul.f32 %v7853, 0.001953125
    %v7856 = vadd.f32 %v7854, 1e-05
    %v7857 = vadd.f32 %v7855, 1e-05
    %v7858 = vrsqrt.pop %v7856
    %v7859 = vmul.f32 %v7858, %v7856
    %v7860 = vmul.f32 %v7859, %v7858
    %v7861 = vmul.f32 0.5, %v7860
    %v7862 = vsub.f32 1.5, %v7861
    %v7863 = vmul.f32 %v7858, %v7862
    %vm7864 = vweird.f32 %v7856
    %vm7865 = vweird.f32 %v7858
    %vm7866 = vmor %vm7864, %vm7865
    %v7867 = vsel %vm7866, %v7858, %v7863
    %v7868 = vrsqrt.pop %v7857
    %v7869 = vmul.f32 %v7868, %v7857
    %v7870 = vmul.f32 %v7869, %v7868
    %v7871 = vmul.f32 0.5, %v7870
    %v7872 = vsub.f32 1.5, %v7871
    %v7873 = vmul.f32 %v7868, %v7872
    %vm7874 = vweird.f32 %v7857
    %vm7875 = vweird.f32 %v7868
    %vm7876 = vmor %vm7874, %vm7875
    %v7877 = vsel %vm7876, %v7868, %v7873
    %v7880 = vrot.slane %v7877, 7
    %v7881 = vsel %vm3663, %v7867, %v7880
    %v7882 = vsel %vm3510, %v7867, %v7880
    %v7883 = vrot.slane %v7882, 1
    %v7884 = vperm.slane %v7881, 0
    %v7885 = vperm.slane %v7881, 1
    %v7886 = vperm.slane %v7883, 0
    %v7887 = vperm.slane %v7883, 1
    %v7892 = vmul.f32 %v7668, %v7884
    %v7893 = vmul.f32 %v7669, %v7885
    %v7894 = vmul.f32 %v7670, %v7884
    %v7895 = vmul.f32 %v7671, %v7885
    %v7896 = vmul.f32 %v7672, %v7884
    %v7897 = vmul.f32 %v7673, %v7885
    %v7898 = vmul.f32 %v7674, %v7884
    %v7899 = vmul.f32 %v7675, %v7885
    %v7900 = vmul.f32 %v7676, %v7886
    %v7901 = vmul.f32 %v7677, %v7887
    %v7902 = vmul.f32 %v7678, %v7886
    %v7903 = vmul.f32 %v7679, %v7887
    %v7904 = vmul.f32 %v7680, %v7886
    %v7905 = vmul.f32 %v7681, %v7887
    %v7906 = vmul.f32 %v7682, %v7886
    %v7907 = vmul.f32 %v7683, %v7887
    %v7908 = vld [vmem:[#allocation10] sm:$0x3]
    %v7910 = vperm.slane %v7908, 0
    %v7911 = vperm.slane %v7908, 1
    %v7914 = vmul.f32 %v7892, %v7910
    %v7915 = vmul.f32 %v7893, %v7911
    %v7916 = vmul.f32 %v7894, %v7910
    %v7917 = vmul.f32 %v7895, %v7911
    %v7918 = vmul.f32 %v7896, %v7910
    %v7919 = vmul.f32 %v7897, %v7911
    %v7920 = vmul.f32 %v7898, %v7910
    %v7921 = vmul.f32 %v7899, %v7911
    %v7922 = vmul.f32 %v7900, %v7910
    %v7923 = vmul.f32 %v7901, %v7911
    %v7924 = vmul.f32 %v7902, %v7910
    %v7925 = vmul.f32 %v7903, %v7911
    %v7926 = vmul.f32 %v7904, %v7910
    %v7927 = vmul.f32 %v7905, %v7911
    %v7928 = vmul.f32 %v7906, %v7910
    %v7929 = vmul.f32 %v7907, %v7911
    %v7930 = vld [vmem:[#allocation11] sm:$0x3]
    %v7932 = vperm.slane %v7930, 0
    %v7933 = vperm.slane %v7930, 1
    %v7936 = vadd.f32 %v7914, %v7932
    %v7937 = vadd.f32 %v7915, %v7933
    %v7938 = vadd.f32 %v7916, %v7932
    %v7939 = vadd.f32 %v7917, %v7933
    %v7940 = vadd.f32 %v7918, %v7932
    %v7941 = vadd.f32 %v7919, %v7933
    %v7942 = vadd.f32 %v7920, %v7932
    %v7943 = vadd.f32 %v7921, %v7933
    %v7944 = vadd.f32 %v7922, %v7932
    %v7945 = vadd.f32 %v7923, %v7933
    %v7946 = vadd.f32 %v7924, %v7932
    %v7947 = vadd.f32 %v7925, %v7933
    %v7948 = vadd.f32 %v7926, %v7932
    %v7949 = vadd.f32 %v7927, %v7933
    %v7950 = vadd.f32 %v7928, %v7932
    %v7951 = vadd.f32 %v7929, %v7933
    %v7952 = vld [vmem:[%s1] sm:$0xff]
    %v7953 = vld [vmem:[%s1 + $0x8] sm:$0xff]
    %v7954 = vld [vmem:[%s1 + $0x10] sm:$0xff]
    %v7955 = vld [vmem:[%s1 + $0x18] sm:$0xff]
    %v7956 = vld [vmem:[%s1 + $0x20] sm:$0xff]
    %v7957 = vld [vmem:[%s1 + $0x28] sm:$0xff]
    %v7958 = vld [vmem:[%s1 + $0x30] sm:$0xff]
    %v7959 = vld [vmem:[%s1 + $0x38] sm:$0xff]
    %v7960 = vld [vmem:[%s1 + $0x40] sm:$0xff]
    %v7961 = vld [vmem:[%s1 + $0x48] sm:$0xff]
    %v7962 = vld [vmem:[%s1 + $0x50] sm:$0xff]
    %v7963 = vld [vmem:[%s1 + $0x58] sm:$0xff]
    %v7964 = vld [vmem:[%s1 + $0x60] sm:$0xff]
    %v7965 = vld [vmem:[%s1 + $0x68] sm:$0xff]
    %v7966 = vld [vmem:[%s1 + $0x70] sm:$0xff]
    %v7967 = vld [vmem:[%s1 + $0x78] sm:$0xff]
    %v7968 = vadd.f32 %v7936, %v7952
    %v7969 = vadd.f32 %v7937, %v7953
    %v7970 = vadd.f32 %v7938, %v7954
    %v7971 = vadd.f32 %v7939, %v7955
    %v7972 = vadd.f32 %v7940, %v7956
    %v7973 = vadd.f32 %v7941, %v7957
    %v7974 = vadd.f32 %v7942, %v7958
    %v7975 = vadd.f32 %v7943, %v7959
    %v7976 = vadd.f32 %v7944, %v7960
    %v7977 = vadd.f32 %v7945, %v7961
    %v7978 = vadd.f32 %v7946, %v7962
    %v7979 = vadd.f32 %v7947, %v7963
    %v7980 = vadd.f32 %v7948, %v7964
    %v7981 = vadd.f32 %v7949, %v7965
    %v7982 = vadd.f32 %v7950, %v7966
    %v7983 = vadd.f32 %v7951, %v7967
    %v7984 = vmax.f32 %v7968, 0.0
    %v7985 = vmax.f32 %v7969, 0.0
    %v7986 = vmax.f32 %v7970, 0.0
    %v7987 = vmax.f32 %v7971, 0.0
    %v7988 = vmax.f32 %v7972, 0.0
    %v7989 = vmax.f32 %v7973, 0.0
    %v7990 = vmax.f32 %v7974, 0.0
    %v7991 = vmax.f32 %v7975, 0.0
    %v7992 = vmax.f32 %v7976, 0.0
    %v7993 = vmax.f32 %v7977, 0.0
    %v7994 = vmax.f32 %v7978, 0.0
    %v7995 = vmax.f32 %v7979, 0.0
    %v7996 = vmax.f32 %v7980, 0.0
    %v7997 = vmax.f32 %v7981, 0.0
    %v7998 = vmax.f32 %v7982, 0.0
    %v7999 = vmax.f32 %v7983, 0.0
    %8000 = vst [vmem:[%s8] sm:$0xff] %v7984
    %8001 = vst [vmem:[%s8 + $0x8] sm:$0xff] %v7985
    %8002 = vst [vmem:[%s8 + $0x10] sm:$0xff] %v7986
    %8003 = vst [vmem:[%s8 + $0x18] sm:$0xff] %v7987
    %8004 = vst [vmem:[%s8 + $0x20] sm:$0xff] %v7988
    %8005 = vst [vmem:[%s8 + $0x28] sm:$0xff] %v7989
    %8006 = vst [vmem:[%s8 + $0x30] sm:$0xff] %v7990
    %8007 = vst [vmem:[%s8 + $0x38] sm:$0xff] %v7991
    %8008 = vst [vmem:[%s8 + $0x40] sm:$0xff] %v7992
    %8009 = vst [vmem:[%s8 + $0x48] sm:$0xff] %v7993
    %8010 = vst [vmem:[%s8 + $0x50] sm:$0xff] %v7994
    %8011 = vst [vmem:[%s8 + $0x58] sm:$0xff] %v7995
    %8012 = vst [vmem:[%s8 + $0x60] sm:$0xff] %v7996
    %8013 = vst [vmem:[%s8 + $0x68] sm:$0xff] %v7997
    %8014 = vst [vmem:[%s8 + $0x70] sm:$0xff] %v7998
    %8015 = vst [vmem:[%s8 + $0x78] sm:$0xff] %v7999
    // Predicated region
    $region58: #{basic_block_pallas.1} parent=1 // pred_check
      _
    $region59: #{basic_block_pallas.1} parent=1 // pred_check_branch
      %8017 = sbr.rel (0) target = $region61
    $region60: #{basic_block_pallas.1} parent=1 // pred_region
      _
    $region61: #{basic_block_pallas.1} parent=1 // pred_fallthru
      _
    // Predicated region
    $region62: #{basic_block_pallas.1} parent=1 // pred_check
      _
    $region63: #{basic_block_pallas.1} parent=1 // pred_check_branch
      %8019 = sbr.rel (0) target = $region65
    $region64: #{basic_block_pallas.1} parent=1 // pred_region
      _
    $region65: #{basic_block_pallas.1} parent=1 // pred_fallthru
      _
    %8020 = vsyncpa [#allocation4], 1
    %8021 = vsyncpa [#allocation6], 1
    %8022 = vsyncpa [#allocation9], 1
    %8023 = vsyncpa [#allocation12], 1

</llo_original>
